<compile_context>
chip_gen: v7x
topology: tpu7x:2x2x1
jax: 0.10.0
libtpu: 0.0.40
codegen_flags: <defaults>
</compile_context>

<pallas_src>
import jax
import jax.numpy as jnp
from jax.experimental import pallas as pl
from jax.experimental.pallas import tpu as pltpu


# ---------------------------------------------------------------------------
# BN folding: inference BatchNorm scale goes into the conv weights.
# ---------------------------------------------------------------------------
def _fold_bn_into_conv(w, gamma, beta, mean, var, eps, compute_dtype):
    """w: (Cout,Cin,Kh,Kw) f32 (PyTorch layout).
    Returns (w_k, bias): w_k (Kh*Kw, Cin, Cout) in compute_dtype with the BN
    scale folded in; bias (1, Cout) f32."""
    cout, cin, kh, kw = w.shape
    inv_std = 1.0 / jnp.sqrt(var.astype(jnp.float32) + eps)
    scale = gamma.astype(jnp.float32) * inv_std                       # (Cout,)
    bias = beta.astype(jnp.float32) - mean.astype(jnp.float32) * scale
    w_f = w.astype(jnp.float32) * scale[:, None, None, None]          # fold in f32
    w_k = jnp.transpose(w_f, (2, 3, 1, 0)).reshape(kh * kw, cin, cout)
    return w_k.astype(compute_dtype), bias.reshape(1, cout)


# ---------------------------------------------------------------------------
# Fused kernel: 1x1 conv+bias+ReLU -> KxK conv+bias+ReLU (-> 2x2/2 maxpool)
# ---------------------------------------------------------------------------
def _make_fused_kernel(kh, kw, ph, pw, pool):
    def kernel(x_ref, w1_ref, b1_ref, w2_ref, b2_ref, o_ref, ypad_ref, acc_ref):
        # x_ref  : (1, H, W, Cin)        whole input frame for this batch elem
        # w1_ref : (Cin, Mid)            1x1 weights, BN scale folded (bf16)
        # b1_ref : (1, Mid) f32          folded BN bias of the 1x1 layer
        # w2_ref : (Kh*Kw, Mid, Cout)    KxK weights per tap, BN scale folded
        # b2_ref : (1, Cout) f32         folded BN bias of the KxK layer
        # o_ref  : (1, OH, OW, Cout)  or (1, OH/2, OW/2, Cout) if pool
        # ypad_ref: VMEM (Hp, Wp, Mid) bf16   zero-padded 1x1 output
        # acc_ref : VMEM (OH*OW, Cout) f32    tap accumulator
        _, h, w, cin = x_ref.shape
        mid = w1_ref.shape[1]
        cout = b2_ref.shape[1]
        hp, wp = h + 2 * ph, w + 2 * pw
        oh, ow = hp - kh + 1, wp - kw + 1

        # ---- 1x1 conv + bias + ReLU on the resident frame (one MXU matmul) --
        x_flat = x_ref[0].reshape(h * w, cin)
        y1 = jnp.dot(x_flat, w1_ref[...], preferred_element_type=jnp.float32)
        y1 = jnp.maximum(y1 + b1_ref[...], 0.0)
        y1 = y1.astype(ypad_ref.dtype).reshape(h, w, mid)

        # ---- stage the intermediate in a zero-padded VMEM scratch -----------
        # Only the halo ring is zeroed; the interior is overwritten below.
        # Rewritten every grid step, so the batch axis can stay "parallel".
        if ph > 0:
            zrow = jnp.zeros((ph, wp, mid), ypad_ref.dtype)
            ypad_ref[0:ph, :, :] = zrow
            ypad_ref[ph + h:hp, :, :] = zrow
        if pw > 0:
            zcol = jnp.zeros((h, pw, mid), ypad_ref.dtype)
            ypad_ref[ph:ph + h, 0:pw, :] = zcol
            ypad_ref[ph:ph + h, pw + w:wp, :] = zcol
        ypad_ref[ph:ph + h, pw:pw + w, :] = y1

        # ---- KxK conv as tap-wise MXU accumulation (no im2col concat) -------
        for dkh in range(kh):
            for dkw in range(kw):
                tap = dkh * kw + dkw
                patch = ypad_ref[dkh:dkh + oh, dkw:dkw + ow, :].reshape(oh * ow, mid)
                contrib = jnp.dot(patch, w2_ref[tap],
                                  preferred_element_type=jnp.float32)
                if tap == 0:
                    acc_ref[...] = contrib
                else:
                    acc_ref[...] += contrib

        y = jnp.maximum(acc_ref[...] + b2_ref[...], 0.0)
        y = y.reshape(oh, ow, cout)

        if pool:
            # Fused MaxPool2d((2,2), stride (2,2)) — value-level stride-2 max.
            y = jnp.maximum(y[:, 0::2, :], y[:, 1::2, :])
            y = jnp.maximum(y[0::2, :, :], y[1::2, :, :])

        o_ref[0] = y.astype(o_ref.dtype)

    return kernel


def fused_1x1_then_kxk(x, w1, b1, w2, b2, *, kernel_size, padding, pool,
                       compute_dtype=jnp.bfloat16):
    """Fused (1x1 conv+BN+ReLU) -> (KxK conv+BN+ReLU) [-> 2x2/2 maxpool].

    x  : (N, H, W, Cin) NHWC
    w1 : (Cin, Mid)         BN-scale-folded, compute_dtype
    b1 : (1, Mid) f32
    w2 : (Kh*Kw, Mid, Cout) BN-scale-folded, compute_dtype
    b2 : (1, Cout) f32
    """
    n, h, w, cin = x.shape
    mid = w1.shape[1]
    cout = w2.shape[2]
    kh, kw = kernel_size
    assert w2.shape[0] == kh * kw and w2.shape[1] == mid
    ph, pw = (padding, padding) if isinstance(padding, int) else tuple(padding)
    hp, wp = h + 2 * ph, w + 2 * pw
    oh, ow = hp - kh + 1, wp - kw + 1
    assert oh >= 1 and ow >= 1

    if pool:
        # TODO(synk): odd OH/OW (PyTorch MaxPool2d floors) not supported.
        assert oh % 2 == 0 and ow % 2 == 0
        out_shape = jax.ShapeDtypeStruct((n, oh // 2, ow // 2, cout), compute_dtype)
        out_spec = pl.BlockSpec((1, oh // 2, ow // 2, cout), lambda i: (i, 0, 0, 0))
        out_elems = n * (oh // 2) * (ow // 2) * cout
    else:
        out_shape = jax.ShapeDtypeStruct((n, oh, ow, cout), compute_dtype)
        out_spec = pl.BlockSpec((1, oh, ow, cout), lambda i: (i, 0, 0, 0))
        out_elems = n * oh * ow * cout

    # Advisory cost estimate so XLA can schedule around the custom call.
    flops = int(2 * n * h * w * cin * mid + 2 * n * oh * ow * kh * kw * mid * cout)
    bytes_accessed = int(2 * (n * h * w * cin + w1.size + w2.size + out_elems)
                         + 4 * (b1.size + b2.size))

    return pl.pallas_call(
        _make_fused_kernel(kh, kw, ph, pw, pool),
        out_shape=out_shape,
        grid=(n,),
        in_specs=[
            # Whole frame resident per batch element (16x16 easily fits VMEM).
            pl.BlockSpec((1, h, w, cin), lambda i: (i, 0, 0, 0)),
            # Constant operands (same block every step).
            pl.BlockSpec((cin, mid), lambda i: (0, 0)),
            pl.BlockSpec((1, mid), lambda i: (0, 0)),
            pl.BlockSpec((kh * kw, mid, cout), lambda i: (0, 0, 0)),
            pl.BlockSpec((1, cout), lambda i: (0, 0)),
        ],
        out_specs=out_spec,
        scratch_shapes=[
            pltpu.VMEM((hp, wp, mid), compute_dtype),   # padded 1x1 output
            pltpu.VMEM((oh * ow, cout), jnp.float32),   # f32 tap accumulator
        ],
        compiler_params=pltpu.CompilerParams(
            dimension_semantics=("parallel",),
            vmem_limit_bytes=32 * 1024 * 1024),
        cost_estimate=pl.CostEstimate(flops=flops, transcendentals=0,
                                      bytes_accessed=bytes_accessed),
    )(x.astype(compute_dtype), w1, b1, w2, b2)


# ---------------------------------------------------------------------------
# Yolov1_block2 module equivalent
# ---------------------------------------------------------------------------
class Yolov1Block2Pallas:
    def __init__(self, in_channels, out_channels, kernel_size, stride, padding,
                 key, compute_dtype=jnp.bfloat16, eps=1e-5):
        if isinstance(stride, (tuple, list)):
            assert tuple(stride) == (1, 1), "Yolov1_block2 uses stride 1"
        else:
            assert stride == 1, "Yolov1_block2 uses stride 1"
        self.compute_dtype = compute_dtype
        self.eps = eps
        ks = tuple(kernel_size) if isinstance(kernel_size, (tuple, list)) \
            else (kernel_size, kernel_size)
        self.kernel_size = ks
        self.out_channels = out_channels

        layer_defs = [
            (in_channels, 128, (1, 1), 0),      # conv1
            (128, 256, ks, padding),            # conv2
            (256, 256, (1, 1), 0),              # conv3
            (256, out_channels, ks, padding),   # conv4 (+ fused maxpool)
        ]
        self.layers = []
        for idx, (cin, cout, k, pad) in enumerate(layer_defs):
            lkey = jax.random.fold_in(key, idx)
            kw_, kg, kb, km, kv = jax.random.split(lkey, 5)
            self.layers.append(dict(
                w=0.05 * jax.random.normal(kw_, (cout, cin, k[0], k[1]), jnp.float32),
                gamma=1.0 + 0.1 * jax.random.normal(kg, (cout,), jnp.float32),
                beta=0.05 * jax.random.normal(kb, (cout,), jnp.float32),
                mean=0.02 * jax.random.normal(km, (cout,), jnp.float32),
                var=0.5 + jax.random.uniform(kv, (cout,), jnp.float32),
                padding=pad,
            ))

        # Pre-fold inference BN into the conv weights once (wrapper-side).
        folded = [_fold_bn_into_conv(l["w"], l["gamma"], l["beta"], l["mean"],
                                     l["var"], eps, compute_dtype)
                  for l in self.layers]
        # 1x1 layers: drop the tap axis -> (Cin, Cout).
        self.w1, self.b1 = folded[0][0].reshape(in_channels, 128), folded[0][1]
        self.w2, self.b2 = folded[1]
        self.w3, self.b3 = folded[2][0].reshape(256, 256), folded[2][1]
        self.w4, self.b4 = folded[3]

    def __call__(self, x_nchw):
        x = jnp.transpose(x_nchw, (0, 2, 3, 1))                  # NCHW -> NHWC
        # Stage 1: conv1 (1x1) + conv2 (KxK), fused in one kernel.
        y = fused_1x1_then_kxk(x, self.w1, self.b1, self.w2, self.b2,
                               kernel_size=self.kernel_size,
                               padding=self.layers[1]["padding"], pool=False,
                               compute_dtype=self.compute_dtype)
        # Stage 2: conv3 (1x1) + conv4 (KxK) + 2x2/2 maxpool, fused.
        y = fused_1x1_then_kxk(y, self.w3, self.b3, self.w4, self.b4,
                               kernel_size=self.kernel_size,
                               padding=self.layers[3]["padding"], pool=True,
                               compute_dtype=self.compute_dtype)
        return jnp.transpose(y, (0, 3, 1, 2)).astype(jnp.float32)  # NHWC -> NCHW


# Pure-JAX reference mirroring the kernel numerics (bf16 operands, f32 acc).
def _reference(model, x_nchw, eps=1e-5):
    cd = model.compute_dtype
    x = jnp.transpose(x_nchw, (0, 2, 3, 1)).astype(cd)
    n_layers = len(model.layers)
    for idx, lyr in enumerate(model.layers):
        w = jnp.transpose(lyr["w"], (2, 3, 1, 0)).astype(cd)      # HWIO
        pad = lyr["padding"]
        ph, pw = (pad, pad) if isinstance(pad, int) else tuple(pad)
        y = jax.lax.conv_general_dilated(
            x, w, window_strides=(1, 1),
            padding=((ph, ph), (pw, pw)),
            dimension_numbers=("NHWC", "HWIO", "NHWC"),
            preferred_element_type=jnp.float32)
        scale = lyr["gamma"] / jnp.sqrt(lyr["var"] + eps)
        y = y * scale + (lyr["beta"] - lyr["mean"] * scale)
        y = jnp.maximum(y, 0.0)
        if idx == n_layers - 1:
            y = jax.lax.reduce_window(y, -jnp.inf, jax.lax.max,
                                      (1, 2, 2, 1), (1, 2, 2, 1), "VALID")
        x = y.astype(cd)
    return jnp.transpose(x, (0, 3, 1, 2)).astype(jnp.float32)


if __name__ == "__main__":
    key = jax.random.PRNGKey(0)
    kx, kp = jax.random.split(key)

    # Small example consistent with the module: NCHW input (2, 4, 16, 16).
    x = jax.random.normal(kx, (2, 4, 16, 16), jnp.float32)

    model = Yolov1Block2Pallas(in_channels=4, out_channels=64,
                               kernel_size=(3, 3), stride=1, padding=1, key=kp)

    out = jax.block_until_ready(model(x))
    assert out.shape == (2, 64, 8, 8), out.shape

    ref = _reference(model, x)
    max_err = float(jnp.max(jnp.abs(out - ref)))
    # bf16 operands (and BN scale folded into bf16 weights) -> allow a few
    # bf16 ulps of divergence vs. XLA's conv reference.
    assert jnp.allclose(out, ref, atol=2e-2, rtol=2e-2), max_err

    print("KERNEL_OK")
</pallas_src>

<mosaic_0001>
module attributes {stable_mosaic.version = 11 : i64} {
  func.func @kernel(%arg0: i32, %arg1: memref<1x16x16x4xbf16, #tpu.memory_space<vmem>>, %arg2: memref<4x128xbf16, #tpu.memory_space<vmem>>, %arg3: memref<1x128xf32, #tpu.memory_space<vmem>>, %arg4: memref<9x128x256xbf16, #tpu.memory_space<vmem>>, %arg5: memref<1x256xf32, #tpu.memory_space<vmem>>, %arg6: memref<1x16x16x256xbf16, #tpu.memory_space<vmem>>, %arg7: memref<18x18x128xbf16, #tpu.memory_space<vmem>>, %arg8: memref<256x256xf32, #tpu.memory_space<vmem>>) attributes {dimension_semantics = [#tpu.dimension_semantics<parallel>], iteration_bounds = array<i64: 2>, scalar_prefetch = 0 : i64, scratch_operands = 2 : i64, tpu.core_type = #tpu.core_type<tc>, window_params = [{transform_indices = @transform_0, window_bounds = array<i64: 1, 16, 16, 4>}, {pipeline_mode = #tpu.pipeline_mode<synchronous>, transform_indices = @transform_1, window_bounds = array<i64: 4, 128>}, {pipeline_mode = #tpu.pipeline_mode<synchronous>, transform_indices = @transform_2, window_bounds = array<i64: 1, 128>}, {pipeline_mode = #tpu.pipeline_mode<synchronous>, transform_indices = @transform_3, window_bounds = array<i64: 9, 128, 256>}, {pipeline_mode = #tpu.pipeline_mode<synchronous>, transform_indices = @transform_4, window_bounds = array<i64: 1, 256>}, {transform_indices = @transform_5, window_bounds = array<i64: 1, 16, 16, 256>}]} {
    %c0 = arith.constant 0 : index
    %c0_0 = arith.constant 0 : index
    %c0_1 = arith.constant 0 : index
    %c0_2 = arith.constant 0 : index
    %0 = vector.load %arg1[%c0, %c0_0, %c0_1, %c0_2] : memref<1x16x16x4xbf16, #tpu.memory_space<vmem>>, vector<1x16x16x4xbf16>
    %1 = vector.shape_cast %0 : vector<1x16x16x4xbf16> to vector<16x16x4xbf16>
    %2 = vector.shape_cast %1 : vector<16x16x4xbf16> to vector<256x4xbf16>
    %c0_3 = arith.constant 0 : index
    %c0_4 = arith.constant 0 : index
    %3 = vector.load %arg2[%c0_3, %c0_4] : memref<4x128xbf16, #tpu.memory_space<vmem>>, vector<4x128xbf16>
    %cst = arith.constant dense<0.000000e+00> : vector<256x128xf32>
    %4 = tpu.matmul %2, %3, %cst {dimension_numbers = #tpu.dot_dimension_numbers<[1], [0], [0], [1], [0, 0, 1, 1], [], []>} : vector<256x4xbf16>, vector<4x128xbf16>, vector<256x128xf32> -> vector<256x128xf32>
    %c0_5 = arith.constant 0 : index
    %c0_6 = arith.constant 0 : index
    %5 = vector.load %arg3[%c0_5, %c0_6] : memref<1x128xf32, #tpu.memory_space<vmem>>, vector<1x128xf32>
    %6 = vector.broadcast %5 : vector<1x128xf32> to vector<256x128xf32>
    %7 = arith.addf %4, %6 : vector<256x128xf32>
    %cst_7 = arith.constant 0.000000e+00 : f32
    %8 = vector.broadcast %cst_7 : f32 to vector<256x128xf32>
    %9 = arith.maximumf %7, %8 : vector<256x128xf32>
    %10 = arith.truncf %9 : vector<256x128xf32> to vector<256x128xbf16>
    %11 = vector.shape_cast %10 : vector<256x128xbf16> to vector<16x16x128xbf16>
    %cst_8 = arith.constant 0.000000e+00 : bf16
    %12 = vector.broadcast %cst_8 : bf16 to vector<1x18x128xbf16>
    %c0_9 = arith.constant 0 : index
    %c0_10 = arith.constant 0 : index
    %c0_11 = arith.constant 0 : index
    %13 = vector.load %arg7[%c0_9, %c0_10, %c0_11] : memref<18x18x128xbf16, #tpu.memory_space<vmem>>, vector<1x18x128xbf16>
    tpu.vector_store %arg7[%c0_9, %c0_10, %c0_11], %12 {strides = array<i32>} : memref<18x18x128xbf16, #tpu.memory_space<vmem>>, vector<1x18x128xbf16>,
    %c17 = arith.constant 17 : index
    %c0_12 = arith.constant 0 : index
    %c0_13 = arith.constant 0 : index
    %14 = vector.load %arg7[%c17, %c0_12, %c0_13] : memref<18x18x128xbf16, #tpu.memory_space<vmem>>, vector<1x18x128xbf16>
    tpu.vector_store %arg7[%c17, %c0_12, %c0_13], %12 {strides = array<i32>} : memref<18x18x128xbf16, #tpu.memory_space<vmem>>, vector<1x18x128xbf16>,
    %cst_14 = arith.constant 0.000000e+00 : bf16
    %15 = vector.broadcast %cst_14 : bf16 to vector<16x1x128xbf16>
    %c1 = arith.constant 1 : index
    %c0_15 = arith.constant 0 : index
    %c0_16 = arith.constant 0 : index
    %16 = vector.load %arg7[%c1, %c0_15, %c0_16] : memref<18x18x128xbf16, #tpu.memory_space<vmem>>, vector<16x1x128xbf16>
    tpu.vector_store %arg7[%c1, %c0_15, %c0_16], %15 {strides = array<i32>} : memref<18x18x128xbf16, #tpu.memory_space<vmem>>, vector<16x1x128xbf16>,
    %c1_17 = arith.constant 1 : index
    %c17_18 = arith.constant 17 : index
    %c0_19 = arith.constant 0 : index
    %17 = vector.load %arg7[%c1_17, %c17_18, %c0_19] : memref<18x18x128xbf16, #tpu.memory_space<vmem>>, vector<16x1x128xbf16>
    tpu.vector_store %arg7[%c1_17, %c17_18, %c0_19], %15 {strides = array<i32>} : memref<18x18x128xbf16, #tpu.memory_space<vmem>>, vector<16x1x128xbf16>,
    %c1_20 = arith.constant 1 : index
    %c1_21 = arith.constant 1 : index
    %c0_22 = arith.constant 0 : index
    %18 = vector.load %arg7[%c1_20, %c1_21, %c0_22] : memref<18x18x128xbf16, #tpu.memory_space<vmem>>, vector<16x16x128xbf16>
    tpu.vector_store %arg7[%c1_20, %c1_21, %c0_22], %11 {strides = array<i32>} : memref<18x18x128xbf16, #tpu.memory_space<vmem>>, vector<16x16x128xbf16>,
    %c0_23 = arith.constant 0 : index
    %c0_24 = arith.constant 0 : index
    %c0_25 = arith.constant 0 : index
    %19 = vector.load %arg7[%c0_23, %c0_24, %c0_25] : memref<18x18x128xbf16, #tpu.memory_space<vmem>>, vector<16x16x128xbf16>
    %20 = vector.shape_cast %19 : vector<16x16x128xbf16> to vector<256x128xbf16>
    %c0_26 = arith.constant 0 : index
    %c0_27 = arith.constant 0 : index
    %c0_28 = arith.constant 0 : index
    %21 = vector.load %arg4[%c0_26, %c0_27, %c0_28] : memref<9x128x256xbf16, #tpu.memory_space<vmem>>, vector<1x128x256xbf16>
    %22 = vector.shape_cast %21 : vector<1x128x256xbf16> to vector<128x256xbf16>
    %cst_29 = arith.constant dense<0.000000e+00> : vector<256x256xf32>
    %23 = tpu.matmul %20, %22, %cst_29 {dimension_numbers = #tpu.dot_dimension_numbers<[1], [0], [0], [1], [0, 0, 1, 1], [], []>} : vector<256x128xbf16>, vector<128x256xbf16>, vector<256x256xf32> -> vector<256x256xf32>
    %c0_30 = arith.constant 0 : index
    %c0_31 = arith.constant 0 : index
    %24 = vector.load %arg8[%c0_30, %c0_31] : memref<256x256xf32, #tpu.memory_space<vmem>>, vector<256x256xf32>
    tpu.vector_store %arg8[%c0_30, %c0_31], %23 {strides = array<i32>} : memref<256x256xf32, #tpu.memory_space<vmem>>, vector<256x256xf32>,
    %c0_32 = arith.constant 0 : index
    %c1_33 = arith.constant 1 : index
    %c0_34 = arith.constant 0 : index
    %25 = vector.load %arg7[%c0_32, %c1_33, %c0_34] : memref<18x18x128xbf16, #tpu.memory_space<vmem>>, vector<16x16x128xbf16>
    %26 = vector.shape_cast %25 : vector<16x16x128xbf16> to vector<256x128xbf16>
    %c1_35 = arith.constant 1 : index
    %c0_36 = arith.constant 0 : index
    %c0_37 = arith.constant 0 : index
    %27 = vector.load %arg4[%c1_35, %c0_36, %c0_37] : memref<9x128x256xbf16, #tpu.memory_space<vmem>>, vector<1x128x256xbf16>
    %28 = vector.shape_cast %27 : vector<1x128x256xbf16> to vector<128x256xbf16>
    %cst_38 = arith.constant dense<0.000000e+00> : vector<256x256xf32>
    %29 = tpu.matmul %26, %28, %cst_38 {dimension_numbers = #tpu.dot_dimension_numbers<[1], [0], [0], [1], [0, 0, 1, 1], [], []>} : vector<256x128xbf16>, vector<128x256xbf16>, vector<256x256xf32> -> vector<256x256xf32>
    %c0_39 = arith.constant 0 : index
    %c0_40 = arith.constant 0 : index
    %30 = vector.load %arg8[%c0_39, %c0_40] : memref<256x256xf32, #tpu.memory_space<vmem>>, vector<256x256xf32>
    %31 = arith.addf %30, %29 : vector<256x256xf32>
    %c0_41 = arith.constant 0 : index
    %c0_42 = arith.constant 0 : index
    %32 = vector.load %arg8[%c0_41, %c0_42] : memref<256x256xf32, #tpu.memory_space<vmem>>, vector<256x256xf32>
    tpu.vector_store %arg8[%c0_41, %c0_42], %31 {strides = array<i32>} : memref<256x256xf32, #tpu.memory_space<vmem>>, vector<256x256xf32>,
    %c0_43 = arith.constant 0 : index
    %c2 = arith.constant 2 : index
    %c0_44 = arith.constant 0 : index
    %33 = vector.load %arg7[%c0_43, %c2, %c0_44] : memref<18x18x128xbf16, #tpu.memory_space<vmem>>, vector<16x16x128xbf16>
    %34 = vector.shape_cast %33 : vector<16x16x128xbf16> to vector<256x128xbf16>
    %c2_45 = arith.constant 2 : index
    %c0_46 = arith.constant 0 : index
    %c0_47 = arith.constant 0 : index
    %35 = vector.load %arg4[%c2_45, %c0_46, %c0_47] : memref<9x128x256xbf16, #tpu.memory_space<vmem>>, vector<1x128x256xbf16>
    %36 = vector.shape_cast %35 : vector<1x128x256xbf16> to vector<128x256xbf16>
    %cst_48 = arith.constant dense<0.000000e+00> : vector<256x256xf32>
    %37 = tpu.matmul %34, %36, %cst_48 {dimension_numbers = #tpu.dot_dimension_numbers<[1], [0], [0], [1], [0, 0, 1, 1], [], []>} : vector<256x128xbf16>, vector<128x256xbf16>, vector<256x256xf32> -> vector<256x256xf32>
    %c0_49 = arith.constant 0 : index
    %c0_50 = arith.constant 0 : index
    %38 = vector.load %arg8[%c0_49, %c0_50] : memref<256x256xf32, #tpu.memory_space<vmem>>, vector<256x256xf32>
    %39 = arith.addf %38, %37 : vector<256x256xf32>
    %c0_51 = arith.constant 0 : index
    %c0_52 = arith.constant 0 : index
    %40 = vector.load %arg8[%c0_51, %c0_52] : memref<256x256xf32, #tpu.memory_space<vmem>>, vector<256x256xf32>
    tpu.vector_store %arg8[%c0_51, %c0_52], %39 {strides = array<i32>} : memref<256x256xf32, #tpu.memory_space<vmem>>, vector<256x256xf32>,
    %c1_53 = arith.constant 1 : index
    %c0_54 = arith.constant 0 : index
    %c0_55 = arith.constant 0 : index
    %41 = vector.load %arg7[%c1_53, %c0_54, %c0_55] : memref<18x18x128xbf16, #tpu.memory_space<vmem>>, vector<16x16x128xbf16>
    %42 = vector.shape_cast %41 : vector<16x16x128xbf16> to vector<256x128xbf16>
    %c3 = arith.constant 3 : index
    %c0_56 = arith.constant 0 : index
    %c0_57 = arith.constant 0 : index
    %43 = vector.load %arg4[%c3, %c0_56, %c0_57] : memref<9x128x256xbf16, #tpu.memory_space<vmem>>, vector<1x128x256xbf16>
    %44 = vector.shape_cast %43 : vector<1x128x256xbf16> to vector<128x256xbf16>
    %cst_58 = arith.constant dense<0.000000e+00> : vector<256x256xf32>
    %45 = tpu.matmul %42, %44, %cst_58 {dimension_numbers = #tpu.dot_dimension_numbers<[1], [0], [0], [1], [0, 0, 1, 1], [], []>} : vector<256x128xbf16>, vector<128x256xbf16>, vector<256x256xf32> -> vector<256x256xf32>
    %c0_59 = arith.constant 0 : index
    %c0_60 = arith.constant 0 : index
    %46 = vector.load %arg8[%c0_59, %c0_60] : memref<256x256xf32, #tpu.memory_space<vmem>>, vector<256x256xf32>
    %47 = arith.addf %46, %45 : vector<256x256xf32>
    %c0_61 = arith.constant 0 : index
    %c0_62 = arith.constant 0 : index
    %48 = vector.load %arg8[%c0_61, %c0_62] : memref<256x256xf32, #tpu.memory_space<vmem>>, vector<256x256xf32>
    tpu.vector_store %arg8[%c0_61, %c0_62], %47 {strides = array<i32>} : memref<256x256xf32, #tpu.memory_space<vmem>>, vector<256x256xf32>,
    %c1_63 = arith.constant 1 : index
    %c1_64 = arith.constant 1 : index
    %c0_65 = arith.constant 0 : index
    %49 = vector.load %arg7[%c1_63, %c1_64, %c0_65] : memref<18x18x128xbf16, #tpu.memory_space<vmem>>, vector<16x16x128xbf16>
    %50 = vector.shape_cast %49 : vector<16x16x128xbf16> to vector<256x128xbf16>
    %c4 = arith.constant 4 : index
    %c0_66 = arith.constant 0 : index
    %c0_67 = arith.constant 0 : index
    %51 = vector.load %arg4[%c4, %c0_66, %c0_67] : memref<9x128x256xbf16, #tpu.memory_space<vmem>>, vector<1x128x256xbf16>
    %52 = vector.shape_cast %51 : vector<1x128x256xbf16> to vector<128x256xbf16>
    %cst_68 = arith.constant dense<0.000000e+00> : vector<256x256xf32>
    %53 = tpu.matmul %50, %52, %cst_68 {dimension_numbers = #tpu.dot_dimension_numbers<[1], [0], [0], [1], [0, 0, 1, 1], [], []>} : vector<256x128xbf16>, vector<128x256xbf16>, vector<256x256xf32> -> vector<256x256xf32>
    %c0_69 = arith.constant 0 : index
    %c0_70 = arith.constant 0 : index
    %54 = vector.load %arg8[%c0_69, %c0_70] : memref<256x256xf32, #tpu.memory_space<vmem>>, vector<256x256xf32>
    %55 = arith.addf %54, %53 : vector<256x256xf32>
    %c0_71 = arith.constant 0 : index
    %c0_72 = arith.constant 0 : index
    %56 = vector.load %arg8[%c0_71, %c0_72] : memref<256x256xf32, #tpu.memory_space<vmem>>, vector<256x256xf32>
    tpu.vector_store %arg8[%c0_71, %c0_72], %55 {strides = array<i32>} : memref<256x256xf32, #tpu.memory_space<vmem>>, vector<256x256xf32>,
    %c1_73 = arith.constant 1 : index
    %c2_74 = arith.constant 2 : index
    %c0_75 = arith.constant 0 : index
    %57 = vector.load %arg7[%c1_73, %c2_74, %c0_75] : memref<18x18x128xbf16, #tpu.memory_space<vmem>>, vector<16x16x128xbf16>
    %58 = vector.shape_cast %57 : vector<16x16x128xbf16> to vector<256x128xbf16>
    %c5 = arith.constant 5 : index
    %c0_76 = arith.constant 0 : index
    %c0_77 = arith.constant 0 : index
    %59 = vector.load %arg4[%c5, %c0_76, %c0_77] : memref<9x128x256xbf16, #tpu.memory_space<vmem>>, vector<1x128x256xbf16>
    %60 = vector.shape_cast %59 : vector<1x128x256xbf16> to vector<128x256xbf16>
    %cst_78 = arith.constant dense<0.000000e+00> : vector<256x256xf32>
    %61 = tpu.matmul %58, %60, %cst_78 {dimension_numbers = #tpu.dot_dimension_numbers<[1], [0], [0], [1], [0, 0, 1, 1], [], []>} : vector<256x128xbf16>, vector<128x256xbf16>, vector<256x256xf32> -> vector<256x256xf32>
    %c0_79 = arith.constant 0 : index
    %c0_80 = arith.constant 0 : index
    %62 = vector.load %arg8[%c0_79, %c0_80] : memref<256x256xf32, #tpu.memory_space<vmem>>, vector<256x256xf32>
    %63 = arith.addf %62, %61 : vector<256x256xf32>
    %c0_81 = arith.constant 0 : index
    %c0_82 = arith.constant 0 : index
    %64 = vector.load %arg8[%c0_81, %c0_82] : memref<256x256xf32, #tpu.memory_space<vmem>>, vector<256x256xf32>
    tpu.vector_store %arg8[%c0_81, %c0_82], %63 {strides = array<i32>} : memref<256x256xf32, #tpu.memory_space<vmem>>, vector<256x256xf32>,
    %c2_83 = arith.constant 2 : index
    %c0_84 = arith.constant 0 : index
    %c0_85 = arith.constant 0 : index
    %65 = vector.load %arg7[%c2_83, %c0_84, %c0_85] : memref<18x18x128xbf16, #tpu.memory_space<vmem>>, vector<16x16x128xbf16>
    %66 = vector.shape_cast %65 : vector<16x16x128xbf16> to vector<256x128xbf16>
    %c6 = arith.constant 6 : index
    %c0_86 = arith.constant 0 : index
    %c0_87 = arith.constant 0 : index
    %67 = vector.load %arg4[%c6, %c0_86, %c0_87] : memref<9x128x256xbf16, #tpu.memory_space<vmem>>, vector<1x128x256xbf16>
    %68 = vector.shape_cast %67 : vector<1x128x256xbf16> to vector<128x256xbf16>
    %cst_88 = arith.constant dense<0.000000e+00> : vector<256x256xf32>
    %69 = tpu.matmul %66, %68, %cst_88 {dimension_numbers = #tpu.dot_dimension_numbers<[1], [0], [0], [1], [0, 0, 1, 1], [], []>} : vector<256x128xbf16>, vector<128x256xbf16>, vector<256x256xf32> -> vector<256x256xf32>
    %c0_89 = arith.constant 0 : index
    %c0_90 = arith.constant 0 : index
    %70 = vector.load %arg8[%c0_89, %c0_90] : memref<256x256xf32, #tpu.memory_space<vmem>>, vector<256x256xf32>
    %71 = arith.addf %70, %69 : vector<256x256xf32>
    %c0_91 = arith.constant 0 : index
    %c0_92 = arith.constant 0 : index
    %72 = vector.load %arg8[%c0_91, %c0_92] : memref<256x256xf32, #tpu.memory_space<vmem>>, vector<256x256xf32>
    tpu.vector_store %arg8[%c0_91, %c0_92], %71 {strides = array<i32>} : memref<256x256xf32, #tpu.memory_space<vmem>>, vector<256x256xf32>,
    %c2_93 = arith.constant 2 : index
    %c1_94 = arith.constant 1 : index
    %c0_95 = arith.constant 0 : index
    %73 = vector.load %arg7[%c2_93, %c1_94, %c0_95] : memref<18x18x128xbf16, #tpu.memory_space<vmem>>, vector<16x16x128xbf16>
    %74 = vector.shape_cast %73 : vector<16x16x128xbf16> to vector<256x128xbf16>
    %c7 = arith.constant 7 : index
    %c0_96 = arith.constant 0 : index
    %c0_97 = arith.constant 0 : index
    %75 = vector.load %arg4[%c7, %c0_96, %c0_97] : memref<9x128x256xbf16, #tpu.memory_space<vmem>>, vector<1x128x256xbf16>
    %76 = vector.shape_cast %75 : vector<1x128x256xbf16> to vector<128x256xbf16>
    %cst_98 = arith.constant dense<0.000000e+00> : vector<256x256xf32>
    %77 = tpu.matmul %74, %76, %cst_98 {dimension_numbers = #tpu.dot_dimension_numbers<[1], [0], [0], [1], [0, 0, 1, 1], [], []>} : vector<256x128xbf16>, vector<128x256xbf16>, vector<256x256xf32> -> vector<256x256xf32>
    %c0_99 = arith.constant 0 : index
    %c0_100 = arith.constant 0 : index
    %78 = vector.load %arg8[%c0_99, %c0_100] : memref<256x256xf32, #tpu.memory_space<vmem>>, vector<256x256xf32>
    %79 = arith.addf %78, %77 : vector<256x256xf32>
    %c0_101 = arith.constant 0 : index
    %c0_102 = arith.constant 0 : index
    %80 = vector.load %arg8[%c0_101, %c0_102] : memref<256x256xf32, #tpu.memory_space<vmem>>, vector<256x256xf32>
    tpu.vector_store %arg8[%c0_101, %c0_102], %79 {strides = array<i32>} : memref<256x256xf32, #tpu.memory_space<vmem>>, vector<256x256xf32>,
    %c2_103 = arith.constant 2 : index
    %c2_104 = arith.constant 2 : index
    %c0_105 = arith.constant 0 : index
    %81 = vector.load %arg7[%c2_103, %c2_104, %c0_105] : memref<18x18x128xbf16, #tpu.memory_space<vmem>>, vector<16x16x128xbf16>
    %82 = vector.shape_cast %81 : vector<16x16x128xbf16> to vector<256x128xbf16>
    %c8 = arith.constant 8 : index
    %c0_106 = arith.constant 0 : index
    %c0_107 = arith.constant 0 : index
    %83 = vector.load %arg4[%c8, %c0_106, %c0_107] : memref<9x128x256xbf16, #tpu.memory_space<vmem>>, vector<1x128x256xbf16>
    %84 = vector.shape_cast %83 : vector<1x128x256xbf16> to vector<128x256xbf16>
    %cst_108 = arith.constant dense<0.000000e+00> : vector<256x256xf32>
    %85 = tpu.matmul %82, %84, %cst_108 {dimension_numbers = #tpu.dot_dimension_numbers<[1], [0], [0], [1], [0, 0, 1, 1], [], []>} : vector<256x128xbf16>, vector<128x256xbf16>, vector<256x256xf32> -> vector<256x256xf32>
    %c0_109 = arith.constant 0 : index
    %c0_110 = arith.constant 0 : index
    %86 = vector.load %arg8[%c0_109, %c0_110] : memref<256x256xf32, #tpu.memory_space<vmem>>, vector<256x256xf32>
    %87 = arith.addf %86, %85 : vector<256x256xf32>
    %c0_111 = arith.constant 0 : index
    %c0_112 = arith.constant 0 : index
    %88 = vector.load %arg8[%c0_111, %c0_112] : memref<256x256xf32, #tpu.memory_space<vmem>>, vector<256x256xf32>
    tpu.vector_store %arg8[%c0_111, %c0_112], %87 {strides = array<i32>} : memref<256x256xf32, #tpu.memory_space<vmem>>, vector<256x256xf32>,
    %c0_113 = arith.constant 0 : index
    %c0_114 = arith.constant 0 : index
    %89 = vector.load %arg8[%c0_113, %c0_114] : memref<256x256xf32, #tpu.memory_space<vmem>>, vector<256x256xf32>
    %c0_115 = arith.constant 0 : index
    %c0_116 = arith.constant 0 : index
    %90 = vector.load %arg5[%c0_115, %c0_116] : memref<1x256xf32, #tpu.memory_space<vmem>>, vector<1x256xf32>
    %91 = vector.broadcast %90 : vector<1x256xf32> to vector<256x256xf32>
    %92 = arith.addf %89, %91 : vector<256x256xf32>
    %cst_117 = arith.constant 0.000000e+00 : f32
    %93 = vector.broadcast %cst_117 : f32 to vector<256x256xf32>
    %94 = arith.maximumf %92, %93 : vector<256x256xf32>
    %95 = vector.shape_cast %94 : vector<256x256xf32> to vector<16x16x256xf32>
    %96 = arith.truncf %95 : vector<16x16x256xf32> to vector<16x16x256xbf16>
    %c0_118 = arith.constant 0 : index
    %c0_119 = arith.constant 0 : index
    %c0_120 = arith.constant 0 : index
    %c0_121 = arith.constant 0 : index
    %97 = vector.load %arg6[%c0_118, %c0_119, %c0_120, %c0_121] : memref<1x16x16x256xbf16, #tpu.memory_space<vmem>>, vector<1x16x16x256xbf16>
    %98 = vector.shape_cast %97 : vector<1x16x16x256xbf16> to vector<16x16x256xbf16>
    %99 = vector.shape_cast %96 : vector<16x16x256xbf16> to vector<1x16x16x256xbf16>
    tpu.vector_store %arg6[%c0_118, %c0_119, %c0_120, %c0_121], %99 {strides = array<i32>} : memref<1x16x16x256xbf16, #tpu.memory_space<vmem>>, vector<1x16x16x256xbf16>,
    return
  }
  func.func @transform_0(%arg0: i32) -> (i32, i32, i32, i32) {
    %c0_i32 = arith.constant 0 : i32
    %c0_i32_0 = arith.constant 0 : i32
    %c0_i32_1 = arith.constant 0 : i32
    %c0_i32_2 = arith.constant 0 : i32
    return %arg0, %c0_i32, %c0_i32_0, %c0_i32_1 : i32, i32, i32, i32
  }
  func.func @transform_1(%arg0: i32) -> (i32, i32) {
    %c0_i32 = arith.constant 0 : i32
    %c0_i32_0 = arith.constant 0 : i32
    %c0_i32_1 = arith.constant 0 : i32
    return %c0_i32, %c0_i32_0 : i32, i32
  }
  func.func @transform_2(%arg0: i32) -> (i32, i32) {
    %c0_i32 = arith.constant 0 : i32
    %c0_i32_0 = arith.constant 0 : i32
    %c0_i32_1 = arith.constant 0 : i32
    return %c0_i32, %c0_i32_0 : i32, i32
  }
  func.func @transform_3(%arg0: i32) -> (i32, i32, i32) {
    %c0_i32 = arith.constant 0 : i32
    %c0_i32_0 = arith.constant 0 : i32
    %c0_i32_1 = arith.constant 0 : i32
    %c0_i32_2 = arith.constant 0 : i32
    return %c0_i32, %c0_i32_0, %c0_i32_1 : i32, i32, i32
  }
  func.func @transform_4(%arg0: i32) -> (i32, i32) {
    %c0_i32 = arith.constant 0 : i32
    %c0_i32_0 = arith.constant 0 : i32
    %c0_i32_1 = arith.constant 0 : i32
    return %c0_i32, %c0_i32_0 : i32, i32
  }
  func.func @transform_5(%arg0: i32) -> (i32, i32, i32, i32) {
    %c0_i32 = arith.constant 0 : i32
    %c0_i32_0 = arith.constant 0 : i32
    %c0_i32_1 = arith.constant 0 : i32
    %c0_i32_2 = arith.constant 0 : i32
    return %arg0, %c0_i32, %c0_i32_0, %c0_i32_1 : i32, i32, i32, i32
  }
}

</mosaic_0001>

<llo_original>
// kernel: tpu_custom_call.1
$region0: #{tpu_custom_call.1}
  #allocation0 [shape = 'u32[]', space=smem, size = 0x4, offset = 0x4, fixed_abs, tag = 'smem constant byte address 0x4 - core index']
  #allocation1 [shape = 'u32[144,128]{1,0:T(1,128)}', space=vmem, size = 0x12000, scoped, tag = 'internal scratch']
  #allocation2 [shape = 'bf16[18,18,128]{2,1,0:T(8,128)(2,1)}', space=vmem, size = 0x1b000, scoped, tag = 'scratch operand']
  #allocation3 [shape = 'f32[256,256]{1,0:T(8,128)}', space=vmem, size = 0x40000, scoped, tag = 'scratch operand']
  %s0 = inlined_call_operand.vmem [shape: bf16[2,16,16,4], index: 0, kind: input, shape index: {}]
  %s1 = inlined_call_operand.vmem [shape: bf16[4,128], index: 1, kind: input, shape index: {}]
  %s2 = inlined_call_operand.vmem [shape: f32[1,128], index: 2, kind: input, shape index: {}]
  %s3 = inlined_call_operand.hbm [shape: bf16[9,128,256], index: 3, kind: input, shape index: {}]
  %s4 = inlined_call_operand.vmem [shape: f32[1,256], index: 4, kind: input, shape index: {}]
  %s5 = inlined_call_operand.hbm [shape: bf16[2,16,16,256], index: 5, kind: output, shape index: {}]
  %s6 = sld [smem:[#allocation0]]
  $region57: #{tpu_custom_call.1} parent=0
    _
  %s8 = ssub.s32 1, %s6
  %s9 = scalar_select 0, %s8, %s6
  $region1: #{tpu_custom_call.1} parent=0
    #allocation4 [shape = 'u8[589824]{0}', space=vmem, size = 0x90000, scoped, tag = 'input window, operand 3, single buffered']
    #allocation5 [shape = 's32[2]{0}', space=sflag, size = 0x8, scoped, tag = 'scoped memory for tpu_custom_call.1']
    #allocation6 [shape = 's32[2]{0}', space=sflag, size = 0x8, scoped, tag = 'scoped memory for tpu_custom_call.1']
    #allocation7 [shape = 'u8[262144]{0}', space=vmem, size = 0x40000, scoped, tag = 'output window, operand 0']
    %10 = vsyncpa [#allocation5], 0
    %11 = vsyncpa [#allocation6], 0
    %s12 = scalar_lea.sflag [#allocation6], 1
    %13 = vsyncpa %s12, 0
    loop: start=0, step=1, limit=4
    $region2: #{tpu_custom_call.1} parent=1 // loop_pre_header
      _
    $region3: #{tpu_custom_call.1} parent=1 // loop_header
      %s15 = sphi 0, %s19
      %p16 = scmp.ge.s32.totalorder %s15, 4
      %s25 = sphi 0, %s27
      %s28 = sphi 0, %s25
      %s29 = sphi 0, %s28
      %s45 = sphi 0, %s29
      %s49 = sphi 0, %s49
      %s51 = sphi 0, %s49
      %s52 = sphi 0, %s51
      %s66 = sphi 0, %s52
      %s70 = sphi 0, %s70
      %s72 = sphi 0, %s70
      %s73 = sphi 0, %s72
      %s87 = sphi 0, %s73
      %s91 = sphi 0, %s91
      %s93 = sphi 0, %s91
      %s94 = sphi 0, %s93
      %s108 = sphi 0, %s94
      %s112 = sphi 0, %s112
      %s114 = sphi 0, %s112
      %s115 = sphi 0, %s114
      %s129 = sphi 0, %s115
      %s135 = sphi 0, %s137
      %s138 = sphi 0, %s135
      %s139 = sphi 0, %s138
      %s155 = sphi 0, %s139
    $region4: #{tpu_custom_call.1} parent=1 // loop_header_branch
      %18 = sbr.rel (%p16) target = $region8
    $region5: #{tpu_custom_call.1} parent=1 // loop_body
      %s20 = ssub.s32 %s15, 1
      %s21 = ssub.s32 %s15, 2
      %s22 = sadd.s32 %s15, 1
      %s23 = ssub.s32 %s15, %s22
      %p24 = scmp.eq.s32.totalorder %s23, 0
      %s26 = sadd.s32 %s25, 1
      %s27 = scalar_select %p24, %s25, %s26
      %p30 = pneg %p24
      %p31 = scmp.eq.s32.totalorder %s15, 1
      %p32 = por %p30, %p31
      %p33 = scmp.ne.s32.totalorder %s25, %s28
      %p34 = scmp.eq.s32.totalorder %s15, 0
      %p35 = por %p33, %p34
      %p36 = scmp.ne.s32.totalorder %s25, %s28
      %p37 = scmp.eq.s32.totalorder %s20, 1
      %p38 = por %p36, %p37
      %p39 = scmp.ne.s32.totalorder %s28, %s29
      %p40 = scmp.eq.s32.totalorder %s20, 0
      %p41 = por %p39, %p40
      %p42 = scmp.ne.s32.totalorder %s28, %s29
      %p43 = scmp.eq.s32.totalorder %s21, 1
      %p44 = por %p42, %p43
      %p46 = scmp.ne.s32.totalorder %s29, %s45
      %p47 = scmp.eq.s32.totalorder %s21, 0
      %p48 = por %p46, %p47
      %s50 = sadd.s32 %s49, 1
      %p53 = scmp.eq.s32.totalorder %s15, 1
      %p54 = scmp.ne.s32.totalorder %s49, %s51
      %p55 = scmp.eq.s32.totalorder %s15, 0
      %p56 = por %p54, %p55
      %p57 = scmp.ne.s32.totalorder %s49, %s51
      %p58 = scmp.eq.s32.totalorder %s20, 1
      %p59 = por %p57, %p58
      %p60 = scmp.ne.s32.totalorder %s51, %s52
      %p61 = scmp.eq.s32.totalorder %s20, 0
      %p62 = por %p60, %p61
      %p63 = scmp.ne.s32.totalorder %s51, %s52
      %p64 = scmp.eq.s32.totalorder %s21, 1
      %p65 = por %p63, %p64
      %p67 = scmp.ne.s32.totalorder %s52, %s66
      %p68 = scmp.eq.s32.totalorder %s21, 0
      %p69 = por %p67, %p68
      %s71 = sadd.s32 %s70, 1
      %p74 = scmp.eq.s32.totalorder %s15, 1
      %p75 = scmp.ne.s32.totalorder %s70, %s72
      %p76 = scmp.eq.s32.totalorder %s15, 0
      %p77 = por %p75, %p76
      %p78 = scmp.ne.s32.totalorder %s70, %s72
      %p79 = scmp.eq.s32.totalorder %s20, 1
      %p80 = por %p78, %p79
      %p81 = scmp.ne.s32.totalorder %s72, %s73
      %p82 = scmp.eq.s32.totalorder %s20, 0
      %p83 = por %p81, %p82
      %p84 = scmp.ne.s32.totalorder %s72, %s73
      %p85 = scmp.eq.s32.totalorder %s21, 1
      %p86 = por %p84, %p85
      %p88 = scmp.ne.s32.totalorder %s73, %s87
      %p89 = scmp.eq.s32.totalorder %s21, 0
      %p90 = por %p88, %p89
      %s92 = sadd.s32 %s91, 1
      %p95 = scmp.eq.s32.totalorder %s15, 1
      %p96 = scmp.ne.s32.totalorder %s91, %s93
      %p97 = scmp.eq.s32.totalorder %s15, 0
      %p98 = por %p96, %p97
      %p99 = scmp.ne.s32.totalorder %s91, %s93
      %p100 = scmp.eq.s32.totalorder %s20, 1
      %p101 = por %p99, %p100
      %p102 = scmp.ne.s32.totalorder %s93, %s94
      %p103 = scmp.eq.s32.totalorder %s20, 0
      %p104 = por %p102, %p103
      %p105 = scmp.ne.s32.totalorder %s93, %s94
      %p106 = scmp.eq.s32.totalorder %s21, 1
      %p107 = por %p105, %p106
      %p109 = scmp.ne.s32.totalorder %s94, %s108
      %p110 = scmp.eq.s32.totalorder %s21, 0
      %p111 = por %p109, %p110
      %s113 = sadd.s32 %s112, 1
      %p116 = scmp.eq.s32.totalorder %s15, 1
      %p117 = scmp.ne.s32.totalorder %s112, %s114
      %p118 = scmp.eq.s32.totalorder %s15, 0
      %p119 = por %p117, %p118
      %p120 = scmp.ne.s32.totalorder %s112, %s114
      %p121 = scmp.eq.s32.totalorder %s20, 1
      %p122 = por %p120, %p121
      %p123 = scmp.ne.s32.totalorder %s114, %s115
      %p124 = scmp.eq.s32.totalorder %s20, 0
      %p125 = por %p123, %p124
      %p126 = scmp.ne.s32.totalorder %s114, %s115
      %p127 = scmp.eq.s32.totalorder %s21, 1
      %p128 = por %p126, %p127
      %p130 = scmp.ne.s32.totalorder %s115, %s129
      %p131 = scmp.eq.s32.totalorder %s21, 0
      %p132 = por %p130, %p131
      %s133 = ssub.s32 %s15, %s22
      %p134 = scmp.eq.s32.totalorder %s133, 0
      %s136 = sadd.s32 %s135, 1
      %s137 = scalar_select %p134, %s135, %s136
      %p140 = pneg %p134
      %p141 = scmp.eq.s32.totalorder %s15, 1
      %p142 = por %p140, %p141
      %p143 = scmp.ne.s32.totalorder %s135, %s138
      %p144 = scmp.eq.s32.totalorder %s15, 0
      %p145 = por %p143, %p144
      %p146 = scmp.ne.s32.totalorder %s135, %s138
      %p147 = scmp.eq.s32.totalorder %s20, 1
      %p148 = por %p146, %p147
      %p149 = scmp.ne.s32.totalorder %s138, %s139
      %p150 = scmp.eq.s32.totalorder %s20, 0
      %p151 = por %p149, %p150
      %p152 = scmp.ne.s32.totalorder %s138, %s139
      %p153 = scmp.eq.s32.totalorder %s21, 1
      %p154 = por %p152, %p153
      %p156 = scmp.ne.s32.totalorder %s139, %s155
      %p157 = scmp.eq.s32.totalorder %s21, 0
      %p158 = por %p156, %p157
      %p159 = scmp.le.s32.totalorder 1, %s15
      %p160 = scmp.lt.s32.totalorder %s15, 3
      %p161 = pnand %p159, %p160
      %p162 = pneg %p161
      // Predicated region
      $region9: #{tpu_custom_call.1} parent=5 // pred_check
        _
      $region10: #{tpu_custom_call.1} parent=5 // pred_check_branch
        %164 = sbr.rel (%p161) target = $region12
      $region11: #{tpu_custom_call.1} parent=5 // pred_region
        %s165 = ssub.s32 %s15, 1
        // Predicated region
        $region13: #{tpu_custom_call.1} parent=11 // pred_check
          %p166 = pneg %p62
        $region14: #{tpu_custom_call.1} parent=11 // pred_check_branch
          %168 = sbr.rel (%p166) target = $region16
        $region15: #{tpu_custom_call.1} parent=11 // pred_region
          _
        $region16: #{tpu_custom_call.1} parent=11 // pred_fallthru
          _
        // Predicated region
        $region17: #{tpu_custom_call.1} parent=11 // pred_check
          %p169 = pneg %p83
        $region18: #{tpu_custom_call.1} parent=11 // pred_check_branch
          %171 = sbr.rel (%p169) target = $region20
        $region19: #{tpu_custom_call.1} parent=11 // pred_region
          _
        $region20: #{tpu_custom_call.1} parent=11 // pred_fallthru
          _
        // Predicated region
        $region21: #{tpu_custom_call.1} parent=11 // pred_check
          %p172 = pneg %p104
        $region22: #{tpu_custom_call.1} parent=11 // pred_check_branch
          %174 = sbr.rel (%p172) target = $region24
        $region23: #{tpu_custom_call.1} parent=11 // pred_region
          %s176 = ssub.s32 18432, 18432
          %177 = vsyncadd [#allocation5], %s176
          %s178 = sshll.u32 [#allocation4], 4
          %s179 = int_to_ptr.vmem [resolvable:$true] %s178
          %184 = dma.hbm_to_vmem [thread:$0]  %s3, 18432, %s179, [#allocation5], 128, 128, 8
        $region24: #{tpu_custom_call.1} parent=11 // pred_fallthru
          _
        // Predicated region
        $region25: #{tpu_custom_call.1} parent=11 // pred_check
          %p185 = pneg %p125
        $region26: #{tpu_custom_call.1} parent=11 // pred_check_branch
          %187 = sbr.rel (%p185) target = $region28
        $region27: #{tpu_custom_call.1} parent=11 // pred_region
          _
        $region28: #{tpu_custom_call.1} parent=11 // pred_fallthru
          _
      $region12: #{tpu_custom_call.1} parent=5 // pred_fallthru
        _
      %p188 = scmp.lt.s32.totalorder %s15, 2
      // Predicated region
      $region29: #{tpu_custom_call.1} parent=5 // pred_check
        %p189 = pneg %p188
      $region30: #{tpu_custom_call.1} parent=5 // pred_check_branch
        %191 = sbr.rel (%p189) target = $region32
      $region31: #{tpu_custom_call.1} parent=5 // pred_region
        // Predicated region
        $region33: #{tpu_custom_call.1} parent=31 // pred_check
          %p192 = pneg %p35
        $region34: #{tpu_custom_call.1} parent=31 // pred_check_branch
          %194 = sbr.rel (%p192) target = $region36
        $region35: #{tpu_custom_call.1} parent=31 // pred_region
          %p195 = scmp.lt.s32.totalorder %s15, 1
          %s196 = scalar_select %p195, %s15, 1
          %s197 = smul.addr %s196, 32
          %s198 = smul.addr %s197, 4
          %s199 = scalar_lea.vmem %s0, %s198
        $region36: #{tpu_custom_call.1} parent=31 // pred_fallthru
          _
      $region32: #{tpu_custom_call.1} parent=5 // pred_fallthru
        _
      %p200 = scmp.le.s32.totalorder 1, %s15
      %p201 = scmp.lt.s32.totalorder %s15, 3
      %p202 = pnand %p200, %p201
      %p203 = pneg %p202
      // Predicated region
      $region37: #{tpu_custom_call.1} parent=5 // pred_check
        _
      $region38: #{tpu_custom_call.1} parent=5 // pred_check_branch
        %205 = sbr.rel (%p202) target = $region40
      $region39: #{tpu_custom_call.1} parent=5 // pred_region
        %s206 = ssub.s32 %s15, 1
        // Predicated region
        $region41: #{tpu_custom_call.1} parent=39 // pred_check
          %p207 = pneg %p104
        $region42: #{tpu_custom_call.1} parent=39 // pred_check_branch
          %209 = sbr.rel (%p207) target = $region44
        $region43: #{tpu_custom_call.1} parent=39 // pred_region
          %210 = dma.done [#allocation5], 18432
        $region44: #{tpu_custom_call.1} parent=39 // pred_fallthru
          _
        %p211 = scmp.lt.s32.totalorder %s20, 1
        %s212 = scalar_select %p211, %s20, 1
        %s213 = smul.addr %s212, 32
        %s214 = smul.addr %s213, 4
        %s215 = scalar_lea.vmem %s0, %s214
        %p216 = pneg %p41
        %p217 = pneg %p38
        %p218 = pneg %p62
        %p219 = pneg %p59
        %p220 = pneg %p83
        %p221 = pneg %p80
        %p222 = pneg %p104
        %p223 = pneg %p101
        %p224 = pneg %p125
        %p225 = pneg %p122
        %p226 = pneg %p151
        %p227 = pneg %p148
        %s228 = sand.u32 %s138, 1
        %s229 = scalar_lea.sflag [#allocation6], %s228
        %s230 = sand.u32 %s138, 1
        %s231 = smul.addr %s230, 256
        %s232 = scalar_lea.vmem [#allocation7], %s231
        %p233 = scmp.lt.s32.totalorder %s20, 1
        %s234 = scalar_select %p233, %s20, 1
        %s235 = smul.addr %s234, 32
        %s236 = smul.addr %s235, 4
        %s237 = scalar_lea.vmem %s0, %s236
        %v239 = vld [vmem:[%s237] sm:$0xf]
        %v240 = vld [vmem:[%s237 + $0x4] sm:$0xf]
        %v241 = vld [vmem:[%s237 + $0x8] sm:$0xf]
        %v242 = vld [vmem:[%s237 + $0xc] sm:$0xf]
        %v243 = vld [vmem:[%s237 + $0x10] sm:$0xf]
        %v244 = vld [vmem:[%s237 + $0x14] sm:$0xf]
        %v245 = vld [vmem:[%s237 + $0x18] sm:$0xf]
        %v246 = vld [vmem:[%s237 + $0x1c] sm:$0xf]
        %v247 = vld [vmem:[%s237 + $0x20] sm:$0xf]
        %v248 = vld [vmem:[%s237 + $0x24] sm:$0xf]
        %v249 = vld [vmem:[%s237 + $0x28] sm:$0xf]
        %v250 = vld [vmem:[%s237 + $0x2c] sm:$0xf]
        %v251 = vld [vmem:[%s237 + $0x30] sm:$0xf]
        %v252 = vld [vmem:[%s237 + $0x34] sm:$0xf]
        %v253 = vld [vmem:[%s237 + $0x38] sm:$0xf]
        %v254 = vld [vmem:[%s237 + $0x3c] sm:$0xf]
        %v255 = vld [vmem:[%s237 + $0x40] sm:$0xf]
        %v256 = vld [vmem:[%s237 + $0x44] sm:$0xf]
        %v257 = vld [vmem:[%s237 + $0x48] sm:$0xf]
        %v258 = vld [vmem:[%s237 + $0x4c] sm:$0xf]
        %v259 = vld [vmem:[%s237 + $0x50] sm:$0xf]
        %v260 = vld [vmem:[%s237 + $0x54] sm:$0xf]
        %v261 = vld [vmem:[%s237 + $0x58] sm:$0xf]
        %v262 = vld [vmem:[%s237 + $0x5c] sm:$0xf]
        %v263 = vld [vmem:[%s237 + $0x60] sm:$0xf]
        %v264 = vld [vmem:[%s237 + $0x64] sm:$0xf]
        %v265 = vld [vmem:[%s237 + $0x68] sm:$0xf]
        %v266 = vld [vmem:[%s237 + $0x6c] sm:$0xf]
        %v267 = vld [vmem:[%s237 + $0x70] sm:$0xf]
        %v268 = vld [vmem:[%s237 + $0x74] sm:$0xf]
        %v269 = vld [vmem:[%s237 + $0x78] sm:$0xf]
        %v270 = vld [vmem:[%s237 + $0x7c] sm:$0xf]
        %v271 = vld [vmem:[%s1] sm:$0x3]
        %v272 = vld [vmem:[%s2] sm:$0x1]
        %v274 = vlaneseq
        %v275 = vshrl.u32 %v274, 7
        %v276 = vsub.s32 0, %v275
        %v277 = vrot.slane %v272, %v276
        %v311 = vunpack.c.l.b16 %v239
        %v312 = vunpack.c.l.b16 %v240
        %v313 = vunpack.c.l.b16 %v241
        %v314 = vunpack.c.l.b16 %v242
        %v315 = vunpack.c.l.b16 %v243
        %v316 = vunpack.c.l.b16 %v244
        %v317 = vunpack.c.l.b16 %v245
        %v318 = vunpack.c.l.b16 %v246
        %v319 = vunpack.c.l.b16 %v247
        %v320 = vunpack.c.l.b16 %v248
        %v321 = vunpack.c.l.b16 %v249
        %v322 = vunpack.c.l.b16 %v250
        %v323 = vunpack.c.l.b16 %v251
        %v324 = vunpack.c.l.b16 %v252
        %v325 = vunpack.c.l.b16 %v253
        %v326 = vunpack.c.l.b16 %v254
        %v327 = vunpack.c.l.b16 %v255
        %v328 = vunpack.c.l.b16 %v256
        %v329 = vunpack.c.l.b16 %v257
        %v330 = vunpack.c.l.b16 %v258
        %v331 = vunpack.c.l.b16 %v259
        %v332 = vunpack.c.l.b16 %v260
        %v333 = vunpack.c.l.b16 %v261
        %v334 = vunpack.c.l.b16 %v262
        %v335 = vunpack.c.l.b16 %v263
        %v336 = vunpack.c.l.b16 %v264
        %v337 = vunpack.c.l.b16 %v265
        %v338 = vunpack.c.l.b16 %v266
        %v339 = vunpack.c.l.b16 %v267
        %v340 = vunpack.c.l.b16 %v268
        %v341 = vunpack.c.l.b16 %v269
        %v342 = vunpack.c.l.b16 %v270
        %v343 = vpack.c.b16 %v312, %v311
        %v344 = vpack.c.b16 %v314, %v313
        %v345 = vpack.c.b16 %v316, %v315
        %v346 = vpack.c.b16 %v318, %v317
        %v347 = vpack.c.b16 %v320, %v319
        %v348 = vpack.c.b16 %v322, %v321
        %v349 = vpack.c.b16 %v324, %v323
        %v350 = vpack.c.b16 %v326, %v325
        %v351 = vpack.c.b16 %v328, %v327
        %v352 = vpack.c.b16 %v330, %v329
        %v353 = vpack.c.b16 %v332, %v331
        %v354 = vpack.c.b16 %v334, %v333
        %v355 = vpack.c.b16 %v336, %v335
        %v356 = vpack.c.b16 %v338, %v337
        %v357 = vpack.c.b16 %v340, %v339
        %v358 = vpack.c.b16 %v342, %v341
        %vm359 = vcmask 31744
        %v361 = vsel %vm359, %v343, 0
        %v364 = vsel %vm359, %v344, 0
        %v367 = vsel %vm359, %v345, 0
        %v370 = vsel %vm359, %v346, 0
        %v373 = vsel %vm359, %v347, 0
        %v376 = vsel %vm359, %v348, 0
        %v379 = vsel %vm359, %v349, 0
        %v382 = vsel %vm359, %v350, 0
        %v385 = vsel %vm359, %v351, 0
        %v388 = vsel %vm359, %v352, 0
        %v391 = vsel %vm359, %v353, 0
        %v394 = vsel %vm359, %v354, 0
        %v397 = vsel %vm359, %v355, 0
        %v400 = vsel %vm359, %v356, 0
        %v403 = vsel %vm359, %v357, 0
        %v406 = vsel %vm359, %v358, 0
        %vm408 = vcmask 1041408
        %v410 = vsel %vm408, %v271, 0
        %412 = vmatprep.subr.bf16.mxu0 0
        %413 = vmatpush1.bf16.msra.mxu0 %v410
        %414 = vmatprep.subr.bf16.mxu0 0
        %415 = vmatpush1.bf16.msra.mxu0 0
        %416 = vmatprep.subr.bf16.mxu0 0
        %417 = vmatpush1.bf16.msra.mxu0 0
        %418 = vmatprep.subr.bf16.mxu0 0
        %419 = vmatpush1.bf16.msra.mxu0 0
        %420 = vmatprep.subr.bf16.mxu0 0
        %421 = vmatpush1.bf16.msra.mxu0 0
        %422 = vmatprep.subr.bf16.mxu0 0
        %423 = vmatpush1.bf16.msra.mxu0 0
        %424 = vmatprep.subr.bf16.mxu0 0
        %425 = vmatpush1.bf16.msra.mxu0 0
        %426 = vmatprep.subr.bf16.mxu0 0
        %427 = vmatpush1.bf16.msra.mxu0 0
        %428 = vmatprep.subr.bf16.mxu0 0
        %429 = vmatpush1.bf16.msra.mxu0 0
        %430 = vmatprep.subr.bf16.mxu0 0
        %431 = vmatpush1.bf16.msra.mxu0 0
        %432 = vmatprep.subr.bf16.mxu0 0
        %433 = vmatpush1.bf16.msra.mxu0 0
        %434 = vmatprep.subr.bf16.mxu0 0
        %435 = vmatpush1.bf16.msra.mxu0 0
        %436 = vmatprep.subr.bf16.mxu0 0
        %437 = vmatpush1.bf16.msra.mxu0 0
        %438 = vmatprep.subr.bf16.mxu0 0
        %439 = vmatpush1.bf16.msra.mxu0 0
        %440 = vmatprep.subr.bf16.mxu0 0
        %441 = vmatpush1.bf16.msra.mxu0 0
        %442 = vmatprep.subr.bf16.mxu0 0
        %443 = vmatpush1.bf16.msra.mxu0 0
        %444 = vmatprep.mubr.bf16.mxu0 0
        %445 = vmatmul.mubr.bf16.gmra.mrb[0].mxu0 %v361
        %v446 = vpop.f32.mrb[0].mxu0
        %v447 = vadd.f32 %v277, %v446
        %v448 = vpop.f32.mrb[0].mxu0
        %v449 = vpop.f32.mrb[0].mxu0
        %v450 = vadd.f32 %v277, %v449
        %v451 = vpop.f32.mrb[0].mxu0
        %452 = vmatprep.mubr.bf16.mxu0 0
        %453 = vmatmul.mubr.bf16.gmra.mrb[0].mxu0 %v364
        %v454 = vpop.f32.mrb[0].mxu0
        %v455 = vadd.f32 %v277, %v454
        %v456 = vpop.f32.mrb[0].mxu0
        %v457 = vpop.f32.mrb[0].mxu0
        %v458 = vadd.f32 %v277, %v457
        %v459 = vpop.f32.mrb[0].mxu0
        %460 = vmatprep.mubr.bf16.mxu0 0
        %461 = vmatmul.mubr.bf16.gmra.mrb[0].mxu0 %v367
        %v462 = vpop.f32.mrb[0].mxu0
        %v463 = vadd.f32 %v277, %v462
        %v464 = vpop.f32.mrb[0].mxu0
        %v465 = vpop.f32.mrb[0].mxu0
        %v466 = vadd.f32 %v277, %v465
        %v467 = vpop.f32.mrb[0].mxu0
        %468 = vmatprep.mubr.bf16.mxu0 0
        %469 = vmatmul.mubr.bf16.gmra.mrb[0].mxu0 %v370
        %v470 = vpop.f32.mrb[0].mxu0
        %v471 = vadd.f32 %v277, %v470
        %v472 = vpop.f32.mrb[0].mxu0
        %v473 = vpop.f32.mrb[0].mxu0
        %v474 = vadd.f32 %v277, %v473
        %v475 = vpop.f32.mrb[0].mxu0
        %476 = vmatprep.mubr.bf16.mxu0 0
        %477 = vmatmul.mubr.bf16.gmra.mrb[0].mxu0 %v373
        %v478 = vpop.f32.mrb[0].mxu0
        %v479 = vadd.f32 %v277, %v478
        %v480 = vpop.f32.mrb[0].mxu0
        %v481 = vpop.f32.mrb[0].mxu0
        %v482 = vadd.f32 %v277, %v481
        %v483 = vpop.f32.mrb[0].mxu0
        %484 = vmatprep.mubr.bf16.mxu0 0
        %485 = vmatmul.mubr.bf16.gmra.mrb[0].mxu0 %v376
        %v486 = vpop.f32.mrb[0].mxu0
        %v487 = vadd.f32 %v277, %v486
        %v488 = vpop.f32.mrb[0].mxu0
        %v489 = vpop.f32.mrb[0].mxu0
        %v490 = vadd.f32 %v277, %v489
        %v491 = vpop.f32.mrb[0].mxu0
        %492 = vmatprep.mubr.bf16.mxu0 0
        %493 = vmatmul.mubr.bf16.gmra.mrb[0].mxu0 %v379
        %v494 = vpop.f32.mrb[0].mxu0
        %v495 = vadd.f32 %v277, %v494
        %v496 = vpop.f32.mrb[0].mxu0
        %v497 = vpop.f32.mrb[0].mxu0
        %v498 = vadd.f32 %v277, %v497
        %v499 = vpop.f32.mrb[0].mxu0
        %500 = vmatprep.mubr.bf16.mxu0 0
        %501 = vmatmul.mubr.bf16.gmra.mrb[0].mxu0 %v382
        %v502 = vpop.f32.mrb[0].mxu0
        %v503 = vadd.f32 %v277, %v502
        %v504 = vpop.f32.mrb[0].mxu0
        %v505 = vpop.f32.mrb[0].mxu0
        %v506 = vadd.f32 %v277, %v505
        %v507 = vpop.f32.mrb[0].mxu0
        %508 = vmatprep.mubr.bf16.mxu0 0
        %509 = vmatmul.mubr.bf16.gmra.mrb[0].mxu0 %v385
        %v510 = vpop.f32.mrb[0].mxu0
        %v511 = vadd.f32 %v277, %v510
        %v512 = vpop.f32.mrb[0].mxu0
        %v513 = vpop.f32.mrb[0].mxu0
        %v514 = vadd.f32 %v277, %v513
        %v515 = vpop.f32.mrb[0].mxu0
        %516 = vmatprep.mubr.bf16.mxu0 0
        %517 = vmatmul.mubr.bf16.gmra.mrb[0].mxu0 %v388
        %v518 = vpop.f32.mrb[0].mxu0
        %v519 = vadd.f32 %v277, %v518
        %v520 = vpop.f32.mrb[0].mxu0
        %v521 = vpop.f32.mrb[0].mxu0
        %v522 = vadd.f32 %v277, %v521
        %v523 = vpop.f32.mrb[0].mxu0
        %524 = vmatprep.mubr.bf16.mxu0 0
        %525 = vmatmul.mubr.bf16.gmra.mrb[0].mxu0 %v391
        %v526 = vpop.f32.mrb[0].mxu0
        %v527 = vadd.f32 %v277, %v526
        %v528 = vpop.f32.mrb[0].mxu0
        %v529 = vpop.f32.mrb[0].mxu0
        %v530 = vadd.f32 %v277, %v529
        %v531 = vpop.f32.mrb[0].mxu0
        %532 = vmatprep.mubr.bf16.mxu0 0
        %533 = vmatmul.mubr.bf16.gmra.mrb[0].mxu0 %v394
        %v534 = vpop.f32.mrb[0].mxu0
        %v535 = vadd.f32 %v277, %v534
        %v536 = vpop.f32.mrb[0].mxu0
        %v537 = vpop.f32.mrb[0].mxu0
        %v538 = vadd.f32 %v277, %v537
        %v539 = vpop.f32.mrb[0].mxu0
        %540 = vmatprep.mubr.bf16.mxu0 0
        %541 = vmatmul.mubr.bf16.gmra.mrb[0].mxu0 %v397
        %v542 = vpop.f32.mrb[0].mxu0
        %v543 = vadd.f32 %v277, %v542
        %v544 = vpop.f32.mrb[0].mxu0
        %v545 = vpop.f32.mrb[0].mxu0
        %v546 = vadd.f32 %v277, %v545
        %v547 = vpop.f32.mrb[0].mxu0
        %548 = vmatprep.mubr.bf16.mxu0 0
        %549 = vmatmul.mubr.bf16.gmra.mrb[0].mxu0 %v400
        %v550 = vpop.f32.mrb[0].mxu0
        %v551 = vadd.f32 %v277, %v550
        %v552 = vpop.f32.mrb[0].mxu0
        %v553 = vpop.f32.mrb[0].mxu0
        %v554 = vadd.f32 %v277, %v553
        %v555 = vpop.f32.mrb[0].mxu0
        %556 = vmatprep.mubr.bf16.mxu0 0
        %557 = vmatmul.mubr.bf16.gmra.mrb[0].mxu0 %v403
        %v558 = vpop.f32.mrb[0].mxu0
        %v559 = vadd.f32 %v277, %v558
        %v560 = vpop.f32.mrb[0].mxu0
        %v561 = vpop.f32.mrb[0].mxu0
        %v562 = vadd.f32 %v277, %v561
        %v563 = vpop.f32.mrb[0].mxu0
        %564 = vmatprep.mubr.bf16.mxu0 0
        %565 = vmatmul.mubr.bf16.gmra.mrb[0].mxu0 %v406
        %v566 = vpop.f32.mrb[0].mxu0
        %v567 = vadd.f32 %v277, %v566
        %v568 = vpop.f32.mrb[0].mxu0
        %v569 = vpop.f32.mrb[0].mxu0
        %v570 = vadd.f32 %v277, %v569
        %v571 = vpop.f32.mrb[0].mxu0
        %572 = vdwg.mxu0
        %v573 = vmax.f32 %v447, 0.0
        %v574 = vmax.f32 %v450, 0.0
        %v575 = vmax.f32 %v455, 0.0
        %v576 = vmax.f32 %v458, 0.0
        %v577 = vmax.f32 %v463, 0.0
        %v578 = vmax.f32 %v466, 0.0
        %v579 = vmax.f32 %v471, 0.0
        %v580 = vmax.f32 %v474, 0.0
        %v581 = vmax.f32 %v479, 0.0
        %v582 = vmax.f32 %v482, 0.0
        %v583 = vmax.f32 %v487, 0.0
        %v584 = vmax.f32 %v490, 0.0
        %v585 = vmax.f32 %v495, 0.0
        %v586 = vmax.f32 %v498, 0.0
        %v587 = vmax.f32 %v503, 0.0
        %v588 = vmax.f32 %v506, 0.0
        %v589 = vmax.f32 %v511, 0.0
        %v590 = vmax.f32 %v514, 0.0
        %v591 = vmax.f32 %v519, 0.0
        %v592 = vmax.f32 %v522, 0.0
        %v593 = vmax.f32 %v527, 0.0
        %v594 = vmax.f32 %v530, 0.0
        %v595 = vmax.f32 %v535, 0.0
        %v596 = vmax.f32 %v538, 0.0
        %v597 = vmax.f32 %v543, 0.0
        %v598 = vmax.f32 %v546, 0.0
        %v599 = vmax.f32 %v551, 0.0
        %v600 = vmax.f32 %v554, 0.0
        %v601 = vmax.f32 %v559, 0.0
        %v602 = vmax.f32 %v562, 0.0
        %v603 = vmax.f32 %v567, 0.0
        %v604 = vmax.f32 %v570, 0.0
        %v605 = vpack.c.bf16 %v574, %v573
        %v606 = vpack.c.bf16 %v576, %v575
        %v607 = vpack.c.bf16 %v578, %v577
        %v608 = vpack.c.bf16 %v580, %v579
        %v609 = vpack.c.bf16 %v582, %v581
        %v610 = vpack.c.bf16 %v584, %v583
        %v611 = vpack.c.bf16 %v586, %v585
        %v612 = vpack.c.bf16 %v588, %v587
        %v613 = vpack.c.bf16 %v590, %v589
        %v614 = vpack.c.bf16 %v592, %v591
        %v615 = vpack.c.bf16 %v594, %v593
        %v616 = vpack.c.bf16 %v596, %v595
        %v617 = vpack.c.bf16 %v598, %v597
        %v618 = vpack.c.bf16 %v600, %v599
        %v619 = vpack.c.bf16 %v602, %v601
        %v620 = vpack.c.bf16 %v604, %v603
        %621 = vst [vmem:[#allocation2] sm:$0xf] 0
        %622 = vst [vmem:[#allocation2 + $0x4] sm:$0xf] 0
        %623 = vst [vmem:[#allocation2 + $0x8] sm:$0x1] 0
        %s624 = scalar_lea.vmem [#allocation2], 204
        %625 = vst [vmem:[%s624] sm:$0xf] 0
        %626 = vst [vmem:[%s624 + $0x4] sm:$0xf] 0
        %627 = vst [vmem:[%s624 + $0x8] sm:$0x1] 0
        %s628 = scalar_lea.vmem [#allocation2], 12
        %vm629 = vcmask 1040384
        %vm630 = vsmask.f32 256
        %vm631 = vmand %vm629, %vm630
        %v632 = vld [vmem:[%s628] sm:$0x1]
        %v633 = vsel %vm631, 0, %v632
        %634 = vst [vmem:[%s628] sm:$0x1] %v633
        %v635 = vld [vmem:[%s628 + $0xc] sm:$0x1]
        %v636 = vsel %vm631, 0, %v635
        %637 = vst [vmem:[%s628 + $0xc] sm:$0x1] %v636
        %v638 = vld [vmem:[%s628 + $0x18] sm:$0x1]
        %v639 = vsel %vm631, 0, %v638
        %640 = vst [vmem:[%s628 + $0x18] sm:$0x1] %v639
        %v641 = vld [vmem:[%s628 + $0x24] sm:$0x1]
        %v642 = vsel %vm631, 0, %v641
        %643 = vst [vmem:[%s628 + $0x24] sm:$0x1] %v642
        %v644 = vld [vmem:[%s628 + $0x30] sm:$0x1]
        %v645 = vsel %vm631, 0, %v644
        %646 = vst [vmem:[%s628 + $0x30] sm:$0x1] %v645
        %v647 = vld [vmem:[%s628 + $0x3c] sm:$0x1]
        %v648 = vsel %vm631, 0, %v647
        %649 = vst [vmem:[%s628 + $0x3c] sm:$0x1] %v648
        %v650 = vld [vmem:[%s628 + $0x48] sm:$0x1]
        %v651 = vsel %vm631, 0, %v650
        %652 = vst [vmem:[%s628 + $0x48] sm:$0x1] %v651
        %v653 = vld [vmem:[%s628 + $0x54] sm:$0x1]
        %v654 = vsel %vm631, 0, %v653
        %655 = vst [vmem:[%s628 + $0x54] sm:$0x1] %v654
        %v656 = vld [vmem:[%s628 + $0x60] sm:$0x1]
        %v657 = vsel %vm631, 0, %v656
        %658 = vst [vmem:[%s628 + $0x60] sm:$0x1] %v657
        %v659 = vld [vmem:[%s628 + $0x6c] sm:$0x1]
        %v660 = vsel %vm631, 0, %v659
        %661 = vst [vmem:[%s628 + $0x6c] sm:$0x1] %v660
        %v662 = vld [vmem:[%s628 + $0x78] sm:$0x1]
        %v663 = vsel %vm631, 0, %v662
        %664 = vst [vmem:[%s628 + $0x78] sm:$0x1] %v663
        %v665 = vld [vmem:[%s628 + $0x84] sm:$0x1]
        %v666 = vsel %vm631, 0, %v665
        %667 = vst [vmem:[%s628 + $0x84] sm:$0x1] %v666
        %v668 = vld [vmem:[%s628 + $0x90] sm:$0x1]
        %v669 = vsel %vm631, 0, %v668
        %670 = vst [vmem:[%s628 + $0x90] sm:$0x1] %v669
        %v671 = vld [vmem:[%s628 + $0x9c] sm:$0x1]
        %v672 = vsel %vm631, 0, %v671
        %673 = vst [vmem:[%s628 + $0x9c] sm:$0x1] %v672
        %v674 = vld [vmem:[%s628 + $0xa8] sm:$0x1]
        %v675 = vsel %vm631, 0, %v674
        %676 = vst [vmem:[%s628 + $0xa8] sm:$0x1] %v675
        %v677 = vld [vmem:[%s628 + $0xb4] sm:$0x1]
        %v678 = vsel %vm631, 0, %v677
        %679 = vst [vmem:[%s628 + $0xb4] sm:$0x1] %v678
        %vm680 = vsmask.f32 7938
        %vm681 = vmand %vm629, %vm680
        %v682 = vld [vmem:[%s628 + $0x8] sm:$0x1]
        %v683 = vsel %vm681, 0, %v682
        %684 = vst [vmem:[%s628 + $0x8] sm:$0x1] %v683
        %v685 = vld [vmem:[%s628 + $0x14] sm:$0x1]
        %v686 = vsel %vm681, 0, %v685
        %687 = vst [vmem:[%s628 + $0x14] sm:$0x1] %v686
        %v688 = vld [vmem:[%s628 + $0x20] sm:$0x1]
        %v689 = vsel %vm681, 0, %v688
        %690 = vst [vmem:[%s628 + $0x20] sm:$0x1] %v689
        %v691 = vld [vmem:[%s628 + $0x2c] sm:$0x1]
        %v692 = vsel %vm681, 0, %v691
        %693 = vst [vmem:[%s628 + $0x2c] sm:$0x1] %v692
        %v694 = vld [vmem:[%s628 + $0x38] sm:$0x1]
        %v695 = vsel %vm681, 0, %v694
        %696 = vst [vmem:[%s628 + $0x38] sm:$0x1] %v695
        %v697 = vld [vmem:[%s628 + $0x44] sm:$0x1]
        %v698 = vsel %vm681, 0, %v697
        %699 = vst [vmem:[%s628 + $0x44] sm:$0x1] %v698
        %v700 = vld [vmem:[%s628 + $0x50] sm:$0x1]
        %v701 = vsel %vm681, 0, %v700
        %702 = vst [vmem:[%s628 + $0x50] sm:$0x1] %v701
        %v703 = vld [vmem:[%s628 + $0x5c] sm:$0x1]
        %v704 = vsel %vm681, 0, %v703
        %705 = vst [vmem:[%s628 + $0x5c] sm:$0x1] %v704
        %v706 = vld [vmem:[%s628 + $0x68] sm:$0x1]
        %v707 = vsel %vm681, 0, %v706
        %708 = vst [vmem:[%s628 + $0x68] sm:$0x1] %v707
        %v709 = vld [vmem:[%s628 + $0x74] sm:$0x1]
        %v710 = vsel %vm681, 0, %v709
        %711 = vst [vmem:[%s628 + $0x74] sm:$0x1] %v710
        %v712 = vld [vmem:[%s628 + $0x80] sm:$0x1]
        %v713 = vsel %vm681, 0, %v712
        %714 = vst [vmem:[%s628 + $0x80] sm:$0x1] %v713
        %v715 = vld [vmem:[%s628 + $0x8c] sm:$0x1]
        %v716 = vsel %vm681, 0, %v715
        %717 = vst [vmem:[%s628 + $0x8c] sm:$0x1] %v716
        %v718 = vld [vmem:[%s628 + $0x98] sm:$0x1]
        %v719 = vsel %vm681, 0, %v718
        %720 = vst [vmem:[%s628 + $0x98] sm:$0x1] %v719
        %v721 = vld [vmem:[%s628 + $0xa4] sm:$0x1]
        %v722 = vsel %vm681, 0, %v721
        %723 = vst [vmem:[%s628 + $0xa4] sm:$0x1] %v722
        %v724 = vld [vmem:[%s628 + $0xb0] sm:$0x1]
        %v725 = vsel %vm681, 0, %v724
        %726 = vst [vmem:[%s628 + $0xb0] sm:$0x1] %v725
        %v727 = vld [vmem:[%s628 + $0xbc] sm:$0x1]
        %v728 = vsel %vm681, 0, %v727
        %729 = vst [vmem:[%s628 + $0xbc] sm:$0x1] %v728
        %v746 = vunpack.c.l.b16 %v605
        %v747 = vunpack.c.h.b16 %v605
        %v748 = vunpack.c.l.b16 %v606
        %v749 = vunpack.c.h.b16 %v606
        %v750 = vunpack.c.l.b16 %v607
        %v751 = vunpack.c.h.b16 %v607
        %v752 = vunpack.c.l.b16 %v608
        %v753 = vunpack.c.h.b16 %v608
        %v754 = vunpack.c.l.b16 %v609
        %v755 = vunpack.c.h.b16 %v609
        %v756 = vunpack.c.l.b16 %v610
        %v757 = vunpack.c.h.b16 %v610
        %v758 = vunpack.c.l.b16 %v611
        %v759 = vunpack.c.h.b16 %v611
        %v760 = vunpack.c.l.b16 %v612
        %v761 = vunpack.c.h.b16 %v612
        %v762 = vunpack.c.l.b16 %v613
        %v763 = vunpack.c.h.b16 %v613
        %v764 = vunpack.c.l.b16 %v614
        %v765 = vunpack.c.h.b16 %v614
        %v766 = vunpack.c.l.b16 %v615
        %v767 = vunpack.c.h.b16 %v615
        %v768 = vunpack.c.l.b16 %v616
        %v769 = vunpack.c.h.b16 %v616
        %v770 = vunpack.c.l.b16 %v617
        %v771 = vunpack.c.h.b16 %v617
        %v772 = vunpack.c.l.b16 %v618
        %v773 = vunpack.c.h.b16 %v618
        %v774 = vunpack.c.l.b16 %v619
        %v775 = vunpack.c.h.b16 %v619
        %v776 = vunpack.c.l.b16 %v620
        %v777 = vunpack.c.h.b16 %v620
        %v778 = vpack.c.b16 %v746, %v746
        %v779 = vpack.c.b16 %v747, %v747
        %v780 = vpack.c.b16 %v748, %v748
        %v781 = vpack.c.b16 %v749, %v749
        %v782 = vpack.c.b16 %v750, %v750
        %v783 = vpack.c.b16 %v751, %v751
        %v784 = vpack.c.b16 %v752, %v752
        %v785 = vpack.c.b16 %v753, %v753
        %v786 = vpack.c.b16 %v754, %v754
        %v787 = vpack.c.b16 %v755, %v755
        %v788 = vpack.c.b16 %v756, %v756
        %v789 = vpack.c.b16 %v757, %v757
        %v790 = vpack.c.b16 %v758, %v758
        %v791 = vpack.c.b16 %v759, %v759
        %v792 = vpack.c.b16 %v760, %v760
        %v793 = vpack.c.b16 %v761, %v761
        %v794 = vpack.c.b16 %v762, %v762
        %v795 = vpack.c.b16 %v763, %v763
        %v796 = vpack.c.b16 %v764, %v764
        %v797 = vpack.c.b16 %v765, %v765
        %v798 = vpack.c.b16 %v766, %v766
        %v799 = vpack.c.b16 %v767, %v767
        %v800 = vpack.c.b16 %v768, %v768
        %v801 = vpack.c.b16 %v769, %v769
        %v802 = vpack.c.b16 %v770, %v770
        %v803 = vpack.c.b16 %v771, %v771
        %v804 = vpack.c.b16 %v772, %v772
        %v805 = vpack.c.b16 %v773, %v773
        %v806 = vpack.c.b16 %v774, %v774
        %v807 = vpack.c.b16 %v775, %v775
        %v808 = vpack.c.b16 %v776, %v776
        %v809 = vpack.c.b16 %v777, %v777
        %vm810 = vsmask.f32 4368
        %vm811 = vmor %vm630, %vm810
        %v813 = vshrl.u32 %v778, 16
        %v815 = vrot.slane %v813, 7
        %v816 = vshll.u32 %v778, 16
        %v818 = vor.u32 %v815, %v816
        %v819 = vrot.slane %v815, 4
        %v821 = vshrl.u32 %v779, 16
        %v823 = vrot.slane %v821, 7
        %v824 = vshll.u32 %v779, 16
        %v826 = vor.u32 %v823, %v824
        %v827 = vsel %vm811, %v819, %v826
        %v828 = vrot.slane %v823, 4
        %v830 = vshrl.u32 %v780, 16
        %v832 = vrot.slane %v830, 7
        %v833 = vshll.u32 %v780, 16
        %v835 = vor.u32 %v832, %v833
        %v836 = vrot.slane %v832, 4
        %v838 = vshrl.u32 %v781, 16
        %v840 = vrot.slane %v838, 7
        %v841 = vshll.u32 %v781, 16
        %v843 = vor.u32 %v840, %v841
        %v844 = vsel %vm811, %v836, %v843
        %v845 = vrot.slane %v840, 4
        %v847 = vshrl.u32 %v782, 16
        %v849 = vrot.slane %v847, 7
        %v850 = vshll.u32 %v782, 16
        %v852 = vor.u32 %v849, %v850
        %v853 = vrot.slane %v849, 4
        %v855 = vshrl.u32 %v783, 16
        %v857 = vrot.slane %v855, 7
        %v858 = vshll.u32 %v783, 16
        %v860 = vor.u32 %v857, %v858
        %v861 = vsel %vm811, %v853, %v860
        %v862 = vrot.slane %v857, 4
        %v864 = vshrl.u32 %v784, 16
        %v866 = vrot.slane %v864, 7
        %v867 = vshll.u32 %v784, 16
        %v869 = vor.u32 %v866, %v867
        %v870 = vrot.slane %v866, 4
        %v872 = vshrl.u32 %v785, 16
        %v874 = vrot.slane %v872, 7
        %v875 = vshll.u32 %v785, 16
        %v877 = vor.u32 %v874, %v875
        %v878 = vsel %vm811, %v870, %v877
        %v879 = vrot.slane %v874, 4
        %v881 = vshrl.u32 %v786, 16
        %v883 = vrot.slane %v881, 7
        %v884 = vshll.u32 %v786, 16
        %v886 = vor.u32 %v883, %v884
        %v887 = vrot.slane %v883, 4
        %v889 = vshrl.u32 %v787, 16
        %v891 = vrot.slane %v889, 7
        %v892 = vshll.u32 %v787, 16
        %v894 = vor.u32 %v891, %v892
        %v895 = vsel %vm811, %v887, %v894
        %v896 = vrot.slane %v891, 4
        %v898 = vshrl.u32 %v788, 16
        %v900 = vrot.slane %v898, 7
        %v901 = vshll.u32 %v788, 16
        %v903 = vor.u32 %v900, %v901
        %v904 = vrot.slane %v900, 4
        %v906 = vshrl.u32 %v789, 16
        %v908 = vrot.slane %v906, 7
        %v909 = vshll.u32 %v789, 16
        %v911 = vor.u32 %v908, %v909
        %v912 = vsel %vm811, %v904, %v911
        %v913 = vrot.slane %v908, 4
        %v915 = vshrl.u32 %v790, 16
        %v917 = vrot.slane %v915, 7
        %v918 = vshll.u32 %v790, 16
        %v920 = vor.u32 %v917, %v918
        %v921 = vrot.slane %v917, 4
        %v923 = vshrl.u32 %v791, 16
        %v925 = vrot.slane %v923, 7
        %v926 = vshll.u32 %v791, 16
        %v928 = vor.u32 %v925, %v926
        %v929 = vsel %vm811, %v921, %v928
        %v930 = vrot.slane %v925, 4
        %v932 = vshrl.u32 %v792, 16
        %v934 = vrot.slane %v932, 7
        %v935 = vshll.u32 %v792, 16
        %v937 = vor.u32 %v934, %v935
        %v938 = vrot.slane %v934, 4
        %v940 = vshrl.u32 %v793, 16
        %v942 = vrot.slane %v940, 7
        %v943 = vshll.u32 %v793, 16
        %v945 = vor.u32 %v942, %v943
        %v946 = vsel %vm811, %v938, %v945
        %v947 = vrot.slane %v942, 4
        %v949 = vshrl.u32 %v794, 16
        %v951 = vrot.slane %v949, 7
        %v952 = vshll.u32 %v794, 16
        %v954 = vor.u32 %v951, %v952
        %v955 = vrot.slane %v951, 4
        %v957 = vshrl.u32 %v795, 16
        %v959 = vrot.slane %v957, 7
        %v960 = vshll.u32 %v795, 16
        %v962 = vor.u32 %v959, %v960
        %v963 = vsel %vm811, %v955, %v962
        %v964 = vrot.slane %v959, 4
        %v966 = vshrl.u32 %v796, 16
        %v968 = vrot.slane %v966, 7
        %v969 = vshll.u32 %v796, 16
        %v971 = vor.u32 %v968, %v969
        %v972 = vrot.slane %v968, 4
        %v974 = vshrl.u32 %v797, 16
        %v976 = vrot.slane %v974, 7
        %v977 = vshll.u32 %v797, 16
        %v979 = vor.u32 %v976, %v977
        %v980 = vsel %vm811, %v972, %v979
        %v981 = vrot.slane %v976, 4
        %v983 = vshrl.u32 %v798, 16
        %v985 = vrot.slane %v983, 7
        %v986 = vshll.u32 %v798, 16
        %v988 = vor.u32 %v985, %v986
        %v989 = vrot.slane %v985, 4
        %v991 = vshrl.u32 %v799, 16
        %v993 = vrot.slane %v991, 7
        %v994 = vshll.u32 %v799, 16
        %v996 = vor.u32 %v993, %v994
        %v997 = vsel %vm811, %v989, %v996
        %v998 = vrot.slane %v993, 4
        %v1000 = vshrl.u32 %v800, 16
        %v1002 = vrot.slane %v1000, 7
        %v1003 = vshll.u32 %v800, 16
        %v1005 = vor.u32 %v1002, %v1003
        %v1006 = vrot.slane %v1002, 4
        %v1008 = vshrl.u32 %v801, 16
        %v1010 = vrot.slane %v1008, 7
        %v1011 = vshll.u32 %v801, 16
        %v1013 = vor.u32 %v1010, %v1011
        %v1014 = vsel %vm811, %v1006, %v1013
        %v1015 = vrot.slane %v1010, 4
        %v1017 = vshrl.u32 %v802, 16
        %v1019 = vrot.slane %v1017, 7
        %v1020 = vshll.u32 %v802, 16
        %v1022 = vor.u32 %v1019, %v1020
        %v1023 = vrot.slane %v1019, 4
        %v1025 = vshrl.u32 %v803, 16
        %v1027 = vrot.slane %v1025, 7
        %v1028 = vshll.u32 %v803, 16
        %v1030 = vor.u32 %v1027, %v1028
        %v1031 = vsel %vm811, %v1023, %v1030
        %v1032 = vrot.slane %v1027, 4
        %v1034 = vshrl.u32 %v804, 16
        %v1036 = vrot.slane %v1034, 7
        %v1037 = vshll.u32 %v804, 16
        %v1039 = vor.u32 %v1036, %v1037
        %v1040 = vrot.slane %v1036, 4
        %v1042 = vshrl.u32 %v805, 16
        %v1044 = vrot.slane %v1042, 7
        %v1045 = vshll.u32 %v805, 16
        %v1047 = vor.u32 %v1044, %v1045
        %v1048 = vsel %vm811, %v1040, %v1047
        %v1049 = vrot.slane %v1044, 4
        %v1051 = vshrl.u32 %v806, 16
        %v1053 = vrot.slane %v1051, 7
        %v1054 = vshll.u32 %v806, 16
        %v1056 = vor.u32 %v1053, %v1054
        %v1057 = vrot.slane %v1053, 4
        %v1059 = vshrl.u32 %v807, 16
        %v1061 = vrot.slane %v1059, 7
        %v1062 = vshll.u32 %v807, 16
        %v1064 = vor.u32 %v1061, %v1062
        %v1065 = vsel %vm811, %v1057, %v1064
        %v1066 = vrot.slane %v1061, 4
        %v1068 = vshrl.u32 %v808, 16
        %v1070 = vrot.slane %v1068, 7
        %v1071 = vshll.u32 %v808, 16
        %v1073 = vor.u32 %v1070, %v1071
        %v1074 = vrot.slane %v1070, 4
        %v1076 = vshrl.u32 %v809, 16
        %v1078 = vrot.slane %v1076, 7
        %v1079 = vshll.u32 %v809, 16
        %v1081 = vor.u32 %v1078, %v1079
        %v1082 = vsel %vm811, %v1074, %v1081
        %v1083 = vrot.slane %v1078, 4
        %vm1132 = vcmask 1043456
        %vm1133 = vmand %vm1132, %vm680
        %v1134 = vld [vmem:[%s628] sm:$0xf]
        %v1135 = vsel %vm1133, %v818, %v1134
        %1136 = vst [vmem:[%s628] sm:$0xf] %v1135
        %1137 = vst [vmem:[%s628 + $0x4] sm:$0xf] %v827
        %v1138 = vld [vmem:[%s628 + $0x8] sm:$0x1]
        %v1139 = vsel %vm631, %v828, %v1138
        %1140 = vst [vmem:[%s628 + $0x8] sm:$0x1] %v1139
        %v1141 = vld [vmem:[%s628 + $0xc] sm:$0xf]
        %v1142 = vsel %vm1133, %v835, %v1141
        %1143 = vst [vmem:[%s628 + $0xc] sm:$0xf] %v1142
        %1144 = vst [vmem:[%s628 + $0x10] sm:$0xf] %v844
        %v1145 = vld [vmem:[%s628 + $0x14] sm:$0x1]
        %v1146 = vsel %vm631, %v845, %v1145
        %1147 = vst [vmem:[%s628 + $0x14] sm:$0x1] %v1146
        %v1148 = vld [vmem:[%s628 + $0x18] sm:$0xf]
        %v1149 = vsel %vm1133, %v852, %v1148
        %1150 = vst [vmem:[%s628 + $0x18] sm:$0xf] %v1149
        %1151 = vst [vmem:[%s628 + $0x1c] sm:$0xf] %v861
        %v1152 = vld [vmem:[%s628 + $0x20] sm:$0x1]
        %v1153 = vsel %vm631, %v862, %v1152
        %1154 = vst [vmem:[%s628 + $0x20] sm:$0x1] %v1153
        %v1155 = vld [vmem:[%s628 + $0x24] sm:$0xf]
        %v1156 = vsel %vm1133, %v869, %v1155
        %1157 = vst [vmem:[%s628 + $0x24] sm:$0xf] %v1156
        %1158 = vst [vmem:[%s628 + $0x28] sm:$0xf] %v878
        %v1159 = vld [vmem:[%s628 + $0x2c] sm:$0x1]
        %v1160 = vsel %vm631, %v879, %v1159
        %1161 = vst [vmem:[%s628 + $0x2c] sm:$0x1] %v1160
        %v1162 = vld [vmem:[%s628 + $0x30] sm:$0xf]
        %v1163 = vsel %vm1133, %v886, %v1162
        %1164 = vst [vmem:[%s628 + $0x30] sm:$0xf] %v1163
        %1165 = vst [vmem:[%s628 + $0x34] sm:$0xf] %v895
        %v1166 = vld [vmem:[%s628 + $0x38] sm:$0x1]
        %v1167 = vsel %vm631, %v896, %v1166
        %1168 = vst [vmem:[%s628 + $0x38] sm:$0x1] %v1167
        %v1169 = vld [vmem:[%s628 + $0x3c] sm:$0xf]
        %v1170 = vsel %vm1133, %v903, %v1169
        %1171 = vst [vmem:[%s628 + $0x3c] sm:$0xf] %v1170
        %1172 = vst [vmem:[%s628 + $0x40] sm:$0xf] %v912
        %v1173 = vld [vmem:[%s628 + $0x44] sm:$0x1]
        %v1174 = vsel %vm631, %v913, %v1173
        %1175 = vst [vmem:[%s628 + $0x44] sm:$0x1] %v1174
        %v1176 = vld [vmem:[%s628 + $0x48] sm:$0xf]
        %v1177 = vsel %vm1133, %v920, %v1176
        %1178 = vst [vmem:[%s628 + $0x48] sm:$0xf] %v1177
        %1179 = vst [vmem:[%s628 + $0x4c] sm:$0xf] %v929
        %v1180 = vld [vmem:[%s628 + $0x50] sm:$0x1]
        %v1181 = vsel %vm631, %v930, %v1180
        %1182 = vst [vmem:[%s628 + $0x50] sm:$0x1] %v1181
        %v1183 = vld [vmem:[%s628 + $0x54] sm:$0xf]
        %v1184 = vsel %vm1133, %v937, %v1183
        %1185 = vst [vmem:[%s628 + $0x54] sm:$0xf] %v1184
        %1186 = vst [vmem:[%s628 + $0x58] sm:$0xf] %v946
        %v1187 = vld [vmem:[%s628 + $0x5c] sm:$0x1]
        %v1188 = vsel %vm631, %v947, %v1187
        %1189 = vst [vmem:[%s628 + $0x5c] sm:$0x1] %v1188
        %v1190 = vld [vmem:[%s628 + $0x60] sm:$0xf]
        %v1191 = vsel %vm1133, %v954, %v1190
        %1192 = vst [vmem:[%s628 + $0x60] sm:$0xf] %v1191
        %1193 = vst [vmem:[%s628 + $0x64] sm:$0xf] %v963
        %v1194 = vld [vmem:[%s628 + $0x68] sm:$0x1]
        %v1195 = vsel %vm631, %v964, %v1194
        %1196 = vst [vmem:[%s628 + $0x68] sm:$0x1] %v1195
        %v1197 = vld [vmem:[%s628 + $0x6c] sm:$0xf]
        %v1198 = vsel %vm1133, %v971, %v1197
        %1199 = vst [vmem:[%s628 + $0x6c] sm:$0xf] %v1198
        %1200 = vst [vmem:[%s628 + $0x70] sm:$0xf] %v980
        %v1201 = vld [vmem:[%s628 + $0x74] sm:$0x1]
        %v1202 = vsel %vm631, %v981, %v1201
        %1203 = vst [vmem:[%s628 + $0x74] sm:$0x1] %v1202
        %v1204 = vld [vmem:[%s628 + $0x78] sm:$0xf]
        %v1205 = vsel %vm1133, %v988, %v1204
        %1206 = vst [vmem:[%s628 + $0x78] sm:$0xf] %v1205
        %1207 = vst [vmem:[%s628 + $0x7c] sm:$0xf] %v997
        %v1208 = vld [vmem:[%s628 + $0x80] sm:$0x1]
        %v1209 = vsel %vm631, %v998, %v1208
        %1210 = vst [vmem:[%s628 + $0x80] sm:$0x1] %v1209
        %v1211 = vld [vmem:[%s628 + $0x84] sm:$0xf]
        %v1212 = vsel %vm1133, %v1005, %v1211
        %1213 = vst [vmem:[%s628 + $0x84] sm:$0xf] %v1212
        %1214 = vst [vmem:[%s628 + $0x88] sm:$0xf] %v1014
        %v1215 = vld [vmem:[%s628 + $0x8c] sm:$0x1]
        %v1216 = vsel %vm631, %v1015, %v1215
        %1217 = vst [vmem:[%s628 + $0x8c] sm:$0x1] %v1216
        %v1218 = vld [vmem:[%s628 + $0x90] sm:$0xf]
        %v1219 = vsel %vm1133, %v1022, %v1218
        %1220 = vst [vmem:[%s628 + $0x90] sm:$0xf] %v1219
        %1221 = vst [vmem:[%s628 + $0x94] sm:$0xf] %v1031
        %v1222 = vld [vmem:[%s628 + $0x98] sm:$0x1]
        %v1223 = vsel %vm631, %v1032, %v1222
        %1224 = vst [vmem:[%s628 + $0x98] sm:$0x1] %v1223
        %v1225 = vld [vmem:[%s628 + $0x9c] sm:$0xf]
        %v1226 = vsel %vm1133, %v1039, %v1225
        %1227 = vst [vmem:[%s628 + $0x9c] sm:$0xf] %v1226
        %1228 = vst [vmem:[%s628 + $0xa0] sm:$0xf] %v1048
        %v1229 = vld [vmem:[%s628 + $0xa4] sm:$0x1]
        %v1230 = vsel %vm631, %v1049, %v1229
        %1231 = vst [vmem:[%s628 + $0xa4] sm:$0x1] %v1230
        %v1232 = vld [vmem:[%s628 + $0xa8] sm:$0xf]
        %v1233 = vsel %vm1133, %v1056, %v1232
        %1234 = vst [vmem:[%s628 + $0xa8] sm:$0xf] %v1233
        %1235 = vst [vmem:[%s628 + $0xac] sm:$0xf] %v1065
        %v1236 = vld [vmem:[%s628 + $0xb0] sm:$0x1]
        %v1237 = vsel %vm631, %v1066, %v1236
        %1238 = vst [vmem:[%s628 + $0xb0] sm:$0x1] %v1237
        %v1239 = vld [vmem:[%s628 + $0xb4] sm:$0xf]
        %v1240 = vsel %vm1133, %v1073, %v1239
        %1241 = vst [vmem:[%s628 + $0xb4] sm:$0xf] %v1240
        %1242 = vst [vmem:[%s628 + $0xb8] sm:$0xf] %v1082
        %v1243 = vld [vmem:[%s628 + $0xbc] sm:$0x1]
        %v1244 = vsel %vm631, %v1083, %v1243
        %1245 = vst [vmem:[%s628 + $0xbc] sm:$0x1] %v1244
        %v1246 = vld [vmem:[#allocation2] sm:$0xf]
        %v1247 = vld [vmem:[#allocation2 + $0x4] sm:$0xf]
        %v1248 = vld [vmem:[#allocation2 + $0xc] sm:$0xf]
        %v1249 = vld [vmem:[#allocation2 + $0x10] sm:$0xf]
        %v1250 = vld [vmem:[#allocation2 + $0x18] sm:$0xf]
        %v1251 = vld [vmem:[#allocation2 + $0x1c] sm:$0xf]
        %v1252 = vld [vmem:[#allocation2 + $0x24] sm:$0xf]
        %v1253 = vld [vmem:[#allocation2 + $0x28] sm:$0xf]
        %v1254 = vld [vmem:[#allocation2 + $0x30] sm:$0xf]
        %v1255 = vld [vmem:[#allocation2 + $0x34] sm:$0xf]
        %v1256 = vld [vmem:[#allocation2 + $0x3c] sm:$0xf]
        %v1257 = vld [vmem:[#allocation2 + $0x40] sm:$0xf]
        %v1258 = vld [vmem:[#allocation2 + $0x48] sm:$0xf]
        %v1259 = vld [vmem:[#allocation2 + $0x4c] sm:$0xf]
        %v1260 = vld [vmem:[#allocation2 + $0x54] sm:$0xf]
        %v1261 = vld [vmem:[#allocation2 + $0x58] sm:$0xf]
        %v1262 = vld [vmem:[#allocation2 + $0x60] sm:$0xf]
        %v1263 = vld [vmem:[#allocation2 + $0x64] sm:$0xf]
        %v1264 = vld [vmem:[#allocation2 + $0x6c] sm:$0xf]
        %v1265 = vld [vmem:[#allocation2 + $0x70] sm:$0xf]
        %v1266 = vld [vmem:[#allocation2 + $0x78] sm:$0xf]
        %v1267 = vld [vmem:[#allocation2 + $0x7c] sm:$0xf]
        %v1268 = vld [vmem:[#allocation2 + $0x84] sm:$0xf]
        %v1269 = vld [vmem:[#allocation2 + $0x88] sm:$0xf]
        %v1270 = vld [vmem:[#allocation2 + $0x90] sm:$0xf]
        %v1271 = vld [vmem:[#allocation2 + $0x94] sm:$0xf]
        %v1272 = vld [vmem:[#allocation2 + $0x9c] sm:$0xf]
        %v1273 = vld [vmem:[#allocation2 + $0xa0] sm:$0xf]
        %v1274 = vld [vmem:[#allocation2 + $0xa8] sm:$0xf]
        %v1275 = vld [vmem:[#allocation2 + $0xac] sm:$0xf]
        %v1276 = vld [vmem:[#allocation2 + $0xb4] sm:$0xf]
        %v1277 = vld [vmem:[#allocation2 + $0xb8] sm:$0xf]
        %v1278 = vld [vmem:[#allocation4] sm:$0xff]
        %v1279 = vld [vmem:[#allocation4 + $0x8] sm:$0xff]
        %v1280 = vld [vmem:[#allocation4 + $0x10] sm:$0xff]
        %v1281 = vld [vmem:[#allocation4 + $0x18] sm:$0xff]
        %v1282 = vld [vmem:[#allocation4 + $0x20] sm:$0xff]
        %v1283 = vld [vmem:[#allocation4 + $0x28] sm:$0xff]
        %v1284 = vld [vmem:[#allocation4 + $0x30] sm:$0xff]
        %v1285 = vld [vmem:[#allocation4 + $0x38] sm:$0xff]
        %v1286 = vld [vmem:[#allocation4 + $0x40] sm:$0xff]
        %v1287 = vld [vmem:[#allocation4 + $0x48] sm:$0xff]
        %v1288 = vld [vmem:[#allocation4 + $0x50] sm:$0xff]
        %v1289 = vld [vmem:[#allocation4 + $0x58] sm:$0xff]
        %v1290 = vld [vmem:[#allocation4 + $0x60] sm:$0xff]
        %v1291 = vld [vmem:[#allocation4 + $0x68] sm:$0xff]
        %v1292 = vld [vmem:[#allocation4 + $0x70] sm:$0xff]
        %v1293 = vld [vmem:[#allocation4 + $0x78] sm:$0xff]
        %v1326 = vunpack.c.l.b16 %v1246
        %v1327 = vunpack.c.l.b16 %v1247
        %v1328 = vunpack.c.l.b16 %v1248
        %v1329 = vunpack.c.l.b16 %v1249
        %v1330 = vunpack.c.l.b16 %v1250
        %v1331 = vunpack.c.l.b16 %v1251
        %v1332 = vunpack.c.l.b16 %v1252
        %v1333 = vunpack.c.l.b16 %v1253
        %v1334 = vunpack.c.l.b16 %v1254
        %v1335 = vunpack.c.l.b16 %v1255
        %v1336 = vunpack.c.l.b16 %v1256
        %v1337 = vunpack.c.l.b16 %v1257
        %v1338 = vunpack.c.l.b16 %v1258
        %v1339 = vunpack.c.l.b16 %v1259
        %v1340 = vunpack.c.l.b16 %v1260
        %v1341 = vunpack.c.l.b16 %v1261
        %v1342 = vunpack.c.l.b16 %v1262
        %v1343 = vunpack.c.l.b16 %v1263
        %v1344 = vunpack.c.l.b16 %v1264
        %v1345 = vunpack.c.l.b16 %v1265
        %v1346 = vunpack.c.l.b16 %v1266
        %v1347 = vunpack.c.l.b16 %v1267
        %v1348 = vunpack.c.l.b16 %v1268
        %v1349 = vunpack.c.l.b16 %v1269
        %v1350 = vunpack.c.l.b16 %v1270
        %v1351 = vunpack.c.l.b16 %v1271
        %v1352 = vunpack.c.l.b16 %v1272
        %v1353 = vunpack.c.l.b16 %v1273
        %v1354 = vunpack.c.l.b16 %v1274
        %v1355 = vunpack.c.l.b16 %v1275
        %v1356 = vunpack.c.l.b16 %v1276
        %v1357 = vunpack.c.l.b16 %v1277
        %v1358 = vpack.c.b16 %v1327, %v1326
        %v1359 = vpack.c.b16 %v1329, %v1328
        %v1360 = vpack.c.b16 %v1331, %v1330
        %v1361 = vpack.c.b16 %v1333, %v1332
        %v1362 = vpack.c.b16 %v1335, %v1334
        %v1363 = vpack.c.b16 %v1337, %v1336
        %v1364 = vpack.c.b16 %v1339, %v1338
        %v1365 = vpack.c.b16 %v1341, %v1340
        %v1366 = vpack.c.b16 %v1343, %v1342
        %v1367 = vpack.c.b16 %v1345, %v1344
        %v1368 = vpack.c.b16 %v1347, %v1346
        %v1369 = vpack.c.b16 %v1349, %v1348
        %v1370 = vpack.c.b16 %v1351, %v1350
        %v1371 = vpack.c.b16 %v1353, %v1352
        %v1372 = vpack.c.b16 %v1355, %v1354
        %v1373 = vpack.c.b16 %v1357, %v1356
        %v1406 = vunpack.c.l.b16 %v1278
        %v1407 = vunpack.c.h.b16 %v1278
        %v1408 = vunpack.c.l.b16 %v1279
        %v1409 = vunpack.c.h.b16 %v1279
        %v1410 = vunpack.c.l.b16 %v1280
        %v1411 = vunpack.c.h.b16 %v1280
        %v1412 = vunpack.c.l.b16 %v1281
        %v1413 = vunpack.c.h.b16 %v1281
        %v1414 = vunpack.c.l.b16 %v1282
        %v1415 = vunpack.c.h.b16 %v1282
        %v1416 = vunpack.c.l.b16 %v1283
        %v1417 = vunpack.c.h.b16 %v1283
        %v1418 = vunpack.c.l.b16 %v1284
        %v1419 = vunpack.c.h.b16 %v1284
        %v1420 = vunpack.c.l.b16 %v1285
        %v1421 = vunpack.c.h.b16 %v1285
        %v1422 = vunpack.c.l.b16 %v1286
        %v1423 = vunpack.c.h.b16 %v1286
        %v1424 = vunpack.c.l.b16 %v1287
        %v1425 = vunpack.c.h.b16 %v1287
        %v1426 = vunpack.c.l.b16 %v1288
        %v1427 = vunpack.c.h.b16 %v1288
        %v1428 = vunpack.c.l.b16 %v1289
        %v1429 = vunpack.c.h.b16 %v1289
        %v1430 = vunpack.c.l.b16 %v1290
        %v1431 = vunpack.c.h.b16 %v1290
        %v1432 = vunpack.c.l.b16 %v1291
        %v1433 = vunpack.c.h.b16 %v1291
        %v1434 = vunpack.c.l.b16 %v1292
        %v1435 = vunpack.c.h.b16 %v1292
        %v1436 = vunpack.c.l.b16 %v1293
        %v1437 = vunpack.c.h.b16 %v1293
        %v1438 = vpack.c.b16 %v1408, %v1406
        %v1439 = vpack.c.b16 %v1409, %v1407
        %v1440 = vpack.c.b16 %v1412, %v1410
        %v1441 = vpack.c.b16 %v1413, %v1411
        %v1442 = vpack.c.b16 %v1416, %v1414
        %v1443 = vpack.c.b16 %v1417, %v1415
        %v1444 = vpack.c.b16 %v1420, %v1418
        %v1445 = vpack.c.b16 %v1421, %v1419
        %v1446 = vpack.c.b16 %v1424, %v1422
        %v1447 = vpack.c.b16 %v1425, %v1423
        %v1448 = vpack.c.b16 %v1428, %v1426
        %v1449 = vpack.c.b16 %v1429, %v1427
        %v1450 = vpack.c.b16 %v1432, %v1430
        %v1451 = vpack.c.b16 %v1433, %v1431
        %v1452 = vpack.c.b16 %v1436, %v1434
        %v1453 = vpack.c.b16 %v1437, %v1435
        %1470 = vmatprep.subr.bf16.mxu0 %v1439
        %1471 = vmatpush1.bf16.msra.mxu0 %v1438
        %1472 = vmatprep.subr.bf16.mxu0 %v1441
        %1473 = vmatpush1.bf16.msra.mxu0 %v1440
        %1474 = vmatprep.subr.bf16.mxu0 %v1443
        %1475 = vmatpush1.bf16.msra.mxu0 %v1442
        %1476 = vmatprep.subr.bf16.mxu0 %v1445
        %1477 = vmatpush1.bf16.msra.mxu0 %v1444
        %1478 = vmatprep.subr.bf16.mxu0 %v1447
        %1479 = vmatpush1.bf16.msra.mxu0 %v1446
        %1480 = vmatprep.subr.bf16.mxu0 %v1449
        %1481 = vmatpush1.bf16.msra.mxu0 %v1448
        %1482 = vmatprep.subr.bf16.mxu0 %v1451
        %1483 = vmatpush1.bf16.msra.mxu0 %v1450
        %1484 = vmatprep.subr.bf16.mxu0 %v1453
        %1485 = vmatpush1.bf16.msra.mxu0 %v1452
        %1486 = vmatprep.subr.bf16.mxu0 0
        %1487 = vmatpush1.bf16.msra.mxu0 0
        %1488 = vmatprep.subr.bf16.mxu0 0
        %1489 = vmatpush1.bf16.msra.mxu0 0
        %1490 = vmatprep.subr.bf16.mxu0 0
        %1491 = vmatpush1.bf16.msra.mxu0 0
        %1492 = vmatprep.subr.bf16.mxu0 0
        %1493 = vmatpush1.bf16.msra.mxu0 0
        %1494 = vmatprep.subr.bf16.mxu0 0
        %1495 = vmatpush1.bf16.msra.mxu0 0
        %1496 = vmatprep.subr.bf16.mxu0 0
        %1497 = vmatpush1.bf16.msra.mxu0 0
        %1498 = vmatprep.subr.bf16.mxu0 0
        %1499 = vmatpush1.bf16.msra.mxu0 0
        %1500 = vmatprep.subr.bf16.mxu0 0
        %1501 = vmatpush1.bf16.msra.mxu0 0
        %1502 = vmatprep.mubr.bf16.mxu0 0
        %1503 = vmatmul.mubr.bf16.gmra.mrb[0].mxu0 %v1358
        %v1504 = vpop.f32.mrb[0].mxu0
        %v1505 = vadd.f32 0.0, %v1504
        %v1506 = vpop.f32.mrb[0].mxu0
        %v1507 = vadd.f32 0.0, %v1506
        %v1508 = vpop.f32.mrb[0].mxu0
        %v1509 = vadd.f32 0.0, %v1508
        %v1510 = vpop.f32.mrb[0].mxu0
        %v1511 = vadd.f32 0.0, %v1510
        %1512 = vmatprep.mubr.bf16.mxu0 0
        %1513 = vmatmul.mubr.bf16.gmra.mrb[0].mxu0 %v1359
        %v1514 = vpop.f32.mrb[0].mxu0
        %v1515 = vadd.f32 0.0, %v1514
        %v1516 = vpop.f32.mrb[0].mxu0
        %v1517 = vadd.f32 0.0, %v1516
        %v1518 = vpop.f32.mrb[0].mxu0
        %v1519 = vadd.f32 0.0, %v1518
        %v1520 = vpop.f32.mrb[0].mxu0
        %v1521 = vadd.f32 0.0, %v1520
        %1522 = vmatprep.mubr.bf16.mxu0 0
        %1523 = vmatmul.mubr.bf16.gmra.mrb[0].mxu0 %v1360
        %v1524 = vpop.f32.mrb[0].mxu0
        %v1525 = vadd.f32 0.0, %v1524
        %v1526 = vpop.f32.mrb[0].mxu0
        %v1527 = vadd.f32 0.0, %v1526
        %v1528 = vpop.f32.mrb[0].mxu0
        %v1529 = vadd.f32 0.0, %v1528
        %v1530 = vpop.f32.mrb[0].mxu0
        %v1531 = vadd.f32 0.0, %v1530
        %1532 = vmatprep.mubr.bf16.mxu0 0
        %1533 = vmatmul.mubr.bf16.gmra.mrb[0].mxu0 %v1361
        %v1534 = vpop.f32.mrb[0].mxu0
        %v1535 = vadd.f32 0.0, %v1534
        %v1536 = vpop.f32.mrb[0].mxu0
        %v1537 = vadd.f32 0.0, %v1536
        %v1538 = vpop.f32.mrb[0].mxu0
        %v1539 = vadd.f32 0.0, %v1538
        %v1540 = vpop.f32.mrb[0].mxu0
        %v1541 = vadd.f32 0.0, %v1540
        %1542 = vmatprep.mubr.bf16.mxu0 0
        %1543 = vmatmul.mubr.bf16.gmra.mrb[0].mxu0 %v1362
        %v1544 = vpop.f32.mrb[0].mxu0
        %v1545 = vadd.f32 0.0, %v1544
        %v1546 = vpop.f32.mrb[0].mxu0
        %v1547 = vadd.f32 0.0, %v1546
        %v1548 = vpop.f32.mrb[0].mxu0
        %v1549 = vadd.f32 0.0, %v1548
        %v1550 = vpop.f32.mrb[0].mxu0
        %v1551 = vadd.f32 0.0, %v1550
        %1552 = vmatprep.mubr.bf16.mxu0 0
        %1553 = vmatmul.mubr.bf16.gmra.mrb[0].mxu0 %v1363
        %v1554 = vpop.f32.mrb[0].mxu0
        %v1555 = vadd.f32 0.0, %v1554
        %v1556 = vpop.f32.mrb[0].mxu0
        %v1557 = vadd.f32 0.0, %v1556
        %v1558 = vpop.f32.mrb[0].mxu0
        %v1559 = vadd.f32 0.0, %v1558
        %v1560 = vpop.f32.mrb[0].mxu0
        %v1561 = vadd.f32 0.0, %v1560
        %1562 = vmatprep.mubr.bf16.mxu0 0
        %1563 = vmatmul.mubr.bf16.gmra.mrb[0].mxu0 %v1364
        %v1564 = vpop.f32.mrb[0].mxu0
        %v1565 = vadd.f32 0.0, %v1564
        %v1566 = vpop.f32.mrb[0].mxu0
        %v1567 = vadd.f32 0.0, %v1566
        %v1568 = vpop.f32.mrb[0].mxu0
        %v1569 = vadd.f32 0.0, %v1568
        %v1570 = vpop.f32.mrb[0].mxu0
        %v1571 = vadd.f32 0.0, %v1570
        %1572 = vmatprep.mubr.bf16.mxu0 0
        %1573 = vmatmul.mubr.bf16.gmra.mrb[0].mxu0 %v1365
        %v1574 = vpop.f32.mrb[0].mxu0
        %v1575 = vadd.f32 0.0, %v1574
        %v1576 = vpop.f32.mrb[0].mxu0
        %v1577 = vadd.f32 0.0, %v1576
        %v1578 = vpop.f32.mrb[0].mxu0
        %v1579 = vadd.f32 0.0, %v1578
        %v1580 = vpop.f32.mrb[0].mxu0
        %v1581 = vadd.f32 0.0, %v1580
        %1582 = vmatprep.mubr.bf16.mxu0 0
        %1583 = vmatmul.mubr.bf16.gmra.mrb[0].mxu0 %v1366
        %v1584 = vpop.f32.mrb[0].mxu0
        %v1585 = vadd.f32 0.0, %v1584
        %v1586 = vpop.f32.mrb[0].mxu0
        %v1587 = vadd.f32 0.0, %v1586
        %v1588 = vpop.f32.mrb[0].mxu0
        %v1589 = vadd.f32 0.0, %v1588
        %v1590 = vpop.f32.mrb[0].mxu0
        %v1591 = vadd.f32 0.0, %v1590
        %1592 = vmatprep.mubr.bf16.mxu0 0
        %1593 = vmatmul.mubr.bf16.gmra.mrb[0].mxu0 %v1367
        %v1594 = vpop.f32.mrb[0].mxu0
        %v1595 = vadd.f32 0.0, %v1594
        %v1596 = vpop.f32.mrb[0].mxu0
        %v1597 = vadd.f32 0.0, %v1596
        %v1598 = vpop.f32.mrb[0].mxu0
        %v1599 = vadd.f32 0.0, %v1598
        %v1600 = vpop.f32.mrb[0].mxu0
        %v1601 = vadd.f32 0.0, %v1600
        %1602 = vmatprep.mubr.bf16.mxu0 0
        %1603 = vmatmul.mubr.bf16.gmra.mrb[0].mxu0 %v1368
        %v1604 = vpop.f32.mrb[0].mxu0
        %v1605 = vadd.f32 0.0, %v1604
        %v1606 = vpop.f32.mrb[0].mxu0
        %v1607 = vadd.f32 0.0, %v1606
        %v1608 = vpop.f32.mrb[0].mxu0
        %v1609 = vadd.f32 0.0, %v1608
        %v1610 = vpop.f32.mrb[0].mxu0
        %v1611 = vadd.f32 0.0, %v1610
        %1612 = vmatprep.mubr.bf16.mxu0 0
        %1613 = vmatmul.mubr.bf16.gmra.mrb[0].mxu0 %v1369
        %v1614 = vpop.f32.mrb[0].mxu0
        %v1615 = vadd.f32 0.0, %v1614
        %v1616 = vpop.f32.mrb[0].mxu0
        %v1617 = vadd.f32 0.0, %v1616
        %v1618 = vpop.f32.mrb[0].mxu0
        %v1619 = vadd.f32 0.0, %v1618
        %v1620 = vpop.f32.mrb[0].mxu0
        %v1621 = vadd.f32 0.0, %v1620
        %1622 = vmatprep.mubr.bf16.mxu0 0
        %1623 = vmatmul.mubr.bf16.gmra.mrb[0].mxu0 %v1370
        %v1624 = vpop.f32.mrb[0].mxu0
        %v1625 = vadd.f32 0.0, %v1624
        %v1626 = vpop.f32.mrb[0].mxu0
        %v1627 = vadd.f32 0.0, %v1626
        %v1628 = vpop.f32.mrb[0].mxu0
        %v1629 = vadd.f32 0.0, %v1628
        %v1630 = vpop.f32.mrb[0].mxu0
        %v1631 = vadd.f32 0.0, %v1630
        %1632 = vmatprep.mubr.bf16.mxu0 0
        %1633 = vmatmul.mubr.bf16.gmra.mrb[0].mxu0 %v1371
        %v1634 = vpop.f32.mrb[0].mxu0
        %v1635 = vadd.f32 0.0, %v1634
        %v1636 = vpop.f32.mrb[0].mxu0
        %v1637 = vadd.f32 0.0, %v1636
        %v1638 = vpop.f32.mrb[0].mxu0
        %v1639 = vadd.f32 0.0, %v1638
        %v1640 = vpop.f32.mrb[0].mxu0
        %v1641 = vadd.f32 0.0, %v1640
        %1642 = vmatprep.mubr.bf16.mxu0 0
        %1643 = vmatmul.mubr.bf16.gmra.mrb[0].mxu0 %v1372
        %v1644 = vpop.f32.mrb[0].mxu0
        %v1645 = vadd.f32 0.0, %v1644
        %v1646 = vpop.f32.mrb[0].mxu0
        %v1647 = vadd.f32 0.0, %v1646
        %v1648 = vpop.f32.mrb[0].mxu0
        %v1649 = vadd.f32 0.0, %v1648
        %v1650 = vpop.f32.mrb[0].mxu0
        %v1651 = vadd.f32 0.0, %v1650
        %1652 = vmatprep.mubr.bf16.mxu0 0
        %1653 = vmatmul.mubr.bf16.gmra.mrb[0].mxu0 %v1373
        %v1654 = vpop.f32.mrb[0].mxu0
        %v1655 = vadd.f32 0.0, %v1654
        %v1656 = vpop.f32.mrb[0].mxu0
        %v1657 = vadd.f32 0.0, %v1656
        %v1658 = vpop.f32.mrb[0].mxu0
        %v1659 = vadd.f32 0.0, %v1658
        %v1660 = vpop.f32.mrb[0].mxu0
        %v1661 = vadd.f32 0.0, %v1660
        %1662 = vdwg.mxu0
        %1663 = vst [vmem:[#allocation3] sm:$0xff] %v1505
        %1664 = vst [vmem:[#allocation3 + $0x8] sm:$0xff] %v1507
        %1665 = vst [vmem:[#allocation3 + $0x10] sm:$0xff] %v1509
        %1666 = vst [vmem:[#allocation3 + $0x18] sm:$0xff] %v1511
        %1667 = vst [vmem:[#allocation3 + $0x20] sm:$0xff] %v1515
        %1668 = vst [vmem:[#allocation3 + $0x28] sm:$0xff] %v1517
        %1669 = vst [vmem:[#allocation3 + $0x30] sm:$0xff] %v1519
        %1670 = vst [vmem:[#allocation3 + $0x38] sm:$0xff] %v1521
        %1671 = vst [vmem:[#allocation3 + $0x40] sm:$0xff] %v1525
        %1672 = vst [vmem:[#allocation3 + $0x48] sm:$0xff] %v1527
        %1673 = vst [vmem:[#allocation3 + $0x50] sm:$0xff] %v1529
        %1674 = vst [vmem:[#allocation3 + $0x58] sm:$0xff] %v1531
        %1675 = vst [vmem:[#allocation3 + $0x60] sm:$0xff] %v1535
        %1676 = vst [vmem:[#allocation3 + $0x68] sm:$0xff] %v1537
        %1677 = vst [vmem:[#allocation3 + $0x70] sm:$0xff] %v1539
        %1678 = vst [vmem:[#allocation3 + $0x78] sm:$0xff] %v1541
        %1679 = vst [vmem:[#allocation3 + $0x80] sm:$0xff] %v1545
        %1680 = vst [vmem:[#allocation3 + $0x88] sm:$0xff] %v1547
        %1681 = vst [vmem:[#allocation3 + $0x90] sm:$0xff] %v1549
        %1682 = vst [vmem:[#allocation3 + $0x98] sm:$0xff] %v1551
        %1683 = vst [vmem:[#allocation3 + $0xa0] sm:$0xff] %v1555
        %1684 = vst [vmem:[#allocation3 + $0xa8] sm:$0xff] %v1557
        %1685 = vst [vmem:[#allocation3 + $0xb0] sm:$0xff] %v1559
        %1686 = vst [vmem:[#allocation3 + $0xb8] sm:$0xff] %v1561
        %1687 = vst [vmem:[#allocation3 + $0xc0] sm:$0xff] %v1565
        %1688 = vst [vmem:[#allocation3 + $0xc8] sm:$0xff] %v1567
        %1689 = vst [vmem:[#allocation3 + $0xd0] sm:$0xff] %v1569
        %1690 = vst [vmem:[#allocation3 + $0xd8] sm:$0xff] %v1571
        %1691 = vst [vmem:[#allocation3 + $0xe0] sm:$0xff] %v1575
        %1692 = vst [vmem:[#allocation3 + $0xe8] sm:$0xff] %v1577
        %1693 = vst [vmem:[#allocation3 + $0xf0] sm:$0xff] %v1579
        %1694 = vst [vmem:[#allocation3 + $0xf8] sm:$0xff] %v1581
        %1695 = vst [vmem:[#allocation3 + $0x100] sm:$0xff] %v1585
        %1696 = vst [vmem:[#allocation3 + $0x108] sm:$0xff] %v1587
        %1697 = vst [vmem:[#allocation3 + $0x110] sm:$0xff] %v1589
        %1698 = vst [vmem:[#allocation3 + $0x118] sm:$0xff] %v1591
        %1699 = vst [vmem:[#allocation3 + $0x120] sm:$0xff] %v1595
        %1700 = vst [vmem:[#allocation3 + $0x128] sm:$0xff] %v1597
        %1701 = vst [vmem:[#allocation3 + $0x130] sm:$0xff] %v1599
        %1702 = vst [vmem:[#allocation3 + $0x138] sm:$0xff] %v1601
        %1703 = vst [vmem:[#allocation3 + $0x140] sm:$0xff] %v1605
        %1704 = vst [vmem:[#allocation3 + $0x148] sm:$0xff] %v1607
        %1705 = vst [vmem:[#allocation3 + $0x150] sm:$0xff] %v1609
        %1706 = vst [vmem:[#allocation3 + $0x158] sm:$0xff] %v1611
        %1707 = vst [vmem:[#allocation3 + $0x160] sm:$0xff] %v1615
        %1708 = vst [vmem:[#allocation3 + $0x168] sm:$0xff] %v1617
        %1709 = vst [vmem:[#allocation3 + $0x170] sm:$0xff] %v1619
        %1710 = vst [vmem:[#allocation3 + $0x178] sm:$0xff] %v1621
        %1711 = vst [vmem:[#allocation3 + $0x180] sm:$0xff] %v1625
        %1712 = vst [vmem:[#allocation3 + $0x188] sm:$0xff] %v1627
        %1713 = vst [vmem:[#allocation3 + $0x190] sm:$0xff] %v1629
        %1714 = vst [vmem:[#allocation3 + $0x198] sm:$0xff] %v1631
        %1715 = vst [vmem:[#allocation3 + $0x1a0] sm:$0xff] %v1635
        %1716 = vst [vmem:[#allocation3 + $0x1a8] sm:$0xff] %v1637
        %1717 = vst [vmem:[#allocation3 + $0x1b0] sm:$0xff] %v1639
        %1718 = vst [vmem:[#allocation3 + $0x1b8] sm:$0xff] %v1641
        %1719 = vst [vmem:[#allocation3 + $0x1c0] sm:$0xff] %v1645
        %1720 = vst [vmem:[#allocation3 + $0x1c8] sm:$0xff] %v1647
        %1721 = vst [vmem:[#allocation3 + $0x1d0] sm:$0xff] %v1649
        %1722 = vst [vmem:[#allocation3 + $0x1d8] sm:$0xff] %v1651
        %1723 = vst [vmem:[#allocation3 + $0x1e0] sm:$0xff] %v1655
        %1724 = vst [vmem:[#allocation3 + $0x1e8] sm:$0xff] %v1657
        %1725 = vst [vmem:[#allocation3 + $0x1f0] sm:$0xff] %v1659
        %1726 = vst [vmem:[#allocation3 + $0x1f8] sm:$0xff] %v1661
        %v1727 = vld [vmem:[#allocation2] sm:$0xf]
        %v1728 = vld [vmem:[#allocation2 + $0x4] sm:$0xf]
        %v1729 = vld [vmem:[#allocation2 + $0x8] sm:$0x1]
        %v1730 = vld [vmem:[#allocation2 + $0xc] sm:$0xf]
        %v1731 = vld [vmem:[#allocation2 + $0x10] sm:$0xf]
        %v1732 = vld [vmem:[#allocation2 + $0x14] sm:$0x1]
        %v1733 = vld [vmem:[#allocation2 + $0x18] sm:$0xf]
        %v1734 = vld [vmem:[#allocation2 + $0x1c] sm:$0xf]
        %v1735 = vld [vmem:[#allocation2 + $0x20] sm:$0x1]
        %v1736 = vld [vmem:[#allocation2 + $0x24] sm:$0xf]
        %v1737 = vld [vmem:[#allocation2 + $0x28] sm:$0xf]
        %v1738 = vld [vmem:[#allocation2 + $0x2c] sm:$0x1]
        %v1739 = vld [vmem:[#allocation2 + $0x30] sm:$0xf]
        %v1740 = vld [vmem:[#allocation2 + $0x34] sm:$0xf]
        %v1741 = vld [vmem:[#allocation2 + $0x38] sm:$0x1]
        %v1742 = vld [vmem:[#allocation2 + $0x3c] sm:$0xf]
        %v1743 = vld [vmem:[#allocation2 + $0x40] sm:$0xf]
        %v1744 = vld [vmem:[#allocation2 + $0x44] sm:$0x1]
        %v1745 = vld [vmem:[#allocation2 + $0x48] sm:$0xf]
        %v1746 = vld [vmem:[#allocation2 + $0x4c] sm:$0xf]
        %v1747 = vld [vmem:[#allocation2 + $0x50] sm:$0x1]
        %v1748 = vld [vmem:[#allocation2 + $0x54] sm:$0xf]
        %v1749 = vld [vmem:[#allocation2 + $0x58] sm:$0xf]
        %v1750 = vld [vmem:[#allocation2 + $0x5c] sm:$0x1]
        %v1751 = vld [vmem:[#allocation2 + $0x60] sm:$0xf]
        %v1752 = vld [vmem:[#allocation2 + $0x64] sm:$0xf]
        %v1753 = vld [vmem:[#allocation2 + $0x68] sm:$0x1]
        %v1754 = vld [vmem:[#allocation2 + $0x6c] sm:$0xf]
        %v1755 = vld [vmem:[#allocation2 + $0x70] sm:$0xf]
        %v1756 = vld [vmem:[#allocation2 + $0x74] sm:$0x1]
        %v1757 = vld [vmem:[#allocation2 + $0x78] sm:$0xf]
        %v1758 = vld [vmem:[#allocation2 + $0x7c] sm:$0xf]
        %v1759 = vld [vmem:[#allocation2 + $0x80] sm:$0x1]
        %v1760 = vld [vmem:[#allocation2 + $0x84] sm:$0xf]
        %v1761 = vld [vmem:[#allocation2 + $0x88] sm:$0xf]
        %v1762 = vld [vmem:[#allocation2 + $0x8c] sm:$0x1]
        %v1763 = vld [vmem:[#allocation2 + $0x90] sm:$0xf]
        %v1764 = vld [vmem:[#allocation2 + $0x94] sm:$0xf]
        %v1765 = vld [vmem:[#allocation2 + $0x98] sm:$0x1]
        %v1766 = vld [vmem:[#allocation2 + $0x9c] sm:$0xf]
        %v1767 = vld [vmem:[#allocation2 + $0xa0] sm:$0xf]
        %v1768 = vld [vmem:[#allocation2 + $0xa4] sm:$0x1]
        %v1769 = vld [vmem:[#allocation2 + $0xa8] sm:$0xf]
        %v1770 = vld [vmem:[#allocation2 + $0xac] sm:$0xf]
        %v1771 = vld [vmem:[#allocation2 + $0xb0] sm:$0x1]
        %v1772 = vld [vmem:[#allocation2 + $0xb4] sm:$0xf]
        %v1773 = vld [vmem:[#allocation2 + $0xb8] sm:$0xf]
        %v1774 = vld [vmem:[#allocation2 + $0xbc] sm:$0x1]
        %vm1775 = vsmask.f32 3328
        %vm1776 = vsmask.f32 7440
        %vm1777 = vmor %vm1775, %vm1776
        %v1779 = vshrl.u32 %v1727, 16
        %v1781 = vrot.slane %v1779, 4
        %v1782 = vshll.u32 %v1727, 16
        %v1784 = vrot.slane %v1782, 5
        %v1785 = vor.u32 %v1781, %v1784
        %v1786 = vrot.slane %v1785, 4
        %v1788 = vshll.u32 %v1728, 16
        %v1790 = vrot.slane %v1788, 5
        %v1791 = vsel %vm1777, %v1786, %v1790
        %v1792 = vshrl.u32 %v1728, 16
        %v1794 = vrot.slane %v1792, 4
        %v1795 = vor.u32 %v1794, %v1790
        %v1796 = vrot.slane %v1795, 4
        %v1798 = vshll.u32 %v1729, 16
        %v1800 = vrot.slane %v1798, 5
        %v1801 = vsel %vm1777, %v1796, %v1800
        %v1803 = vshrl.u32 %v1730, 16
        %v1805 = vrot.slane %v1803, 4
        %v1806 = vshll.u32 %v1730, 16
        %v1808 = vrot.slane %v1806, 5
        %v1809 = vor.u32 %v1805, %v1808
        %v1810 = vrot.slane %v1809, 4
        %v1812 = vshll.u32 %v1731, 16
        %v1814 = vrot.slane %v1812, 5
        %v1815 = vsel %vm1777, %v1810, %v1814
        %v1816 = vshrl.u32 %v1731, 16
        %v1818 = vrot.slane %v1816, 4
        %v1819 = vor.u32 %v1818, %v1814
        %v1820 = vrot.slane %v1819, 4
        %v1822 = vshll.u32 %v1732, 16
        %v1824 = vrot.slane %v1822, 5
        %v1825 = vsel %vm1777, %v1820, %v1824
        %v1827 = vshrl.u32 %v1733, 16
        %v1829 = vrot.slane %v1827, 4
        %v1830 = vshll.u32 %v1733, 16
        %v1832 = vrot.slane %v1830, 5
        %v1833 = vor.u32 %v1829, %v1832
        %v1834 = vrot.slane %v1833, 4
        %v1836 = vshll.u32 %v1734, 16
        %v1838 = vrot.slane %v1836, 5
        %v1839 = vsel %vm1777, %v1834, %v1838
        %v1840 = vshrl.u32 %v1734, 16
        %v1842 = vrot.slane %v1840, 4
        %v1843 = vor.u32 %v1842, %v1838
        %v1844 = vrot.slane %v1843, 4
        %v1846 = vshll.u32 %v1735, 16
        %v1848 = vrot.slane %v1846, 5
        %v1849 = vsel %vm1777, %v1844, %v1848
        %v1851 = vshrl.u32 %v1736, 16
        %v1853 = vrot.slane %v1851, 4
        %v1854 = vshll.u32 %v1736, 16
        %v1856 = vrot.slane %v1854, 5
        %v1857 = vor.u32 %v1853, %v1856
        %v1858 = vrot.slane %v1857, 4
        %v1860 = vshll.u32 %v1737, 16
        %v1862 = vrot.slane %v1860, 5
        %v1863 = vsel %vm1777, %v1858, %v1862
        %v1864 = vshrl.u32 %v1737, 16
        %v1866 = vrot.slane %v1864, 4
        %v1867 = vor.u32 %v1866, %v1862
        %v1868 = vrot.slane %v1867, 4
        %v1870 = vshll.u32 %v1738, 16
        %v1872 = vrot.slane %v1870, 5
        %v1873 = vsel %vm1777, %v1868, %v1872
        %v1875 = vshrl.u32 %v1739, 16
        %v1877 = vrot.slane %v1875, 4
        %v1878 = vshll.u32 %v1739, 16
        %v1880 = vrot.slane %v1878, 5
        %v1881 = vor.u32 %v1877, %v1880
        %v1882 = vrot.slane %v1881, 4
        %v1884 = vshll.u32 %v1740, 16
        %v1886 = vrot.slane %v1884, 5
        %v1887 = vsel %vm1777, %v1882, %v1886
        %v1888 = vshrl.u32 %v1740, 16
        %v1890 = vrot.slane %v1888, 4
        %v1891 = vor.u32 %v1890, %v1886
        %v1892 = vrot.slane %v1891, 4
        %v1894 = vshll.u32 %v1741, 16
        %v1896 = vrot.slane %v1894, 5
        %v1897 = vsel %vm1777, %v1892, %v1896
        %v1899 = vshrl.u32 %v1742, 16
        %v1901 = vrot.slane %v1899, 4
        %v1902 = vshll.u32 %v1742, 16
        %v1904 = vrot.slane %v1902, 5
        %v1905 = vor.u32 %v1901, %v1904
        %v1906 = vrot.slane %v1905, 4
        %v1908 = vshll.u32 %v1743, 16
        %v1910 = vrot.slane %v1908, 5
        %v1911 = vsel %vm1777, %v1906, %v1910
        %v1912 = vshrl.u32 %v1743, 16
        %v1914 = vrot.slane %v1912, 4
        %v1915 = vor.u32 %v1914, %v1910
        %v1916 = vrot.slane %v1915, 4
        %v1918 = vshll.u32 %v1744, 16
        %v1920 = vrot.slane %v1918, 5
        %v1921 = vsel %vm1777, %v1916, %v1920
        %v1923 = vshrl.u32 %v1745, 16
        %v1925 = vrot.slane %v1923, 4
        %v1926 = vshll.u32 %v1745, 16
        %v1928 = vrot.slane %v1926, 5
        %v1929 = vor.u32 %v1925, %v1928
        %v1930 = vrot.slane %v1929, 4
        %v1932 = vshll.u32 %v1746, 16
        %v1934 = vrot.slane %v1932, 5
        %v1935 = vsel %vm1777, %v1930, %v1934
        %v1936 = vshrl.u32 %v1746, 16
        %v1938 = vrot.slane %v1936, 4
        %v1939 = vor.u32 %v1938, %v1934
        %v1940 = vrot.slane %v1939, 4
        %v1942 = vshll.u32 %v1747, 16
        %v1944 = vrot.slane %v1942, 5
        %v1945 = vsel %vm1777, %v1940, %v1944
        %v1947 = vshrl.u32 %v1748, 16
        %v1949 = vrot.slane %v1947, 4
        %v1950 = vshll.u32 %v1748, 16
        %v1952 = vrot.slane %v1950, 5
        %v1953 = vor.u32 %v1949, %v1952
        %v1954 = vrot.slane %v1953, 4
        %v1956 = vshll.u32 %v1749, 16
        %v1958 = vrot.slane %v1956, 5
        %v1959 = vsel %vm1777, %v1954, %v1958
        %v1960 = vshrl.u32 %v1749, 16
        %v1962 = vrot.slane %v1960, 4
        %v1963 = vor.u32 %v1962, %v1958
        %v1964 = vrot.slane %v1963, 4
        %v1966 = vshll.u32 %v1750, 16
        %v1968 = vrot.slane %v1966, 5
        %v1969 = vsel %vm1777, %v1964, %v1968
        %v1971 = vshrl.u32 %v1751, 16
        %v1973 = vrot.slane %v1971, 4
        %v1974 = vshll.u32 %v1751, 16
        %v1976 = vrot.slane %v1974, 5
        %v1977 = vor.u32 %v1973, %v1976
        %v1978 = vrot.slane %v1977, 4
        %v1980 = vshll.u32 %v1752, 16
        %v1982 = vrot.slane %v1980, 5
        %v1983 = vsel %vm1777, %v1978, %v1982
        %v1984 = vshrl.u32 %v1752, 16
        %v1986 = vrot.slane %v1984, 4
        %v1987 = vor.u32 %v1986, %v1982
        %v1988 = vrot.slane %v1987, 4
        %v1990 = vshll.u32 %v1753, 16
        %v1992 = vrot.slane %v1990, 5
        %v1993 = vsel %vm1777, %v1988, %v1992
        %v1995 = vshrl.u32 %v1754, 16
        %v1997 = vrot.slane %v1995, 4
        %v1998 = vshll.u32 %v1754, 16
        %v2000 = vrot.slane %v1998, 5
        %v2001 = vor.u32 %v1997, %v2000
        %v2002 = vrot.slane %v2001, 4
        %v2004 = vshll.u32 %v1755, 16
        %v2006 = vrot.slane %v2004, 5
        %v2007 = vsel %vm1777, %v2002, %v2006
        %v2008 = vshrl.u32 %v1755, 16
        %v2010 = vrot.slane %v2008, 4
        %v2011 = vor.u32 %v2010, %v2006
        %v2012 = vrot.slane %v2011, 4
        %v2014 = vshll.u32 %v1756, 16
        %v2016 = vrot.slane %v2014, 5
        %v2017 = vsel %vm1777, %v2012, %v2016
        %v2019 = vshrl.u32 %v1757, 16
        %v2021 = vrot.slane %v2019, 4
        %v2022 = vshll.u32 %v1757, 16
        %v2024 = vrot.slane %v2022, 5
        %v2025 = vor.u32 %v2021, %v2024
        %v2026 = vrot.slane %v2025, 4
        %v2028 = vshll.u32 %v1758, 16
        %v2030 = vrot.slane %v2028, 5
        %v2031 = vsel %vm1777, %v2026, %v2030
        %v2032 = vshrl.u32 %v1758, 16
        %v2034 = vrot.slane %v2032, 4
        %v2035 = vor.u32 %v2034, %v2030
        %v2036 = vrot.slane %v2035, 4
        %v2038 = vshll.u32 %v1759, 16
        %v2040 = vrot.slane %v2038, 5
        %v2041 = vsel %vm1777, %v2036, %v2040
        %v2043 = vshrl.u32 %v1760, 16
        %v2045 = vrot.slane %v2043, 4
        %v2046 = vshll.u32 %v1760, 16
        %v2048 = vrot.slane %v2046, 5
        %v2049 = vor.u32 %v2045, %v2048
        %v2050 = vrot.slane %v2049, 4
        %v2052 = vshll.u32 %v1761, 16
        %v2054 = vrot.slane %v2052, 5
        %v2055 = vsel %vm1777, %v2050, %v2054
        %v2056 = vshrl.u32 %v1761, 16
        %v2058 = vrot.slane %v2056, 4
        %v2059 = vor.u32 %v2058, %v2054
        %v2060 = vrot.slane %v2059, 4
        %v2062 = vshll.u32 %v1762, 16
        %v2064 = vrot.slane %v2062, 5
        %v2065 = vsel %vm1777, %v2060, %v2064
        %v2067 = vshrl.u32 %v1763, 16
        %v2069 = vrot.slane %v2067, 4
        %v2070 = vshll.u32 %v1763, 16
        %v2072 = vrot.slane %v2070, 5
        %v2073 = vor.u32 %v2069, %v2072
        %v2074 = vrot.slane %v2073, 4
        %v2076 = vshll.u32 %v1764, 16
        %v2078 = vrot.slane %v2076, 5
        %v2079 = vsel %vm1777, %v2074, %v2078
        %v2080 = vshrl.u32 %v1764, 16
        %v2082 = vrot.slane %v2080, 4
        %v2083 = vor.u32 %v2082, %v2078
        %v2084 = vrot.slane %v2083, 4
        %v2086 = vshll.u32 %v1765, 16
        %v2088 = vrot.slane %v2086, 5
        %v2089 = vsel %vm1777, %v2084, %v2088
        %v2091 = vshrl.u32 %v1766, 16
        %v2093 = vrot.slane %v2091, 4
        %v2094 = vshll.u32 %v1766, 16
        %v2096 = vrot.slane %v2094, 5
        %v2097 = vor.u32 %v2093, %v2096
        %v2098 = vrot.slane %v2097, 4
        %v2100 = vshll.u32 %v1767, 16
        %v2102 = vrot.slane %v2100, 5
        %v2103 = vsel %vm1777, %v2098, %v2102
        %v2104 = vshrl.u32 %v1767, 16
        %v2106 = vrot.slane %v2104, 4
        %v2107 = vor.u32 %v2106, %v2102
        %v2108 = vrot.slane %v2107, 4
        %v2110 = vshll.u32 %v1768, 16
        %v2112 = vrot.slane %v2110, 5
        %v2113 = vsel %vm1777, %v2108, %v2112
        %v2115 = vshrl.u32 %v1769, 16
        %v2117 = vrot.slane %v2115, 4
        %v2118 = vshll.u32 %v1769, 16
        %v2120 = vrot.slane %v2118, 5
        %v2121 = vor.u32 %v2117, %v2120
        %v2122 = vrot.slane %v2121, 4
        %v2124 = vshll.u32 %v1770, 16
        %v2126 = vrot.slane %v2124, 5
        %v2127 = vsel %vm1777, %v2122, %v2126
        %v2128 = vshrl.u32 %v1770, 16
        %v2130 = vrot.slane %v2128, 4
        %v2131 = vor.u32 %v2130, %v2126
        %v2132 = vrot.slane %v2131, 4
        %v2134 = vshll.u32 %v1771, 16
        %v2136 = vrot.slane %v2134, 5
        %v2137 = vsel %vm1777, %v2132, %v2136
        %v2139 = vshrl.u32 %v1772, 16
        %v2141 = vrot.slane %v2139, 4
        %v2142 = vshll.u32 %v1772, 16
        %v2144 = vrot.slane %v2142, 5
        %v2145 = vor.u32 %v2141, %v2144
        %v2146 = vrot.slane %v2145, 4
        %v2148 = vshll.u32 %v1773, 16
        %v2150 = vrot.slane %v2148, 5
        %v2151 = vsel %vm1777, %v2146, %v2150
        %v2152 = vshrl.u32 %v1773, 16
        %v2154 = vrot.slane %v2152, 4
        %v2155 = vor.u32 %v2154, %v2150
        %v2156 = vrot.slane %v2155, 4
        %v2158 = vshll.u32 %v1774, 16
        %v2160 = vrot.slane %v2158, 5
        %v2161 = vsel %vm1777, %v2156, %v2160
        %s2162 = scalar_lea.vmem [#allocation4], 128
        %v2163 = vld [vmem:[%s2162] sm:$0xff]
        %v2164 = vld [vmem:[%s2162 + $0x8] sm:$0xff]
        %v2165 = vld [vmem:[%s2162 + $0x10] sm:$0xff]
        %v2166 = vld [vmem:[%s2162 + $0x18] sm:$0xff]
        %v2167 = vld [vmem:[%s2162 + $0x20] sm:$0xff]
        %v2168 = vld [vmem:[%s2162 + $0x28] sm:$0xff]
        %v2169 = vld [vmem:[%s2162 + $0x30] sm:$0xff]
        %v2170 = vld [vmem:[%s2162 + $0x38] sm:$0xff]
        %v2171 = vld [vmem:[%s2162 + $0x40] sm:$0xff]
        %v2172 = vld [vmem:[%s2162 + $0x48] sm:$0xff]
        %v2173 = vld [vmem:[%s2162 + $0x50] sm:$0xff]
        %v2174 = vld [vmem:[%s2162 + $0x58] sm:$0xff]
        %v2175 = vld [vmem:[%s2162 + $0x60] sm:$0xff]
        %v2176 = vld [vmem:[%s2162 + $0x68] sm:$0xff]
        %v2177 = vld [vmem:[%s2162 + $0x70] sm:$0xff]
        %v2178 = vld [vmem:[%s2162 + $0x78] sm:$0xff]
        %v2179 = vunpack.c.l.b16 %v1791
        %v2180 = vunpack.c.l.b16 %v1801
        %v2181 = vunpack.c.l.b16 %v1815
        %v2182 = vunpack.c.l.b16 %v1825
        %v2183 = vunpack.c.l.b16 %v1839
        %v2184 = vunpack.c.l.b16 %v1849
        %v2185 = vunpack.c.l.b16 %v1863
        %v2186 = vunpack.c.l.b16 %v1873
        %v2187 = vunpack.c.l.b16 %v1887
        %v2188 = vunpack.c.l.b16 %v1897
        %v2189 = vunpack.c.l.b16 %v1911
        %v2190 = vunpack.c.l.b16 %v1921
        %v2191 = vunpack.c.l.b16 %v1935
        %v2192 = vunpack.c.l.b16 %v1945
        %v2193 = vunpack.c.l.b16 %v1959
        %v2194 = vunpack.c.l.b16 %v1969
        %v2195 = vunpack.c.l.b16 %v1983
        %v2196 = vunpack.c.l.b16 %v1993
        %v2197 = vunpack.c.l.b16 %v2007
        %v2198 = vunpack.c.l.b16 %v2017
        %v2199 = vunpack.c.l.b16 %v2031
        %v2200 = vunpack.c.l.b16 %v2041
        %v2201 = vunpack.c.l.b16 %v2055
        %v2202 = vunpack.c.l.b16 %v2065
        %v2203 = vunpack.c.l.b16 %v2079
        %v2204 = vunpack.c.l.b16 %v2089
        %v2205 = vunpack.c.l.b16 %v2103
        %v2206 = vunpack.c.l.b16 %v2113
        %v2207 = vunpack.c.l.b16 %v2127
        %v2208 = vunpack.c.l.b16 %v2137
        %v2209 = vunpack.c.l.b16 %v2151
        %v2210 = vunpack.c.l.b16 %v2161
        %v2211 = vpack.c.b16 %v2180, %v2179
        %v2212 = vpack.c.b16 %v2182, %v2181
        %v2213 = vpack.c.b16 %v2184, %v2183
        %v2214 = vpack.c.b16 %v2186, %v2185
        %v2215 = vpack.c.b16 %v2188, %v2187
        %v2216 = vpack.c.b16 %v2190, %v2189
        %v2217 = vpack.c.b16 %v2192, %v2191
        %v2218 = vpack.c.b16 %v2194, %v2193
        %v2219 = vpack.c.b16 %v2196, %v2195
        %v2220 = vpack.c.b16 %v2198, %v2197
        %v2221 = vpack.c.b16 %v2200, %v2199
        %v2222 = vpack.c.b16 %v2202, %v2201
        %v2223 = vpack.c.b16 %v2204, %v2203
        %v2224 = vpack.c.b16 %v2206, %v2205
        %v2225 = vpack.c.b16 %v2208, %v2207
        %v2226 = vpack.c.b16 %v2210, %v2209
        %v2259 = vunpack.c.l.b16 %v2163
        %v2260 = vunpack.c.h.b16 %v2163
        %v2261 = vunpack.c.l.b16 %v2164
        %v2262 = vunpack.c.h.b16 %v2164
        %v2263 = vunpack.c.l.b16 %v2165
        %v2264 = vunpack.c.h.b16 %v2165
        %v2265 = vunpack.c.l.b16 %v2166
        %v2266 = vunpack.c.h.b16 %v2166
        %v2267 = vunpack.c.l.b16 %v2167
        %v2268 = vunpack.c.h.b16 %v2167
        %v2269 = vunpack.c.l.b16 %v2168
        %v2270 = vunpack.c.h.b16 %v2168
        %v2271 = vunpack.c.l.b16 %v2169
        %v2272 = vunpack.c.h.b16 %v2169
        %v2273 = vunpack.c.l.b16 %v2170
        %v2274 = vunpack.c.h.b16 %v2170
        %v2275 = vunpack.c.l.b16 %v2171
        %v2276 = vunpack.c.h.b16 %v2171
        %v2277 = vunpack.c.l.b16 %v2172
        %v2278 = vunpack.c.h.b16 %v2172
        %v2279 = vunpack.c.l.b16 %v2173
        %v2280 = vunpack.c.h.b16 %v2173
        %v2281 = vunpack.c.l.b16 %v2174
        %v2282 = vunpack.c.h.b16 %v2174
        %v2283 = vunpack.c.l.b16 %v2175
        %v2284 = vunpack.c.h.b16 %v2175
        %v2285 = vunpack.c.l.b16 %v2176
        %v2286 = vunpack.c.h.b16 %v2176
        %v2287 = vunpack.c.l.b16 %v2177
        %v2288 = vunpack.c.h.b16 %v2177
        %v2289 = vunpack.c.l.b16 %v2178
        %v2290 = vunpack.c.h.b16 %v2178
        %v2291 = vpack.c.b16 %v2261, %v2259
        %v2292 = vpack.c.b16 %v2262, %v2260
        %v2293 = vpack.c.b16 %v2265, %v2263
        %v2294 = vpack.c.b16 %v2266, %v2264
        %v2295 = vpack.c.b16 %v2269, %v2267
        %v2296 = vpack.c.b16 %v2270, %v2268
        %v2297 = vpack.c.b16 %v2273, %v2271
        %v2298 = vpack.c.b16 %v2274, %v2272
        %v2299 = vpack.c.b16 %v2277, %v2275
        %v2300 = vpack.c.b16 %v2278, %v2276
        %v2301 = vpack.c.b16 %v2281, %v2279
        %v2302 = vpack.c.b16 %v2282, %v2280
        %v2303 = vpack.c.b16 %v2285, %v2283
        %v2304 = vpack.c.b16 %v2286, %v2284
        %v2305 = vpack.c.b16 %v2289, %v2287
        %v2306 = vpack.c.b16 %v2290, %v2288
        %2323 = vmatprep.subr.bf16.mxu0 %v2292
        %2324 = vmatpush1.bf16.msra.mxu0 %v2291
        %2325 = vmatprep.subr.bf16.mxu0 %v2294
        %2326 = vmatpush1.bf16.msra.mxu0 %v2293
        %2327 = vmatprep.subr.bf16.mxu0 %v2296
        %2328 = vmatpush1.bf16.msra.mxu0 %v2295
        %2329 = vmatprep.subr.bf16.mxu0 %v2298
        %2330 = vmatpush1.bf16.msra.mxu0 %v2297
        %2331 = vmatprep.subr.bf16.mxu0 %v2300
        %2332 = vmatpush1.bf16.msra.mxu0 %v2299
        %2333 = vmatprep.subr.bf16.mxu0 %v2302
        %2334 = vmatpush1.bf16.msra.mxu0 %v2301
        %2335 = vmatprep.subr.bf16.mxu0 %v2304
        %2336 = vmatpush1.bf16.msra.mxu0 %v2303
        %2337 = vmatprep.subr.bf16.mxu0 %v2306
        %2338 = vmatpush1.bf16.msra.mxu0 %v2305
        %2339 = vmatprep.subr.bf16.mxu0 0
        %2340 = vmatpush1.bf16.msra.mxu0 0
        %2341 = vmatprep.subr.bf16.mxu0 0
        %2342 = vmatpush1.bf16.msra.mxu0 0
        %2343 = vmatprep.subr.bf16.mxu0 0
        %2344 = vmatpush1.bf16.msra.mxu0 0
        %2345 = vmatprep.subr.bf16.mxu0 0
        %2346 = vmatpush1.bf16.msra.mxu0 0
        %2347 = vmatprep.subr.bf16.mxu0 0
        %2348 = vmatpush1.bf16.msra.mxu0 0
        %2349 = vmatprep.subr.bf16.mxu0 0
        %2350 = vmatpush1.bf16.msra.mxu0 0
        %2351 = vmatprep.subr.bf16.mxu0 0
        %2352 = vmatpush1.bf16.msra.mxu0 0
        %2353 = vmatprep.subr.bf16.mxu0 0
        %2354 = vmatpush1.bf16.msra.mxu0 0
        %2355 = vmatprep.mubr.bf16.mxu0 0
        %2356 = vmatmul.mubr.bf16.gmra.mrb[0].mxu0 %v2211
        %v2357 = vpop.f32.mrb[0].mxu0
        %v2358 = vadd.f32 0.0, %v2357
        %v2359 = vpop.f32.mrb[0].mxu0
        %v2360 = vadd.f32 0.0, %v2359
        %v2361 = vpop.f32.mrb[0].mxu0
        %v2362 = vadd.f32 0.0, %v2361
        %v2363 = vpop.f32.mrb[0].mxu0
        %v2364 = vadd.f32 0.0, %v2363
        %2365 = vmatprep.mubr.bf16.mxu0 0
        %2366 = vmatmul.mubr.bf16.gmra.mrb[0].mxu0 %v2212
        %v2367 = vpop.f32.mrb[0].mxu0
        %v2368 = vadd.f32 0.0, %v2367
        %v2369 = vpop.f32.mrb[0].mxu0
        %v2370 = vadd.f32 0.0, %v2369
        %v2371 = vpop.f32.mrb[0].mxu0
        %v2372 = vadd.f32 0.0, %v2371
        %v2373 = vpop.f32.mrb[0].mxu0
        %v2374 = vadd.f32 0.0, %v2373
        %2375 = vmatprep.mubr.bf16.mxu0 0
        %2376 = vmatmul.mubr.bf16.gmra.mrb[0].mxu0 %v2213
        %v2377 = vpop.f32.mrb[0].mxu0
        %v2378 = vadd.f32 0.0, %v2377
        %v2379 = vpop.f32.mrb[0].mxu0
        %v2380 = vadd.f32 0.0, %v2379
        %v2381 = vpop.f32.mrb[0].mxu0
        %v2382 = vadd.f32 0.0, %v2381
        %v2383 = vpop.f32.mrb[0].mxu0
        %v2384 = vadd.f32 0.0, %v2383
        %2385 = vmatprep.mubr.bf16.mxu0 0
        %2386 = vmatmul.mubr.bf16.gmra.mrb[0].mxu0 %v2214
        %v2387 = vpop.f32.mrb[0].mxu0
        %v2388 = vadd.f32 0.0, %v2387
        %v2389 = vpop.f32.mrb[0].mxu0
        %v2390 = vadd.f32 0.0, %v2389
        %v2391 = vpop.f32.mrb[0].mxu0
        %v2392 = vadd.f32 0.0, %v2391
        %v2393 = vpop.f32.mrb[0].mxu0
        %v2394 = vadd.f32 0.0, %v2393
        %2395 = vmatprep.mubr.bf16.mxu0 0
        %2396 = vmatmul.mubr.bf16.gmra.mrb[0].mxu0 %v2215
        %v2397 = vpop.f32.mrb[0].mxu0
        %v2398 = vadd.f32 0.0, %v2397
        %v2399 = vpop.f32.mrb[0].mxu0
        %v2400 = vadd.f32 0.0, %v2399
        %v2401 = vpop.f32.mrb[0].mxu0
        %v2402 = vadd.f32 0.0, %v2401
        %v2403 = vpop.f32.mrb[0].mxu0
        %v2404 = vadd.f32 0.0, %v2403
        %2405 = vmatprep.mubr.bf16.mxu0 0
        %2406 = vmatmul.mubr.bf16.gmra.mrb[0].mxu0 %v2216
        %v2407 = vpop.f32.mrb[0].mxu0
        %v2408 = vadd.f32 0.0, %v2407
        %v2409 = vpop.f32.mrb[0].mxu0
        %v2410 = vadd.f32 0.0, %v2409
        %v2411 = vpop.f32.mrb[0].mxu0
        %v2412 = vadd.f32 0.0, %v2411
        %v2413 = vpop.f32.mrb[0].mxu0
        %v2414 = vadd.f32 0.0, %v2413
        %2415 = vmatprep.mubr.bf16.mxu0 0
        %2416 = vmatmul.mubr.bf16.gmra.mrb[0].mxu0 %v2217
        %v2417 = vpop.f32.mrb[0].mxu0
        %v2418 = vadd.f32 0.0, %v2417
        %v2419 = vpop.f32.mrb[0].mxu0
        %v2420 = vadd.f32 0.0, %v2419
        %v2421 = vpop.f32.mrb[0].mxu0
        %v2422 = vadd.f32 0.0, %v2421
        %v2423 = vpop.f32.mrb[0].mxu0
        %v2424 = vadd.f32 0.0, %v2423
        %2425 = vmatprep.mubr.bf16.mxu0 0
        %2426 = vmatmul.mubr.bf16.gmra.mrb[0].mxu0 %v2218
        %v2427 = vpop.f32.mrb[0].mxu0
        %v2428 = vadd.f32 0.0, %v2427
        %v2429 = vpop.f32.mrb[0].mxu0
        %v2430 = vadd.f32 0.0, %v2429
        %v2431 = vpop.f32.mrb[0].mxu0
        %v2432 = vadd.f32 0.0, %v2431
        %v2433 = vpop.f32.mrb[0].mxu0
        %v2434 = vadd.f32 0.0, %v2433
        %2435 = vmatprep.mubr.bf16.mxu0 0
        %2436 = vmatmul.mubr.bf16.gmra.mrb[0].mxu0 %v2219
        %v2437 = vpop.f32.mrb[0].mxu0
        %v2438 = vadd.f32 0.0, %v2437
        %v2439 = vpop.f32.mrb[0].mxu0
        %v2440 = vadd.f32 0.0, %v2439
        %v2441 = vpop.f32.mrb[0].mxu0
        %v2442 = vadd.f32 0.0, %v2441
        %v2443 = vpop.f32.mrb[0].mxu0
        %v2444 = vadd.f32 0.0, %v2443
        %2445 = vmatprep.mubr.bf16.mxu0 0
        %2446 = vmatmul.mubr.bf16.gmra.mrb[0].mxu0 %v2220
        %v2447 = vpop.f32.mrb[0].mxu0
        %v2448 = vadd.f32 0.0, %v2447
        %v2449 = vpop.f32.mrb[0].mxu0
        %v2450 = vadd.f32 0.0, %v2449
        %v2451 = vpop.f32.mrb[0].mxu0
        %v2452 = vadd.f32 0.0, %v2451
        %v2453 = vpop.f32.mrb[0].mxu0
        %v2454 = vadd.f32 0.0, %v2453
        %2455 = vmatprep.mubr.bf16.mxu0 0
        %2456 = vmatmul.mubr.bf16.gmra.mrb[0].mxu0 %v2221
        %v2457 = vpop.f32.mrb[0].mxu0
        %v2458 = vadd.f32 0.0, %v2457
        %v2459 = vpop.f32.mrb[0].mxu0
        %v2460 = vadd.f32 0.0, %v2459
        %v2461 = vpop.f32.mrb[0].mxu0
        %v2462 = vadd.f32 0.0, %v2461
        %v2463 = vpop.f32.mrb[0].mxu0
        %v2464 = vadd.f32 0.0, %v2463
        %2465 = vmatprep.mubr.bf16.mxu0 0
        %2466 = vmatmul.mubr.bf16.gmra.mrb[0].mxu0 %v2222
        %v2467 = vpop.f32.mrb[0].mxu0
        %v2468 = vadd.f32 0.0, %v2467
        %v2469 = vpop.f32.mrb[0].mxu0
        %v2470 = vadd.f32 0.0, %v2469
        %v2471 = vpop.f32.mrb[0].mxu0
        %v2472 = vadd.f32 0.0, %v2471
        %v2473 = vpop.f32.mrb[0].mxu0
        %v2474 = vadd.f32 0.0, %v2473
        %2475 = vmatprep.mubr.bf16.mxu0 0
        %2476 = vmatmul.mubr.bf16.gmra.mrb[0].mxu0 %v2223
        %v2477 = vpop.f32.mrb[0].mxu0
        %v2478 = vadd.f32 0.0, %v2477
        %v2479 = vpop.f32.mrb[0].mxu0
        %v2480 = vadd.f32 0.0, %v2479
        %v2481 = vpop.f32.mrb[0].mxu0
        %v2482 = vadd.f32 0.0, %v2481
        %v2483 = vpop.f32.mrb[0].mxu0
        %v2484 = vadd.f32 0.0, %v2483
        %2485 = vmatprep.mubr.bf16.mxu0 0
        %2486 = vmatmul.mubr.bf16.gmra.mrb[0].mxu0 %v2224
        %v2487 = vpop.f32.mrb[0].mxu0
        %v2488 = vadd.f32 0.0, %v2487
        %v2489 = vpop.f32.mrb[0].mxu0
        %v2490 = vadd.f32 0.0, %v2489
        %v2491 = vpop.f32.mrb[0].mxu0
        %v2492 = vadd.f32 0.0, %v2491
        %v2493 = vpop.f32.mrb[0].mxu0
        %v2494 = vadd.f32 0.0, %v2493
        %2495 = vmatprep.mubr.bf16.mxu0 0
        %2496 = vmatmul.mubr.bf16.gmra.mrb[0].mxu0 %v2225
        %v2497 = vpop.f32.mrb[0].mxu0
        %v2498 = vadd.f32 0.0, %v2497
        %v2499 = vpop.f32.mrb[0].mxu0
        %v2500 = vadd.f32 0.0, %v2499
        %v2501 = vpop.f32.mrb[0].mxu0
        %v2502 = vadd.f32 0.0, %v2501
        %v2503 = vpop.f32.mrb[0].mxu0
        %v2504 = vadd.f32 0.0, %v2503
        %2505 = vmatprep.mubr.bf16.mxu0 0
        %2506 = vmatmul.mubr.bf16.gmra.mrb[0].mxu0 %v2226
        %v2507 = vpop.f32.mrb[0].mxu0
        %v2508 = vadd.f32 0.0, %v2507
        %v2509 = vpop.f32.mrb[0].mxu0
        %v2510 = vadd.f32 0.0, %v2509
        %v2511 = vpop.f32.mrb[0].mxu0
        %v2512 = vadd.f32 0.0, %v2511
        %v2513 = vpop.f32.mrb[0].mxu0
        %v2514 = vadd.f32 0.0, %v2513
        %2515 = vdwg.mxu0
        %v2516 = vld [vmem:[#allocation3] sm:$0xff]
        %v2517 = vld [vmem:[#allocation3 + $0x8] sm:$0xff]
        %v2518 = vld [vmem:[#allocation3 + $0x10] sm:$0xff]
        %v2519 = vld [vmem:[#allocation3 + $0x18] sm:$0xff]
        %v2520 = vld [vmem:[#allocation3 + $0x20] sm:$0xff]
        %v2521 = vld [vmem:[#allocation3 + $0x28] sm:$0xff]
        %v2522 = vld [vmem:[#allocation3 + $0x30] sm:$0xff]
        %v2523 = vld [vmem:[#allocation3 + $0x38] sm:$0xff]
        %v2524 = vld [vmem:[#allocation3 + $0x40] sm:$0xff]
        %v2525 = vld [vmem:[#allocation3 + $0x48] sm:$0xff]
        %v2526 = vld [vmem:[#allocation3 + $0x50] sm:$0xff]
        %v2527 = vld [vmem:[#allocation3 + $0x58] sm:$0xff]
        %v2528 = vld [vmem:[#allocation3 + $0x60] sm:$0xff]
        %v2529 = vld [vmem:[#allocation3 + $0x68] sm:$0xff]
        %v2530 = vld [vmem:[#allocation3 + $0x70] sm:$0xff]
        %v2531 = vld [vmem:[#allocation3 + $0x78] sm:$0xff]
        %v2532 = vld [vmem:[#allocation3 + $0x80] sm:$0xff]
        %v2533 = vld [vmem:[#allocation3 + $0x88] sm:$0xff]
        %v2534 = vld [vmem:[#allocation3 + $0x90] sm:$0xff]
        %v2535 = vld [vmem:[#allocation3 + $0x98] sm:$0xff]
        %v2536 = vld [vmem:[#allocation3 + $0xa0] sm:$0xff]
        %v2537 = vld [vmem:[#allocation3 + $0xa8] sm:$0xff]
        %v2538 = vld [vmem:[#allocation3 + $0xb0] sm:$0xff]
        %v2539 = vld [vmem:[#allocation3 + $0xb8] sm:$0xff]
        %v2540 = vld [vmem:[#allocation3 + $0xc0] sm:$0xff]
        %v2541 = vld [vmem:[#allocation3 + $0xc8] sm:$0xff]
        %v2542 = vld [vmem:[#allocation3 + $0xd0] sm:$0xff]
        %v2543 = vld [vmem:[#allocation3 + $0xd8] sm:$0xff]
        %v2544 = vld [vmem:[#allocation3 + $0xe0] sm:$0xff]
        %v2545 = vld [vmem:[#allocation3 + $0xe8] sm:$0xff]
        %v2546 = vld [vmem:[#allocation3 + $0xf0] sm:$0xff]
        %v2547 = vld [vmem:[#allocation3 + $0xf8] sm:$0xff]
        %v2548 = vld [vmem:[#allocation3 + $0x100] sm:$0xff]
        %v2549 = vld [vmem:[#allocation3 + $0x108] sm:$0xff]
        %v2550 = vld [vmem:[#allocation3 + $0x110] sm:$0xff]
        %v2551 = vld [vmem:[#allocation3 + $0x118] sm:$0xff]
        %v2552 = vld [vmem:[#allocation3 + $0x120] sm:$0xff]
        %v2553 = vld [vmem:[#allocation3 + $0x128] sm:$0xff]
        %v2554 = vld [vmem:[#allocation3 + $0x130] sm:$0xff]
        %v2555 = vld [vmem:[#allocation3 + $0x138] sm:$0xff]
        %v2556 = vld [vmem:[#allocation3 + $0x140] sm:$0xff]
        %v2557 = vld [vmem:[#allocation3 + $0x148] sm:$0xff]
        %v2558 = vld [vmem:[#allocation3 + $0x150] sm:$0xff]
        %v2559 = vld [vmem:[#allocation3 + $0x158] sm:$0xff]
        %v2560 = vld [vmem:[#allocation3 + $0x160] sm:$0xff]
        %v2561 = vld [vmem:[#allocation3 + $0x168] sm:$0xff]
        %v2562 = vld [vmem:[#allocation3 + $0x170] sm:$0xff]
        %v2563 = vld [vmem:[#allocation3 + $0x178] sm:$0xff]
        %v2564 = vld [vmem:[#allocation3 + $0x180] sm:$0xff]
        %v2565 = vld [vmem:[#allocation3 + $0x188] sm:$0xff]
        %v2566 = vld [vmem:[#allocation3 + $0x190] sm:$0xff]
        %v2567 = vld [vmem:[#allocation3 + $0x198] sm:$0xff]
        %v2568 = vld [vmem:[#allocation3 + $0x1a0] sm:$0xff]
        %v2569 = vld [vmem:[#allocation3 + $0x1a8] sm:$0xff]
        %v2570 = vld [vmem:[#allocation3 + $0x1b0] sm:$0xff]
        %v2571 = vld [vmem:[#allocation3 + $0x1b8] sm:$0xff]
        %v2572 = vld [vmem:[#allocation3 + $0x1c0] sm:$0xff]
        %v2573 = vld [vmem:[#allocation3 + $0x1c8] sm:$0xff]
        %v2574 = vld [vmem:[#allocation3 + $0x1d0] sm:$0xff]
        %v2575 = vld [vmem:[#allocation3 + $0x1d8] sm:$0xff]
        %v2576 = vld [vmem:[#allocation3 + $0x1e0] sm:$0xff]
        %v2577 = vld [vmem:[#allocation3 + $0x1e8] sm:$0xff]
        %v2578 = vld [vmem:[#allocation3 + $0x1f0] sm:$0xff]
        %v2579 = vld [vmem:[#allocation3 + $0x1f8] sm:$0xff]
        %v2580 = vadd.f32 %v2516, %v2358
        %v2581 = vadd.f32 %v2517, %v2360
        %v2582 = vadd.f32 %v2518, %v2362
        %v2583 = vadd.f32 %v2519, %v2364
        %v2584 = vadd.f32 %v2520, %v2368
        %v2585 = vadd.f32 %v2521, %v2370
        %v2586 = vadd.f32 %v2522, %v2372
        %v2587 = vadd.f32 %v2523, %v2374
        %v2588 = vadd.f32 %v2524, %v2378
        %v2589 = vadd.f32 %v2525, %v2380
        %v2590 = vadd.f32 %v2526, %v2382
        %v2591 = vadd.f32 %v2527, %v2384
        %v2592 = vadd.f32 %v2528, %v2388
        %v2593 = vadd.f32 %v2529, %v2390
        %v2594 = vadd.f32 %v2530, %v2392
        %v2595 = vadd.f32 %v2531, %v2394
        %v2596 = vadd.f32 %v2532, %v2398
        %v2597 = vadd.f32 %v2533, %v2400
        %v2598 = vadd.f32 %v2534, %v2402
        %v2599 = vadd.f32 %v2535, %v2404
        %v2600 = vadd.f32 %v2536, %v2408
        %v2601 = vadd.f32 %v2537, %v2410
        %v2602 = vadd.f32 %v2538, %v2412
        %v2603 = vadd.f32 %v2539, %v2414
        %v2604 = vadd.f32 %v2540, %v2418
        %v2605 = vadd.f32 %v2541, %v2420
        %v2606 = vadd.f32 %v2542, %v2422
        %v2607 = vadd.f32 %v2543, %v2424
        %v2608 = vadd.f32 %v2544, %v2428
        %v2609 = vadd.f32 %v2545, %v2430
        %v2610 = vadd.f32 %v2546, %v2432
        %v2611 = vadd.f32 %v2547, %v2434
        %v2612 = vadd.f32 %v2548, %v2438
        %v2613 = vadd.f32 %v2549, %v2440
        %v2614 = vadd.f32 %v2550, %v2442
        %v2615 = vadd.f32 %v2551, %v2444
        %v2616 = vadd.f32 %v2552, %v2448
        %v2617 = vadd.f32 %v2553, %v2450
        %v2618 = vadd.f32 %v2554, %v2452
        %v2619 = vadd.f32 %v2555, %v2454
        %v2620 = vadd.f32 %v2556, %v2458
        %v2621 = vadd.f32 %v2557, %v2460
        %v2622 = vadd.f32 %v2558, %v2462
        %v2623 = vadd.f32 %v2559, %v2464
        %v2624 = vadd.f32 %v2560, %v2468
        %v2625 = vadd.f32 %v2561, %v2470
        %v2626 = vadd.f32 %v2562, %v2472
        %v2627 = vadd.f32 %v2563, %v2474
        %v2628 = vadd.f32 %v2564, %v2478
        %v2629 = vadd.f32 %v2565, %v2480
        %v2630 = vadd.f32 %v2566, %v2482
        %v2631 = vadd.f32 %v2567, %v2484
        %v2632 = vadd.f32 %v2568, %v2488
        %v2633 = vadd.f32 %v2569, %v2490
        %v2634 = vadd.f32 %v2570, %v2492
        %v2635 = vadd.f32 %v2571, %v2494
        %v2636 = vadd.f32 %v2572, %v2498
        %v2637 = vadd.f32 %v2573, %v2500
        %v2638 = vadd.f32 %v2574, %v2502
        %v2639 = vadd.f32 %v2575, %v2504
        %v2640 = vadd.f32 %v2576, %v2508
        %v2641 = vadd.f32 %v2577, %v2510
        %v2642 = vadd.f32 %v2578, %v2512
        %v2643 = vadd.f32 %v2579, %v2514
        %2644 = vst [vmem:[#allocation3] sm:$0xff] %v2580
        %2645 = vst [vmem:[#allocation3 + $0x8] sm:$0xff] %v2581
        %2646 = vst [vmem:[#allocation3 + $0x10] sm:$0xff] %v2582
        %2647 = vst [vmem:[#allocation3 + $0x18] sm:$0xff] %v2583
        %2648 = vst [vmem:[#allocation3 + $0x20] sm:$0xff] %v2584
        %2649 = vst [vmem:[#allocation3 + $0x28] sm:$0xff] %v2585
        %2650 = vst [vmem:[#allocation3 + $0x30] sm:$0xff] %v2586
        %2651 = vst [vmem:[#allocation3 + $0x38] sm:$0xff] %v2587
        %2652 = vst [vmem:[#allocation3 + $0x40] sm:$0xff] %v2588
        %2653 = vst [vmem:[#allocation3 + $0x48] sm:$0xff] %v2589
        %2654 = vst [vmem:[#allocation3 + $0x50] sm:$0xff] %v2590
        %2655 = vst [vmem:[#allocation3 + $0x58] sm:$0xff] %v2591
        %2656 = vst [vmem:[#allocation3 + $0x60] sm:$0xff] %v2592
        %2657 = vst [vmem:[#allocation3 + $0x68] sm:$0xff] %v2593
        %2658 = vst [vmem:[#allocation3 + $0x70] sm:$0xff] %v2594
        %2659 = vst [vmem:[#allocation3 + $0x78] sm:$0xff] %v2595
        %2660 = vst [vmem:[#allocation3 + $0x80] sm:$0xff] %v2596
        %2661 = vst [vmem:[#allocation3 + $0x88] sm:$0xff] %v2597
        %2662 = vst [vmem:[#allocation3 + $0x90] sm:$0xff] %v2598
        %2663 = vst [vmem:[#allocation3 + $0x98] sm:$0xff] %v2599
        %2664 = vst [vmem:[#allocation3 + $0xa0] sm:$0xff] %v2600
        %2665 = vst [vmem:[#allocation3 + $0xa8] sm:$0xff] %v2601
        %2666 = vst [vmem:[#allocation3 + $0xb0] sm:$0xff] %v2602
        %2667 = vst [vmem:[#allocation3 + $0xb8] sm:$0xff] %v2603
        %2668 = vst [vmem:[#allocation3 + $0xc0] sm:$0xff] %v2604
        %2669 = vst [vmem:[#allocation3 + $0xc8] sm:$0xff] %v2605
        %2670 = vst [vmem:[#allocation3 + $0xd0] sm:$0xff] %v2606
        %2671 = vst [vmem:[#allocation3 + $0xd8] sm:$0xff] %v2607
        %2672 = vst [vmem:[#allocation3 + $0xe0] sm:$0xff] %v2608
        %2673 = vst [vmem:[#allocation3 + $0xe8] sm:$0xff] %v2609
        %2674 = vst [vmem:[#allocation3 + $0xf0] sm:$0xff] %v2610
        %2675 = vst [vmem:[#allocation3 + $0xf8] sm:$0xff] %v2611
        %2676 = vst [vmem:[#allocation3 + $0x100] sm:$0xff] %v2612
        %2677 = vst [vmem:[#allocation3 + $0x108] sm:$0xff] %v2613
        %2678 = vst [vmem:[#allocation3 + $0x110] sm:$0xff] %v2614
        %2679 = vst [vmem:[#allocation3 + $0x118] sm:$0xff] %v2615
        %2680 = vst [vmem:[#allocation3 + $0x120] sm:$0xff] %v2616
        %2681 = vst [vmem:[#allocation3 + $0x128] sm:$0xff] %v2617
        %2682 = vst [vmem:[#allocation3 + $0x130] sm:$0xff] %v2618
        %2683 = vst [vmem:[#allocation3 + $0x138] sm:$0xff] %v2619
        %2684 = vst [vmem:[#allocation3 + $0x140] sm:$0xff] %v2620
        %2685 = vst [vmem:[#allocation3 + $0x148] sm:$0xff] %v2621
        %2686 = vst [vmem:[#allocation3 + $0x150] sm:$0xff] %v2622
        %2687 = vst [vmem:[#allocation3 + $0x158] sm:$0xff] %v2623
        %2688 = vst [vmem:[#allocation3 + $0x160] sm:$0xff] %v2624
        %2689 = vst [vmem:[#allocation3 + $0x168] sm:$0xff] %v2625
        %2690 = vst [vmem:[#allocation3 + $0x170] sm:$0xff] %v2626
        %2691 = vst [vmem:[#allocation3 + $0x178] sm:$0xff] %v2627
        %2692 = vst [vmem:[#allocation3 + $0x180] sm:$0xff] %v2628
        %2693 = vst [vmem:[#allocation3 + $0x188] sm:$0xff] %v2629
        %2694 = vst [vmem:[#allocation3 + $0x190] sm:$0xff] %v2630
        %2695 = vst [vmem:[#allocation3 + $0x198] sm:$0xff] %v2631
        %2696 = vst [vmem:[#allocation3 + $0x1a0] sm:$0xff] %v2632
        %2697 = vst [vmem:[#allocation3 + $0x1a8] sm:$0xff] %v2633
        %2698 = vst [vmem:[#allocation3 + $0x1b0] sm:$0xff] %v2634
        %2699 = vst [vmem:[#allocation3 + $0x1b8] sm:$0xff] %v2635
        %2700 = vst [vmem:[#allocation3 + $0x1c0] sm:$0xff] %v2636
        %2701 = vst [vmem:[#allocation3 + $0x1c8] sm:$0xff] %v2637
        %2702 = vst [vmem:[#allocation3 + $0x1d0] sm:$0xff] %v2638
        %2703 = vst [vmem:[#allocation3 + $0x1d8] sm:$0xff] %v2639
        %2704 = vst [vmem:[#allocation3 + $0x1e0] sm:$0xff] %v2640
        %2705 = vst [vmem:[#allocation3 + $0x1e8] sm:$0xff] %v2641
        %2706 = vst [vmem:[#allocation3 + $0x1f0] sm:$0xff] %v2642
        %2707 = vst [vmem:[#allocation3 + $0x1f8] sm:$0xff] %v2643
        %v2708 = vld [vmem:[#allocation2] sm:$0xe]
        %v2709 = vld [vmem:[#allocation2 + $0x4] sm:$0xf]
        %v2710 = vld [vmem:[#allocation2 + $0x8] sm:$0x1]
        %v2711 = vld [vmem:[#allocation2 + $0xc] sm:$0xe]
        %v2712 = vld [vmem:[#allocation2 + $0x10] sm:$0xf]
        %v2713 = vld [vmem:[#allocation2 + $0x14] sm:$0x1]
        %v2714 = vld [vmem:[#allocation2 + $0x18] sm:$0xe]
        %v2715 = vld [vmem:[#allocation2 + $0x1c] sm:$0xf]
        %v2716 = vld [vmem:[#allocation2 + $0x20] sm:$0x1]
        %v2717 = vld [vmem:[#allocation2 + $0x24] sm:$0xe]
        %v2718 = vld [vmem:[#allocation2 + $0x28] sm:$0xf]
        %v2719 = vld [vmem:[#allocation2 + $0x2c] sm:$0x1]
        %v2720 = vld [vmem:[#allocation2 + $0x30] sm:$0xe]
        %v2721 = vld [vmem:[#allocation2 + $0x34] sm:$0xf]
        %v2722 = vld [vmem:[#allocation2 + $0x38] sm:$0x1]
        %v2723 = vld [vmem:[#allocation2 + $0x3c] sm:$0xe]
        %v2724 = vld [vmem:[#allocation2 + $0x40] sm:$0xf]
        %v2725 = vld [vmem:[#allocation2 + $0x44] sm:$0x1]
        %v2726 = vld [vmem:[#allocation2 + $0x48] sm:$0xe]
        %v2727 = vld [vmem:[#allocation2 + $0x4c] sm:$0xf]
        %v2728 = vld [vmem:[#allocation2 + $0x50] sm:$0x1]
        %v2729 = vld [vmem:[#allocation2 + $0x54] sm:$0xe]
        %v2730 = vld [vmem:[#allocation2 + $0x58] sm:$0xf]
        %v2731 = vld [vmem:[#allocation2 + $0x5c] sm:$0x1]
        %v2732 = vld [vmem:[#allocation2 + $0x60] sm:$0xe]
        %v2733 = vld [vmem:[#allocation2 + $0x64] sm:$0xf]
        %v2734 = vld [vmem:[#allocation2 + $0x68] sm:$0x1]
        %v2735 = vld [vmem:[#allocation2 + $0x6c] sm:$0xe]
        %v2736 = vld [vmem:[#allocation2 + $0x70] sm:$0xf]
        %v2737 = vld [vmem:[#allocation2 + $0x74] sm:$0x1]
        %v2738 = vld [vmem:[#allocation2 + $0x78] sm:$0xe]
        %v2739 = vld [vmem:[#allocation2 + $0x7c] sm:$0xf]
        %v2740 = vld [vmem:[#allocation2 + $0x80] sm:$0x1]
        %v2741 = vld [vmem:[#allocation2 + $0x84] sm:$0xe]
        %v2742 = vld [vmem:[#allocation2 + $0x88] sm:$0xf]
        %v2743 = vld [vmem:[#allocation2 + $0x8c] sm:$0x1]
        %v2744 = vld [vmem:[#allocation2 + $0x90] sm:$0xe]
        %v2745 = vld [vmem:[#allocation2 + $0x94] sm:$0xf]
        %v2746 = vld [vmem:[#allocation2 + $0x98] sm:$0x1]
        %v2747 = vld [vmem:[#allocation2 + $0x9c] sm:$0xe]
        %v2748 = vld [vmem:[#allocation2 + $0xa0] sm:$0xf]
        %v2749 = vld [vmem:[#allocation2 + $0xa4] sm:$0x1]
        %v2750 = vld [vmem:[#allocation2 + $0xa8] sm:$0xe]
        %v2751 = vld [vmem:[#allocation2 + $0xac] sm:$0xf]
        %v2752 = vld [vmem:[#allocation2 + $0xb0] sm:$0x1]
        %v2753 = vld [vmem:[#allocation2 + $0xb4] sm:$0xe]
        %v2754 = vld [vmem:[#allocation2 + $0xb8] sm:$0xf]
        %v2755 = vld [vmem:[#allocation2 + $0xbc] sm:$0x1]
        %vm2804 = vcmask 1042432
        %vm2805 = vcmask 1046532
        %vm2806 = vmor %vm2804, %vm2805
        %v2807 = vrot.slane %v2708, 5
        %v2808 = vrot.slane %v2807, 4
        %v2809 = vrot.slane %v2709, 5
        %v2810 = vsel %vm2806, %v2808, %v2809
        %v2811 = vrot.slane %v2809, 4
        %v2812 = vrot.slane %v2710, 5
        %v2813 = vsel %vm2806, %v2811, %v2812
        %v2814 = vrot.slane %v2711, 5
        %v2815 = vrot.slane %v2814, 4
        %v2816 = vrot.slane %v2712, 5
        %v2817 = vsel %vm2806, %v2815, %v2816
        %v2818 = vrot.slane %v2816, 4
        %v2819 = vrot.slane %v2713, 5
        %v2820 = vsel %vm2806, %v2818, %v2819
        %v2821 = vrot.slane %v2714, 5
        %v2822 = vrot.slane %v2821, 4
        %v2823 = vrot.slane %v2715, 5
        %v2824 = vsel %vm2806, %v2822, %v2823
        %v2825 = vrot.slane %v2823, 4
        %v2826 = vrot.slane %v2716, 5
        %v2827 = vsel %vm2806, %v2825, %v2826
        %v2828 = vrot.slane %v2717, 5
        %v2829 = vrot.slane %v2828, 4
        %v2830 = vrot.slane %v2718, 5
        %v2831 = vsel %vm2806, %v2829, %v2830
        %v2832 = vrot.slane %v2830, 4
        %v2833 = vrot.slane %v2719, 5
        %v2834 = vsel %vm2806, %v2832, %v2833
        %v2835 = vrot.slane %v2720, 5
        %v2836 = vrot.slane %v2835, 4
        %v2837 = vrot.slane %v2721, 5
        %v2838 = vsel %vm2806, %v2836, %v2837
        %v2839 = vrot.slane %v2837, 4
        %v2840 = vrot.slane %v2722, 5
        %v2841 = vsel %vm2806, %v2839, %v2840
        %v2842 = vrot.slane %v2723, 5
        %v2843 = vrot.slane %v2842, 4
        %v2844 = vrot.slane %v2724, 5
        %v2845 = vsel %vm2806, %v2843, %v2844
        %v2846 = vrot.slane %v2844, 4
        %v2847 = vrot.slane %v2725, 5
        %v2848 = vsel %vm2806, %v2846, %v2847
        %v2849 = vrot.slane %v2726, 5
        %v2850 = vrot.slane %v2849, 4
        %v2851 = vrot.slane %v2727, 5
        %v2852 = vsel %vm2806, %v2850, %v2851
        %v2853 = vrot.slane %v2851, 4
        %v2854 = vrot.slane %v2728, 5
        %v2855 = vsel %vm2806, %v2853, %v2854
        %v2856 = vrot.slane %v2729, 5
        %v2857 = vrot.slane %v2856, 4
        %v2858 = vrot.slane %v2730, 5
        %v2859 = vsel %vm2806, %v2857, %v2858
        %v2860 = vrot.slane %v2858, 4
        %v2861 = vrot.slane %v2731, 5
        %v2862 = vsel %vm2806, %v2860, %v2861
        %v2863 = vrot.slane %v2732, 5
        %v2864 = vrot.slane %v2863, 4
        %v2865 = vrot.slane %v2733, 5
        %v2866 = vsel %vm2806, %v2864, %v2865
        %v2867 = vrot.slane %v2865, 4
        %v2868 = vrot.slane %v2734, 5
        %v2869 = vsel %vm2806, %v2867, %v2868
        %v2870 = vrot.slane %v2735, 5
        %v2871 = vrot.slane %v2870, 4
        %v2872 = vrot.slane %v2736, 5
        %v2873 = vsel %vm2806, %v2871, %v2872
        %v2874 = vrot.slane %v2872, 4
        %v2875 = vrot.slane %v2737, 5
        %v2876 = vsel %vm2806, %v2874, %v2875
        %v2877 = vrot.slane %v2738, 5
        %v2878 = vrot.slane %v2877, 4
        %v2879 = vrot.slane %v2739, 5
        %v2880 = vsel %vm2806, %v2878, %v2879
        %v2881 = vrot.slane %v2879, 4
        %v2882 = vrot.slane %v2740, 5
        %v2883 = vsel %vm2806, %v2881, %v2882
        %v2884 = vrot.slane %v2741, 5
        %v2885 = vrot.slane %v2884, 4
        %v2886 = vrot.slane %v2742, 5
        %v2887 = vsel %vm2806, %v2885, %v2886
        %v2888 = vrot.slane %v2886, 4
        %v2889 = vrot.slane %v2743, 5
        %v2890 = vsel %vm2806, %v2888, %v2889
        %v2891 = vrot.slane %v2744, 5
        %v2892 = vrot.slane %v2891, 4
        %v2893 = vrot.slane %v2745, 5
        %v2894 = vsel %vm2806, %v2892, %v2893
        %v2895 = vrot.slane %v2893, 4
        %v2896 = vrot.slane %v2746, 5
        %v2897 = vsel %vm2806, %v2895, %v2896
        %v2898 = vrot.slane %v2747, 5
        %v2899 = vrot.slane %v2898, 4
        %v2900 = vrot.slane %v2748, 5
        %v2901 = vsel %vm2806, %v2899, %v2900
        %v2902 = vrot.slane %v2900, 4
        %v2903 = vrot.slane %v2749, 5
        %v2904 = vsel %vm2806, %v2902, %v2903
        %v2905 = vrot.slane %v2750, 5
        %v2906 = vrot.slane %v2905, 4
        %v2907 = vrot.slane %v2751, 5
        %v2908 = vsel %vm2806, %v2906, %v2907
        %v2909 = vrot.slane %v2907, 4
        %v2910 = vrot.slane %v2752, 5
        %v2911 = vsel %vm2806, %v2909, %v2910
        %v2912 = vrot.slane %v2753, 5
        %v2913 = vrot.slane %v2912, 4
        %v2914 = vrot.slane %v2754, 5
        %v2915 = vsel %vm2806, %v2913, %v2914
        %v2916 = vrot.slane %v2914, 4
        %v2917 = vrot.slane %v2755, 5
        %v2918 = vsel %vm2806, %v2916, %v2917
        %s2919 = scalar_lea.vmem [#allocation4], 256
        %v2920 = vld [vmem:[%s2919] sm:$0xff]
        %v2921 = vld [vmem:[%s2919 + $0x8] sm:$0xff]
        %v2922 = vld [vmem:[%s2919 + $0x10] sm:$0xff]
        %v2923 = vld [vmem:[%s2919 + $0x18] sm:$0xff]
        %v2924 = vld [vmem:[%s2919 + $0x20] sm:$0xff]
        %v2925 = vld [vmem:[%s2919 + $0x28] sm:$0xff]
        %v2926 = vld [vmem:[%s2919 + $0x30] sm:$0xff]
        %v2927 = vld [vmem:[%s2919 + $0x38] sm:$0xff]
        %v2928 = vld [vmem:[%s2919 + $0x40] sm:$0xff]
        %v2929 = vld [vmem:[%s2919 + $0x48] sm:$0xff]
        %v2930 = vld [vmem:[%s2919 + $0x50] sm:$0xff]
        %v2931 = vld [vmem:[%s2919 + $0x58] sm:$0xff]
        %v2932 = vld [vmem:[%s2919 + $0x60] sm:$0xff]
        %v2933 = vld [vmem:[%s2919 + $0x68] sm:$0xff]
        %v2934 = vld [vmem:[%s2919 + $0x70] sm:$0xff]
        %v2935 = vld [vmem:[%s2919 + $0x78] sm:$0xff]
        %v2936 = vunpack.c.l.b16 %v2810
        %v2937 = vunpack.c.l.b16 %v2813
        %v2938 = vunpack.c.l.b16 %v2817
        %v2939 = vunpack.c.l.b16 %v2820
        %v2940 = vunpack.c.l.b16 %v2824
        %v2941 = vunpack.c.l.b16 %v2827
        %v2942 = vunpack.c.l.b16 %v2831
        %v2943 = vunpack.c.l.b16 %v2834
        %v2944 = vunpack.c.l.b16 %v2838
        %v2945 = vunpack.c.l.b16 %v2841
        %v2946 = vunpack.c.l.b16 %v2845
        %v2947 = vunpack.c.l.b16 %v2848
        %v2948 = vunpack.c.l.b16 %v2852
        %v2949 = vunpack.c.l.b16 %v2855
        %v2950 = vunpack.c.l.b16 %v2859
        %v2951 = vunpack.c.l.b16 %v2862
        %v2952 = vunpack.c.l.b16 %v2866
        %v2953 = vunpack.c.l.b16 %v2869
        %v2954 = vunpack.c.l.b16 %v2873
        %v2955 = vunpack.c.l.b16 %v2876
        %v2956 = vunpack.c.l.b16 %v2880
        %v2957 = vunpack.c.l.b16 %v2883
        %v2958 = vunpack.c.l.b16 %v2887
        %v2959 = vunpack.c.l.b16 %v2890
        %v2960 = vunpack.c.l.b16 %v2894
        %v2961 = vunpack.c.l.b16 %v2897
        %v2962 = vunpack.c.l.b16 %v2901
        %v2963 = vunpack.c.l.b16 %v2904
        %v2964 = vunpack.c.l.b16 %v2908
        %v2965 = vunpack.c.l.b16 %v2911
        %v2966 = vunpack.c.l.b16 %v2915
        %v2967 = vunpack.c.l.b16 %v2918
        %v2968 = vpack.c.b16 %v2937, %v2936
        %v2969 = vpack.c.b16 %v2939, %v2938
        %v2970 = vpack.c.b16 %v2941, %v2940
        %v2971 = vpack.c.b16 %v2943, %v2942
        %v2972 = vpack.c.b16 %v2945, %v2944
        %v2973 = vpack.c.b16 %v2947, %v2946
        %v2974 = vpack.c.b16 %v2949, %v2948
        %v2975 = vpack.c.b16 %v2951, %v2950
        %v2976 = vpack.c.b16 %v2953, %v2952
        %v2977 = vpack.c.b16 %v2955, %v2954
        %v2978 = vpack.c.b16 %v2957, %v2956
        %v2979 = vpack.c.b16 %v2959, %v2958
        %v2980 = vpack.c.b16 %v2961, %v2960
        %v2981 = vpack.c.b16 %v2963, %v2962
        %v2982 = vpack.c.b16 %v2965, %v2964
        %v2983 = vpack.c.b16 %v2967, %v2966
        %v3016 = vunpack.c.l.b16 %v2920
        %v3017 = vunpack.c.h.b16 %v2920
        %v3018 = vunpack.c.l.b16 %v2921
        %v3019 = vunpack.c.h.b16 %v2921
        %v3020 = vunpack.c.l.b16 %v2922
        %v3021 = vunpack.c.h.b16 %v2922
        %v3022 = vunpack.c.l.b16 %v2923
        %v3023 = vunpack.c.h.b16 %v2923
        %v3024 = vunpack.c.l.b16 %v2924
        %v3025 = vunpack.c.h.b16 %v2924
        %v3026 = vunpack.c.l.b16 %v2925
        %v3027 = vunpack.c.h.b16 %v2925
        %v3028 = vunpack.c.l.b16 %v2926
        %v3029 = vunpack.c.h.b16 %v2926
        %v3030 = vunpack.c.l.b16 %v2927
        %v3031 = vunpack.c.h.b16 %v2927
        %v3032 = vunpack.c.l.b16 %v2928
        %v3033 = vunpack.c.h.b16 %v2928
        %v3034 = vunpack.c.l.b16 %v2929
        %v3035 = vunpack.c.h.b16 %v2929
        %v3036 = vunpack.c.l.b16 %v2930
        %v3037 = vunpack.c.h.b16 %v2930
        %v3038 = vunpack.c.l.b16 %v2931
        %v3039 = vunpack.c.h.b16 %v2931
        %v3040 = vunpack.c.l.b16 %v2932
        %v3041 = vunpack.c.h.b16 %v2932
        %v3042 = vunpack.c.l.b16 %v2933
        %v3043 = vunpack.c.h.b16 %v2933
        %v3044 = vunpack.c.l.b16 %v2934
        %v3045 = vunpack.c.h.b16 %v2934
        %v3046 = vunpack.c.l.b16 %v2935
        %v3047 = vunpack.c.h.b16 %v2935
        %v3048 = vpack.c.b16 %v3018, %v3016
        %v3049 = vpack.c.b16 %v3019, %v3017
        %v3050 = vpack.c.b16 %v3022, %v3020
        %v3051 = vpack.c.b16 %v3023, %v3021
        %v3052 = vpack.c.b16 %v3026, %v3024
        %v3053 = vpack.c.b16 %v3027, %v3025
        %v3054 = vpack.c.b16 %v3030, %v3028
        %v3055 = vpack.c.b16 %v3031, %v3029
        %v3056 = vpack.c.b16 %v3034, %v3032
        %v3057 = vpack.c.b16 %v3035, %v3033
        %v3058 = vpack.c.b16 %v3038, %v3036
        %v3059 = vpack.c.b16 %v3039, %v3037
        %v3060 = vpack.c.b16 %v3042, %v3040
        %v3061 = vpack.c.b16 %v3043, %v3041
        %v3062 = vpack.c.b16 %v3046, %v3044
        %v3063 = vpack.c.b16 %v3047, %v3045
        %3080 = vmatprep.subr.bf16.mxu0 %v3049
        %3081 = vmatpush1.bf16.msra.mxu0 %v3048
        %3082 = vmatprep.subr.bf16.mxu0 %v3051
        %3083 = vmatpush1.bf16.msra.mxu0 %v3050
        %3084 = vmatprep.subr.bf16.mxu0 %v3053
        %3085 = vmatpush1.bf16.msra.mxu0 %v3052
        %3086 = vmatprep.subr.bf16.mxu0 %v3055
        %3087 = vmatpush1.bf16.msra.mxu0 %v3054
        %3088 = vmatprep.subr.bf16.mxu0 %v3057
        %3089 = vmatpush1.bf16.msra.mxu0 %v3056
        %3090 = vmatprep.subr.bf16.mxu0 %v3059
        %3091 = vmatpush1.bf16.msra.mxu0 %v3058
        %3092 = vmatprep.subr.bf16.mxu0 %v3061
        %3093 = vmatpush1.bf16.msra.mxu0 %v3060
        %3094 = vmatprep.subr.bf16.mxu0 %v3063
        %3095 = vmatpush1.bf16.msra.mxu0 %v3062
        %3096 = vmatprep.subr.bf16.mxu0 0
        %3097 = vmatpush1.bf16.msra.mxu0 0
        %3098 = vmatprep.subr.bf16.mxu0 0
        %3099 = vmatpush1.bf16.msra.mxu0 0
        %3100 = vmatprep.subr.bf16.mxu0 0
        %3101 = vmatpush1.bf16.msra.mxu0 0
        %3102 = vmatprep.subr.bf16.mxu0 0
        %3103 = vmatpush1.bf16.msra.mxu0 0
        %3104 = vmatprep.subr.bf16.mxu0 0
        %3105 = vmatpush1.bf16.msra.mxu0 0
        %3106 = vmatprep.subr.bf16.mxu0 0
        %3107 = vmatpush1.bf16.msra.mxu0 0
        %3108 = vmatprep.subr.bf16.mxu0 0
        %3109 = vmatpush1.bf16.msra.mxu0 0
        %3110 = vmatprep.subr.bf16.mxu0 0
        %3111 = vmatpush1.bf16.msra.mxu0 0
        %3112 = vmatprep.mubr.bf16.mxu0 0
        %3113 = vmatmul.mubr.bf16.gmra.mrb[0].mxu0 %v2968
        %v3114 = vpop.f32.mrb[0].mxu0
        %v3115 = vadd.f32 0.0, %v3114
        %v3116 = vpop.f32.mrb[0].mxu0
        %v3117 = vadd.f32 0.0, %v3116
        %v3118 = vpop.f32.mrb[0].mxu0
        %v3119 = vadd.f32 0.0, %v3118
        %v3120 = vpop.f32.mrb[0].mxu0
        %v3121 = vadd.f32 0.0, %v3120
        %3122 = vmatprep.mubr.bf16.mxu0 0
        %3123 = vmatmul.mubr.bf16.gmra.mrb[0].mxu0 %v2969
        %v3124 = vpop.f32.mrb[0].mxu0
        %v3125 = vadd.f32 0.0, %v3124
        %v3126 = vpop.f32.mrb[0].mxu0
        %v3127 = vadd.f32 0.0, %v3126
        %v3128 = vpop.f32.mrb[0].mxu0
        %v3129 = vadd.f32 0.0, %v3128
        %v3130 = vpop.f32.mrb[0].mxu0
        %v3131 = vadd.f32 0.0, %v3130
        %3132 = vmatprep.mubr.bf16.mxu0 0
        %3133 = vmatmul.mubr.bf16.gmra.mrb[0].mxu0 %v2970
        %v3134 = vpop.f32.mrb[0].mxu0
        %v3135 = vadd.f32 0.0, %v3134
        %v3136 = vpop.f32.mrb[0].mxu0
        %v3137 = vadd.f32 0.0, %v3136
        %v3138 = vpop.f32.mrb[0].mxu0
        %v3139 = vadd.f32 0.0, %v3138
        %v3140 = vpop.f32.mrb[0].mxu0
        %v3141 = vadd.f32 0.0, %v3140
        %3142 = vmatprep.mubr.bf16.mxu0 0
        %3143 = vmatmul.mubr.bf16.gmra.mrb[0].mxu0 %v2971
        %v3144 = vpop.f32.mrb[0].mxu0
        %v3145 = vadd.f32 0.0, %v3144
        %v3146 = vpop.f32.mrb[0].mxu0
        %v3147 = vadd.f32 0.0, %v3146
        %v3148 = vpop.f32.mrb[0].mxu0
        %v3149 = vadd.f32 0.0, %v3148
        %v3150 = vpop.f32.mrb[0].mxu0
        %v3151 = vadd.f32 0.0, %v3150
        %3152 = vmatprep.mubr.bf16.mxu0 0
        %3153 = vmatmul.mubr.bf16.gmra.mrb[0].mxu0 %v2972
        %v3154 = vpop.f32.mrb[0].mxu0
        %v3155 = vadd.f32 0.0, %v3154
        %v3156 = vpop.f32.mrb[0].mxu0
        %v3157 = vadd.f32 0.0, %v3156
        %v3158 = vpop.f32.mrb[0].mxu0
        %v3159 = vadd.f32 0.0, %v3158
        %v3160 = vpop.f32.mrb[0].mxu0
        %v3161 = vadd.f32 0.0, %v3160
        %3162 = vmatprep.mubr.bf16.mxu0 0
        %3163 = vmatmul.mubr.bf16.gmra.mrb[0].mxu0 %v2973
        %v3164 = vpop.f32.mrb[0].mxu0
        %v3165 = vadd.f32 0.0, %v3164
        %v3166 = vpop.f32.mrb[0].mxu0
        %v3167 = vadd.f32 0.0, %v3166
        %v3168 = vpop.f32.mrb[0].mxu0
        %v3169 = vadd.f32 0.0, %v3168
        %v3170 = vpop.f32.mrb[0].mxu0
        %v3171 = vadd.f32 0.0, %v3170
        %3172 = vmatprep.mubr.bf16.mxu0 0
        %3173 = vmatmul.mubr.bf16.gmra.mrb[0].mxu0 %v2974
        %v3174 = vpop.f32.mrb[0].mxu0
        %v3175 = vadd.f32 0.0, %v3174
        %v3176 = vpop.f32.mrb[0].mxu0
        %v3177 = vadd.f32 0.0, %v3176
        %v3178 = vpop.f32.mrb[0].mxu0
        %v3179 = vadd.f32 0.0, %v3178
        %v3180 = vpop.f32.mrb[0].mxu0
        %v3181 = vadd.f32 0.0, %v3180
        %3182 = vmatprep.mubr.bf16.mxu0 0
        %3183 = vmatmul.mubr.bf16.gmra.mrb[0].mxu0 %v2975
        %v3184 = vpop.f32.mrb[0].mxu0
        %v3185 = vadd.f32 0.0, %v3184
        %v3186 = vpop.f32.mrb[0].mxu0
        %v3187 = vadd.f32 0.0, %v3186
        %v3188 = vpop.f32.mrb[0].mxu0
        %v3189 = vadd.f32 0.0, %v3188
        %v3190 = vpop.f32.mrb[0].mxu0
        %v3191 = vadd.f32 0.0, %v3190
        %3192 = vmatprep.mubr.bf16.mxu0 0
        %3193 = vmatmul.mubr.bf16.gmra.mrb[0].mxu0 %v2976
        %v3194 = vpop.f32.mrb[0].mxu0
        %v3195 = vadd.f32 0.0, %v3194
        %v3196 = vpop.f32.mrb[0].mxu0
        %v3197 = vadd.f32 0.0, %v3196
        %v3198 = vpop.f32.mrb[0].mxu0
        %v3199 = vadd.f32 0.0, %v3198
        %v3200 = vpop.f32.mrb[0].mxu0
        %v3201 = vadd.f32 0.0, %v3200
        %3202 = vmatprep.mubr.bf16.mxu0 0
        %3203 = vmatmul.mubr.bf16.gmra.mrb[0].mxu0 %v2977
        %v3204 = vpop.f32.mrb[0].mxu0
        %v3205 = vadd.f32 0.0, %v3204
        %v3206 = vpop.f32.mrb[0].mxu0
        %v3207 = vadd.f32 0.0, %v3206
        %v3208 = vpop.f32.mrb[0].mxu0
        %v3209 = vadd.f32 0.0, %v3208
        %v3210 = vpop.f32.mrb[0].mxu0
        %v3211 = vadd.f32 0.0, %v3210
        %3212 = vmatprep.mubr.bf16.mxu0 0
        %3213 = vmatmul.mubr.bf16.gmra.mrb[0].mxu0 %v2978
        %v3214 = vpop.f32.mrb[0].mxu0
        %v3215 = vadd.f32 0.0, %v3214
        %v3216 = vpop.f32.mrb[0].mxu0
        %v3217 = vadd.f32 0.0, %v3216
        %v3218 = vpop.f32.mrb[0].mxu0
        %v3219 = vadd.f32 0.0, %v3218
        %v3220 = vpop.f32.mrb[0].mxu0
        %v3221 = vadd.f32 0.0, %v3220
        %3222 = vmatprep.mubr.bf16.mxu0 0
        %3223 = vmatmul.mubr.bf16.gmra.mrb[0].mxu0 %v2979
        %v3224 = vpop.f32.mrb[0].mxu0
        %v3225 = vadd.f32 0.0, %v3224
        %v3226 = vpop.f32.mrb[0].mxu0
        %v3227 = vadd.f32 0.0, %v3226
        %v3228 = vpop.f32.mrb[0].mxu0
        %v3229 = vadd.f32 0.0, %v3228
        %v3230 = vpop.f32.mrb[0].mxu0
        %v3231 = vadd.f32 0.0, %v3230
        %3232 = vmatprep.mubr.bf16.mxu0 0
        %3233 = vmatmul.mubr.bf16.gmra.mrb[0].mxu0 %v2980
        %v3234 = vpop.f32.mrb[0].mxu0
        %v3235 = vadd.f32 0.0, %v3234
        %v3236 = vpop.f32.mrb[0].mxu0
        %v3237 = vadd.f32 0.0, %v3236
        %v3238 = vpop.f32.mrb[0].mxu0
        %v3239 = vadd.f32 0.0, %v3238
        %v3240 = vpop.f32.mrb[0].mxu0
        %v3241 = vadd.f32 0.0, %v3240
        %3242 = vmatprep.mubr.bf16.mxu0 0
        %3243 = vmatmul.mubr.bf16.gmra.mrb[0].mxu0 %v2981
        %v3244 = vpop.f32.mrb[0].mxu0
        %v3245 = vadd.f32 0.0, %v3244
        %v3246 = vpop.f32.mrb[0].mxu0
        %v3247 = vadd.f32 0.0, %v3246
        %v3248 = vpop.f32.mrb[0].mxu0
        %v3249 = vadd.f32 0.0, %v3248
        %v3250 = vpop.f32.mrb[0].mxu0
        %v3251 = vadd.f32 0.0, %v3250
        %3252 = vmatprep.mubr.bf16.mxu0 0
        %3253 = vmatmul.mubr.bf16.gmra.mrb[0].mxu0 %v2982
        %v3254 = vpop.f32.mrb[0].mxu0
        %v3255 = vadd.f32 0.0, %v3254
        %v3256 = vpop.f32.mrb[0].mxu0
        %v3257 = vadd.f32 0.0, %v3256
        %v3258 = vpop.f32.mrb[0].mxu0
        %v3259 = vadd.f32 0.0, %v3258
        %v3260 = vpop.f32.mrb[0].mxu0
        %v3261 = vadd.f32 0.0, %v3260
        %3262 = vmatprep.mubr.bf16.mxu0 0
        %3263 = vmatmul.mubr.bf16.gmra.mrb[0].mxu0 %v2983
        %v3264 = vpop.f32.mrb[0].mxu0
        %v3265 = vadd.f32 0.0, %v3264
        %v3266 = vpop.f32.mrb[0].mxu0
        %v3267 = vadd.f32 0.0, %v3266
        %v3268 = vpop.f32.mrb[0].mxu0
        %v3269 = vadd.f32 0.0, %v3268
        %v3270 = vpop.f32.mrb[0].mxu0
        %v3271 = vadd.f32 0.0, %v3270
        %3272 = vdwg.mxu0
        %v3273 = vld [vmem:[#allocation3] sm:$0xff]
        %v3274 = vld [vmem:[#allocation3 + $0x8] sm:$0xff]
        %v3275 = vld [vmem:[#allocation3 + $0x10] sm:$0xff]
        %v3276 = vld [vmem:[#allocation3 + $0x18] sm:$0xff]
        %v3277 = vld [vmem:[#allocation3 + $0x20] sm:$0xff]
        %v3278 = vld [vmem:[#allocation3 + $0x28] sm:$0xff]
        %v3279 = vld [vmem:[#allocation3 + $0x30] sm:$0xff]
        %v3280 = vld [vmem:[#allocation3 + $0x38] sm:$0xff]
        %v3281 = vld [vmem:[#allocation3 + $0x40] sm:$0xff]
        %v3282 = vld [vmem:[#allocation3 + $0x48] sm:$0xff]
        %v3283 = vld [vmem:[#allocation3 + $0x50] sm:$0xff]
        %v3284 = vld [vmem:[#allocation3 + $0x58] sm:$0xff]
        %v3285 = vld [vmem:[#allocation3 + $0x60] sm:$0xff]
        %v3286 = vld [vmem:[#allocation3 + $0x68] sm:$0xff]
        %v3287 = vld [vmem:[#allocation3 + $0x70] sm:$0xff]
        %v3288 = vld [vmem:[#allocation3 + $0x78] sm:$0xff]
        %v3289 = vld [vmem:[#allocation3 + $0x80] sm:$0xff]
        %v3290 = vld [vmem:[#allocation3 + $0x88] sm:$0xff]
        %v3291 = vld [vmem:[#allocation3 + $0x90] sm:$0xff]
        %v3292 = vld [vmem:[#allocation3 + $0x98] sm:$0xff]
        %v3293 = vld [vmem:[#allocation3 + $0xa0] sm:$0xff]
        %v3294 = vld [vmem:[#allocation3 + $0xa8] sm:$0xff]
        %v3295 = vld [vmem:[#allocation3 + $0xb0] sm:$0xff]
        %v3296 = vld [vmem:[#allocation3 + $0xb8] sm:$0xff]
        %v3297 = vld [vmem:[#allocation3 + $0xc0] sm:$0xff]
        %v3298 = vld [vmem:[#allocation3 + $0xc8] sm:$0xff]
        %v3299 = vld [vmem:[#allocation3 + $0xd0] sm:$0xff]
        %v3300 = vld [vmem:[#allocation3 + $0xd8] sm:$0xff]
        %v3301 = vld [vmem:[#allocation3 + $0xe0] sm:$0xff]
        %v3302 = vld [vmem:[#allocation3 + $0xe8] sm:$0xff]
        %v3303 = vld [vmem:[#allocation3 + $0xf0] sm:$0xff]
        %v3304 = vld [vmem:[#allocation3 + $0xf8] sm:$0xff]
        %v3305 = vld [vmem:[#allocation3 + $0x100] sm:$0xff]
        %v3306 = vld [vmem:[#allocation3 + $0x108] sm:$0xff]
        %v3307 = vld [vmem:[#allocation3 + $0x110] sm:$0xff]
        %v3308 = vld [vmem:[#allocation3 + $0x118] sm:$0xff]
        %v3309 = vld [vmem:[#allocation3 + $0x120] sm:$0xff]
        %v3310 = vld [vmem:[#allocation3 + $0x128] sm:$0xff]
        %v3311 = vld [vmem:[#allocation3 + $0x130] sm:$0xff]
        %v3312 = vld [vmem:[#allocation3 + $0x138] sm:$0xff]
        %v3313 = vld [vmem:[#allocation3 + $0x140] sm:$0xff]
        %v3314 = vld [vmem:[#allocation3 + $0x148] sm:$0xff]
        %v3315 = vld [vmem:[#allocation3 + $0x150] sm:$0xff]
        %v3316 = vld [vmem:[#allocation3 + $0x158] sm:$0xff]
        %v3317 = vld [vmem:[#allocation3 + $0x160] sm:$0xff]
        %v3318 = vld [vmem:[#allocation3 + $0x168] sm:$0xff]
        %v3319 = vld [vmem:[#allocation3 + $0x170] sm:$0xff]
        %v3320 = vld [vmem:[#allocation3 + $0x178] sm:$0xff]
        %v3321 = vld [vmem:[#allocation3 + $0x180] sm:$0xff]
        %v3322 = vld [vmem:[#allocation3 + $0x188] sm:$0xff]
        %v3323 = vld [vmem:[#allocation3 + $0x190] sm:$0xff]
        %v3324 = vld [vmem:[#allocation3 + $0x198] sm:$0xff]
        %v3325 = vld [vmem:[#allocation3 + $0x1a0] sm:$0xff]
        %v3326 = vld [vmem:[#allocation3 + $0x1a8] sm:$0xff]
        %v3327 = vld [vmem:[#allocation3 + $0x1b0] sm:$0xff]
        %v3328 = vld [vmem:[#allocation3 + $0x1b8] sm:$0xff]
        %v3329 = vld [vmem:[#allocation3 + $0x1c0] sm:$0xff]
        %v3330 = vld [vmem:[#allocation3 + $0x1c8] sm:$0xff]
        %v3331 = vld [vmem:[#allocation3 + $0x1d0] sm:$0xff]
        %v3332 = vld [vmem:[#allocation3 + $0x1d8] sm:$0xff]
        %v3333 = vld [vmem:[#allocation3 + $0x1e0] sm:$0xff]
        %v3334 = vld [vmem:[#allocation3 + $0x1e8] sm:$0xff]
        %v3335 = vld [vmem:[#allocation3 + $0x1f0] sm:$0xff]
        %v3336 = vld [vmem:[#allocation3 + $0x1f8] sm:$0xff]
        %v3337 = vadd.f32 %v3273, %v3115
        %v3338 = vadd.f32 %v3274, %v3117
        %v3339 = vadd.f32 %v3275, %v3119
        %v3340 = vadd.f32 %v3276, %v3121
        %v3341 = vadd.f32 %v3277, %v3125
        %v3342 = vadd.f32 %v3278, %v3127
        %v3343 = vadd.f32 %v3279, %v3129
        %v3344 = vadd.f32 %v3280, %v3131
        %v3345 = vadd.f32 %v3281, %v3135
        %v3346 = vadd.f32 %v3282, %v3137
        %v3347 = vadd.f32 %v3283, %v3139
        %v3348 = vadd.f32 %v3284, %v3141
        %v3349 = vadd.f32 %v3285, %v3145
        %v3350 = vadd.f32 %v3286, %v3147
        %v3351 = vadd.f32 %v3287, %v3149
        %v3352 = vadd.f32 %v3288, %v3151
        %v3353 = vadd.f32 %v3289, %v3155
        %v3354 = vadd.f32 %v3290, %v3157
        %v3355 = vadd.f32 %v3291, %v3159
        %v3356 = vadd.f32 %v3292, %v3161
        %v3357 = vadd.f32 %v3293, %v3165
        %v3358 = vadd.f32 %v3294, %v3167
        %v3359 = vadd.f32 %v3295, %v3169
        %v3360 = vadd.f32 %v3296, %v3171
        %v3361 = vadd.f32 %v3297, %v3175
        %v3362 = vadd.f32 %v3298, %v3177
        %v3363 = vadd.f32 %v3299, %v3179
        %v3364 = vadd.f32 %v3300, %v3181
        %v3365 = vadd.f32 %v3301, %v3185
        %v3366 = vadd.f32 %v3302, %v3187
        %v3367 = vadd.f32 %v3303, %v3189
        %v3368 = vadd.f32 %v3304, %v3191
        %v3369 = vadd.f32 %v3305, %v3195
        %v3370 = vadd.f32 %v3306, %v3197
        %v3371 = vadd.f32 %v3307, %v3199
        %v3372 = vadd.f32 %v3308, %v3201
        %v3373 = vadd.f32 %v3309, %v3205
        %v3374 = vadd.f32 %v3310, %v3207
        %v3375 = vadd.f32 %v3311, %v3209
        %v3376 = vadd.f32 %v3312, %v3211
        %v3377 = vadd.f32 %v3313, %v3215
        %v3378 = vadd.f32 %v3314, %v3217
        %v3379 = vadd.f32 %v3315, %v3219
        %v3380 = vadd.f32 %v3316, %v3221
        %v3381 = vadd.f32 %v3317, %v3225
        %v3382 = vadd.f32 %v3318, %v3227
        %v3383 = vadd.f32 %v3319, %v3229
        %v3384 = vadd.f32 %v3320, %v3231
        %v3385 = vadd.f32 %v3321, %v3235
        %v3386 = vadd.f32 %v3322, %v3237
        %v3387 = vadd.f32 %v3323, %v3239
        %v3388 = vadd.f32 %v3324, %v3241
        %v3389 = vadd.f32 %v3325, %v3245
        %v3390 = vadd.f32 %v3326, %v3247
        %v3391 = vadd.f32 %v3327, %v3249
        %v3392 = vadd.f32 %v3328, %v3251
        %v3393 = vadd.f32 %v3329, %v3255
        %v3394 = vadd.f32 %v3330, %v3257
        %v3395 = vadd.f32 %v3331, %v3259
        %v3396 = vadd.f32 %v3332, %v3261
        %v3397 = vadd.f32 %v3333, %v3265
        %v3398 = vadd.f32 %v3334, %v3267
        %v3399 = vadd.f32 %v3335, %v3269
        %v3400 = vadd.f32 %v3336, %v3271
        %3401 = vst [vmem:[#allocation3] sm:$0xff] %v3337
        %3402 = vst [vmem:[#allocation3 + $0x8] sm:$0xff] %v3338
        %3403 = vst [vmem:[#allocation3 + $0x10] sm:$0xff] %v3339
        %3404 = vst [vmem:[#allocation3 + $0x18] sm:$0xff] %v3340
        %3405 = vst [vmem:[#allocation3 + $0x20] sm:$0xff] %v3341
        %3406 = vst [vmem:[#allocation3 + $0x28] sm:$0xff] %v3342
        %3407 = vst [vmem:[#allocation3 + $0x30] sm:$0xff] %v3343
        %3408 = vst [vmem:[#allocation3 + $0x38] sm:$0xff] %v3344
        %3409 = vst [vmem:[#allocation3 + $0x40] sm:$0xff] %v3345
        %3410 = vst [vmem:[#allocation3 + $0x48] sm:$0xff] %v3346
        %3411 = vst [vmem:[#allocation3 + $0x50] sm:$0xff] %v3347
        %3412 = vst [vmem:[#allocation3 + $0x58] sm:$0xff] %v3348
        %3413 = vst [vmem:[#allocation3 + $0x60] sm:$0xff] %v3349
        %3414 = vst [vmem:[#allocation3 + $0x68] sm:$0xff] %v3350
        %3415 = vst [vmem:[#allocation3 + $0x70] sm:$0xff] %v3351
        %3416 = vst [vmem:[#allocation3 + $0x78] sm:$0xff] %v3352
        %3417 = vst [vmem:[#allocation3 + $0x80] sm:$0xff] %v3353
        %3418 = vst [vmem:[#allocation3 + $0x88] sm:$0xff] %v3354
        %3419 = vst [vmem:[#allocation3 + $0x90] sm:$0xff] %v3355
        %3420 = vst [vmem:[#allocation3 + $0x98] sm:$0xff] %v3356
        %3421 = vst [vmem:[#allocation3 + $0xa0] sm:$0xff] %v3357
        %3422 = vst [vmem:[#allocation3 + $0xa8] sm:$0xff] %v3358
        %3423 = vst [vmem:[#allocation3 + $0xb0] sm:$0xff] %v3359
        %3424 = vst [vmem:[#allocation3 + $0xb8] sm:$0xff] %v3360
        %3425 = vst [vmem:[#allocation3 + $0xc0] sm:$0xff] %v3361
        %3426 = vst [vmem:[#allocation3 + $0xc8] sm:$0xff] %v3362
        %3427 = vst [vmem:[#allocation3 + $0xd0] sm:$0xff] %v3363
        %3428 = vst [vmem:[#allocation3 + $0xd8] sm:$0xff] %v3364
        %3429 = vst [vmem:[#allocation3 + $0xe0] sm:$0xff] %v3365
        %3430 = vst [vmem:[#allocation3 + $0xe8] sm:$0xff] %v3366
        %3431 = vst [vmem:[#allocation3 + $0xf0] sm:$0xff] %v3367
        %3432 = vst [vmem:[#allocation3 + $0xf8] sm:$0xff] %v3368
        %3433 = vst [vmem:[#allocation3 + $0x100] sm:$0xff] %v3369
        %3434 = vst [vmem:[#allocation3 + $0x108] sm:$0xff] %v3370
        %3435 = vst [vmem:[#allocation3 + $0x110] sm:$0xff] %v3371
        %3436 = vst [vmem:[#allocation3 + $0x118] sm:$0xff] %v3372
        %3437 = vst [vmem:[#allocation3 + $0x120] sm:$0xff] %v3373
        %3438 = vst [vmem:[#allocation3 + $0x128] sm:$0xff] %v3374
        %3439 = vst [vmem:[#allocation3 + $0x130] sm:$0xff] %v3375
        %3440 = vst [vmem:[#allocation3 + $0x138] sm:$0xff] %v3376
        %3441 = vst [vmem:[#allocation3 + $0x140] sm:$0xff] %v3377
        %3442 = vst [vmem:[#allocation3 + $0x148] sm:$0xff] %v3378
        %3443 = vst [vmem:[#allocation3 + $0x150] sm:$0xff] %v3379
        %3444 = vst [vmem:[#allocation3 + $0x158] sm:$0xff] %v3380
        %3445 = vst [vmem:[#allocation3 + $0x160] sm:$0xff] %v3381
        %3446 = vst [vmem:[#allocation3 + $0x168] sm:$0xff] %v3382
        %3447 = vst [vmem:[#allocation3 + $0x170] sm:$0xff] %v3383
        %3448 = vst [vmem:[#allocation3 + $0x178] sm:$0xff] %v3384
        %3449 = vst [vmem:[#allocation3 + $0x180] sm:$0xff] %v3385
        %3450 = vst [vmem:[#allocation3 + $0x188] sm:$0xff] %v3386
        %3451 = vst [vmem:[#allocation3 + $0x190] sm:$0xff] %v3387
        %3452 = vst [vmem:[#allocation3 + $0x198] sm:$0xff] %v3388
        %3453 = vst [vmem:[#allocation3 + $0x1a0] sm:$0xff] %v3389
        %3454 = vst [vmem:[#allocation3 + $0x1a8] sm:$0xff] %v3390
        %3455 = vst [vmem:[#allocation3 + $0x1b0] sm:$0xff] %v3391
        %3456 = vst [vmem:[#allocation3 + $0x1b8] sm:$0xff] %v3392
        %3457 = vst [vmem:[#allocation3 + $0x1c0] sm:$0xff] %v3393
        %3458 = vst [vmem:[#allocation3 + $0x1c8] sm:$0xff] %v3394
        %3459 = vst [vmem:[#allocation3 + $0x1d0] sm:$0xff] %v3395
        %3460 = vst [vmem:[#allocation3 + $0x1d8] sm:$0xff] %v3396
        %3461 = vst [vmem:[#allocation3 + $0x1e0] sm:$0xff] %v3397
        %3462 = vst [vmem:[#allocation3 + $0x1e8] sm:$0xff] %v3398
        %3463 = vst [vmem:[#allocation3 + $0x1f0] sm:$0xff] %v3399
        %3464 = vst [vmem:[#allocation3 + $0x1f8] sm:$0xff] %v3400
        %v3465 = vld [vmem:[%s628] sm:$0xf]
        %v3466 = vld [vmem:[%s628 + $0x4] sm:$0xf]
        %v3467 = vld [vmem:[%s628 + $0xc] sm:$0xf]
        %v3468 = vld [vmem:[%s628 + $0x10] sm:$0xf]
        %v3469 = vld [vmem:[%s628 + $0x18] sm:$0xf]
        %v3470 = vld [vmem:[%s628 + $0x1c] sm:$0xf]
        %v3471 = vld [vmem:[%s628 + $0x24] sm:$0xf]
        %v3472 = vld [vmem:[%s628 + $0x28] sm:$0xf]
        %v3473 = vld [vmem:[%s628 + $0x30] sm:$0xf]
        %v3474 = vld [vmem:[%s628 + $0x34] sm:$0xf]
        %v3475 = vld [vmem:[%s628 + $0x3c] sm:$0xf]
        %v3476 = vld [vmem:[%s628 + $0x40] sm:$0xf]
        %v3477 = vld [vmem:[%s628 + $0x48] sm:$0xf]
        %v3478 = vld [vmem:[%s628 + $0x4c] sm:$0xf]
        %v3479 = vld [vmem:[%s628 + $0x54] sm:$0xf]
        %v3480 = vld [vmem:[%s628 + $0x58] sm:$0xf]
        %v3481 = vld [vmem:[%s628 + $0x60] sm:$0xf]
        %v3482 = vld [vmem:[%s628 + $0x64] sm:$0xf]
        %v3483 = vld [vmem:[%s628 + $0x6c] sm:$0xf]
        %v3484 = vld [vmem:[%s628 + $0x70] sm:$0xf]
        %v3485 = vld [vmem:[%s628 + $0x78] sm:$0xf]
        %v3486 = vld [vmem:[%s628 + $0x7c] sm:$0xf]
        %v3487 = vld [vmem:[%s628 + $0x84] sm:$0xf]
        %v3488 = vld [vmem:[%s628 + $0x88] sm:$0xf]
        %v3489 = vld [vmem:[%s628 + $0x90] sm:$0xf]
        %v3490 = vld [vmem:[%s628 + $0x94] sm:$0xf]
        %v3491 = vld [vmem:[%s628 + $0x9c] sm:$0xf]
        %v3492 = vld [vmem:[%s628 + $0xa0] sm:$0xf]
        %v3493 = vld [vmem:[%s628 + $0xa8] sm:$0xf]
        %v3494 = vld [vmem:[%s628 + $0xac] sm:$0xf]
        %v3495 = vld [vmem:[%s628 + $0xb4] sm:$0xf]
        %v3496 = vld [vmem:[%s628 + $0xb8] sm:$0xf]
        %s3497 = scalar_lea.vmem [#allocation4], 384
        %v3498 = vld [vmem:[%s3497] sm:$0xff]
        %v3499 = vld [vmem:[%s3497 + $0x8] sm:$0xff]
        %v3500 = vld [vmem:[%s3497 + $0x10] sm:$0xff]
        %v3501 = vld [vmem:[%s3497 + $0x18] sm:$0xff]
        %v3502 = vld [vmem:[%s3497 + $0x20] sm:$0xff]
        %v3503 = vld [vmem:[%s3497 + $0x28] sm:$0xff]
        %v3504 = vld [vmem:[%s3497 + $0x30] sm:$0xff]
        %v3505 = vld [vmem:[%s3497 + $0x38] sm:$0xff]
        %v3506 = vld [vmem:[%s3497 + $0x40] sm:$0xff]
        %v3507 = vld [vmem:[%s3497 + $0x48] sm:$0xff]
        %v3508 = vld [vmem:[%s3497 + $0x50] sm:$0xff]
        %v3509 = vld [vmem:[%s3497 + $0x58] sm:$0xff]
        %v3510 = vld [vmem:[%s3497 + $0x60] sm:$0xff]
        %v3511 = vld [vmem:[%s3497 + $0x68] sm:$0xff]
        %v3512 = vld [vmem:[%s3497 + $0x70] sm:$0xff]
        %v3513 = vld [vmem:[%s3497 + $0x78] sm:$0xff]
        %v3546 = vunpack.c.l.b16 %v3465
        %v3547 = vunpack.c.l.b16 %v3466
        %v3548 = vunpack.c.l.b16 %v3467
        %v3549 = vunpack.c.l.b16 %v3468
        %v3550 = vunpack.c.l.b16 %v3469
        %v3551 = vunpack.c.l.b16 %v3470
        %v3552 = vunpack.c.l.b16 %v3471
        %v3553 = vunpack.c.l.b16 %v3472
        %v3554 = vunpack.c.l.b16 %v3473
        %v3555 = vunpack.c.l.b16 %v3474
        %v3556 = vunpack.c.l.b16 %v3475
        %v3557 = vunpack.c.l.b16 %v3476
        %v3558 = vunpack.c.l.b16 %v3477
        %v3559 = vunpack.c.l.b16 %v3478
        %v3560 = vunpack.c.l.b16 %v3479
        %v3561 = vunpack.c.l.b16 %v3480
        %v3562 = vunpack.c.l.b16 %v3481
        %v3563 = vunpack.c.l.b16 %v3482
        %v3564 = vunpack.c.l.b16 %v3483
        %v3565 = vunpack.c.l.b16 %v3484
        %v3566 = vunpack.c.l.b16 %v3485
        %v3567 = vunpack.c.l.b16 %v3486
        %v3568 = vunpack.c.l.b16 %v3487
        %v3569 = vunpack.c.l.b16 %v3488
        %v3570 = vunpack.c.l.b16 %v3489
        %v3571 = vunpack.c.l.b16 %v3490
        %v3572 = vunpack.c.l.b16 %v3491
        %v3573 = vunpack.c.l.b16 %v3492
        %v3574 = vunpack.c.l.b16 %v3493
        %v3575 = vunpack.c.l.b16 %v3494
        %v3576 = vunpack.c.l.b16 %v3495
        %v3577 = vunpack.c.l.b16 %v3496
        %v3578 = vpack.c.b16 %v3547, %v3546
        %v3579 = vpack.c.b16 %v3549, %v3548
        %v3580 = vpack.c.b16 %v3551, %v3550
        %v3581 = vpack.c.b16 %v3553, %v3552
        %v3582 = vpack.c.b16 %v3555, %v3554
        %v3583 = vpack.c.b16 %v3557, %v3556
        %v3584 = vpack.c.b16 %v3559, %v3558
        %v3585 = vpack.c.b16 %v3561, %v3560
        %v3586 = vpack.c.b16 %v3563, %v3562
        %v3587 = vpack.c.b16 %v3565, %v3564
        %v3588 = vpack.c.b16 %v3567, %v3566
        %v3589 = vpack.c.b16 %v3569, %v3568
        %v3590 = vpack.c.b16 %v3571, %v3570
        %v3591 = vpack.c.b16 %v3573, %v3572
        %v3592 = vpack.c.b16 %v3575, %v3574
        %v3593 = vpack.c.b16 %v3577, %v3576
        %v3626 = vunpack.c.l.b16 %v3498
        %v3627 = vunpack.c.h.b16 %v3498
        %v3628 = vunpack.c.l.b16 %v3499
        %v3629 = vunpack.c.h.b16 %v3499
        %v3630 = vunpack.c.l.b16 %v3500
        %v3631 = vunpack.c.h.b16 %v3500
        %v3632 = vunpack.c.l.b16 %v3501
        %v3633 = vunpack.c.h.b16 %v3501
        %v3634 = vunpack.c.l.b16 %v3502
        %v3635 = vunpack.c.h.b16 %v3502
        %v3636 = vunpack.c.l.b16 %v3503
        %v3637 = vunpack.c.h.b16 %v3503
        %v3638 = vunpack.c.l.b16 %v3504
        %v3639 = vunpack.c.h.b16 %v3504
        %v3640 = vunpack.c.l.b16 %v3505
        %v3641 = vunpack.c.h.b16 %v3505
        %v3642 = vunpack.c.l.b16 %v3506
        %v3643 = vunpack.c.h.b16 %v3506
        %v3644 = vunpack.c.l.b16 %v3507
        %v3645 = vunpack.c.h.b16 %v3507
        %v3646 = vunpack.c.l.b16 %v3508
        %v3647 = vunpack.c.h.b16 %v3508
        %v3648 = vunpack.c.l.b16 %v3509
        %v3649 = vunpack.c.h.b16 %v3509
        %v3650 = vunpack.c.l.b16 %v3510
        %v3651 = vunpack.c.h.b16 %v3510
        %v3652 = vunpack.c.l.b16 %v3511
        %v3653 = vunpack.c.h.b16 %v3511
        %v3654 = vunpack.c.l.b16 %v3512
        %v3655 = vunpack.c.h.b16 %v3512
        %v3656 = vunpack.c.l.b16 %v3513
        %v3657 = vunpack.c.h.b16 %v3513
        %v3658 = vpack.c.b16 %v3628, %v3626
        %v3659 = vpack.c.b16 %v3629, %v3627
        %v3660 = vpack.c.b16 %v3632, %v3630
        %v3661 = vpack.c.b16 %v3633, %v3631
        %v3662 = vpack.c.b16 %v3636, %v3634
        %v3663 = vpack.c.b16 %v3637, %v3635
        %v3664 = vpack.c.b16 %v3640, %v3638
        %v3665 = vpack.c.b16 %v3641, %v3639
        %v3666 = vpack.c.b16 %v3644, %v3642
        %v3667 = vpack.c.b16 %v3645, %v3643
        %v3668 = vpack.c.b16 %v3648, %v3646
        %v3669 = vpack.c.b16 %v3649, %v3647
        %v3670 = vpack.c.b16 %v3652, %v3650
        %v3671 = vpack.c.b16 %v3653, %v3651
        %v3672 = vpack.c.b16 %v3656, %v3654
        %v3673 = vpack.c.b16 %v3657, %v3655
        %3690 = vmatprep.subr.bf16.mxu0 %v3659
        %3691 = vmatpush1.bf16.msra.mxu0 %v3658
        %3692 = vmatprep.subr.bf16.mxu0 %v3661
        %3693 = vmatpush1.bf16.msra.mxu0 %v3660
        %3694 = vmatprep.subr.bf16.mxu0 %v3663
        %3695 = vmatpush1.bf16.msra.mxu0 %v3662
        %3696 = vmatprep.subr.bf16.mxu0 %v3665
        %3697 = vmatpush1.bf16.msra.mxu0 %v3664
        %3698 = vmatprep.subr.bf16.mxu0 %v3667
        %3699 = vmatpush1.bf16.msra.mxu0 %v3666
        %3700 = vmatprep.subr.bf16.mxu0 %v3669
        %3701 = vmatpush1.bf16.msra.mxu0 %v3668
        %3702 = vmatprep.subr.bf16.mxu0 %v3671
        %3703 = vmatpush1.bf16.msra.mxu0 %v3670
        %3704 = vmatprep.subr.bf16.mxu0 %v3673
        %3705 = vmatpush1.bf16.msra.mxu0 %v3672
        %3706 = vmatprep.subr.bf16.mxu0 0
        %3707 = vmatpush1.bf16.msra.mxu0 0
        %3708 = vmatprep.subr.bf16.mxu0 0
        %3709 = vmatpush1.bf16.msra.mxu0 0
        %3710 = vmatprep.subr.bf16.mxu0 0
        %3711 = vmatpush1.bf16.msra.mxu0 0
        %3712 = vmatprep.subr.bf16.mxu0 0
        %3713 = vmatpush1.bf16.msra.mxu0 0
        %3714 = vmatprep.subr.bf16.mxu0 0
        %3715 = vmatpush1.bf16.msra.mxu0 0
        %3716 = vmatprep.subr.bf16.mxu0 0
        %3717 = vmatpush1.bf16.msra.mxu0 0
        %3718 = vmatprep.subr.bf16.mxu0 0
        %3719 = vmatpush1.bf16.msra.mxu0 0
        %3720 = vmatprep.subr.bf16.mxu0 0
        %3721 = vmatpush1.bf16.msra.mxu0 0
        %3722 = vmatprep.mubr.bf16.mxu0 0
        %3723 = vmatmul.mubr.bf16.gmra.mrb[0].mxu0 %v3578
        %v3724 = vpop.f32.mrb[0].mxu0
        %v3725 = vadd.f32 0.0, %v3724
        %v3726 = vpop.f32.mrb[0].mxu0
        %v3727 = vadd.f32 0.0, %v3726
        %v3728 = vpop.f32.mrb[0].mxu0
        %v3729 = vadd.f32 0.0, %v3728
        %v3730 = vpop.f32.mrb[0].mxu0
        %v3731 = vadd.f32 0.0, %v3730
        %3732 = vmatprep.mubr.bf16.mxu0 0
        %3733 = vmatmul.mubr.bf16.gmra.mrb[0].mxu0 %v3579
        %v3734 = vpop.f32.mrb[0].mxu0
        %v3735 = vadd.f32 0.0, %v3734
        %v3736 = vpop.f32.mrb[0].mxu0
        %v3737 = vadd.f32 0.0, %v3736
        %v3738 = vpop.f32.mrb[0].mxu0
        %v3739 = vadd.f32 0.0, %v3738
        %v3740 = vpop.f32.mrb[0].mxu0
        %v3741 = vadd.f32 0.0, %v3740
        %3742 = vmatprep.mubr.bf16.mxu0 0
        %3743 = vmatmul.mubr.bf16.gmra.mrb[0].mxu0 %v3580
        %v3744 = vpop.f32.mrb[0].mxu0
        %v3745 = vadd.f32 0.0, %v3744
        %v3746 = vpop.f32.mrb[0].mxu0
        %v3747 = vadd.f32 0.0, %v3746
        %v3748 = vpop.f32.mrb[0].mxu0
        %v3749 = vadd.f32 0.0, %v3748
        %v3750 = vpop.f32.mrb[0].mxu0
        %v3751 = vadd.f32 0.0, %v3750
        %3752 = vmatprep.mubr.bf16.mxu0 0
        %3753 = vmatmul.mubr.bf16.gmra.mrb[0].mxu0 %v3581
        %v3754 = vpop.f32.mrb[0].mxu0
        %v3755 = vadd.f32 0.0, %v3754
        %v3756 = vpop.f32.mrb[0].mxu0
        %v3757 = vadd.f32 0.0, %v3756
        %v3758 = vpop.f32.mrb[0].mxu0
        %v3759 = vadd.f32 0.0, %v3758
        %v3760 = vpop.f32.mrb[0].mxu0
        %v3761 = vadd.f32 0.0, %v3760
        %3762 = vmatprep.mubr.bf16.mxu0 0
        %3763 = vmatmul.mubr.bf16.gmra.mrb[0].mxu0 %v3582
        %v3764 = vpop.f32.mrb[0].mxu0
        %v3765 = vadd.f32 0.0, %v3764
        %v3766 = vpop.f32.mrb[0].mxu0
        %v3767 = vadd.f32 0.0, %v3766
        %v3768 = vpop.f32.mrb[0].mxu0
        %v3769 = vadd.f32 0.0, %v3768
        %v3770 = vpop.f32.mrb[0].mxu0
        %v3771 = vadd.f32 0.0, %v3770
        %3772 = vmatprep.mubr.bf16.mxu0 0
        %3773 = vmatmul.mubr.bf16.gmra.mrb[0].mxu0 %v3583
        %v3774 = vpop.f32.mrb[0].mxu0
        %v3775 = vadd.f32 0.0, %v3774
        %v3776 = vpop.f32.mrb[0].mxu0
        %v3777 = vadd.f32 0.0, %v3776
        %v3778 = vpop.f32.mrb[0].mxu0
        %v3779 = vadd.f32 0.0, %v3778
        %v3780 = vpop.f32.mrb[0].mxu0
        %v3781 = vadd.f32 0.0, %v3780
        %3782 = vmatprep.mubr.bf16.mxu0 0
        %3783 = vmatmul.mubr.bf16.gmra.mrb[0].mxu0 %v3584
        %v3784 = vpop.f32.mrb[0].mxu0
        %v3785 = vadd.f32 0.0, %v3784
        %v3786 = vpop.f32.mrb[0].mxu0
        %v3787 = vadd.f32 0.0, %v3786
        %v3788 = vpop.f32.mrb[0].mxu0
        %v3789 = vadd.f32 0.0, %v3788
        %v3790 = vpop.f32.mrb[0].mxu0
        %v3791 = vadd.f32 0.0, %v3790
        %3792 = vmatprep.mubr.bf16.mxu0 0
        %3793 = vmatmul.mubr.bf16.gmra.mrb[0].mxu0 %v3585
        %v3794 = vpop.f32.mrb[0].mxu0
        %v3795 = vadd.f32 0.0, %v3794
        %v3796 = vpop.f32.mrb[0].mxu0
        %v3797 = vadd.f32 0.0, %v3796
        %v3798 = vpop.f32.mrb[0].mxu0
        %v3799 = vadd.f32 0.0, %v3798
        %v3800 = vpop.f32.mrb[0].mxu0
        %v3801 = vadd.f32 0.0, %v3800
        %3802 = vmatprep.mubr.bf16.mxu0 0
        %3803 = vmatmul.mubr.bf16.gmra.mrb[0].mxu0 %v3586
        %v3804 = vpop.f32.mrb[0].mxu0
        %v3805 = vadd.f32 0.0, %v3804
        %v3806 = vpop.f32.mrb[0].mxu0
        %v3807 = vadd.f32 0.0, %v3806
        %v3808 = vpop.f32.mrb[0].mxu0
        %v3809 = vadd.f32 0.0, %v3808
        %v3810 = vpop.f32.mrb[0].mxu0
        %v3811 = vadd.f32 0.0, %v3810
        %3812 = vmatprep.mubr.bf16.mxu0 0
        %3813 = vmatmul.mubr.bf16.gmra.mrb[0].mxu0 %v3587
        %v3814 = vpop.f32.mrb[0].mxu0
        %v3815 = vadd.f32 0.0, %v3814
        %v3816 = vpop.f32.mrb[0].mxu0
        %v3817 = vadd.f32 0.0, %v3816
        %v3818 = vpop.f32.mrb[0].mxu0
        %v3819 = vadd.f32 0.0, %v3818
        %v3820 = vpop.f32.mrb[0].mxu0
        %v3821 = vadd.f32 0.0, %v3820
        %3822 = vmatprep.mubr.bf16.mxu0 0
        %3823 = vmatmul.mubr.bf16.gmra.mrb[0].mxu0 %v3588
        %v3824 = vpop.f32.mrb[0].mxu0
        %v3825 = vadd.f32 0.0, %v3824
        %v3826 = vpop.f32.mrb[0].mxu0
        %v3827 = vadd.f32 0.0, %v3826
        %v3828 = vpop.f32.mrb[0].mxu0
        %v3829 = vadd.f32 0.0, %v3828
        %v3830 = vpop.f32.mrb[0].mxu0
        %v3831 = vadd.f32 0.0, %v3830
        %3832 = vmatprep.mubr.bf16.mxu0 0
        %3833 = vmatmul.mubr.bf16.gmra.mrb[0].mxu0 %v3589
        %v3834 = vpop.f32.mrb[0].mxu0
        %v3835 = vadd.f32 0.0, %v3834
        %v3836 = vpop.f32.mrb[0].mxu0
        %v3837 = vadd.f32 0.0, %v3836
        %v3838 = vpop.f32.mrb[0].mxu0
        %v3839 = vadd.f32 0.0, %v3838
        %v3840 = vpop.f32.mrb[0].mxu0
        %v3841 = vadd.f32 0.0, %v3840
        %3842 = vmatprep.mubr.bf16.mxu0 0
        %3843 = vmatmul.mubr.bf16.gmra.mrb[0].mxu0 %v3590
        %v3844 = vpop.f32.mrb[0].mxu0
        %v3845 = vadd.f32 0.0, %v3844
        %v3846 = vpop.f32.mrb[0].mxu0
        %v3847 = vadd.f32 0.0, %v3846
        %v3848 = vpop.f32.mrb[0].mxu0
        %v3849 = vadd.f32 0.0, %v3848
        %v3850 = vpop.f32.mrb[0].mxu0
        %v3851 = vadd.f32 0.0, %v3850
        %3852 = vmatprep.mubr.bf16.mxu0 0
        %3853 = vmatmul.mubr.bf16.gmra.mrb[0].mxu0 %v3591
        %v3854 = vpop.f32.mrb[0].mxu0
        %v3855 = vadd.f32 0.0, %v3854
        %v3856 = vpop.f32.mrb[0].mxu0
        %v3857 = vadd.f32 0.0, %v3856
        %v3858 = vpop.f32.mrb[0].mxu0
        %v3859 = vadd.f32 0.0, %v3858
        %v3860 = vpop.f32.mrb[0].mxu0
        %v3861 = vadd.f32 0.0, %v3860
        %3862 = vmatprep.mubr.bf16.mxu0 0
        %3863 = vmatmul.mubr.bf16.gmra.mrb[0].mxu0 %v3592
        %v3864 = vpop.f32.mrb[0].mxu0
        %v3865 = vadd.f32 0.0, %v3864
        %v3866 = vpop.f32.mrb[0].mxu0
        %v3867 = vadd.f32 0.0, %v3866
        %v3868 = vpop.f32.mrb[0].mxu0
        %v3869 = vadd.f32 0.0, %v3868
        %v3870 = vpop.f32.mrb[0].mxu0
        %v3871 = vadd.f32 0.0, %v3870
        %3872 = vmatprep.mubr.bf16.mxu0 0
        %3873 = vmatmul.mubr.bf16.gmra.mrb[0].mxu0 %v3593
        %v3874 = vpop.f32.mrb[0].mxu0
        %v3875 = vadd.f32 0.0, %v3874
        %v3876 = vpop.f32.mrb[0].mxu0
        %v3877 = vadd.f32 0.0, %v3876
        %v3878 = vpop.f32.mrb[0].mxu0
        %v3879 = vadd.f32 0.0, %v3878
        %v3880 = vpop.f32.mrb[0].mxu0
        %v3881 = vadd.f32 0.0, %v3880
        %3882 = vdwg.mxu0
        %v3883 = vld [vmem:[#allocation3] sm:$0xff]
        %v3884 = vld [vmem:[#allocation3 + $0x8] sm:$0xff]
        %v3885 = vld [vmem:[#allocation3 + $0x10] sm:$0xff]
        %v3886 = vld [vmem:[#allocation3 + $0x18] sm:$0xff]
        %v3887 = vld [vmem:[#allocation3 + $0x20] sm:$0xff]
        %v3888 = vld [vmem:[#allocation3 + $0x28] sm:$0xff]
        %v3889 = vld [vmem:[#allocation3 + $0x30] sm:$0xff]
        %v3890 = vld [vmem:[#allocation3 + $0x38] sm:$0xff]
        %v3891 = vld [vmem:[#allocation3 + $0x40] sm:$0xff]
        %v3892 = vld [vmem:[#allocation3 + $0x48] sm:$0xff]
        %v3893 = vld [vmem:[#allocation3 + $0x50] sm:$0xff]
        %v3894 = vld [vmem:[#allocation3 + $0x58] sm:$0xff]
        %v3895 = vld [vmem:[#allocation3 + $0x60] sm:$0xff]
        %v3896 = vld [vmem:[#allocation3 + $0x68] sm:$0xff]
        %v3897 = vld [vmem:[#allocation3 + $0x70] sm:$0xff]
        %v3898 = vld [vmem:[#allocation3 + $0x78] sm:$0xff]
        %v3899 = vld [vmem:[#allocation3 + $0x80] sm:$0xff]
        %v3900 = vld [vmem:[#allocation3 + $0x88] sm:$0xff]
        %v3901 = vld [vmem:[#allocation3 + $0x90] sm:$0xff]
        %v3902 = vld [vmem:[#allocation3 + $0x98] sm:$0xff]
        %v3903 = vld [vmem:[#allocation3 + $0xa0] sm:$0xff]
        %v3904 = vld [vmem:[#allocation3 + $0xa8] sm:$0xff]
        %v3905 = vld [vmem:[#allocation3 + $0xb0] sm:$0xff]
        %v3906 = vld [vmem:[#allocation3 + $0xb8] sm:$0xff]
        %v3907 = vld [vmem:[#allocation3 + $0xc0] sm:$0xff]
        %v3908 = vld [vmem:[#allocation3 + $0xc8] sm:$0xff]
        %v3909 = vld [vmem:[#allocation3 + $0xd0] sm:$0xff]
        %v3910 = vld [vmem:[#allocation3 + $0xd8] sm:$0xff]
        %v3911 = vld [vmem:[#allocation3 + $0xe0] sm:$0xff]
        %v3912 = vld [vmem:[#allocation3 + $0xe8] sm:$0xff]
        %v3913 = vld [vmem:[#allocation3 + $0xf0] sm:$0xff]
        %v3914 = vld [vmem:[#allocation3 + $0xf8] sm:$0xff]
        %v3915 = vld [vmem:[#allocation3 + $0x100] sm:$0xff]
        %v3916 = vld [vmem:[#allocation3 + $0x108] sm:$0xff]
        %v3917 = vld [vmem:[#allocation3 + $0x110] sm:$0xff]
        %v3918 = vld [vmem:[#allocation3 + $0x118] sm:$0xff]
        %v3919 = vld [vmem:[#allocation3 + $0x120] sm:$0xff]
        %v3920 = vld [vmem:[#allocation3 + $0x128] sm:$0xff]
        %v3921 = vld [vmem:[#allocation3 + $0x130] sm:$0xff]
        %v3922 = vld [vmem:[#allocation3 + $0x138] sm:$0xff]
        %v3923 = vld [vmem:[#allocation3 + $0x140] sm:$0xff]
        %v3924 = vld [vmem:[#allocation3 + $0x148] sm:$0xff]
        %v3925 = vld [vmem:[#allocation3 + $0x150] sm:$0xff]
        %v3926 = vld [vmem:[#allocation3 + $0x158] sm:$0xff]
        %v3927 = vld [vmem:[#allocation3 + $0x160] sm:$0xff]
        %v3928 = vld [vmem:[#allocation3 + $0x168] sm:$0xff]
        %v3929 = vld [vmem:[#allocation3 + $0x170] sm:$0xff]
        %v3930 = vld [vmem:[#allocation3 + $0x178] sm:$0xff]
        %v3931 = vld [vmem:[#allocation3 + $0x180] sm:$0xff]
        %v3932 = vld [vmem:[#allocation3 + $0x188] sm:$0xff]
        %v3933 = vld [vmem:[#allocation3 + $0x190] sm:$0xff]
        %v3934 = vld [vmem:[#allocation3 + $0x198] sm:$0xff]
        %v3935 = vld [vmem:[#allocation3 + $0x1a0] sm:$0xff]
        %v3936 = vld [vmem:[#allocation3 + $0x1a8] sm:$0xff]
        %v3937 = vld [vmem:[#allocation3 + $0x1b0] sm:$0xff]
        %v3938 = vld [vmem:[#allocation3 + $0x1b8] sm:$0xff]
        %v3939 = vld [vmem:[#allocation3 + $0x1c0] sm:$0xff]
        %v3940 = vld [vmem:[#allocation3 + $0x1c8] sm:$0xff]
        %v3941 = vld [vmem:[#allocation3 + $0x1d0] sm:$0xff]
        %v3942 = vld [vmem:[#allocation3 + $0x1d8] sm:$0xff]
        %v3943 = vld [vmem:[#allocation3 + $0x1e0] sm:$0xff]
        %v3944 = vld [vmem:[#allocation3 + $0x1e8] sm:$0xff]
        %v3945 = vld [vmem:[#allocation3 + $0x1f0] sm:$0xff]
        %v3946 = vld [vmem:[#allocation3 + $0x1f8] sm:$0xff]
        %v3947 = vadd.f32 %v3883, %v3725
        %v3948 = vadd.f32 %v3884, %v3727
        %v3949 = vadd.f32 %v3885, %v3729
        %v3950 = vadd.f32 %v3886, %v3731
        %v3951 = vadd.f32 %v3887, %v3735
        %v3952 = vadd.f32 %v3888, %v3737
        %v3953 = vadd.f32 %v3889, %v3739
        %v3954 = vadd.f32 %v3890, %v3741
        %v3955 = vadd.f32 %v3891, %v3745
        %v3956 = vadd.f32 %v3892, %v3747
        %v3957 = vadd.f32 %v3893, %v3749
        %v3958 = vadd.f32 %v3894, %v3751
        %v3959 = vadd.f32 %v3895, %v3755
        %v3960 = vadd.f32 %v3896, %v3757
        %v3961 = vadd.f32 %v3897, %v3759
        %v3962 = vadd.f32 %v3898, %v3761
        %v3963 = vadd.f32 %v3899, %v3765
        %v3964 = vadd.f32 %v3900, %v3767
        %v3965 = vadd.f32 %v3901, %v3769
        %v3966 = vadd.f32 %v3902, %v3771
        %v3967 = vadd.f32 %v3903, %v3775
        %v3968 = vadd.f32 %v3904, %v3777
        %v3969 = vadd.f32 %v3905, %v3779
        %v3970 = vadd.f32 %v3906, %v3781
        %v3971 = vadd.f32 %v3907, %v3785
        %v3972 = vadd.f32 %v3908, %v3787
        %v3973 = vadd.f32 %v3909, %v3789
        %v3974 = vadd.f32 %v3910, %v3791
        %v3975 = vadd.f32 %v3911, %v3795
        %v3976 = vadd.f32 %v3912, %v3797
        %v3977 = vadd.f32 %v3913, %v3799
        %v3978 = vadd.f32 %v3914, %v3801
        %v3979 = vadd.f32 %v3915, %v3805
        %v3980 = vadd.f32 %v3916, %v3807
        %v3981 = vadd.f32 %v3917, %v3809
        %v3982 = vadd.f32 %v3918, %v3811
        %v3983 = vadd.f32 %v3919, %v3815
        %v3984 = vadd.f32 %v3920, %v3817
        %v3985 = vadd.f32 %v3921, %v3819
        %v3986 = vadd.f32 %v3922, %v3821
        %v3987 = vadd.f32 %v3923, %v3825
        %v3988 = vadd.f32 %v3924, %v3827
        %v3989 = vadd.f32 %v3925, %v3829
        %v3990 = vadd.f32 %v3926, %v3831
        %v3991 = vadd.f32 %v3927, %v3835
        %v3992 = vadd.f32 %v3928, %v3837
        %v3993 = vadd.f32 %v3929, %v3839
        %v3994 = vadd.f32 %v3930, %v3841
        %v3995 = vadd.f32 %v3931, %v3845
        %v3996 = vadd.f32 %v3932, %v3847
        %v3997 = vadd.f32 %v3933, %v3849
        %v3998 = vadd.f32 %v3934, %v3851
        %v3999 = vadd.f32 %v3935, %v3855
        %v4000 = vadd.f32 %v3936, %v3857
        %v4001 = vadd.f32 %v3937, %v3859
        %v4002 = vadd.f32 %v3938, %v3861
        %v4003 = vadd.f32 %v3939, %v3865
        %v4004 = vadd.f32 %v3940, %v3867
        %v4005 = vadd.f32 %v3941, %v3869
        %v4006 = vadd.f32 %v3942, %v3871
        %v4007 = vadd.f32 %v3943, %v3875
        %v4008 = vadd.f32 %v3944, %v3877
        %v4009 = vadd.f32 %v3945, %v3879
        %v4010 = vadd.f32 %v3946, %v3881
        %4011 = vst [vmem:[#allocation3] sm:$0xff] %v3947
        %4012 = vst [vmem:[#allocation3 + $0x8] sm:$0xff] %v3948
        %4013 = vst [vmem:[#allocation3 + $0x10] sm:$0xff] %v3949
        %4014 = vst [vmem:[#allocation3 + $0x18] sm:$0xff] %v3950
        %4015 = vst [vmem:[#allocation3 + $0x20] sm:$0xff] %v3951
        %4016 = vst [vmem:[#allocation3 + $0x28] sm:$0xff] %v3952
        %4017 = vst [vmem:[#allocation3 + $0x30] sm:$0xff] %v3953
        %4018 = vst [vmem:[#allocation3 + $0x38] sm:$0xff] %v3954
        %4019 = vst [vmem:[#allocation3 + $0x40] sm:$0xff] %v3955
        %4020 = vst [vmem:[#allocation3 + $0x48] sm:$0xff] %v3956
        %4021 = vst [vmem:[#allocation3 + $0x50] sm:$0xff] %v3957
        %4022 = vst [vmem:[#allocation3 + $0x58] sm:$0xff] %v3958
        %4023 = vst [vmem:[#allocation3 + $0x60] sm:$0xff] %v3959
        %4024 = vst [vmem:[#allocation3 + $0x68] sm:$0xff] %v3960
        %4025 = vst [vmem:[#allocation3 + $0x70] sm:$0xff] %v3961
        %4026 = vst [vmem:[#allocation3 + $0x78] sm:$0xff] %v3962
        %4027 = vst [vmem:[#allocation3 + $0x80] sm:$0xff] %v3963
        %4028 = vst [vmem:[#allocation3 + $0x88] sm:$0xff] %v3964
        %4029 = vst [vmem:[#allocation3 + $0x90] sm:$0xff] %v3965
        %4030 = vst [vmem:[#allocation3 + $0x98] sm:$0xff] %v3966
        %4031 = vst [vmem:[#allocation3 + $0xa0] sm:$0xff] %v3967
        %4032 = vst [vmem:[#allocation3 + $0xa8] sm:$0xff] %v3968
        %4033 = vst [vmem:[#allocation3 + $0xb0] sm:$0xff] %v3969
        %4034 = vst [vmem:[#allocation3 + $0xb8] sm:$0xff] %v3970
        %4035 = vst [vmem:[#allocation3 + $0xc0] sm:$0xff] %v3971
        %4036 = vst [vmem:[#allocation3 + $0xc8] sm:$0xff] %v3972
        %4037 = vst [vmem:[#allocation3 + $0xd0] sm:$0xff] %v3973
        %4038 = vst [vmem:[#allocation3 + $0xd8] sm:$0xff] %v3974
        %4039 = vst [vmem:[#allocation3 + $0xe0] sm:$0xff] %v3975
        %4040 = vst [vmem:[#allocation3 + $0xe8] sm:$0xff] %v3976
        %4041 = vst [vmem:[#allocation3 + $0xf0] sm:$0xff] %v3977
        %4042 = vst [vmem:[#allocation3 + $0xf8] sm:$0xff] %v3978
        %4043 = vst [vmem:[#allocation3 + $0x100] sm:$0xff] %v3979
        %4044 = vst [vmem:[#allocation3 + $0x108] sm:$0xff] %v3980
        %4045 = vst [vmem:[#allocation3 + $0x110] sm:$0xff] %v3981
        %4046 = vst [vmem:[#allocation3 + $0x118] sm:$0xff] %v3982
        %4047 = vst [vmem:[#allocation3 + $0x120] sm:$0xff] %v3983
        %4048 = vst [vmem:[#allocation3 + $0x128] sm:$0xff] %v3984
        %4049 = vst [vmem:[#allocation3 + $0x130] sm:$0xff] %v3985
        %4050 = vst [vmem:[#allocation3 + $0x138] sm:$0xff] %v3986
        %4051 = vst [vmem:[#allocation3 + $0x140] sm:$0xff] %v3987
        %4052 = vst [vmem:[#allocation3 + $0x148] sm:$0xff] %v3988
        %4053 = vst [vmem:[#allocation3 + $0x150] sm:$0xff] %v3989
        %4054 = vst [vmem:[#allocation3 + $0x158] sm:$0xff] %v3990
        %4055 = vst [vmem:[#allocation3 + $0x160] sm:$0xff] %v3991
        %4056 = vst [vmem:[#allocation3 + $0x168] sm:$0xff] %v3992
        %4057 = vst [vmem:[#allocation3 + $0x170] sm:$0xff] %v3993
        %4058 = vst [vmem:[#allocation3 + $0x178] sm:$0xff] %v3994
        %4059 = vst [vmem:[#allocation3 + $0x180] sm:$0xff] %v3995
        %4060 = vst [vmem:[#allocation3 + $0x188] sm:$0xff] %v3996
        %4061 = vst [vmem:[#allocation3 + $0x190] sm:$0xff] %v3997
        %4062 = vst [vmem:[#allocation3 + $0x198] sm:$0xff] %v3998
        %4063 = vst [vmem:[#allocation3 + $0x1a0] sm:$0xff] %v3999
        %4064 = vst [vmem:[#allocation3 + $0x1a8] sm:$0xff] %v4000
        %4065 = vst [vmem:[#allocation3 + $0x1b0] sm:$0xff] %v4001
        %4066 = vst [vmem:[#allocation3 + $0x1b8] sm:$0xff] %v4002
        %4067 = vst [vmem:[#allocation3 + $0x1c0] sm:$0xff] %v4003
        %4068 = vst [vmem:[#allocation3 + $0x1c8] sm:$0xff] %v4004
        %4069 = vst [vmem:[#allocation3 + $0x1d0] sm:$0xff] %v4005
        %4070 = vst [vmem:[#allocation3 + $0x1d8] sm:$0xff] %v4006
        %4071 = vst [vmem:[#allocation3 + $0x1e0] sm:$0xff] %v4007
        %4072 = vst [vmem:[#allocation3 + $0x1e8] sm:$0xff] %v4008
        %4073 = vst [vmem:[#allocation3 + $0x1f0] sm:$0xff] %v4009
        %4074 = vst [vmem:[#allocation3 + $0x1f8] sm:$0xff] %v4010
        %v4075 = vld [vmem:[%s628] sm:$0xf]
        %v4076 = vld [vmem:[%s628 + $0x4] sm:$0xf]
        %v4077 = vld [vmem:[%s628 + $0x8] sm:$0x1]
        %v4078 = vld [vmem:[%s628 + $0xc] sm:$0xf]
        %v4079 = vld [vmem:[%s628 + $0x10] sm:$0xf]
        %v4080 = vld [vmem:[%s628 + $0x14] sm:$0x1]
        %v4081 = vld [vmem:[%s628 + $0x18] sm:$0xf]
        %v4082 = vld [vmem:[%s628 + $0x1c] sm:$0xf]
        %v4083 = vld [vmem:[%s628 + $0x20] sm:$0x1]
        %v4084 = vld [vmem:[%s628 + $0x24] sm:$0xf]
        %v4085 = vld [vmem:[%s628 + $0x28] sm:$0xf]
        %v4086 = vld [vmem:[%s628 + $0x2c] sm:$0x1]
        %v4087 = vld [vmem:[%s628 + $0x30] sm:$0xf]
        %v4088 = vld [vmem:[%s628 + $0x34] sm:$0xf]
        %v4089 = vld [vmem:[%s628 + $0x38] sm:$0x1]
        %v4090 = vld [vmem:[%s628 + $0x3c] sm:$0xf]
        %v4091 = vld [vmem:[%s628 + $0x40] sm:$0xf]
        %v4092 = vld [vmem:[%s628 + $0x44] sm:$0x1]
        %v4093 = vld [vmem:[%s628 + $0x48] sm:$0xf]
        %v4094 = vld [vmem:[%s628 + $0x4c] sm:$0xf]
        %v4095 = vld [vmem:[%s628 + $0x50] sm:$0x1]
        %v4096 = vld [vmem:[%s628 + $0x54] sm:$0xf]
        %v4097 = vld [vmem:[%s628 + $0x58] sm:$0xf]
        %v4098 = vld [vmem:[%s628 + $0x5c] sm:$0x1]
        %v4099 = vld [vmem:[%s628 + $0x60] sm:$0xf]
        %v4100 = vld [vmem:[%s628 + $0x64] sm:$0xf]
        %v4101 = vld [vmem:[%s628 + $0x68] sm:$0x1]
        %v4102 = vld [vmem:[%s628 + $0x6c] sm:$0xf]
        %v4103 = vld [vmem:[%s628 + $0x70] sm:$0xf]
        %v4104 = vld [vmem:[%s628 + $0x74] sm:$0x1]
        %v4105 = vld [vmem:[%s628 + $0x78] sm:$0xf]
        %v4106 = vld [vmem:[%s628 + $0x7c] sm:$0xf]
        %v4107 = vld [vmem:[%s628 + $0x80] sm:$0x1]
        %v4108 = vld [vmem:[%s628 + $0x84] sm:$0xf]
        %v4109 = vld [vmem:[%s628 + $0x88] sm:$0xf]
        %v4110 = vld [vmem:[%s628 + $0x8c] sm:$0x1]
        %v4111 = vld [vmem:[%s628 + $0x90] sm:$0xf]
        %v4112 = vld [vmem:[%s628 + $0x94] sm:$0xf]
        %v4113 = vld [vmem:[%s628 + $0x98] sm:$0x1]
        %v4114 = vld [vmem:[%s628 + $0x9c] sm:$0xf]
        %v4115 = vld [vmem:[%s628 + $0xa0] sm:$0xf]
        %v4116 = vld [vmem:[%s628 + $0xa4] sm:$0x1]
        %v4117 = vld [vmem:[%s628 + $0xa8] sm:$0xf]
        %v4118 = vld [vmem:[%s628 + $0xac] sm:$0xf]
        %v4119 = vld [vmem:[%s628 + $0xb0] sm:$0x1]
        %v4120 = vld [vmem:[%s628 + $0xb4] sm:$0xf]
        %v4121 = vld [vmem:[%s628 + $0xb8] sm:$0xf]
        %v4122 = vld [vmem:[%s628 + $0xbc] sm:$0x1]
        %v4124 = vshrl.u32 %v4075, 16
        %v4126 = vrot.slane %v4124, 4
        %v4127 = vshll.u32 %v4075, 16
        %v4129 = vrot.slane %v4127, 5
        %v4130 = vor.u32 %v4126, %v4129
        %v4131 = vrot.slane %v4130, 4
        %v4133 = vshll.u32 %v4076, 16
        %v4135 = vrot.slane %v4133, 5
        %v4136 = vsel %vm1777, %v4131, %v4135
        %v4137 = vshrl.u32 %v4076, 16
        %v4139 = vrot.slane %v4137, 4
        %v4140 = vor.u32 %v4139, %v4135
        %v4141 = vrot.slane %v4140, 4
        %v4143 = vshll.u32 %v4077, 16
        %v4145 = vrot.slane %v4143, 5
        %v4146 = vsel %vm1777, %v4141, %v4145
        %v4148 = vshrl.u32 %v4078, 16
        %v4150 = vrot.slane %v4148, 4
        %v4151 = vshll.u32 %v4078, 16
        %v4153 = vrot.slane %v4151, 5
        %v4154 = vor.u32 %v4150, %v4153
        %v4155 = vrot.slane %v4154, 4
        %v4157 = vshll.u32 %v4079, 16
        %v4159 = vrot.slane %v4157, 5
        %v4160 = vsel %vm1777, %v4155, %v4159
        %v4161 = vshrl.u32 %v4079, 16
        %v4163 = vrot.slane %v4161, 4
        %v4164 = vor.u32 %v4163, %v4159
        %v4165 = vrot.slane %v4164, 4
        %v4167 = vshll.u32 %v4080, 16
        %v4169 = vrot.slane %v4167, 5
        %v4170 = vsel %vm1777, %v4165, %v4169
        %v4172 = vshrl.u32 %v4081, 16
        %v4174 = vrot.slane %v4172, 4
        %v4175 = vshll.u32 %v4081, 16
        %v4177 = vrot.slane %v4175, 5
        %v4178 = vor.u32 %v4174, %v4177
        %v4179 = vrot.slane %v4178, 4
        %v4181 = vshll.u32 %v4082, 16
        %v4183 = vrot.slane %v4181, 5
        %v4184 = vsel %vm1777, %v4179, %v4183
        %v4185 = vshrl.u32 %v4082, 16
        %v4187 = vrot.slane %v4185, 4
        %v4188 = vor.u32 %v4187, %v4183
        %v4189 = vrot.slane %v4188, 4
        %v4191 = vshll.u32 %v4083, 16
        %v4193 = vrot.slane %v4191, 5
        %v4194 = vsel %vm1777, %v4189, %v4193
        %v4196 = vshrl.u32 %v4084, 16
        %v4198 = vrot.slane %v4196, 4
        %v4199 = vshll.u32 %v4084, 16
        %v4201 = vrot.slane %v4199, 5
        %v4202 = vor.u32 %v4198, %v4201
        %v4203 = vrot.slane %v4202, 4
        %v4205 = vshll.u32 %v4085, 16
        %v4207 = vrot.slane %v4205, 5
        %v4208 = vsel %vm1777, %v4203, %v4207
        %v4209 = vshrl.u32 %v4085, 16
        %v4211 = vrot.slane %v4209, 4
        %v4212 = vor.u32 %v4211, %v4207
        %v4213 = vrot.slane %v4212, 4
        %v4215 = vshll.u32 %v4086, 16
        %v4217 = vrot.slane %v4215, 5
        %v4218 = vsel %vm1777, %v4213, %v4217
        %v4220 = vshrl.u32 %v4087, 16
        %v4222 = vrot.slane %v4220, 4
        %v4223 = vshll.u32 %v4087, 16
        %v4225 = vrot.slane %v4223, 5
        %v4226 = vor.u32 %v4222, %v4225
        %v4227 = vrot.slane %v4226, 4
        %v4229 = vshll.u32 %v4088, 16
        %v4231 = vrot.slane %v4229, 5
        %v4232 = vsel %vm1777, %v4227, %v4231
        %v4233 = vshrl.u32 %v4088, 16
        %v4235 = vrot.slane %v4233, 4
        %v4236 = vor.u32 %v4235, %v4231
        %v4237 = vrot.slane %v4236, 4
        %v4239 = vshll.u32 %v4089, 16
        %v4241 = vrot.slane %v4239, 5
        %v4242 = vsel %vm1777, %v4237, %v4241
        %v4244 = vshrl.u32 %v4090, 16
        %v4246 = vrot.slane %v4244, 4
        %v4247 = vshll.u32 %v4090, 16
        %v4249 = vrot.slane %v4247, 5
        %v4250 = vor.u32 %v4246, %v4249
        %v4251 = vrot.slane %v4250, 4
        %v4253 = vshll.u32 %v4091, 16
        %v4255 = vrot.slane %v4253, 5
        %v4256 = vsel %vm1777, %v4251, %v4255
        %v4257 = vshrl.u32 %v4091, 16
        %v4259 = vrot.slane %v4257, 4
        %v4260 = vor.u32 %v4259, %v4255
        %v4261 = vrot.slane %v4260, 4
        %v4263 = vshll.u32 %v4092, 16
        %v4265 = vrot.slane %v4263, 5
        %v4266 = vsel %vm1777, %v4261, %v4265
        %v4268 = vshrl.u32 %v4093, 16
        %v4270 = vrot.slane %v4268, 4
        %v4271 = vshll.u32 %v4093, 16
        %v4273 = vrot.slane %v4271, 5
        %v4274 = vor.u32 %v4270, %v4273
        %v4275 = vrot.slane %v4274, 4
        %v4277 = vshll.u32 %v4094, 16
        %v4279 = vrot.slane %v4277, 5
        %v4280 = vsel %vm1777, %v4275, %v4279
        %v4281 = vshrl.u32 %v4094, 16
        %v4283 = vrot.slane %v4281, 4
        %v4284 = vor.u32 %v4283, %v4279
        %v4285 = vrot.slane %v4284, 4
        %v4287 = vshll.u32 %v4095, 16
        %v4289 = vrot.slane %v4287, 5
        %v4290 = vsel %vm1777, %v4285, %v4289
        %v4292 = vshrl.u32 %v4096, 16
        %v4294 = vrot.slane %v4292, 4
        %v4295 = vshll.u32 %v4096, 16
        %v4297 = vrot.slane %v4295, 5
        %v4298 = vor.u32 %v4294, %v4297
        %v4299 = vrot.slane %v4298, 4
        %v4301 = vshll.u32 %v4097, 16
        %v4303 = vrot.slane %v4301, 5
        %v4304 = vsel %vm1777, %v4299, %v4303
        %v4305 = vshrl.u32 %v4097, 16
        %v4307 = vrot.slane %v4305, 4
        %v4308 = vor.u32 %v4307, %v4303
        %v4309 = vrot.slane %v4308, 4
        %v4311 = vshll.u32 %v4098, 16
        %v4313 = vrot.slane %v4311, 5
        %v4314 = vsel %vm1777, %v4309, %v4313
        %v4316 = vshrl.u32 %v4099, 16
        %v4318 = vrot.slane %v4316, 4
        %v4319 = vshll.u32 %v4099, 16
        %v4321 = vrot.slane %v4319, 5
        %v4322 = vor.u32 %v4318, %v4321
        %v4323 = vrot.slane %v4322, 4
        %v4325 = vshll.u32 %v4100, 16
        %v4327 = vrot.slane %v4325, 5
        %v4328 = vsel %vm1777, %v4323, %v4327
        %v4329 = vshrl.u32 %v4100, 16
        %v4331 = vrot.slane %v4329, 4
        %v4332 = vor.u32 %v4331, %v4327
        %v4333 = vrot.slane %v4332, 4
        %v4335 = vshll.u32 %v4101, 16
        %v4337 = vrot.slane %v4335, 5
        %v4338 = vsel %vm1777, %v4333, %v4337
        %v4340 = vshrl.u32 %v4102, 16
        %v4342 = vrot.slane %v4340, 4
        %v4343 = vshll.u32 %v4102, 16
        %v4345 = vrot.slane %v4343, 5
        %v4346 = vor.u32 %v4342, %v4345
        %v4347 = vrot.slane %v4346, 4
        %v4349 = vshll.u32 %v4103, 16
        %v4351 = vrot.slane %v4349, 5
        %v4352 = vsel %vm1777, %v4347, %v4351
        %v4353 = vshrl.u32 %v4103, 16
        %v4355 = vrot.slane %v4353, 4
        %v4356 = vor.u32 %v4355, %v4351
        %v4357 = vrot.slane %v4356, 4
        %v4359 = vshll.u32 %v4104, 16
        %v4361 = vrot.slane %v4359, 5
        %v4362 = vsel %vm1777, %v4357, %v4361
        %v4364 = vshrl.u32 %v4105, 16
        %v4366 = vrot.slane %v4364, 4
        %v4367 = vshll.u32 %v4105, 16
        %v4369 = vrot.slane %v4367, 5
        %v4370 = vor.u32 %v4366, %v4369
        %v4371 = vrot.slane %v4370, 4
        %v4373 = vshll.u32 %v4106, 16
        %v4375 = vrot.slane %v4373, 5
        %v4376 = vsel %vm1777, %v4371, %v4375
        %v4377 = vshrl.u32 %v4106, 16
        %v4379 = vrot.slane %v4377, 4
        %v4380 = vor.u32 %v4379, %v4375
        %v4381 = vrot.slane %v4380, 4
        %v4383 = vshll.u32 %v4107, 16
        %v4385 = vrot.slane %v4383, 5
        %v4386 = vsel %vm1777, %v4381, %v4385
        %v4388 = vshrl.u32 %v4108, 16
        %v4390 = vrot.slane %v4388, 4
        %v4391 = vshll.u32 %v4108, 16
        %v4393 = vrot.slane %v4391, 5
        %v4394 = vor.u32 %v4390, %v4393
        %v4395 = vrot.slane %v4394, 4
        %v4397 = vshll.u32 %v4109, 16
        %v4399 = vrot.slane %v4397, 5
        %v4400 = vsel %vm1777, %v4395, %v4399
        %v4401 = vshrl.u32 %v4109, 16
        %v4403 = vrot.slane %v4401, 4
        %v4404 = vor.u32 %v4403, %v4399
        %v4405 = vrot.slane %v4404, 4
        %v4407 = vshll.u32 %v4110, 16
        %v4409 = vrot.slane %v4407, 5
        %v4410 = vsel %vm1777, %v4405, %v4409
        %v4412 = vshrl.u32 %v4111, 16
        %v4414 = vrot.slane %v4412, 4
        %v4415 = vshll.u32 %v4111, 16
        %v4417 = vrot.slane %v4415, 5
        %v4418 = vor.u32 %v4414, %v4417
        %v4419 = vrot.slane %v4418, 4
        %v4421 = vshll.u32 %v4112, 16
        %v4423 = vrot.slane %v4421, 5
        %v4424 = vsel %vm1777, %v4419, %v4423
        %v4425 = vshrl.u32 %v4112, 16
        %v4427 = vrot.slane %v4425, 4
        %v4428 = vor.u32 %v4427, %v4423
        %v4429 = vrot.slane %v4428, 4
        %v4431 = vshll.u32 %v4113, 16
        %v4433 = vrot.slane %v4431, 5
        %v4434 = vsel %vm1777, %v4429, %v4433
        %v4436 = vshrl.u32 %v4114, 16
        %v4438 = vrot.slane %v4436, 4
        %v4439 = vshll.u32 %v4114, 16
        %v4441 = vrot.slane %v4439, 5
        %v4442 = vor.u32 %v4438, %v4441
        %v4443 = vrot.slane %v4442, 4
        %v4445 = vshll.u32 %v4115, 16
        %v4447 = vrot.slane %v4445, 5
        %v4448 = vsel %vm1777, %v4443, %v4447
        %v4449 = vshrl.u32 %v4115, 16
        %v4451 = vrot.slane %v4449, 4
        %v4452 = vor.u32 %v4451, %v4447
        %v4453 = vrot.slane %v4452, 4
        %v4455 = vshll.u32 %v4116, 16
        %v4457 = vrot.slane %v4455, 5
        %v4458 = vsel %vm1777, %v4453, %v4457
        %v4460 = vshrl.u32 %v4117, 16
        %v4462 = vrot.slane %v4460, 4
        %v4463 = vshll.u32 %v4117, 16
        %v4465 = vrot.slane %v4463, 5
        %v4466 = vor.u32 %v4462, %v4465
        %v4467 = vrot.slane %v4466, 4
        %v4469 = vshll.u32 %v4118, 16
        %v4471 = vrot.slane %v4469, 5
        %v4472 = vsel %vm1777, %v4467, %v4471
        %v4473 = vshrl.u32 %v4118, 16
        %v4475 = vrot.slane %v4473, 4
        %v4476 = vor.u32 %v4475, %v4471
        %v4477 = vrot.slane %v4476, 4
        %v4479 = vshll.u32 %v4119, 16
        %v4481 = vrot.slane %v4479, 5
        %v4482 = vsel %vm1777, %v4477, %v4481
        %v4484 = vshrl.u32 %v4120, 16
        %v4486 = vrot.slane %v4484, 4
        %v4487 = vshll.u32 %v4120, 16
        %v4489 = vrot.slane %v4487, 5
        %v4490 = vor.u32 %v4486, %v4489
        %v4491 = vrot.slane %v4490, 4
        %v4493 = vshll.u32 %v4121, 16
        %v4495 = vrot.slane %v4493, 5
        %v4496 = vsel %vm1777, %v4491, %v4495
        %v4497 = vshrl.u32 %v4121, 16
        %v4499 = vrot.slane %v4497, 4
        %v4500 = vor.u32 %v4499, %v4495
        %v4501 = vrot.slane %v4500, 4
        %v4503 = vshll.u32 %v4122, 16
        %v4505 = vrot.slane %v4503, 5
        %v4506 = vsel %vm1777, %v4501, %v4505
        %s4507 = scalar_lea.vmem [#allocation4], 512
        %v4508 = vld [vmem:[%s4507] sm:$0xff]
        %v4509 = vld [vmem:[%s4507 + $0x8] sm:$0xff]
        %v4510 = vld [vmem:[%s4507 + $0x10] sm:$0xff]
        %v4511 = vld [vmem:[%s4507 + $0x18] sm:$0xff]
        %v4512 = vld [vmem:[%s4507 + $0x20] sm:$0xff]
        %v4513 = vld [vmem:[%s4507 + $0x28] sm:$0xff]
        %v4514 = vld [vmem:[%s4507 + $0x30] sm:$0xff]
        %v4515 = vld [vmem:[%s4507 + $0x38] sm:$0xff]
        %v4516 = vld [vmem:[%s4507 + $0x40] sm:$0xff]
        %v4517 = vld [vmem:[%s4507 + $0x48] sm:$0xff]
        %v4518 = vld [vmem:[%s4507 + $0x50] sm:$0xff]
        %v4519 = vld [vmem:[%s4507 + $0x58] sm:$0xff]
        %v4520 = vld [vmem:[%s4507 + $0x60] sm:$0xff]
        %v4521 = vld [vmem:[%s4507 + $0x68] sm:$0xff]
        %v4522 = vld [vmem:[%s4507 + $0x70] sm:$0xff]
        %v4523 = vld [vmem:[%s4507 + $0x78] sm:$0xff]
        %v4524 = vunpack.c.l.b16 %v4136
        %v4525 = vunpack.c.l.b16 %v4146
        %v4526 = vunpack.c.l.b16 %v4160
        %v4527 = vunpack.c.l.b16 %v4170
        %v4528 = vunpack.c.l.b16 %v4184
        %v4529 = vunpack.c.l.b16 %v4194
        %v4530 = vunpack.c.l.b16 %v4208
        %v4531 = vunpack.c.l.b16 %v4218
        %v4532 = vunpack.c.l.b16 %v4232
        %v4533 = vunpack.c.l.b16 %v4242
        %v4534 = vunpack.c.l.b16 %v4256
        %v4535 = vunpack.c.l.b16 %v4266
        %v4536 = vunpack.c.l.b16 %v4280
        %v4537 = vunpack.c.l.b16 %v4290
        %v4538 = vunpack.c.l.b16 %v4304
        %v4539 = vunpack.c.l.b16 %v4314
        %v4540 = vunpack.c.l.b16 %v4328
        %v4541 = vunpack.c.l.b16 %v4338
        %v4542 = vunpack.c.l.b16 %v4352
        %v4543 = vunpack.c.l.b16 %v4362
        %v4544 = vunpack.c.l.b16 %v4376
        %v4545 = vunpack.c.l.b16 %v4386
        %v4546 = vunpack.c.l.b16 %v4400
        %v4547 = vunpack.c.l.b16 %v4410
        %v4548 = vunpack.c.l.b16 %v4424
        %v4549 = vunpack.c.l.b16 %v4434
        %v4550 = vunpack.c.l.b16 %v4448
        %v4551 = vunpack.c.l.b16 %v4458
        %v4552 = vunpack.c.l.b16 %v4472
        %v4553 = vunpack.c.l.b16 %v4482
        %v4554 = vunpack.c.l.b16 %v4496
        %v4555 = vunpack.c.l.b16 %v4506
        %v4556 = vpack.c.b16 %v4525, %v4524
        %v4557 = vpack.c.b16 %v4527, %v4526
        %v4558 = vpack.c.b16 %v4529, %v4528
        %v4559 = vpack.c.b16 %v4531, %v4530
        %v4560 = vpack.c.b16 %v4533, %v4532
        %v4561 = vpack.c.b16 %v4535, %v4534
        %v4562 = vpack.c.b16 %v4537, %v4536
        %v4563 = vpack.c.b16 %v4539, %v4538
        %v4564 = vpack.c.b16 %v4541, %v4540
        %v4565 = vpack.c.b16 %v4543, %v4542
        %v4566 = vpack.c.b16 %v4545, %v4544
        %v4567 = vpack.c.b16 %v4547, %v4546
        %v4568 = vpack.c.b16 %v4549, %v4548
        %v4569 = vpack.c.b16 %v4551, %v4550
        %v4570 = vpack.c.b16 %v4553, %v4552
        %v4571 = vpack.c.b16 %v4555, %v4554
        %v4604 = vunpack.c.l.b16 %v4508
        %v4605 = vunpack.c.h.b16 %v4508
        %v4606 = vunpack.c.l.b16 %v4509
        %v4607 = vunpack.c.h.b16 %v4509
        %v4608 = vunpack.c.l.b16 %v4510
        %v4609 = vunpack.c.h.b16 %v4510
        %v4610 = vunpack.c.l.b16 %v4511
        %v4611 = vunpack.c.h.b16 %v4511
        %v4612 = vunpack.c.l.b16 %v4512
        %v4613 = vunpack.c.h.b16 %v4512
        %v4614 = vunpack.c.l.b16 %v4513
        %v4615 = vunpack.c.h.b16 %v4513
        %v4616 = vunpack.c.l.b16 %v4514
        %v4617 = vunpack.c.h.b16 %v4514
        %v4618 = vunpack.c.l.b16 %v4515
        %v4619 = vunpack.c.h.b16 %v4515
        %v4620 = vunpack.c.l.b16 %v4516
        %v4621 = vunpack.c.h.b16 %v4516
        %v4622 = vunpack.c.l.b16 %v4517
        %v4623 = vunpack.c.h.b16 %v4517
        %v4624 = vunpack.c.l.b16 %v4518
        %v4625 = vunpack.c.h.b16 %v4518
        %v4626 = vunpack.c.l.b16 %v4519
        %v4627 = vunpack.c.h.b16 %v4519
        %v4628 = vunpack.c.l.b16 %v4520
        %v4629 = vunpack.c.h.b16 %v4520
        %v4630 = vunpack.c.l.b16 %v4521
        %v4631 = vunpack.c.h.b16 %v4521
        %v4632 = vunpack.c.l.b16 %v4522
        %v4633 = vunpack.c.h.b16 %v4522
        %v4634 = vunpack.c.l.b16 %v4523
        %v4635 = vunpack.c.h.b16 %v4523
        %v4636 = vpack.c.b16 %v4606, %v4604
        %v4637 = vpack.c.b16 %v4607, %v4605
        %v4638 = vpack.c.b16 %v4610, %v4608
        %v4639 = vpack.c.b16 %v4611, %v4609
        %v4640 = vpack.c.b16 %v4614, %v4612
        %v4641 = vpack.c.b16 %v4615, %v4613
        %v4642 = vpack.c.b16 %v4618, %v4616
        %v4643 = vpack.c.b16 %v4619, %v4617
        %v4644 = vpack.c.b16 %v4622, %v4620
        %v4645 = vpack.c.b16 %v4623, %v4621
        %v4646 = vpack.c.b16 %v4626, %v4624
        %v4647 = vpack.c.b16 %v4627, %v4625
        %v4648 = vpack.c.b16 %v4630, %v4628
        %v4649 = vpack.c.b16 %v4631, %v4629
        %v4650 = vpack.c.b16 %v4634, %v4632
        %v4651 = vpack.c.b16 %v4635, %v4633
        %4668 = vmatprep.subr.bf16.mxu0 %v4637
        %4669 = vmatpush1.bf16.msra.mxu0 %v4636
        %4670 = vmatprep.subr.bf16.mxu0 %v4639
        %4671 = vmatpush1.bf16.msra.mxu0 %v4638
        %4672 = vmatprep.subr.bf16.mxu0 %v4641
        %4673 = vmatpush1.bf16.msra.mxu0 %v4640
        %4674 = vmatprep.subr.bf16.mxu0 %v4643
        %4675 = vmatpush1.bf16.msra.mxu0 %v4642
        %4676 = vmatprep.subr.bf16.mxu0 %v4645
        %4677 = vmatpush1.bf16.msra.mxu0 %v4644
        %4678 = vmatprep.subr.bf16.mxu0 %v4647
        %4679 = vmatpush1.bf16.msra.mxu0 %v4646
        %4680 = vmatprep.subr.bf16.mxu0 %v4649
        %4681 = vmatpush1.bf16.msra.mxu0 %v4648
        %4682 = vmatprep.subr.bf16.mxu0 %v4651
        %4683 = vmatpush1.bf16.msra.mxu0 %v4650
        %4684 = vmatprep.subr.bf16.mxu0 0
        %4685 = vmatpush1.bf16.msra.mxu0 0
        %4686 = vmatprep.subr.bf16.mxu0 0
        %4687 = vmatpush1.bf16.msra.mxu0 0
        %4688 = vmatprep.subr.bf16.mxu0 0
        %4689 = vmatpush1.bf16.msra.mxu0 0
        %4690 = vmatprep.subr.bf16.mxu0 0
        %4691 = vmatpush1.bf16.msra.mxu0 0
        %4692 = vmatprep.subr.bf16.mxu0 0
        %4693 = vmatpush1.bf16.msra.mxu0 0
        %4694 = vmatprep.subr.bf16.mxu0 0
        %4695 = vmatpush1.bf16.msra.mxu0 0
        %4696 = vmatprep.subr.bf16.mxu0 0
        %4697 = vmatpush1.bf16.msra.mxu0 0
        %4698 = vmatprep.subr.bf16.mxu0 0
        %4699 = vmatpush1.bf16.msra.mxu0 0
        %4700 = vmatprep.mubr.bf16.mxu0 0
        %4701 = vmatmul.mubr.bf16.gmra.mrb[0].mxu0 %v4556
        %v4702 = vpop.f32.mrb[0].mxu0
        %v4703 = vadd.f32 0.0, %v4702
        %v4704 = vpop.f32.mrb[0].mxu0
        %v4705 = vadd.f32 0.0, %v4704
        %v4706 = vpop.f32.mrb[0].mxu0
        %v4707 = vadd.f32 0.0, %v4706
        %v4708 = vpop.f32.mrb[0].mxu0
        %v4709 = vadd.f32 0.0, %v4708
        %4710 = vmatprep.mubr.bf16.mxu0 0
        %4711 = vmatmul.mubr.bf16.gmra.mrb[0].mxu0 %v4557
        %v4712 = vpop.f32.mrb[0].mxu0
        %v4713 = vadd.f32 0.0, %v4712
        %v4714 = vpop.f32.mrb[0].mxu0
        %v4715 = vadd.f32 0.0, %v4714
        %v4716 = vpop.f32.mrb[0].mxu0
        %v4717 = vadd.f32 0.0, %v4716
        %v4718 = vpop.f32.mrb[0].mxu0
        %v4719 = vadd.f32 0.0, %v4718
        %4720 = vmatprep.mubr.bf16.mxu0 0
        %4721 = vmatmul.mubr.bf16.gmra.mrb[0].mxu0 %v4558
        %v4722 = vpop.f32.mrb[0].mxu0
        %v4723 = vadd.f32 0.0, %v4722
        %v4724 = vpop.f32.mrb[0].mxu0
        %v4725 = vadd.f32 0.0, %v4724
        %v4726 = vpop.f32.mrb[0].mxu0
        %v4727 = vadd.f32 0.0, %v4726
        %v4728 = vpop.f32.mrb[0].mxu0
        %v4729 = vadd.f32 0.0, %v4728
        %4730 = vmatprep.mubr.bf16.mxu0 0
        %4731 = vmatmul.mubr.bf16.gmra.mrb[0].mxu0 %v4559
        %v4732 = vpop.f32.mrb[0].mxu0
        %v4733 = vadd.f32 0.0, %v4732
        %v4734 = vpop.f32.mrb[0].mxu0
        %v4735 = vadd.f32 0.0, %v4734
        %v4736 = vpop.f32.mrb[0].mxu0
        %v4737 = vadd.f32 0.0, %v4736
        %v4738 = vpop.f32.mrb[0].mxu0
        %v4739 = vadd.f32 0.0, %v4738
        %4740 = vmatprep.mubr.bf16.mxu0 0
        %4741 = vmatmul.mubr.bf16.gmra.mrb[0].mxu0 %v4560
        %v4742 = vpop.f32.mrb[0].mxu0
        %v4743 = vadd.f32 0.0, %v4742
        %v4744 = vpop.f32.mrb[0].mxu0
        %v4745 = vadd.f32 0.0, %v4744
        %v4746 = vpop.f32.mrb[0].mxu0
        %v4747 = vadd.f32 0.0, %v4746
        %v4748 = vpop.f32.mrb[0].mxu0
        %v4749 = vadd.f32 0.0, %v4748
        %4750 = vmatprep.mubr.bf16.mxu0 0
        %4751 = vmatmul.mubr.bf16.gmra.mrb[0].mxu0 %v4561
        %v4752 = vpop.f32.mrb[0].mxu0
        %v4753 = vadd.f32 0.0, %v4752
        %v4754 = vpop.f32.mrb[0].mxu0
        %v4755 = vadd.f32 0.0, %v4754
        %v4756 = vpop.f32.mrb[0].mxu0
        %v4757 = vadd.f32 0.0, %v4756
        %v4758 = vpop.f32.mrb[0].mxu0
        %v4759 = vadd.f32 0.0, %v4758
        %4760 = vmatprep.mubr.bf16.mxu0 0
        %4761 = vmatmul.mubr.bf16.gmra.mrb[0].mxu0 %v4562
        %v4762 = vpop.f32.mrb[0].mxu0
        %v4763 = vadd.f32 0.0, %v4762
        %v4764 = vpop.f32.mrb[0].mxu0
        %v4765 = vadd.f32 0.0, %v4764
        %v4766 = vpop.f32.mrb[0].mxu0
        %v4767 = vadd.f32 0.0, %v4766
        %v4768 = vpop.f32.mrb[0].mxu0
        %v4769 = vadd.f32 0.0, %v4768
        %4770 = vmatprep.mubr.bf16.mxu0 0
        %4771 = vmatmul.mubr.bf16.gmra.mrb[0].mxu0 %v4563
        %v4772 = vpop.f32.mrb[0].mxu0
        %v4773 = vadd.f32 0.0, %v4772
        %v4774 = vpop.f32.mrb[0].mxu0
        %v4775 = vadd.f32 0.0, %v4774
        %v4776 = vpop.f32.mrb[0].mxu0
        %v4777 = vadd.f32 0.0, %v4776
        %v4778 = vpop.f32.mrb[0].mxu0
        %v4779 = vadd.f32 0.0, %v4778
        %4780 = vmatprep.mubr.bf16.mxu0 0
        %4781 = vmatmul.mubr.bf16.gmra.mrb[0].mxu0 %v4564
        %v4782 = vpop.f32.mrb[0].mxu0
        %v4783 = vadd.f32 0.0, %v4782
        %v4784 = vpop.f32.mrb[0].mxu0
        %v4785 = vadd.f32 0.0, %v4784
        %v4786 = vpop.f32.mrb[0].mxu0
        %v4787 = vadd.f32 0.0, %v4786
        %v4788 = vpop.f32.mrb[0].mxu0
        %v4789 = vadd.f32 0.0, %v4788
        %4790 = vmatprep.mubr.bf16.mxu0 0
        %4791 = vmatmul.mubr.bf16.gmra.mrb[0].mxu0 %v4565
        %v4792 = vpop.f32.mrb[0].mxu0
        %v4793 = vadd.f32 0.0, %v4792
        %v4794 = vpop.f32.mrb[0].mxu0
        %v4795 = vadd.f32 0.0, %v4794
        %v4796 = vpop.f32.mrb[0].mxu0
        %v4797 = vadd.f32 0.0, %v4796
        %v4798 = vpop.f32.mrb[0].mxu0
        %v4799 = vadd.f32 0.0, %v4798
        %4800 = vmatprep.mubr.bf16.mxu0 0
        %4801 = vmatmul.mubr.bf16.gmra.mrb[0].mxu0 %v4566
        %v4802 = vpop.f32.mrb[0].mxu0
        %v4803 = vadd.f32 0.0, %v4802
        %v4804 = vpop.f32.mrb[0].mxu0
        %v4805 = vadd.f32 0.0, %v4804
        %v4806 = vpop.f32.mrb[0].mxu0
        %v4807 = vadd.f32 0.0, %v4806
        %v4808 = vpop.f32.mrb[0].mxu0
        %v4809 = vadd.f32 0.0, %v4808
        %4810 = vmatprep.mubr.bf16.mxu0 0
        %4811 = vmatmul.mubr.bf16.gmra.mrb[0].mxu0 %v4567
        %v4812 = vpop.f32.mrb[0].mxu0
        %v4813 = vadd.f32 0.0, %v4812
        %v4814 = vpop.f32.mrb[0].mxu0
        %v4815 = vadd.f32 0.0, %v4814
        %v4816 = vpop.f32.mrb[0].mxu0
        %v4817 = vadd.f32 0.0, %v4816
        %v4818 = vpop.f32.mrb[0].mxu0
        %v4819 = vadd.f32 0.0, %v4818
        %4820 = vmatprep.mubr.bf16.mxu0 0
        %4821 = vmatmul.mubr.bf16.gmra.mrb[0].mxu0 %v4568
        %v4822 = vpop.f32.mrb[0].mxu0
        %v4823 = vadd.f32 0.0, %v4822
        %v4824 = vpop.f32.mrb[0].mxu0
        %v4825 = vadd.f32 0.0, %v4824
        %v4826 = vpop.f32.mrb[0].mxu0
        %v4827 = vadd.f32 0.0, %v4826
        %v4828 = vpop.f32.mrb[0].mxu0
        %v4829 = vadd.f32 0.0, %v4828
        %4830 = vmatprep.mubr.bf16.mxu0 0
        %4831 = vmatmul.mubr.bf16.gmra.mrb[0].mxu0 %v4569
        %v4832 = vpop.f32.mrb[0].mxu0
        %v4833 = vadd.f32 0.0, %v4832
        %v4834 = vpop.f32.mrb[0].mxu0
        %v4835 = vadd.f32 0.0, %v4834
        %v4836 = vpop.f32.mrb[0].mxu0
        %v4837 = vadd.f32 0.0, %v4836
        %v4838 = vpop.f32.mrb[0].mxu0
        %v4839 = vadd.f32 0.0, %v4838
        %4840 = vmatprep.mubr.bf16.mxu0 0
        %4841 = vmatmul.mubr.bf16.gmra.mrb[0].mxu0 %v4570
        %v4842 = vpop.f32.mrb[0].mxu0
        %v4843 = vadd.f32 0.0, %v4842
        %v4844 = vpop.f32.mrb[0].mxu0
        %v4845 = vadd.f32 0.0, %v4844
        %v4846 = vpop.f32.mrb[0].mxu0
        %v4847 = vadd.f32 0.0, %v4846
        %v4848 = vpop.f32.mrb[0].mxu0
        %v4849 = vadd.f32 0.0, %v4848
        %4850 = vmatprep.mubr.bf16.mxu0 0
        %4851 = vmatmul.mubr.bf16.gmra.mrb[0].mxu0 %v4571
        %v4852 = vpop.f32.mrb[0].mxu0
        %v4853 = vadd.f32 0.0, %v4852
        %v4854 = vpop.f32.mrb[0].mxu0
        %v4855 = vadd.f32 0.0, %v4854
        %v4856 = vpop.f32.mrb[0].mxu0
        %v4857 = vadd.f32 0.0, %v4856
        %v4858 = vpop.f32.mrb[0].mxu0
        %v4859 = vadd.f32 0.0, %v4858
        %4860 = vdwg.mxu0
        %v4861 = vld [vmem:[#allocation3] sm:$0xff]
        %v4862 = vld [vmem:[#allocation3 + $0x8] sm:$0xff]
        %v4863 = vld [vmem:[#allocation3 + $0x10] sm:$0xff]
        %v4864 = vld [vmem:[#allocation3 + $0x18] sm:$0xff]
        %v4865 = vld [vmem:[#allocation3 + $0x20] sm:$0xff]
        %v4866 = vld [vmem:[#allocation3 + $0x28] sm:$0xff]
        %v4867 = vld [vmem:[#allocation3 + $0x30] sm:$0xff]
        %v4868 = vld [vmem:[#allocation3 + $0x38] sm:$0xff]
        %v4869 = vld [vmem:[#allocation3 + $0x40] sm:$0xff]
        %v4870 = vld [vmem:[#allocation3 + $0x48] sm:$0xff]
        %v4871 = vld [vmem:[#allocation3 + $0x50] sm:$0xff]
        %v4872 = vld [vmem:[#allocation3 + $0x58] sm:$0xff]
        %v4873 = vld [vmem:[#allocation3 + $0x60] sm:$0xff]
        %v4874 = vld [vmem:[#allocation3 + $0x68] sm:$0xff]
        %v4875 = vld [vmem:[#allocation3 + $0x70] sm:$0xff]
        %v4876 = vld [vmem:[#allocation3 + $0x78] sm:$0xff]
        %v4877 = vld [vmem:[#allocation3 + $0x80] sm:$0xff]
        %v4878 = vld [vmem:[#allocation3 + $0x88] sm:$0xff]
        %v4879 = vld [vmem:[#allocation3 + $0x90] sm:$0xff]
        %v4880 = vld [vmem:[#allocation3 + $0x98] sm:$0xff]
        %v4881 = vld [vmem:[#allocation3 + $0xa0] sm:$0xff]
        %v4882 = vld [vmem:[#allocation3 + $0xa8] sm:$0xff]
        %v4883 = vld [vmem:[#allocation3 + $0xb0] sm:$0xff]
        %v4884 = vld [vmem:[#allocation3 + $0xb8] sm:$0xff]
        %v4885 = vld [vmem:[#allocation3 + $0xc0] sm:$0xff]
        %v4886 = vld [vmem:[#allocation3 + $0xc8] sm:$0xff]
        %v4887 = vld [vmem:[#allocation3 + $0xd0] sm:$0xff]
        %v4888 = vld [vmem:[#allocation3 + $0xd8] sm:$0xff]
        %v4889 = vld [vmem:[#allocation3 + $0xe0] sm:$0xff]
        %v4890 = vld [vmem:[#allocation3 + $0xe8] sm:$0xff]
        %v4891 = vld [vmem:[#allocation3 + $0xf0] sm:$0xff]
        %v4892 = vld [vmem:[#allocation3 + $0xf8] sm:$0xff]
        %v4893 = vld [vmem:[#allocation3 + $0x100] sm:$0xff]
        %v4894 = vld [vmem:[#allocation3 + $0x108] sm:$0xff]
        %v4895 = vld [vmem:[#allocation3 + $0x110] sm:$0xff]
        %v4896 = vld [vmem:[#allocation3 + $0x118] sm:$0xff]
        %v4897 = vld [vmem:[#allocation3 + $0x120] sm:$0xff]
        %v4898 = vld [vmem:[#allocation3 + $0x128] sm:$0xff]
        %v4899 = vld [vmem:[#allocation3 + $0x130] sm:$0xff]
        %v4900 = vld [vmem:[#allocation3 + $0x138] sm:$0xff]
        %v4901 = vld [vmem:[#allocation3 + $0x140] sm:$0xff]
        %v4902 = vld [vmem:[#allocation3 + $0x148] sm:$0xff]
        %v4903 = vld [vmem:[#allocation3 + $0x150] sm:$0xff]
        %v4904 = vld [vmem:[#allocation3 + $0x158] sm:$0xff]
        %v4905 = vld [vmem:[#allocation3 + $0x160] sm:$0xff]
        %v4906 = vld [vmem:[#allocation3 + $0x168] sm:$0xff]
        %v4907 = vld [vmem:[#allocation3 + $0x170] sm:$0xff]
        %v4908 = vld [vmem:[#allocation3 + $0x178] sm:$0xff]
        %v4909 = vld [vmem:[#allocation3 + $0x180] sm:$0xff]
        %v4910 = vld [vmem:[#allocation3 + $0x188] sm:$0xff]
        %v4911 = vld [vmem:[#allocation3 + $0x190] sm:$0xff]
        %v4912 = vld [vmem:[#allocation3 + $0x198] sm:$0xff]
        %v4913 = vld [vmem:[#allocation3 + $0x1a0] sm:$0xff]
        %v4914 = vld [vmem:[#allocation3 + $0x1a8] sm:$0xff]
        %v4915 = vld [vmem:[#allocation3 + $0x1b0] sm:$0xff]
        %v4916 = vld [vmem:[#allocation3 + $0x1b8] sm:$0xff]
        %v4917 = vld [vmem:[#allocation3 + $0x1c0] sm:$0xff]
        %v4918 = vld [vmem:[#allocation3 + $0x1c8] sm:$0xff]
        %v4919 = vld [vmem:[#allocation3 + $0x1d0] sm:$0xff]
        %v4920 = vld [vmem:[#allocation3 + $0x1d8] sm:$0xff]
        %v4921 = vld [vmem:[#allocation3 + $0x1e0] sm:$0xff]
        %v4922 = vld [vmem:[#allocation3 + $0x1e8] sm:$0xff]
        %v4923 = vld [vmem:[#allocation3 + $0x1f0] sm:$0xff]
        %v4924 = vld [vmem:[#allocation3 + $0x1f8] sm:$0xff]
        %v4925 = vadd.f32 %v4861, %v4703
        %v4926 = vadd.f32 %v4862, %v4705
        %v4927 = vadd.f32 %v4863, %v4707
        %v4928 = vadd.f32 %v4864, %v4709
        %v4929 = vadd.f32 %v4865, %v4713
        %v4930 = vadd.f32 %v4866, %v4715
        %v4931 = vadd.f32 %v4867, %v4717
        %v4932 = vadd.f32 %v4868, %v4719
        %v4933 = vadd.f32 %v4869, %v4723
        %v4934 = vadd.f32 %v4870, %v4725
        %v4935 = vadd.f32 %v4871, %v4727
        %v4936 = vadd.f32 %v4872, %v4729
        %v4937 = vadd.f32 %v4873, %v4733
        %v4938 = vadd.f32 %v4874, %v4735
        %v4939 = vadd.f32 %v4875, %v4737
        %v4940 = vadd.f32 %v4876, %v4739
        %v4941 = vadd.f32 %v4877, %v4743
        %v4942 = vadd.f32 %v4878, %v4745
        %v4943 = vadd.f32 %v4879, %v4747
        %v4944 = vadd.f32 %v4880, %v4749
        %v4945 = vadd.f32 %v4881, %v4753
        %v4946 = vadd.f32 %v4882, %v4755
        %v4947 = vadd.f32 %v4883, %v4757
        %v4948 = vadd.f32 %v4884, %v4759
        %v4949 = vadd.f32 %v4885, %v4763
        %v4950 = vadd.f32 %v4886, %v4765
        %v4951 = vadd.f32 %v4887, %v4767
        %v4952 = vadd.f32 %v4888, %v4769
        %v4953 = vadd.f32 %v4889, %v4773
        %v4954 = vadd.f32 %v4890, %v4775
        %v4955 = vadd.f32 %v4891, %v4777
        %v4956 = vadd.f32 %v4892, %v4779
        %v4957 = vadd.f32 %v4893, %v4783
        %v4958 = vadd.f32 %v4894, %v4785
        %v4959 = vadd.f32 %v4895, %v4787
        %v4960 = vadd.f32 %v4896, %v4789
        %v4961 = vadd.f32 %v4897, %v4793
        %v4962 = vadd.f32 %v4898, %v4795
        %v4963 = vadd.f32 %v4899, %v4797
        %v4964 = vadd.f32 %v4900, %v4799
        %v4965 = vadd.f32 %v4901, %v4803
        %v4966 = vadd.f32 %v4902, %v4805
        %v4967 = vadd.f32 %v4903, %v4807
        %v4968 = vadd.f32 %v4904, %v4809
        %v4969 = vadd.f32 %v4905, %v4813
        %v4970 = vadd.f32 %v4906, %v4815
        %v4971 = vadd.f32 %v4907, %v4817
        %v4972 = vadd.f32 %v4908, %v4819
        %v4973 = vadd.f32 %v4909, %v4823
        %v4974 = vadd.f32 %v4910, %v4825
        %v4975 = vadd.f32 %v4911, %v4827
        %v4976 = vadd.f32 %v4912, %v4829
        %v4977 = vadd.f32 %v4913, %v4833
        %v4978 = vadd.f32 %v4914, %v4835
        %v4979 = vadd.f32 %v4915, %v4837
        %v4980 = vadd.f32 %v4916, %v4839
        %v4981 = vadd.f32 %v4917, %v4843
        %v4982 = vadd.f32 %v4918, %v4845
        %v4983 = vadd.f32 %v4919, %v4847
        %v4984 = vadd.f32 %v4920, %v4849
        %v4985 = vadd.f32 %v4921, %v4853
        %v4986 = vadd.f32 %v4922, %v4855
        %v4987 = vadd.f32 %v4923, %v4857
        %v4988 = vadd.f32 %v4924, %v4859
        %4989 = vst [vmem:[#allocation3] sm:$0xff] %v4925
        %4990 = vst [vmem:[#allocation3 + $0x8] sm:$0xff] %v4926
        %4991 = vst [vmem:[#allocation3 + $0x10] sm:$0xff] %v4927
        %4992 = vst [vmem:[#allocation3 + $0x18] sm:$0xff] %v4928
        %4993 = vst [vmem:[#allocation3 + $0x20] sm:$0xff] %v4929
        %4994 = vst [vmem:[#allocation3 + $0x28] sm:$0xff] %v4930
        %4995 = vst [vmem:[#allocation3 + $0x30] sm:$0xff] %v4931
        %4996 = vst [vmem:[#allocation3 + $0x38] sm:$0xff] %v4932
        %4997 = vst [vmem:[#allocation3 + $0x40] sm:$0xff] %v4933
        %4998 = vst [vmem:[#allocation3 + $0x48] sm:$0xff] %v4934
        %4999 = vst [vmem:[#allocation3 + $0x50] sm:$0xff] %v4935
        %5000 = vst [vmem:[#allocation3 + $0x58] sm:$0xff] %v4936
        %5001 = vst [vmem:[#allocation3 + $0x60] sm:$0xff] %v4937
        %5002 = vst [vmem:[#allocation3 + $0x68] sm:$0xff] %v4938
        %5003 = vst [vmem:[#allocation3 + $0x70] sm:$0xff] %v4939
        %5004 = vst [vmem:[#allocation3 + $0x78] sm:$0xff] %v4940
        %5005 = vst [vmem:[#allocation3 + $0x80] sm:$0xff] %v4941
        %5006 = vst [vmem:[#allocation3 + $0x88] sm:$0xff] %v4942
        %5007 = vst [vmem:[#allocation3 + $0x90] sm:$0xff] %v4943
        %5008 = vst [vmem:[#allocation3 + $0x98] sm:$0xff] %v4944
        %5009 = vst [vmem:[#allocation3 + $0xa0] sm:$0xff] %v4945
        %5010 = vst [vmem:[#allocation3 + $0xa8] sm:$0xff] %v4946
        %5011 = vst [vmem:[#allocation3 + $0xb0] sm:$0xff] %v4947
        %5012 = vst [vmem:[#allocation3 + $0xb8] sm:$0xff] %v4948
        %5013 = vst [vmem:[#allocation3 + $0xc0] sm:$0xff] %v4949
        %5014 = vst [vmem:[#allocation3 + $0xc8] sm:$0xff] %v4950
        %5015 = vst [vmem:[#allocation3 + $0xd0] sm:$0xff] %v4951
        %5016 = vst [vmem:[#allocation3 + $0xd8] sm:$0xff] %v4952
        %5017 = vst [vmem:[#allocation3 + $0xe0] sm:$0xff] %v4953
        %5018 = vst [vmem:[#allocation3 + $0xe8] sm:$0xff] %v4954
        %5019 = vst [vmem:[#allocation3 + $0xf0] sm:$0xff] %v4955
        %5020 = vst [vmem:[#allocation3 + $0xf8] sm:$0xff] %v4956
        %5021 = vst [vmem:[#allocation3 + $0x100] sm:$0xff] %v4957
        %5022 = vst [vmem:[#allocation3 + $0x108] sm:$0xff] %v4958
        %5023 = vst [vmem:[#allocation3 + $0x110] sm:$0xff] %v4959
        %5024 = vst [vmem:[#allocation3 + $0x118] sm:$0xff] %v4960
        %5025 = vst [vmem:[#allocation3 + $0x120] sm:$0xff] %v4961
        %5026 = vst [vmem:[#allocation3 + $0x128] sm:$0xff] %v4962
        %5027 = vst [vmem:[#allocation3 + $0x130] sm:$0xff] %v4963
        %5028 = vst [vmem:[#allocation3 + $0x138] sm:$0xff] %v4964
        %5029 = vst [vmem:[#allocation3 + $0x140] sm:$0xff] %v4965
        %5030 = vst [vmem:[#allocation3 + $0x148] sm:$0xff] %v4966
        %5031 = vst [vmem:[#allocation3 + $0x150] sm:$0xff] %v4967
        %5032 = vst [vmem:[#allocation3 + $0x158] sm:$0xff] %v4968
        %5033 = vst [vmem:[#allocation3 + $0x160] sm:$0xff] %v4969
        %5034 = vst [vmem:[#allocation3 + $0x168] sm:$0xff] %v4970
        %5035 = vst [vmem:[#allocation3 + $0x170] sm:$0xff] %v4971
        %5036 = vst [vmem:[#allocation3 + $0x178] sm:$0xff] %v4972
        %5037 = vst [vmem:[#allocation3 + $0x180] sm:$0xff] %v4973
        %5038 = vst [vmem:[#allocation3 + $0x188] sm:$0xff] %v4974
        %5039 = vst [vmem:[#allocation3 + $0x190] sm:$0xff] %v4975
        %5040 = vst [vmem:[#allocation3 + $0x198] sm:$0xff] %v4976
        %5041 = vst [vmem:[#allocation3 + $0x1a0] sm:$0xff] %v4977
        %5042 = vst [vmem:[#allocation3 + $0x1a8] sm:$0xff] %v4978
        %5043 = vst [vmem:[#allocation3 + $0x1b0] sm:$0xff] %v4979
        %5044 = vst [vmem:[#allocation3 + $0x1b8] sm:$0xff] %v4980
        %5045 = vst [vmem:[#allocation3 + $0x1c0] sm:$0xff] %v4981
        %5046 = vst [vmem:[#allocation3 + $0x1c8] sm:$0xff] %v4982
        %5047 = vst [vmem:[#allocation3 + $0x1d0] sm:$0xff] %v4983
        %5048 = vst [vmem:[#allocation3 + $0x1d8] sm:$0xff] %v4984
        %5049 = vst [vmem:[#allocation3 + $0x1e0] sm:$0xff] %v4985
        %5050 = vst [vmem:[#allocation3 + $0x1e8] sm:$0xff] %v4986
        %5051 = vst [vmem:[#allocation3 + $0x1f0] sm:$0xff] %v4987
        %5052 = vst [vmem:[#allocation3 + $0x1f8] sm:$0xff] %v4988
        %v5053 = vld [vmem:[%s628] sm:$0xe]
        %v5054 = vld [vmem:[%s628 + $0x4] sm:$0xf]
        %v5055 = vld [vmem:[%s628 + $0x8] sm:$0x1]
        %v5056 = vld [vmem:[%s628 + $0xc] sm:$0xe]
        %v5057 = vld [vmem:[%s628 + $0x10] sm:$0xf]
        %v5058 = vld [vmem:[%s628 + $0x14] sm:$0x1]
        %v5059 = vld [vmem:[%s628 + $0x18] sm:$0xe]
        %v5060 = vld [vmem:[%s628 + $0x1c] sm:$0xf]
        %v5061 = vld [vmem:[%s628 + $0x20] sm:$0x1]
        %v5062 = vld [vmem:[%s628 + $0x24] sm:$0xe]
        %v5063 = vld [vmem:[%s628 + $0x28] sm:$0xf]
        %v5064 = vld [vmem:[%s628 + $0x2c] sm:$0x1]
        %v5065 = vld [vmem:[%s628 + $0x30] sm:$0xe]
        %v5066 = vld [vmem:[%s628 + $0x34] sm:$0xf]
        %v5067 = vld [vmem:[%s628 + $0x38] sm:$0x1]
        %v5068 = vld [vmem:[%s628 + $0x3c] sm:$0xe]
        %v5069 = vld [vmem:[%s628 + $0x40] sm:$0xf]
        %v5070 = vld [vmem:[%s628 + $0x44] sm:$0x1]
        %v5071 = vld [vmem:[%s628 + $0x48] sm:$0xe]
        %v5072 = vld [vmem:[%s628 + $0x4c] sm:$0xf]
        %v5073 = vld [vmem:[%s628 + $0x50] sm:$0x1]
        %v5074 = vld [vmem:[%s628 + $0x54] sm:$0xe]
        %v5075 = vld [vmem:[%s628 + $0x58] sm:$0xf]
        %v5076 = vld [vmem:[%s628 + $0x5c] sm:$0x1]
        %v5077 = vld [vmem:[%s628 + $0x60] sm:$0xe]
        %v5078 = vld [vmem:[%s628 + $0x64] sm:$0xf]
        %v5079 = vld [vmem:[%s628 + $0x68] sm:$0x1]
        %v5080 = vld [vmem:[%s628 + $0x6c] sm:$0xe]
        %v5081 = vld [vmem:[%s628 + $0x70] sm:$0xf]
        %v5082 = vld [vmem:[%s628 + $0x74] sm:$0x1]
        %v5083 = vld [vmem:[%s628 + $0x78] sm:$0xe]
        %v5084 = vld [vmem:[%s628 + $0x7c] sm:$0xf]
        %v5085 = vld [vmem:[%s628 + $0x80] sm:$0x1]
        %v5086 = vld [vmem:[%s628 + $0x84] sm:$0xe]
        %v5087 = vld [vmem:[%s628 + $0x88] sm:$0xf]
        %v5088 = vld [vmem:[%s628 + $0x8c] sm:$0x1]
        %v5089 = vld [vmem:[%s628 + $0x90] sm:$0xe]
        %v5090 = vld [vmem:[%s628 + $0x94] sm:$0xf]
        %v5091 = vld [vmem:[%s628 + $0x98] sm:$0x1]
        %v5092 = vld [vmem:[%s628 + $0x9c] sm:$0xe]
        %v5093 = vld [vmem:[%s628 + $0xa0] sm:$0xf]
        %v5094 = vld [vmem:[%s628 + $0xa4] sm:$0x1]
        %v5095 = vld [vmem:[%s628 + $0xa8] sm:$0xe]
        %v5096 = vld [vmem:[%s628 + $0xac] sm:$0xf]
        %v5097 = vld [vmem:[%s628 + $0xb0] sm:$0x1]
        %v5098 = vld [vmem:[%s628 + $0xb4] sm:$0xe]
        %v5099 = vld [vmem:[%s628 + $0xb8] sm:$0xf]
        %v5100 = vld [vmem:[%s628 + $0xbc] sm:$0x1]
        %v5149 = vrot.slane %v5053, 5
        %v5150 = vrot.slane %v5149, 4
        %v5151 = vrot.slane %v5054, 5
        %v5152 = vsel %vm2806, %v5150, %v5151
        %v5153 = vrot.slane %v5151, 4
        %v5154 = vrot.slane %v5055, 5
        %v5155 = vsel %vm2806, %v5153, %v5154
        %v5156 = vrot.slane %v5056, 5
        %v5157 = vrot.slane %v5156, 4
        %v5158 = vrot.slane %v5057, 5
        %v5159 = vsel %vm2806, %v5157, %v5158
        %v5160 = vrot.slane %v5158, 4
        %v5161 = vrot.slane %v5058, 5
        %v5162 = vsel %vm2806, %v5160, %v5161
        %v5163 = vrot.slane %v5059, 5
        %v5164 = vrot.slane %v5163, 4
        %v5165 = vrot.slane %v5060, 5
        %v5166 = vsel %vm2806, %v5164, %v5165
        %v5167 = vrot.slane %v5165, 4
        %v5168 = vrot.slane %v5061, 5
        %v5169 = vsel %vm2806, %v5167, %v5168
        %v5170 = vrot.slane %v5062, 5
        %v5171 = vrot.slane %v5170, 4
        %v5172 = vrot.slane %v5063, 5
        %v5173 = vsel %vm2806, %v5171, %v5172
        %v5174 = vrot.slane %v5172, 4
        %v5175 = vrot.slane %v5064, 5
        %v5176 = vsel %vm2806, %v5174, %v5175
        %v5177 = vrot.slane %v5065, 5
        %v5178 = vrot.slane %v5177, 4
        %v5179 = vrot.slane %v5066, 5
        %v5180 = vsel %vm2806, %v5178, %v5179
        %v5181 = vrot.slane %v5179, 4
        %v5182 = vrot.slane %v5067, 5
        %v5183 = vsel %vm2806, %v5181, %v5182
        %v5184 = vrot.slane %v5068, 5
        %v5185 = vrot.slane %v5184, 4
        %v5186 = vrot.slane %v5069, 5
        %v5187 = vsel %vm2806, %v5185, %v5186
        %v5188 = vrot.slane %v5186, 4
        %v5189 = vrot.slane %v5070, 5
        %v5190 = vsel %vm2806, %v5188, %v5189
        %v5191 = vrot.slane %v5071, 5
        %v5192 = vrot.slane %v5191, 4
        %v5193 = vrot.slane %v5072, 5
        %v5194 = vsel %vm2806, %v5192, %v5193
        %v5195 = vrot.slane %v5193, 4
        %v5196 = vrot.slane %v5073, 5
        %v5197 = vsel %vm2806, %v5195, %v5196
        %v5198 = vrot.slane %v5074, 5
        %v5199 = vrot.slane %v5198, 4
        %v5200 = vrot.slane %v5075, 5
        %v5201 = vsel %vm2806, %v5199, %v5200
        %v5202 = vrot.slane %v5200, 4
        %v5203 = vrot.slane %v5076, 5
        %v5204 = vsel %vm2806, %v5202, %v5203
        %v5205 = vrot.slane %v5077, 5
        %v5206 = vrot.slane %v5205, 4
        %v5207 = vrot.slane %v5078, 5
        %v5208 = vsel %vm2806, %v5206, %v5207
        %v5209 = vrot.slane %v5207, 4
        %v5210 = vrot.slane %v5079, 5
        %v5211 = vsel %vm2806, %v5209, %v5210
        %v5212 = vrot.slane %v5080, 5
        %v5213 = vrot.slane %v5212, 4
        %v5214 = vrot.slane %v5081, 5
        %v5215 = vsel %vm2806, %v5213, %v5214
        %v5216 = vrot.slane %v5214, 4
        %v5217 = vrot.slane %v5082, 5
        %v5218 = vsel %vm2806, %v5216, %v5217
        %v5219 = vrot.slane %v5083, 5
        %v5220 = vrot.slane %v5219, 4
        %v5221 = vrot.slane %v5084, 5
        %v5222 = vsel %vm2806, %v5220, %v5221
        %v5223 = vrot.slane %v5221, 4
        %v5224 = vrot.slane %v5085, 5
        %v5225 = vsel %vm2806, %v5223, %v5224
        %v5226 = vrot.slane %v5086, 5
        %v5227 = vrot.slane %v5226, 4
        %v5228 = vrot.slane %v5087, 5
        %v5229 = vsel %vm2806, %v5227, %v5228
        %v5230 = vrot.slane %v5228, 4
        %v5231 = vrot.slane %v5088, 5
        %v5232 = vsel %vm2806, %v5230, %v5231
        %v5233 = vrot.slane %v5089, 5
        %v5234 = vrot.slane %v5233, 4
        %v5235 = vrot.slane %v5090, 5
        %v5236 = vsel %vm2806, %v5234, %v5235
        %v5237 = vrot.slane %v5235, 4
        %v5238 = vrot.slane %v5091, 5
        %v5239 = vsel %vm2806, %v5237, %v5238
        %v5240 = vrot.slane %v5092, 5
        %v5241 = vrot.slane %v5240, 4
        %v5242 = vrot.slane %v5093, 5
        %v5243 = vsel %vm2806, %v5241, %v5242
        %v5244 = vrot.slane %v5242, 4
        %v5245 = vrot.slane %v5094, 5
        %v5246 = vsel %vm2806, %v5244, %v5245
        %v5247 = vrot.slane %v5095, 5
        %v5248 = vrot.slane %v5247, 4
        %v5249 = vrot.slane %v5096, 5
        %v5250 = vsel %vm2806, %v5248, %v5249
        %v5251 = vrot.slane %v5249, 4
        %v5252 = vrot.slane %v5097, 5
        %v5253 = vsel %vm2806, %v5251, %v5252
        %v5254 = vrot.slane %v5098, 5
        %v5255 = vrot.slane %v5254, 4
        %v5256 = vrot.slane %v5099, 5
        %v5257 = vsel %vm2806, %v5255, %v5256
        %v5258 = vrot.slane %v5256, 4
        %v5259 = vrot.slane %v5100, 5
        %v5260 = vsel %vm2806, %v5258, %v5259
        %s5261 = scalar_lea.vmem [#allocation4], 640
        %v5262 = vld [vmem:[%s5261] sm:$0xff]
        %v5263 = vld [vmem:[%s5261 + $0x8] sm:$0xff]
        %v5264 = vld [vmem:[%s5261 + $0x10] sm:$0xff]
        %v5265 = vld [vmem:[%s5261 + $0x18] sm:$0xff]
        %v5266 = vld [vmem:[%s5261 + $0x20] sm:$0xff]
        %v5267 = vld [vmem:[%s5261 + $0x28] sm:$0xff]
        %v5268 = vld [vmem:[%s5261 + $0x30] sm:$0xff]
        %v5269 = vld [vmem:[%s5261 + $0x38] sm:$0xff]
        %v5270 = vld [vmem:[%s5261 + $0x40] sm:$0xff]
        %v5271 = vld [vmem:[%s5261 + $0x48] sm:$0xff]
        %v5272 = vld [vmem:[%s5261 + $0x50] sm:$0xff]
        %v5273 = vld [vmem:[%s5261 + $0x58] sm:$0xff]
        %v5274 = vld [vmem:[%s5261 + $0x60] sm:$0xff]
        %v5275 = vld [vmem:[%s5261 + $0x68] sm:$0xff]
        %v5276 = vld [vmem:[%s5261 + $0x70] sm:$0xff]
        %v5277 = vld [vmem:[%s5261 + $0x78] sm:$0xff]
        %v5278 = vunpack.c.l.b16 %v5152
        %v5279 = vunpack.c.l.b16 %v5155
        %v5280 = vunpack.c.l.b16 %v5159
        %v5281 = vunpack.c.l.b16 %v5162
        %v5282 = vunpack.c.l.b16 %v5166
        %v5283 = vunpack.c.l.b16 %v5169
        %v5284 = vunpack.c.l.b16 %v5173
        %v5285 = vunpack.c.l.b16 %v5176
        %v5286 = vunpack.c.l.b16 %v5180
        %v5287 = vunpack.c.l.b16 %v5183
        %v5288 = vunpack.c.l.b16 %v5187
        %v5289 = vunpack.c.l.b16 %v5190
        %v5290 = vunpack.c.l.b16 %v5194
        %v5291 = vunpack.c.l.b16 %v5197
        %v5292 = vunpack.c.l.b16 %v5201
        %v5293 = vunpack.c.l.b16 %v5204
        %v5294 = vunpack.c.l.b16 %v5208
        %v5295 = vunpack.c.l.b16 %v5211
        %v5296 = vunpack.c.l.b16 %v5215
        %v5297 = vunpack.c.l.b16 %v5218
        %v5298 = vunpack.c.l.b16 %v5222
        %v5299 = vunpack.c.l.b16 %v5225
        %v5300 = vunpack.c.l.b16 %v5229
        %v5301 = vunpack.c.l.b16 %v5232
        %v5302 = vunpack.c.l.b16 %v5236
        %v5303 = vunpack.c.l.b16 %v5239
        %v5304 = vunpack.c.l.b16 %v5243
        %v5305 = vunpack.c.l.b16 %v5246
        %v5306 = vunpack.c.l.b16 %v5250
        %v5307 = vunpack.c.l.b16 %v5253
        %v5308 = vunpack.c.l.b16 %v5257
        %v5309 = vunpack.c.l.b16 %v5260
        %v5310 = vpack.c.b16 %v5279, %v5278
        %v5311 = vpack.c.b16 %v5281, %v5280
        %v5312 = vpack.c.b16 %v5283, %v5282
        %v5313 = vpack.c.b16 %v5285, %v5284
        %v5314 = vpack.c.b16 %v5287, %v5286
        %v5315 = vpack.c.b16 %v5289, %v5288
        %v5316 = vpack.c.b16 %v5291, %v5290
        %v5317 = vpack.c.b16 %v5293, %v5292
        %v5318 = vpack.c.b16 %v5295, %v5294
        %v5319 = vpack.c.b16 %v5297, %v5296
        %v5320 = vpack.c.b16 %v5299, %v5298
        %v5321 = vpack.c.b16 %v5301, %v5300
        %v5322 = vpack.c.b16 %v5303, %v5302
        %v5323 = vpack.c.b16 %v5305, %v5304
        %v5324 = vpack.c.b16 %v5307, %v5306
        %v5325 = vpack.c.b16 %v5309, %v5308
        %v5358 = vunpack.c.l.b16 %v5262
        %v5359 = vunpack.c.h.b16 %v5262
        %v5360 = vunpack.c.l.b16 %v5263
        %v5361 = vunpack.c.h.b16 %v5263
        %v5362 = vunpack.c.l.b16 %v5264
        %v5363 = vunpack.c.h.b16 %v5264
        %v5364 = vunpack.c.l.b16 %v5265
        %v5365 = vunpack.c.h.b16 %v5265
        %v5366 = vunpack.c.l.b16 %v5266
        %v5367 = vunpack.c.h.b16 %v5266
        %v5368 = vunpack.c.l.b16 %v5267
        %v5369 = vunpack.c.h.b16 %v5267
        %v5370 = vunpack.c.l.b16 %v5268
        %v5371 = vunpack.c.h.b16 %v5268
        %v5372 = vunpack.c.l.b16 %v5269
        %v5373 = vunpack.c.h.b16 %v5269
        %v5374 = vunpack.c.l.b16 %v5270
        %v5375 = vunpack.c.h.b16 %v5270
        %v5376 = vunpack.c.l.b16 %v5271
        %v5377 = vunpack.c.h.b16 %v5271
        %v5378 = vunpack.c.l.b16 %v5272
        %v5379 = vunpack.c.h.b16 %v5272
        %v5380 = vunpack.c.l.b16 %v5273
        %v5381 = vunpack.c.h.b16 %v5273
        %v5382 = vunpack.c.l.b16 %v5274
        %v5383 = vunpack.c.h.b16 %v5274
        %v5384 = vunpack.c.l.b16 %v5275
        %v5385 = vunpack.c.h.b16 %v5275
        %v5386 = vunpack.c.l.b16 %v5276
        %v5387 = vunpack.c.h.b16 %v5276
        %v5388 = vunpack.c.l.b16 %v5277
        %v5389 = vunpack.c.h.b16 %v5277
        %v5390 = vpack.c.b16 %v5360, %v5358
        %v5391 = vpack.c.b16 %v5361, %v5359
        %v5392 = vpack.c.b16 %v5364, %v5362
        %v5393 = vpack.c.b16 %v5365, %v5363
        %v5394 = vpack.c.b16 %v5368, %v5366
        %v5395 = vpack.c.b16 %v5369, %v5367
        %v5396 = vpack.c.b16 %v5372, %v5370
        %v5397 = vpack.c.b16 %v5373, %v5371
        %v5398 = vpack.c.b16 %v5376, %v5374
        %v5399 = vpack.c.b16 %v5377, %v5375
        %v5400 = vpack.c.b16 %v5380, %v5378
        %v5401 = vpack.c.b16 %v5381, %v5379
        %v5402 = vpack.c.b16 %v5384, %v5382
        %v5403 = vpack.c.b16 %v5385, %v5383
        %v5404 = vpack.c.b16 %v5388, %v5386
        %v5405 = vpack.c.b16 %v5389, %v5387
        %5422 = vmatprep.subr.bf16.mxu0 %v5391
        %5423 = vmatpush1.bf16.msra.mxu0 %v5390
        %5424 = vmatprep.subr.bf16.mxu0 %v5393
        %5425 = vmatpush1.bf16.msra.mxu0 %v5392
        %5426 = vmatprep.subr.bf16.mxu0 %v5395
        %5427 = vmatpush1.bf16.msra.mxu0 %v5394
        %5428 = vmatprep.subr.bf16.mxu0 %v5397
        %5429 = vmatpush1.bf16.msra.mxu0 %v5396
        %5430 = vmatprep.subr.bf16.mxu0 %v5399
        %5431 = vmatpush1.bf16.msra.mxu0 %v5398
        %5432 = vmatprep.subr.bf16.mxu0 %v5401
        %5433 = vmatpush1.bf16.msra.mxu0 %v5400
        %5434 = vmatprep.subr.bf16.mxu0 %v5403
        %5435 = vmatpush1.bf16.msra.mxu0 %v5402
        %5436 = vmatprep.subr.bf16.mxu0 %v5405
        %5437 = vmatpush1.bf16.msra.mxu0 %v5404
        %5438 = vmatprep.subr.bf16.mxu0 0
        %5439 = vmatpush1.bf16.msra.mxu0 0
        %5440 = vmatprep.subr.bf16.mxu0 0
        %5441 = vmatpush1.bf16.msra.mxu0 0
        %5442 = vmatprep.subr.bf16.mxu0 0
        %5443 = vmatpush1.bf16.msra.mxu0 0
        %5444 = vmatprep.subr.bf16.mxu0 0
        %5445 = vmatpush1.bf16.msra.mxu0 0
        %5446 = vmatprep.subr.bf16.mxu0 0
        %5447 = vmatpush1.bf16.msra.mxu0 0
        %5448 = vmatprep.subr.bf16.mxu0 0
        %5449 = vmatpush1.bf16.msra.mxu0 0
        %5450 = vmatprep.subr.bf16.mxu0 0
        %5451 = vmatpush1.bf16.msra.mxu0 0
        %5452 = vmatprep.subr.bf16.mxu0 0
        %5453 = vmatpush1.bf16.msra.mxu0 0
        %5454 = vmatprep.mubr.bf16.mxu0 0
        %5455 = vmatmul.mubr.bf16.gmra.mrb[0].mxu0 %v5310
        %v5456 = vpop.f32.mrb[0].mxu0
        %v5457 = vadd.f32 0.0, %v5456
        %v5458 = vpop.f32.mrb[0].mxu0
        %v5459 = vadd.f32 0.0, %v5458
        %v5460 = vpop.f32.mrb[0].mxu0
        %v5461 = vadd.f32 0.0, %v5460
        %v5462 = vpop.f32.mrb[0].mxu0
        %v5463 = vadd.f32 0.0, %v5462
        %5464 = vmatprep.mubr.bf16.mxu0 0
        %5465 = vmatmul.mubr.bf16.gmra.mrb[0].mxu0 %v5311
        %v5466 = vpop.f32.mrb[0].mxu0
        %v5467 = vadd.f32 0.0, %v5466
        %v5468 = vpop.f32.mrb[0].mxu0
        %v5469 = vadd.f32 0.0, %v5468
        %v5470 = vpop.f32.mrb[0].mxu0
        %v5471 = vadd.f32 0.0, %v5470
        %v5472 = vpop.f32.mrb[0].mxu0
        %v5473 = vadd.f32 0.0, %v5472
        %5474 = vmatprep.mubr.bf16.mxu0 0
        %5475 = vmatmul.mubr.bf16.gmra.mrb[0].mxu0 %v5312
        %v5476 = vpop.f32.mrb[0].mxu0
        %v5477 = vadd.f32 0.0, %v5476
        %v5478 = vpop.f32.mrb[0].mxu0
        %v5479 = vadd.f32 0.0, %v5478
        %v5480 = vpop.f32.mrb[0].mxu0
        %v5481 = vadd.f32 0.0, %v5480
        %v5482 = vpop.f32.mrb[0].mxu0
        %v5483 = vadd.f32 0.0, %v5482
        %5484 = vmatprep.mubr.bf16.mxu0 0
        %5485 = vmatmul.mubr.bf16.gmra.mrb[0].mxu0 %v5313
        %v5486 = vpop.f32.mrb[0].mxu0
        %v5487 = vadd.f32 0.0, %v5486
        %v5488 = vpop.f32.mrb[0].mxu0
        %v5489 = vadd.f32 0.0, %v5488
        %v5490 = vpop.f32.mrb[0].mxu0
        %v5491 = vadd.f32 0.0, %v5490
        %v5492 = vpop.f32.mrb[0].mxu0
        %v5493 = vadd.f32 0.0, %v5492
        %5494 = vmatprep.mubr.bf16.mxu0 0
        %5495 = vmatmul.mubr.bf16.gmra.mrb[0].mxu0 %v5314
        %v5496 = vpop.f32.mrb[0].mxu0
        %v5497 = vadd.f32 0.0, %v5496
        %v5498 = vpop.f32.mrb[0].mxu0
        %v5499 = vadd.f32 0.0, %v5498
        %v5500 = vpop.f32.mrb[0].mxu0
        %v5501 = vadd.f32 0.0, %v5500
        %v5502 = vpop.f32.mrb[0].mxu0
        %v5503 = vadd.f32 0.0, %v5502
        %5504 = vmatprep.mubr.bf16.mxu0 0
        %5505 = vmatmul.mubr.bf16.gmra.mrb[0].mxu0 %v5315
        %v5506 = vpop.f32.mrb[0].mxu0
        %v5507 = vadd.f32 0.0, %v5506
        %v5508 = vpop.f32.mrb[0].mxu0
        %v5509 = vadd.f32 0.0, %v5508
        %v5510 = vpop.f32.mrb[0].mxu0
        %v5511 = vadd.f32 0.0, %v5510
        %v5512 = vpop.f32.mrb[0].mxu0
        %v5513 = vadd.f32 0.0, %v5512
        %5514 = vmatprep.mubr.bf16.mxu0 0
        %5515 = vmatmul.mubr.bf16.gmra.mrb[0].mxu0 %v5316
        %v5516 = vpop.f32.mrb[0].mxu0
        %v5517 = vadd.f32 0.0, %v5516
        %v5518 = vpop.f32.mrb[0].mxu0
        %v5519 = vadd.f32 0.0, %v5518
        %v5520 = vpop.f32.mrb[0].mxu0
        %v5521 = vadd.f32 0.0, %v5520
        %v5522 = vpop.f32.mrb[0].mxu0
        %v5523 = vadd.f32 0.0, %v5522
        %5524 = vmatprep.mubr.bf16.mxu0 0
        %5525 = vmatmul.mubr.bf16.gmra.mrb[0].mxu0 %v5317
        %v5526 = vpop.f32.mrb[0].mxu0
        %v5527 = vadd.f32 0.0, %v5526
        %v5528 = vpop.f32.mrb[0].mxu0
        %v5529 = vadd.f32 0.0, %v5528
        %v5530 = vpop.f32.mrb[0].mxu0
        %v5531 = vadd.f32 0.0, %v5530
        %v5532 = vpop.f32.mrb[0].mxu0
        %v5533 = vadd.f32 0.0, %v5532
        %5534 = vmatprep.mubr.bf16.mxu0 0
        %5535 = vmatmul.mubr.bf16.gmra.mrb[0].mxu0 %v5318
        %v5536 = vpop.f32.mrb[0].mxu0
        %v5537 = vadd.f32 0.0, %v5536
        %v5538 = vpop.f32.mrb[0].mxu0
        %v5539 = vadd.f32 0.0, %v5538
        %v5540 = vpop.f32.mrb[0].mxu0
        %v5541 = vadd.f32 0.0, %v5540
        %v5542 = vpop.f32.mrb[0].mxu0
        %v5543 = vadd.f32 0.0, %v5542
        %5544 = vmatprep.mubr.bf16.mxu0 0
        %5545 = vmatmul.mubr.bf16.gmra.mrb[0].mxu0 %v5319
        %v5546 = vpop.f32.mrb[0].mxu0
        %v5547 = vadd.f32 0.0, %v5546
        %v5548 = vpop.f32.mrb[0].mxu0
        %v5549 = vadd.f32 0.0, %v5548
        %v5550 = vpop.f32.mrb[0].mxu0
        %v5551 = vadd.f32 0.0, %v5550
        %v5552 = vpop.f32.mrb[0].mxu0
        %v5553 = vadd.f32 0.0, %v5552
        %5554 = vmatprep.mubr.bf16.mxu0 0
        %5555 = vmatmul.mubr.bf16.gmra.mrb[0].mxu0 %v5320
        %v5556 = vpop.f32.mrb[0].mxu0
        %v5557 = vadd.f32 0.0, %v5556
        %v5558 = vpop.f32.mrb[0].mxu0
        %v5559 = vadd.f32 0.0, %v5558
        %v5560 = vpop.f32.mrb[0].mxu0
        %v5561 = vadd.f32 0.0, %v5560
        %v5562 = vpop.f32.mrb[0].mxu0
        %v5563 = vadd.f32 0.0, %v5562
        %5564 = vmatprep.mubr.bf16.mxu0 0
        %5565 = vmatmul.mubr.bf16.gmra.mrb[0].mxu0 %v5321
        %v5566 = vpop.f32.mrb[0].mxu0
        %v5567 = vadd.f32 0.0, %v5566
        %v5568 = vpop.f32.mrb[0].mxu0
        %v5569 = vadd.f32 0.0, %v5568
        %v5570 = vpop.f32.mrb[0].mxu0
        %v5571 = vadd.f32 0.0, %v5570
        %v5572 = vpop.f32.mrb[0].mxu0
        %v5573 = vadd.f32 0.0, %v5572
        %5574 = vmatprep.mubr.bf16.mxu0 0
        %5575 = vmatmul.mubr.bf16.gmra.mrb[0].mxu0 %v5322
        %v5576 = vpop.f32.mrb[0].mxu0
        %v5577 = vadd.f32 0.0, %v5576
        %v5578 = vpop.f32.mrb[0].mxu0
        %v5579 = vadd.f32 0.0, %v5578
        %v5580 = vpop.f32.mrb[0].mxu0
        %v5581 = vadd.f32 0.0, %v5580
        %v5582 = vpop.f32.mrb[0].mxu0
        %v5583 = vadd.f32 0.0, %v5582
        %5584 = vmatprep.mubr.bf16.mxu0 0
        %5585 = vmatmul.mubr.bf16.gmra.mrb[0].mxu0 %v5323
        %v5586 = vpop.f32.mrb[0].mxu0
        %v5587 = vadd.f32 0.0, %v5586
        %v5588 = vpop.f32.mrb[0].mxu0
        %v5589 = vadd.f32 0.0, %v5588
        %v5590 = vpop.f32.mrb[0].mxu0
        %v5591 = vadd.f32 0.0, %v5590
        %v5592 = vpop.f32.mrb[0].mxu0
        %v5593 = vadd.f32 0.0, %v5592
        %5594 = vmatprep.mubr.bf16.mxu0 0
        %5595 = vmatmul.mubr.bf16.gmra.mrb[0].mxu0 %v5324
        %v5596 = vpop.f32.mrb[0].mxu0
        %v5597 = vadd.f32 0.0, %v5596
        %v5598 = vpop.f32.mrb[0].mxu0
        %v5599 = vadd.f32 0.0, %v5598
        %v5600 = vpop.f32.mrb[0].mxu0
        %v5601 = vadd.f32 0.0, %v5600
        %v5602 = vpop.f32.mrb[0].mxu0
        %v5603 = vadd.f32 0.0, %v5602
        %5604 = vmatprep.mubr.bf16.mxu0 0
        %5605 = vmatmul.mubr.bf16.gmra.mrb[0].mxu0 %v5325
        %v5606 = vpop.f32.mrb[0].mxu0
        %v5607 = vadd.f32 0.0, %v5606
        %v5608 = vpop.f32.mrb[0].mxu0
        %v5609 = vadd.f32 0.0, %v5608
        %v5610 = vpop.f32.mrb[0].mxu0
        %v5611 = vadd.f32 0.0, %v5610
        %v5612 = vpop.f32.mrb[0].mxu0
        %v5613 = vadd.f32 0.0, %v5612
        %5614 = vdwg.mxu0
        %v5615 = vld [vmem:[#allocation3] sm:$0xff]
        %v5616 = vld [vmem:[#allocation3 + $0x8] sm:$0xff]
        %v5617 = vld [vmem:[#allocation3 + $0x10] sm:$0xff]
        %v5618 = vld [vmem:[#allocation3 + $0x18] sm:$0xff]
        %v5619 = vld [vmem:[#allocation3 + $0x20] sm:$0xff]
        %v5620 = vld [vmem:[#allocation3 + $0x28] sm:$0xff]
        %v5621 = vld [vmem:[#allocation3 + $0x30] sm:$0xff]
        %v5622 = vld [vmem:[#allocation3 + $0x38] sm:$0xff]
        %v5623 = vld [vmem:[#allocation3 + $0x40] sm:$0xff]
        %v5624 = vld [vmem:[#allocation3 + $0x48] sm:$0xff]
        %v5625 = vld [vmem:[#allocation3 + $0x50] sm:$0xff]
        %v5626 = vld [vmem:[#allocation3 + $0x58] sm:$0xff]
        %v5627 = vld [vmem:[#allocation3 + $0x60] sm:$0xff]
        %v5628 = vld [vmem:[#allocation3 + $0x68] sm:$0xff]
        %v5629 = vld [vmem:[#allocation3 + $0x70] sm:$0xff]
        %v5630 = vld [vmem:[#allocation3 + $0x78] sm:$0xff]
        %v5631 = vld [vmem:[#allocation3 + $0x80] sm:$0xff]
        %v5632 = vld [vmem:[#allocation3 + $0x88] sm:$0xff]
        %v5633 = vld [vmem:[#allocation3 + $0x90] sm:$0xff]
        %v5634 = vld [vmem:[#allocation3 + $0x98] sm:$0xff]
        %v5635 = vld [vmem:[#allocation3 + $0xa0] sm:$0xff]
        %v5636 = vld [vmem:[#allocation3 + $0xa8] sm:$0xff]
        %v5637 = vld [vmem:[#allocation3 + $0xb0] sm:$0xff]
        %v5638 = vld [vmem:[#allocation3 + $0xb8] sm:$0xff]
        %v5639 = vld [vmem:[#allocation3 + $0xc0] sm:$0xff]
        %v5640 = vld [vmem:[#allocation3 + $0xc8] sm:$0xff]
        %v5641 = vld [vmem:[#allocation3 + $0xd0] sm:$0xff]
        %v5642 = vld [vmem:[#allocation3 + $0xd8] sm:$0xff]
        %v5643 = vld [vmem:[#allocation3 + $0xe0] sm:$0xff]
        %v5644 = vld [vmem:[#allocation3 + $0xe8] sm:$0xff]
        %v5645 = vld [vmem:[#allocation3 + $0xf0] sm:$0xff]
        %v5646 = vld [vmem:[#allocation3 + $0xf8] sm:$0xff]
        %v5647 = vld [vmem:[#allocation3 + $0x100] sm:$0xff]
        %v5648 = vld [vmem:[#allocation3 + $0x108] sm:$0xff]
        %v5649 = vld [vmem:[#allocation3 + $0x110] sm:$0xff]
        %v5650 = vld [vmem:[#allocation3 + $0x118] sm:$0xff]
        %v5651 = vld [vmem:[#allocation3 + $0x120] sm:$0xff]
        %v5652 = vld [vmem:[#allocation3 + $0x128] sm:$0xff]
        %v5653 = vld [vmem:[#allocation3 + $0x130] sm:$0xff]
        %v5654 = vld [vmem:[#allocation3 + $0x138] sm:$0xff]
        %v5655 = vld [vmem:[#allocation3 + $0x140] sm:$0xff]
        %v5656 = vld [vmem:[#allocation3 + $0x148] sm:$0xff]
        %v5657 = vld [vmem:[#allocation3 + $0x150] sm:$0xff]
        %v5658 = vld [vmem:[#allocation3 + $0x158] sm:$0xff]
        %v5659 = vld [vmem:[#allocation3 + $0x160] sm:$0xff]
        %v5660 = vld [vmem:[#allocation3 + $0x168] sm:$0xff]
        %v5661 = vld [vmem:[#allocation3 + $0x170] sm:$0xff]
        %v5662 = vld [vmem:[#allocation3 + $0x178] sm:$0xff]
        %v5663 = vld [vmem:[#allocation3 + $0x180] sm:$0xff]
        %v5664 = vld [vmem:[#allocation3 + $0x188] sm:$0xff]
        %v5665 = vld [vmem:[#allocation3 + $0x190] sm:$0xff]
        %v5666 = vld [vmem:[#allocation3 + $0x198] sm:$0xff]
        %v5667 = vld [vmem:[#allocation3 + $0x1a0] sm:$0xff]
        %v5668 = vld [vmem:[#allocation3 + $0x1a8] sm:$0xff]
        %v5669 = vld [vmem:[#allocation3 + $0x1b0] sm:$0xff]
        %v5670 = vld [vmem:[#allocation3 + $0x1b8] sm:$0xff]
        %v5671 = vld [vmem:[#allocation3 + $0x1c0] sm:$0xff]
        %v5672 = vld [vmem:[#allocation3 + $0x1c8] sm:$0xff]
        %v5673 = vld [vmem:[#allocation3 + $0x1d0] sm:$0xff]
        %v5674 = vld [vmem:[#allocation3 + $0x1d8] sm:$0xff]
        %v5675 = vld [vmem:[#allocation3 + $0x1e0] sm:$0xff]
        %v5676 = vld [vmem:[#allocation3 + $0x1e8] sm:$0xff]
        %v5677 = vld [vmem:[#allocation3 + $0x1f0] sm:$0xff]
        %v5678 = vld [vmem:[#allocation3 + $0x1f8] sm:$0xff]
        %v5679 = vadd.f32 %v5615, %v5457
        %v5680 = vadd.f32 %v5616, %v5459
        %v5681 = vadd.f32 %v5617, %v5461
        %v5682 = vadd.f32 %v5618, %v5463
        %v5683 = vadd.f32 %v5619, %v5467
        %v5684 = vadd.f32 %v5620, %v5469
        %v5685 = vadd.f32 %v5621, %v5471
        %v5686 = vadd.f32 %v5622, %v5473
        %v5687 = vadd.f32 %v5623, %v5477
        %v5688 = vadd.f32 %v5624, %v5479
        %v5689 = vadd.f32 %v5625, %v5481
        %v5690 = vadd.f32 %v5626, %v5483
        %v5691 = vadd.f32 %v5627, %v5487
        %v5692 = vadd.f32 %v5628, %v5489
        %v5693 = vadd.f32 %v5629, %v5491
        %v5694 = vadd.f32 %v5630, %v5493
        %v5695 = vadd.f32 %v5631, %v5497
        %v5696 = vadd.f32 %v5632, %v5499
        %v5697 = vadd.f32 %v5633, %v5501
        %v5698 = vadd.f32 %v5634, %v5503
        %v5699 = vadd.f32 %v5635, %v5507
        %v5700 = vadd.f32 %v5636, %v5509
        %v5701 = vadd.f32 %v5637, %v5511
        %v5702 = vadd.f32 %v5638, %v5513
        %v5703 = vadd.f32 %v5639, %v5517
        %v5704 = vadd.f32 %v5640, %v5519
        %v5705 = vadd.f32 %v5641, %v5521
        %v5706 = vadd.f32 %v5642, %v5523
        %v5707 = vadd.f32 %v5643, %v5527
        %v5708 = vadd.f32 %v5644, %v5529
        %v5709 = vadd.f32 %v5645, %v5531
        %v5710 = vadd.f32 %v5646, %v5533
        %v5711 = vadd.f32 %v5647, %v5537
        %v5712 = vadd.f32 %v5648, %v5539
        %v5713 = vadd.f32 %v5649, %v5541
        %v5714 = vadd.f32 %v5650, %v5543
        %v5715 = vadd.f32 %v5651, %v5547
        %v5716 = vadd.f32 %v5652, %v5549
        %v5717 = vadd.f32 %v5653, %v5551
        %v5718 = vadd.f32 %v5654, %v5553
        %v5719 = vadd.f32 %v5655, %v5557
        %v5720 = vadd.f32 %v5656, %v5559
        %v5721 = vadd.f32 %v5657, %v5561
        %v5722 = vadd.f32 %v5658, %v5563
        %v5723 = vadd.f32 %v5659, %v5567
        %v5724 = vadd.f32 %v5660, %v5569
        %v5725 = vadd.f32 %v5661, %v5571
        %v5726 = vadd.f32 %v5662, %v5573
        %v5727 = vadd.f32 %v5663, %v5577
        %v5728 = vadd.f32 %v5664, %v5579
        %v5729 = vadd.f32 %v5665, %v5581
        %v5730 = vadd.f32 %v5666, %v5583
        %v5731 = vadd.f32 %v5667, %v5587
        %v5732 = vadd.f32 %v5668, %v5589
        %v5733 = vadd.f32 %v5669, %v5591
        %v5734 = vadd.f32 %v5670, %v5593
        %v5735 = vadd.f32 %v5671, %v5597
        %v5736 = vadd.f32 %v5672, %v5599
        %v5737 = vadd.f32 %v5673, %v5601
        %v5738 = vadd.f32 %v5674, %v5603
        %v5739 = vadd.f32 %v5675, %v5607
        %v5740 = vadd.f32 %v5676, %v5609
        %v5741 = vadd.f32 %v5677, %v5611
        %v5742 = vadd.f32 %v5678, %v5613
        %5743 = vst [vmem:[#allocation3] sm:$0xff] %v5679
        %5744 = vst [vmem:[#allocation3 + $0x8] sm:$0xff] %v5680
        %5745 = vst [vmem:[#allocation3 + $0x10] sm:$0xff] %v5681
        %5746 = vst [vmem:[#allocation3 + $0x18] sm:$0xff] %v5682
        %5747 = vst [vmem:[#allocation3 + $0x20] sm:$0xff] %v5683
        %5748 = vst [vmem:[#allocation3 + $0x28] sm:$0xff] %v5684
        %5749 = vst [vmem:[#allocation3 + $0x30] sm:$0xff] %v5685
        %5750 = vst [vmem:[#allocation3 + $0x38] sm:$0xff] %v5686
        %5751 = vst [vmem:[#allocation3 + $0x40] sm:$0xff] %v5687
        %5752 = vst [vmem:[#allocation3 + $0x48] sm:$0xff] %v5688
        %5753 = vst [vmem:[#allocation3 + $0x50] sm:$0xff] %v5689
        %5754 = vst [vmem:[#allocation3 + $0x58] sm:$0xff] %v5690
        %5755 = vst [vmem:[#allocation3 + $0x60] sm:$0xff] %v5691
        %5756 = vst [vmem:[#allocation3 + $0x68] sm:$0xff] %v5692
        %5757 = vst [vmem:[#allocation3 + $0x70] sm:$0xff] %v5693
        %5758 = vst [vmem:[#allocation3 + $0x78] sm:$0xff] %v5694
        %5759 = vst [vmem:[#allocation3 + $0x80] sm:$0xff] %v5695
        %5760 = vst [vmem:[#allocation3 + $0x88] sm:$0xff] %v5696
        %5761 = vst [vmem:[#allocation3 + $0x90] sm:$0xff] %v5697
        %5762 = vst [vmem:[#allocation3 + $0x98] sm:$0xff] %v5698
        %5763 = vst [vmem:[#allocation3 + $0xa0] sm:$0xff] %v5699
        %5764 = vst [vmem:[#allocation3 + $0xa8] sm:$0xff] %v5700
        %5765 = vst [vmem:[#allocation3 + $0xb0] sm:$0xff] %v5701
        %5766 = vst [vmem:[#allocation3 + $0xb8] sm:$0xff] %v5702
        %5767 = vst [vmem:[#allocation3 + $0xc0] sm:$0xff] %v5703
        %5768 = vst [vmem:[#allocation3 + $0xc8] sm:$0xff] %v5704
        %5769 = vst [vmem:[#allocation3 + $0xd0] sm:$0xff] %v5705
        %5770 = vst [vmem:[#allocation3 + $0xd8] sm:$0xff] %v5706
        %5771 = vst [vmem:[#allocation3 + $0xe0] sm:$0xff] %v5707
        %5772 = vst [vmem:[#allocation3 + $0xe8] sm:$0xff] %v5708
        %5773 = vst [vmem:[#allocation3 + $0xf0] sm:$0xff] %v5709
        %5774 = vst [vmem:[#allocation3 + $0xf8] sm:$0xff] %v5710
        %5775 = vst [vmem:[#allocation3 + $0x100] sm:$0xff] %v5711
        %5776 = vst [vmem:[#allocation3 + $0x108] sm:$0xff] %v5712
        %5777 = vst [vmem:[#allocation3 + $0x110] sm:$0xff] %v5713
        %5778 = vst [vmem:[#allocation3 + $0x118] sm:$0xff] %v5714
        %5779 = vst [vmem:[#allocation3 + $0x120] sm:$0xff] %v5715
        %5780 = vst [vmem:[#allocation3 + $0x128] sm:$0xff] %v5716
        %5781 = vst [vmem:[#allocation3 + $0x130] sm:$0xff] %v5717
        %5782 = vst [vmem:[#allocation3 + $0x138] sm:$0xff] %v5718
        %5783 = vst [vmem:[#allocation3 + $0x140] sm:$0xff] %v5719
        %5784 = vst [vmem:[#allocation3 + $0x148] sm:$0xff] %v5720
        %5785 = vst [vmem:[#allocation3 + $0x150] sm:$0xff] %v5721
        %5786 = vst [vmem:[#allocation3 + $0x158] sm:$0xff] %v5722
        %5787 = vst [vmem:[#allocation3 + $0x160] sm:$0xff] %v5723
        %5788 = vst [vmem:[#allocation3 + $0x168] sm:$0xff] %v5724
        %5789 = vst [vmem:[#allocation3 + $0x170] sm:$0xff] %v5725
        %5790 = vst [vmem:[#allocation3 + $0x178] sm:$0xff] %v5726
        %5791 = vst [vmem:[#allocation3 + $0x180] sm:$0xff] %v5727
        %5792 = vst [vmem:[#allocation3 + $0x188] sm:$0xff] %v5728
        %5793 = vst [vmem:[#allocation3 + $0x190] sm:$0xff] %v5729
        %5794 = vst [vmem:[#allocation3 + $0x198] sm:$0xff] %v5730
        %5795 = vst [vmem:[#allocation3 + $0x1a0] sm:$0xff] %v5731
        %5796 = vst [vmem:[#allocation3 + $0x1a8] sm:$0xff] %v5732
        %5797 = vst [vmem:[#allocation3 + $0x1b0] sm:$0xff] %v5733
        %5798 = vst [vmem:[#allocation3 + $0x1b8] sm:$0xff] %v5734
        %5799 = vst [vmem:[#allocation3 + $0x1c0] sm:$0xff] %v5735
        %5800 = vst [vmem:[#allocation3 + $0x1c8] sm:$0xff] %v5736
        %5801 = vst [vmem:[#allocation3 + $0x1d0] sm:$0xff] %v5737
        %5802 = vst [vmem:[#allocation3 + $0x1d8] sm:$0xff] %v5738
        %5803 = vst [vmem:[#allocation3 + $0x1e0] sm:$0xff] %v5739
        %5804 = vst [vmem:[#allocation3 + $0x1e8] sm:$0xff] %v5740
        %5805 = vst [vmem:[#allocation3 + $0x1f0] sm:$0xff] %v5741
        %5806 = vst [vmem:[#allocation3 + $0x1f8] sm:$0xff] %v5742
        %s5807 = scalar_lea.vmem [#allocation2], 24
        %v5808 = vld [vmem:[%s5807] sm:$0xf]
        %v5809 = vld [vmem:[%s5807 + $0x4] sm:$0xf]
        %v5810 = vld [vmem:[%s5807 + $0xc] sm:$0xf]
        %v5811 = vld [vmem:[%s5807 + $0x10] sm:$0xf]
        %v5812 = vld [vmem:[%s5807 + $0x18] sm:$0xf]
        %v5813 = vld [vmem:[%s5807 + $0x1c] sm:$0xf]
        %v5814 = vld [vmem:[%s5807 + $0x24] sm:$0xf]
        %v5815 = vld [vmem:[%s5807 + $0x28] sm:$0xf]
        %v5816 = vld [vmem:[%s5807 + $0x30] sm:$0xf]
        %v5817 = vld [vmem:[%s5807 + $0x34] sm:$0xf]
        %v5818 = vld [vmem:[%s5807 + $0x3c] sm:$0xf]
        %v5819 = vld [vmem:[%s5807 + $0x40] sm:$0xf]
        %v5820 = vld [vmem:[%s5807 + $0x48] sm:$0xf]
        %v5821 = vld [vmem:[%s5807 + $0x4c] sm:$0xf]
        %v5822 = vld [vmem:[%s5807 + $0x54] sm:$0xf]
        %v5823 = vld [vmem:[%s5807 + $0x58] sm:$0xf]
        %v5824 = vld [vmem:[%s5807 + $0x60] sm:$0xf]
        %v5825 = vld [vmem:[%s5807 + $0x64] sm:$0xf]
        %v5826 = vld [vmem:[%s5807 + $0x6c] sm:$0xf]
        %v5827 = vld [vmem:[%s5807 + $0x70] sm:$0xf]
        %v5828 = vld [vmem:[%s5807 + $0x78] sm:$0xf]
        %v5829 = vld [vmem:[%s5807 + $0x7c] sm:$0xf]
        %v5830 = vld [vmem:[%s5807 + $0x84] sm:$0xf]
        %v5831 = vld [vmem:[%s5807 + $0x88] sm:$0xf]
        %v5832 = vld [vmem:[%s5807 + $0x90] sm:$0xf]
        %v5833 = vld [vmem:[%s5807 + $0x94] sm:$0xf]
        %v5834 = vld [vmem:[%s5807 + $0x9c] sm:$0xf]
        %v5835 = vld [vmem:[%s5807 + $0xa0] sm:$0xf]
        %v5836 = vld [vmem:[%s5807 + $0xa8] sm:$0xf]
        %v5837 = vld [vmem:[%s5807 + $0xac] sm:$0xf]
        %v5838 = vld [vmem:[%s5807 + $0xb4] sm:$0xf]
        %v5839 = vld [vmem:[%s5807 + $0xb8] sm:$0xf]
        %s5840 = scalar_lea.vmem [#allocation4], 768
        %v5841 = vld [vmem:[%s5840] sm:$0xff]
        %v5842 = vld [vmem:[%s5840 + $0x8] sm:$0xff]
        %v5843 = vld [vmem:[%s5840 + $0x10] sm:$0xff]
        %v5844 = vld [vmem:[%s5840 + $0x18] sm:$0xff]
        %v5845 = vld [vmem:[%s5840 + $0x20] sm:$0xff]
        %v5846 = vld [vmem:[%s5840 + $0x28] sm:$0xff]
        %v5847 = vld [vmem:[%s5840 + $0x30] sm:$0xff]
        %v5848 = vld [vmem:[%s5840 + $0x38] sm:$0xff]
        %v5849 = vld [vmem:[%s5840 + $0x40] sm:$0xff]
        %v5850 = vld [vmem:[%s5840 + $0x48] sm:$0xff]
        %v5851 = vld [vmem:[%s5840 + $0x50] sm:$0xff]
        %v5852 = vld [vmem:[%s5840 + $0x58] sm:$0xff]
        %v5853 = vld [vmem:[%s5840 + $0x60] sm:$0xff]
        %v5854 = vld [vmem:[%s5840 + $0x68] sm:$0xff]
        %v5855 = vld [vmem:[%s5840 + $0x70] sm:$0xff]
        %v5856 = vld [vmem:[%s5840 + $0x78] sm:$0xff]
        %v5889 = vunpack.c.l.b16 %v5808
        %v5890 = vunpack.c.l.b16 %v5809
        %v5891 = vunpack.c.l.b16 %v5810
        %v5892 = vunpack.c.l.b16 %v5811
        %v5893 = vunpack.c.l.b16 %v5812
        %v5894 = vunpack.c.l.b16 %v5813
        %v5895 = vunpack.c.l.b16 %v5814
        %v5896 = vunpack.c.l.b16 %v5815
        %v5897 = vunpack.c.l.b16 %v5816
        %v5898 = vunpack.c.l.b16 %v5817
        %v5899 = vunpack.c.l.b16 %v5818
        %v5900 = vunpack.c.l.b16 %v5819
        %v5901 = vunpack.c.l.b16 %v5820
        %v5902 = vunpack.c.l.b16 %v5821
        %v5903 = vunpack.c.l.b16 %v5822
        %v5904 = vunpack.c.l.b16 %v5823
        %v5905 = vunpack.c.l.b16 %v5824
        %v5906 = vunpack.c.l.b16 %v5825
        %v5907 = vunpack.c.l.b16 %v5826
        %v5908 = vunpack.c.l.b16 %v5827
        %v5909 = vunpack.c.l.b16 %v5828
        %v5910 = vunpack.c.l.b16 %v5829
        %v5911 = vunpack.c.l.b16 %v5830
        %v5912 = vunpack.c.l.b16 %v5831
        %v5913 = vunpack.c.l.b16 %v5832
        %v5914 = vunpack.c.l.b16 %v5833
        %v5915 = vunpack.c.l.b16 %v5834
        %v5916 = vunpack.c.l.b16 %v5835
        %v5917 = vunpack.c.l.b16 %v5836
        %v5918 = vunpack.c.l.b16 %v5837
        %v5919 = vunpack.c.l.b16 %v5838
        %v5920 = vunpack.c.l.b16 %v5839
        %v5921 = vpack.c.b16 %v5890, %v5889
        %v5922 = vpack.c.b16 %v5892, %v5891
        %v5923 = vpack.c.b16 %v5894, %v5893
        %v5924 = vpack.c.b16 %v5896, %v5895
        %v5925 = vpack.c.b16 %v5898, %v5897
        %v5926 = vpack.c.b16 %v5900, %v5899
        %v5927 = vpack.c.b16 %v5902, %v5901
        %v5928 = vpack.c.b16 %v5904, %v5903
        %v5929 = vpack.c.b16 %v5906, %v5905
        %v5930 = vpack.c.b16 %v5908, %v5907
        %v5931 = vpack.c.b16 %v5910, %v5909
        %v5932 = vpack.c.b16 %v5912, %v5911
        %v5933 = vpack.c.b16 %v5914, %v5913
        %v5934 = vpack.c.b16 %v5916, %v5915
        %v5935 = vpack.c.b16 %v5918, %v5917
        %v5936 = vpack.c.b16 %v5920, %v5919
        %v5969 = vunpack.c.l.b16 %v5841
        %v5970 = vunpack.c.h.b16 %v5841
        %v5971 = vunpack.c.l.b16 %v5842
        %v5972 = vunpack.c.h.b16 %v5842
        %v5973 = vunpack.c.l.b16 %v5843
        %v5974 = vunpack.c.h.b16 %v5843
        %v5975 = vunpack.c.l.b16 %v5844
        %v5976 = vunpack.c.h.b16 %v5844
        %v5977 = vunpack.c.l.b16 %v5845
        %v5978 = vunpack.c.h.b16 %v5845
        %v5979 = vunpack.c.l.b16 %v5846
        %v5980 = vunpack.c.h.b16 %v5846
        %v5981 = vunpack.c.l.b16 %v5847
        %v5982 = vunpack.c.h.b16 %v5847
        %v5983 = vunpack.c.l.b16 %v5848
        %v5984 = vunpack.c.h.b16 %v5848
        %v5985 = vunpack.c.l.b16 %v5849
        %v5986 = vunpack.c.h.b16 %v5849
        %v5987 = vunpack.c.l.b16 %v5850
        %v5988 = vunpack.c.h.b16 %v5850
        %v5989 = vunpack.c.l.b16 %v5851
        %v5990 = vunpack.c.h.b16 %v5851
        %v5991 = vunpack.c.l.b16 %v5852
        %v5992 = vunpack.c.h.b16 %v5852
        %v5993 = vunpack.c.l.b16 %v5853
        %v5994 = vunpack.c.h.b16 %v5853
        %v5995 = vunpack.c.l.b16 %v5854
        %v5996 = vunpack.c.h.b16 %v5854
        %v5997 = vunpack.c.l.b16 %v5855
        %v5998 = vunpack.c.h.b16 %v5855
        %v5999 = vunpack.c.l.b16 %v5856
        %v6000 = vunpack.c.h.b16 %v5856
        %v6001 = vpack.c.b16 %v5971, %v5969
        %v6002 = vpack.c.b16 %v5972, %v5970
        %v6003 = vpack.c.b16 %v5975, %v5973
        %v6004 = vpack.c.b16 %v5976, %v5974
        %v6005 = vpack.c.b16 %v5979, %v5977
        %v6006 = vpack.c.b16 %v5980, %v5978
        %v6007 = vpack.c.b16 %v5983, %v5981
        %v6008 = vpack.c.b16 %v5984, %v5982
        %v6009 = vpack.c.b16 %v5987, %v5985
        %v6010 = vpack.c.b16 %v5988, %v5986
        %v6011 = vpack.c.b16 %v5991, %v5989
        %v6012 = vpack.c.b16 %v5992, %v5990
        %v6013 = vpack.c.b16 %v5995, %v5993
        %v6014 = vpack.c.b16 %v5996, %v5994
        %v6015 = vpack.c.b16 %v5999, %v5997
        %v6016 = vpack.c.b16 %v6000, %v5998
        %6033 = vmatprep.subr.bf16.mxu0 %v6002
        %6034 = vmatpush1.bf16.msra.mxu0 %v6001
        %6035 = vmatprep.subr.bf16.mxu0 %v6004
        %6036 = vmatpush1.bf16.msra.mxu0 %v6003
        %6037 = vmatprep.subr.bf16.mxu0 %v6006
        %6038 = vmatpush1.bf16.msra.mxu0 %v6005
        %6039 = vmatprep.subr.bf16.mxu0 %v6008
        %6040 = vmatpush1.bf16.msra.mxu0 %v6007
        %6041 = vmatprep.subr.bf16.mxu0 %v6010
        %6042 = vmatpush1.bf16.msra.mxu0 %v6009
        %6043 = vmatprep.subr.bf16.mxu0 %v6012
        %6044 = vmatpush1.bf16.msra.mxu0 %v6011
        %6045 = vmatprep.subr.bf16.mxu0 %v6014
        %6046 = vmatpush1.bf16.msra.mxu0 %v6013
        %6047 = vmatprep.subr.bf16.mxu0 %v6016
        %6048 = vmatpush1.bf16.msra.mxu0 %v6015
        %6049 = vmatprep.subr.bf16.mxu0 0
        %6050 = vmatpush1.bf16.msra.mxu0 0
        %6051 = vmatprep.subr.bf16.mxu0 0
        %6052 = vmatpush1.bf16.msra.mxu0 0
        %6053 = vmatprep.subr.bf16.mxu0 0
        %6054 = vmatpush1.bf16.msra.mxu0 0
        %6055 = vmatprep.subr.bf16.mxu0 0
        %6056 = vmatpush1.bf16.msra.mxu0 0
        %6057 = vmatprep.subr.bf16.mxu0 0
        %6058 = vmatpush1.bf16.msra.mxu0 0
        %6059 = vmatprep.subr.bf16.mxu0 0
        %6060 = vmatpush1.bf16.msra.mxu0 0
        %6061 = vmatprep.subr.bf16.mxu0 0
        %6062 = vmatpush1.bf16.msra.mxu0 0
        %6063 = vmatprep.subr.bf16.mxu0 0
        %6064 = vmatpush1.bf16.msra.mxu0 0
        %6065 = vmatprep.mubr.bf16.mxu0 0
        %6066 = vmatmul.mubr.bf16.gmra.mrb[0].mxu0 %v5921
        %v6067 = vpop.f32.mrb[0].mxu0
        %v6068 = vadd.f32 0.0, %v6067
        %v6069 = vpop.f32.mrb[0].mxu0
        %v6070 = vadd.f32 0.0, %v6069
        %v6071 = vpop.f32.mrb[0].mxu0
        %v6072 = vadd.f32 0.0, %v6071
        %v6073 = vpop.f32.mrb[0].mxu0
        %v6074 = vadd.f32 0.0, %v6073
        %6075 = vmatprep.mubr.bf16.mxu0 0
        %6076 = vmatmul.mubr.bf16.gmra.mrb[0].mxu0 %v5922
        %v6077 = vpop.f32.mrb[0].mxu0
        %v6078 = vadd.f32 0.0, %v6077
        %v6079 = vpop.f32.mrb[0].mxu0
        %v6080 = vadd.f32 0.0, %v6079
        %v6081 = vpop.f32.mrb[0].mxu0
        %v6082 = vadd.f32 0.0, %v6081
        %v6083 = vpop.f32.mrb[0].mxu0
        %v6084 = vadd.f32 0.0, %v6083
        %6085 = vmatprep.mubr.bf16.mxu0 0
        %6086 = vmatmul.mubr.bf16.gmra.mrb[0].mxu0 %v5923
        %v6087 = vpop.f32.mrb[0].mxu0
        %v6088 = vadd.f32 0.0, %v6087
        %v6089 = vpop.f32.mrb[0].mxu0
        %v6090 = vadd.f32 0.0, %v6089
        %v6091 = vpop.f32.mrb[0].mxu0
        %v6092 = vadd.f32 0.0, %v6091
        %v6093 = vpop.f32.mrb[0].mxu0
        %v6094 = vadd.f32 0.0, %v6093
        %6095 = vmatprep.mubr.bf16.mxu0 0
        %6096 = vmatmul.mubr.bf16.gmra.mrb[0].mxu0 %v5924
        %v6097 = vpop.f32.mrb[0].mxu0
        %v6098 = vadd.f32 0.0, %v6097
        %v6099 = vpop.f32.mrb[0].mxu0
        %v6100 = vadd.f32 0.0, %v6099
        %v6101 = vpop.f32.mrb[0].mxu0
        %v6102 = vadd.f32 0.0, %v6101
        %v6103 = vpop.f32.mrb[0].mxu0
        %v6104 = vadd.f32 0.0, %v6103
        %6105 = vmatprep.mubr.bf16.mxu0 0
        %6106 = vmatmul.mubr.bf16.gmra.mrb[0].mxu0 %v5925
        %v6107 = vpop.f32.mrb[0].mxu0
        %v6108 = vadd.f32 0.0, %v6107
        %v6109 = vpop.f32.mrb[0].mxu0
        %v6110 = vadd.f32 0.0, %v6109
        %v6111 = vpop.f32.mrb[0].mxu0
        %v6112 = vadd.f32 0.0, %v6111
        %v6113 = vpop.f32.mrb[0].mxu0
        %v6114 = vadd.f32 0.0, %v6113
        %6115 = vmatprep.mubr.bf16.mxu0 0
        %6116 = vmatmul.mubr.bf16.gmra.mrb[0].mxu0 %v5926
        %v6117 = vpop.f32.mrb[0].mxu0
        %v6118 = vadd.f32 0.0, %v6117
        %v6119 = vpop.f32.mrb[0].mxu0
        %v6120 = vadd.f32 0.0, %v6119
        %v6121 = vpop.f32.mrb[0].mxu0
        %v6122 = vadd.f32 0.0, %v6121
        %v6123 = vpop.f32.mrb[0].mxu0
        %v6124 = vadd.f32 0.0, %v6123
        %6125 = vmatprep.mubr.bf16.mxu0 0
        %6126 = vmatmul.mubr.bf16.gmra.mrb[0].mxu0 %v5927
        %v6127 = vpop.f32.mrb[0].mxu0
        %v6128 = vadd.f32 0.0, %v6127
        %v6129 = vpop.f32.mrb[0].mxu0
        %v6130 = vadd.f32 0.0, %v6129
        %v6131 = vpop.f32.mrb[0].mxu0
        %v6132 = vadd.f32 0.0, %v6131
        %v6133 = vpop.f32.mrb[0].mxu0
        %v6134 = vadd.f32 0.0, %v6133
        %6135 = vmatprep.mubr.bf16.mxu0 0
        %6136 = vmatmul.mubr.bf16.gmra.mrb[0].mxu0 %v5928
        %v6137 = vpop.f32.mrb[0].mxu0
        %v6138 = vadd.f32 0.0, %v6137
        %v6139 = vpop.f32.mrb[0].mxu0
        %v6140 = vadd.f32 0.0, %v6139
        %v6141 = vpop.f32.mrb[0].mxu0
        %v6142 = vadd.f32 0.0, %v6141
        %v6143 = vpop.f32.mrb[0].mxu0
        %v6144 = vadd.f32 0.0, %v6143
        %6145 = vmatprep.mubr.bf16.mxu0 0
        %6146 = vmatmul.mubr.bf16.gmra.mrb[0].mxu0 %v5929
        %v6147 = vpop.f32.mrb[0].mxu0
        %v6148 = vadd.f32 0.0, %v6147
        %v6149 = vpop.f32.mrb[0].mxu0
        %v6150 = vadd.f32 0.0, %v6149
        %v6151 = vpop.f32.mrb[0].mxu0
        %v6152 = vadd.f32 0.0, %v6151
        %v6153 = vpop.f32.mrb[0].mxu0
        %v6154 = vadd.f32 0.0, %v6153
        %6155 = vmatprep.mubr.bf16.mxu0 0
        %6156 = vmatmul.mubr.bf16.gmra.mrb[0].mxu0 %v5930
        %v6157 = vpop.f32.mrb[0].mxu0
        %v6158 = vadd.f32 0.0, %v6157
        %v6159 = vpop.f32.mrb[0].mxu0
        %v6160 = vadd.f32 0.0, %v6159
        %v6161 = vpop.f32.mrb[0].mxu0
        %v6162 = vadd.f32 0.0, %v6161
        %v6163 = vpop.f32.mrb[0].mxu0
        %v6164 = vadd.f32 0.0, %v6163
        %6165 = vmatprep.mubr.bf16.mxu0 0
        %6166 = vmatmul.mubr.bf16.gmra.mrb[0].mxu0 %v5931
        %v6167 = vpop.f32.mrb[0].mxu0
        %v6168 = vadd.f32 0.0, %v6167
        %v6169 = vpop.f32.mrb[0].mxu0
        %v6170 = vadd.f32 0.0, %v6169
        %v6171 = vpop.f32.mrb[0].mxu0
        %v6172 = vadd.f32 0.0, %v6171
        %v6173 = vpop.f32.mrb[0].mxu0
        %v6174 = vadd.f32 0.0, %v6173
        %6175 = vmatprep.mubr.bf16.mxu0 0
        %6176 = vmatmul.mubr.bf16.gmra.mrb[0].mxu0 %v5932
        %v6177 = vpop.f32.mrb[0].mxu0
        %v6178 = vadd.f32 0.0, %v6177
        %v6179 = vpop.f32.mrb[0].mxu0
        %v6180 = vadd.f32 0.0, %v6179
        %v6181 = vpop.f32.mrb[0].mxu0
        %v6182 = vadd.f32 0.0, %v6181
        %v6183 = vpop.f32.mrb[0].mxu0
        %v6184 = vadd.f32 0.0, %v6183
        %6185 = vmatprep.mubr.bf16.mxu0 0
        %6186 = vmatmul.mubr.bf16.gmra.mrb[0].mxu0 %v5933
        %v6187 = vpop.f32.mrb[0].mxu0
        %v6188 = vadd.f32 0.0, %v6187
        %v6189 = vpop.f32.mrb[0].mxu0
        %v6190 = vadd.f32 0.0, %v6189
        %v6191 = vpop.f32.mrb[0].mxu0
        %v6192 = vadd.f32 0.0, %v6191
        %v6193 = vpop.f32.mrb[0].mxu0
        %v6194 = vadd.f32 0.0, %v6193
        %6195 = vmatprep.mubr.bf16.mxu0 0
        %6196 = vmatmul.mubr.bf16.gmra.mrb[0].mxu0 %v5934
        %v6197 = vpop.f32.mrb[0].mxu0
        %v6198 = vadd.f32 0.0, %v6197
        %v6199 = vpop.f32.mrb[0].mxu0
        %v6200 = vadd.f32 0.0, %v6199
        %v6201 = vpop.f32.mrb[0].mxu0
        %v6202 = vadd.f32 0.0, %v6201
        %v6203 = vpop.f32.mrb[0].mxu0
        %v6204 = vadd.f32 0.0, %v6203
        %6205 = vmatprep.mubr.bf16.mxu0 0
        %6206 = vmatmul.mubr.bf16.gmra.mrb[0].mxu0 %v5935
        %v6207 = vpop.f32.mrb[0].mxu0
        %v6208 = vadd.f32 0.0, %v6207
        %v6209 = vpop.f32.mrb[0].mxu0
        %v6210 = vadd.f32 0.0, %v6209
        %v6211 = vpop.f32.mrb[0].mxu0
        %v6212 = vadd.f32 0.0, %v6211
        %v6213 = vpop.f32.mrb[0].mxu0
        %v6214 = vadd.f32 0.0, %v6213
        %6215 = vmatprep.mubr.bf16.mxu0 0
        %6216 = vmatmul.mubr.bf16.gmra.mrb[0].mxu0 %v5936
        %v6217 = vpop.f32.mrb[0].mxu0
        %v6218 = vadd.f32 0.0, %v6217
        %v6219 = vpop.f32.mrb[0].mxu0
        %v6220 = vadd.f32 0.0, %v6219
        %v6221 = vpop.f32.mrb[0].mxu0
        %v6222 = vadd.f32 0.0, %v6221
        %v6223 = vpop.f32.mrb[0].mxu0
        %v6224 = vadd.f32 0.0, %v6223
        %6225 = vdwg.mxu0
        %v6226 = vld [vmem:[#allocation3] sm:$0xff]
        %v6227 = vld [vmem:[#allocation3 + $0x8] sm:$0xff]
        %v6228 = vld [vmem:[#allocation3 + $0x10] sm:$0xff]
        %v6229 = vld [vmem:[#allocation3 + $0x18] sm:$0xff]
        %v6230 = vld [vmem:[#allocation3 + $0x20] sm:$0xff]
        %v6231 = vld [vmem:[#allocation3 + $0x28] sm:$0xff]
        %v6232 = vld [vmem:[#allocation3 + $0x30] sm:$0xff]
        %v6233 = vld [vmem:[#allocation3 + $0x38] sm:$0xff]
        %v6234 = vld [vmem:[#allocation3 + $0x40] sm:$0xff]
        %v6235 = vld [vmem:[#allocation3 + $0x48] sm:$0xff]
        %v6236 = vld [vmem:[#allocation3 + $0x50] sm:$0xff]
        %v6237 = vld [vmem:[#allocation3 + $0x58] sm:$0xff]
        %v6238 = vld [vmem:[#allocation3 + $0x60] sm:$0xff]
        %v6239 = vld [vmem:[#allocation3 + $0x68] sm:$0xff]
        %v6240 = vld [vmem:[#allocation3 + $0x70] sm:$0xff]
        %v6241 = vld [vmem:[#allocation3 + $0x78] sm:$0xff]
        %v6242 = vld [vmem:[#allocation3 + $0x80] sm:$0xff]
        %v6243 = vld [vmem:[#allocation3 + $0x88] sm:$0xff]
        %v6244 = vld [vmem:[#allocation3 + $0x90] sm:$0xff]
        %v6245 = vld [vmem:[#allocation3 + $0x98] sm:$0xff]
        %v6246 = vld [vmem:[#allocation3 + $0xa0] sm:$0xff]
        %v6247 = vld [vmem:[#allocation3 + $0xa8] sm:$0xff]
        %v6248 = vld [vmem:[#allocation3 + $0xb0] sm:$0xff]
        %v6249 = vld [vmem:[#allocation3 + $0xb8] sm:$0xff]
        %v6250 = vld [vmem:[#allocation3 + $0xc0] sm:$0xff]
        %v6251 = vld [vmem:[#allocation3 + $0xc8] sm:$0xff]
        %v6252 = vld [vmem:[#allocation3 + $0xd0] sm:$0xff]
        %v6253 = vld [vmem:[#allocation3 + $0xd8] sm:$0xff]
        %v6254 = vld [vmem:[#allocation3 + $0xe0] sm:$0xff]
        %v6255 = vld [vmem:[#allocation3 + $0xe8] sm:$0xff]
        %v6256 = vld [vmem:[#allocation3 + $0xf0] sm:$0xff]
        %v6257 = vld [vmem:[#allocation3 + $0xf8] sm:$0xff]
        %v6258 = vld [vmem:[#allocation3 + $0x100] sm:$0xff]
        %v6259 = vld [vmem:[#allocation3 + $0x108] sm:$0xff]
        %v6260 = vld [vmem:[#allocation3 + $0x110] sm:$0xff]
        %v6261 = vld [vmem:[#allocation3 + $0x118] sm:$0xff]
        %v6262 = vld [vmem:[#allocation3 + $0x120] sm:$0xff]
        %v6263 = vld [vmem:[#allocation3 + $0x128] sm:$0xff]
        %v6264 = vld [vmem:[#allocation3 + $0x130] sm:$0xff]
        %v6265 = vld [vmem:[#allocation3 + $0x138] sm:$0xff]
        %v6266 = vld [vmem:[#allocation3 + $0x140] sm:$0xff]
        %v6267 = vld [vmem:[#allocation3 + $0x148] sm:$0xff]
        %v6268 = vld [vmem:[#allocation3 + $0x150] sm:$0xff]
        %v6269 = vld [vmem:[#allocation3 + $0x158] sm:$0xff]
        %v6270 = vld [vmem:[#allocation3 + $0x160] sm:$0xff]
        %v6271 = vld [vmem:[#allocation3 + $0x168] sm:$0xff]
        %v6272 = vld [vmem:[#allocation3 + $0x170] sm:$0xff]
        %v6273 = vld [vmem:[#allocation3 + $0x178] sm:$0xff]
        %v6274 = vld [vmem:[#allocation3 + $0x180] sm:$0xff]
        %v6275 = vld [vmem:[#allocation3 + $0x188] sm:$0xff]
        %v6276 = vld [vmem:[#allocation3 + $0x190] sm:$0xff]
        %v6277 = vld [vmem:[#allocation3 + $0x198] sm:$0xff]
        %v6278 = vld [vmem:[#allocation3 + $0x1a0] sm:$0xff]
        %v6279 = vld [vmem:[#allocation3 + $0x1a8] sm:$0xff]
        %v6280 = vld [vmem:[#allocation3 + $0x1b0] sm:$0xff]
        %v6281 = vld [vmem:[#allocation3 + $0x1b8] sm:$0xff]
        %v6282 = vld [vmem:[#allocation3 + $0x1c0] sm:$0xff]
        %v6283 = vld [vmem:[#allocation3 + $0x1c8] sm:$0xff]
        %v6284 = vld [vmem:[#allocation3 + $0x1d0] sm:$0xff]
        %v6285 = vld [vmem:[#allocation3 + $0x1d8] sm:$0xff]
        %v6286 = vld [vmem:[#allocation3 + $0x1e0] sm:$0xff]
        %v6287 = vld [vmem:[#allocation3 + $0x1e8] sm:$0xff]
        %v6288 = vld [vmem:[#allocation3 + $0x1f0] sm:$0xff]
        %v6289 = vld [vmem:[#allocation3 + $0x1f8] sm:$0xff]
        %v6290 = vadd.f32 %v6226, %v6068
        %v6291 = vadd.f32 %v6227, %v6070
        %v6292 = vadd.f32 %v6228, %v6072
        %v6293 = vadd.f32 %v6229, %v6074
        %v6294 = vadd.f32 %v6230, %v6078
        %v6295 = vadd.f32 %v6231, %v6080
        %v6296 = vadd.f32 %v6232, %v6082
        %v6297 = vadd.f32 %v6233, %v6084
        %v6298 = vadd.f32 %v6234, %v6088
        %v6299 = vadd.f32 %v6235, %v6090
        %v6300 = vadd.f32 %v6236, %v6092
        %v6301 = vadd.f32 %v6237, %v6094
        %v6302 = vadd.f32 %v6238, %v6098
        %v6303 = vadd.f32 %v6239, %v6100
        %v6304 = vadd.f32 %v6240, %v6102
        %v6305 = vadd.f32 %v6241, %v6104
        %v6306 = vadd.f32 %v6242, %v6108
        %v6307 = vadd.f32 %v6243, %v6110
        %v6308 = vadd.f32 %v6244, %v6112
        %v6309 = vadd.f32 %v6245, %v6114
        %v6310 = vadd.f32 %v6246, %v6118
        %v6311 = vadd.f32 %v6247, %v6120
        %v6312 = vadd.f32 %v6248, %v6122
        %v6313 = vadd.f32 %v6249, %v6124
        %v6314 = vadd.f32 %v6250, %v6128
        %v6315 = vadd.f32 %v6251, %v6130
        %v6316 = vadd.f32 %v6252, %v6132
        %v6317 = vadd.f32 %v6253, %v6134
        %v6318 = vadd.f32 %v6254, %v6138
        %v6319 = vadd.f32 %v6255, %v6140
        %v6320 = vadd.f32 %v6256, %v6142
        %v6321 = vadd.f32 %v6257, %v6144
        %v6322 = vadd.f32 %v6258, %v6148
        %v6323 = vadd.f32 %v6259, %v6150
        %v6324 = vadd.f32 %v6260, %v6152
        %v6325 = vadd.f32 %v6261, %v6154
        %v6326 = vadd.f32 %v6262, %v6158
        %v6327 = vadd.f32 %v6263, %v6160
        %v6328 = vadd.f32 %v6264, %v6162
        %v6329 = vadd.f32 %v6265, %v6164
        %v6330 = vadd.f32 %v6266, %v6168
        %v6331 = vadd.f32 %v6267, %v6170
        %v6332 = vadd.f32 %v6268, %v6172
        %v6333 = vadd.f32 %v6269, %v6174
        %v6334 = vadd.f32 %v6270, %v6178
        %v6335 = vadd.f32 %v6271, %v6180
        %v6336 = vadd.f32 %v6272, %v6182
        %v6337 = vadd.f32 %v6273, %v6184
        %v6338 = vadd.f32 %v6274, %v6188
        %v6339 = vadd.f32 %v6275, %v6190
        %v6340 = vadd.f32 %v6276, %v6192
        %v6341 = vadd.f32 %v6277, %v6194
        %v6342 = vadd.f32 %v6278, %v6198
        %v6343 = vadd.f32 %v6279, %v6200
        %v6344 = vadd.f32 %v6280, %v6202
        %v6345 = vadd.f32 %v6281, %v6204
        %v6346 = vadd.f32 %v6282, %v6208
        %v6347 = vadd.f32 %v6283, %v6210
        %v6348 = vadd.f32 %v6284, %v6212
        %v6349 = vadd.f32 %v6285, %v6214
        %v6350 = vadd.f32 %v6286, %v6218
        %v6351 = vadd.f32 %v6287, %v6220
        %v6352 = vadd.f32 %v6288, %v6222
        %v6353 = vadd.f32 %v6289, %v6224
        %6354 = vst [vmem:[#allocation3] sm:$0xff] %v6290
        %6355 = vst [vmem:[#allocation3 + $0x8] sm:$0xff] %v6291
        %6356 = vst [vmem:[#allocation3 + $0x10] sm:$0xff] %v6292
        %6357 = vst [vmem:[#allocation3 + $0x18] sm:$0xff] %v6293
        %6358 = vst [vmem:[#allocation3 + $0x20] sm:$0xff] %v6294
        %6359 = vst [vmem:[#allocation3 + $0x28] sm:$0xff] %v6295
        %6360 = vst [vmem:[#allocation3 + $0x30] sm:$0xff] %v6296
        %6361 = vst [vmem:[#allocation3 + $0x38] sm:$0xff] %v6297
        %6362 = vst [vmem:[#allocation3 + $0x40] sm:$0xff] %v6298
        %6363 = vst [vmem:[#allocation3 + $0x48] sm:$0xff] %v6299
        %6364 = vst [vmem:[#allocation3 + $0x50] sm:$0xff] %v6300
        %6365 = vst [vmem:[#allocation3 + $0x58] sm:$0xff] %v6301
        %6366 = vst [vmem:[#allocation3 + $0x60] sm:$0xff] %v6302
        %6367 = vst [vmem:[#allocation3 + $0x68] sm:$0xff] %v6303
        %6368 = vst [vmem:[#allocation3 + $0x70] sm:$0xff] %v6304
        %6369 = vst [vmem:[#allocation3 + $0x78] sm:$0xff] %v6305
        %6370 = vst [vmem:[#allocation3 + $0x80] sm:$0xff] %v6306
        %6371 = vst [vmem:[#allocation3 + $0x88] sm:$0xff] %v6307
        %6372 = vst [vmem:[#allocation3 + $0x90] sm:$0xff] %v6308
        %6373 = vst [vmem:[#allocation3 + $0x98] sm:$0xff] %v6309
        %6374 = vst [vmem:[#allocation3 + $0xa0] sm:$0xff] %v6310
        %6375 = vst [vmem:[#allocation3 + $0xa8] sm:$0xff] %v6311
        %6376 = vst [vmem:[#allocation3 + $0xb0] sm:$0xff] %v6312
        %6377 = vst [vmem:[#allocation3 + $0xb8] sm:$0xff] %v6313
        %6378 = vst [vmem:[#allocation3 + $0xc0] sm:$0xff] %v6314
        %6379 = vst [vmem:[#allocation3 + $0xc8] sm:$0xff] %v6315
        %6380 = vst [vmem:[#allocation3 + $0xd0] sm:$0xff] %v6316
        %6381 = vst [vmem:[#allocation3 + $0xd8] sm:$0xff] %v6317
        %6382 = vst [vmem:[#allocation3 + $0xe0] sm:$0xff] %v6318
        %6383 = vst [vmem:[#allocation3 + $0xe8] sm:$0xff] %v6319
        %6384 = vst [vmem:[#allocation3 + $0xf0] sm:$0xff] %v6320
        %6385 = vst [vmem:[#allocation3 + $0xf8] sm:$0xff] %v6321
        %6386 = vst [vmem:[#allocation3 + $0x100] sm:$0xff] %v6322
        %6387 = vst [vmem:[#allocation3 + $0x108] sm:$0xff] %v6323
        %6388 = vst [vmem:[#allocation3 + $0x110] sm:$0xff] %v6324
        %6389 = vst [vmem:[#allocation3 + $0x118] sm:$0xff] %v6325
        %6390 = vst [vmem:[#allocation3 + $0x120] sm:$0xff] %v6326
        %6391 = vst [vmem:[#allocation3 + $0x128] sm:$0xff] %v6327
        %6392 = vst [vmem:[#allocation3 + $0x130] sm:$0xff] %v6328
        %6393 = vst [vmem:[#allocation3 + $0x138] sm:$0xff] %v6329
        %6394 = vst [vmem:[#allocation3 + $0x140] sm:$0xff] %v6330
        %6395 = vst [vmem:[#allocation3 + $0x148] sm:$0xff] %v6331
        %6396 = vst [vmem:[#allocation3 + $0x150] sm:$0xff] %v6332
        %6397 = vst [vmem:[#allocation3 + $0x158] sm:$0xff] %v6333
        %6398 = vst [vmem:[#allocation3 + $0x160] sm:$0xff] %v6334
        %6399 = vst [vmem:[#allocation3 + $0x168] sm:$0xff] %v6335
        %6400 = vst [vmem:[#allocation3 + $0x170] sm:$0xff] %v6336
        %6401 = vst [vmem:[#allocation3 + $0x178] sm:$0xff] %v6337
        %6402 = vst [vmem:[#allocation3 + $0x180] sm:$0xff] %v6338
        %6403 = vst [vmem:[#allocation3 + $0x188] sm:$0xff] %v6339
        %6404 = vst [vmem:[#allocation3 + $0x190] sm:$0xff] %v6340
        %6405 = vst [vmem:[#allocation3 + $0x198] sm:$0xff] %v6341
        %6406 = vst [vmem:[#allocation3 + $0x1a0] sm:$0xff] %v6342
        %6407 = vst [vmem:[#allocation3 + $0x1a8] sm:$0xff] %v6343
        %6408 = vst [vmem:[#allocation3 + $0x1b0] sm:$0xff] %v6344
        %6409 = vst [vmem:[#allocation3 + $0x1b8] sm:$0xff] %v6345
        %6410 = vst [vmem:[#allocation3 + $0x1c0] sm:$0xff] %v6346
        %6411 = vst [vmem:[#allocation3 + $0x1c8] sm:$0xff] %v6347
        %6412 = vst [vmem:[#allocation3 + $0x1d0] sm:$0xff] %v6348
        %6413 = vst [vmem:[#allocation3 + $0x1d8] sm:$0xff] %v6349
        %6414 = vst [vmem:[#allocation3 + $0x1e0] sm:$0xff] %v6350
        %6415 = vst [vmem:[#allocation3 + $0x1e8] sm:$0xff] %v6351
        %6416 = vst [vmem:[#allocation3 + $0x1f0] sm:$0xff] %v6352
        %6417 = vst [vmem:[#allocation3 + $0x1f8] sm:$0xff] %v6353
        %v6418 = vld [vmem:[%s5807] sm:$0xf]
        %v6419 = vld [vmem:[%s5807 + $0x4] sm:$0xf]
        %v6420 = vld [vmem:[%s5807 + $0x8] sm:$0x1]
        %v6421 = vld [vmem:[%s5807 + $0xc] sm:$0xf]
        %v6422 = vld [vmem:[%s5807 + $0x10] sm:$0xf]
        %v6423 = vld [vmem:[%s5807 + $0x14] sm:$0x1]
        %v6424 = vld [vmem:[%s5807 + $0x18] sm:$0xf]
        %v6425 = vld [vmem:[%s5807 + $0x1c] sm:$0xf]
        %v6426 = vld [vmem:[%s5807 + $0x20] sm:$0x1]
        %v6427 = vld [vmem:[%s5807 + $0x24] sm:$0xf]
        %v6428 = vld [vmem:[%s5807 + $0x28] sm:$0xf]
        %v6429 = vld [vmem:[%s5807 + $0x2c] sm:$0x1]
        %v6430 = vld [vmem:[%s5807 + $0x30] sm:$0xf]
        %v6431 = vld [vmem:[%s5807 + $0x34] sm:$0xf]
        %v6432 = vld [vmem:[%s5807 + $0x38] sm:$0x1]
        %v6433 = vld [vmem:[%s5807 + $0x3c] sm:$0xf]
        %v6434 = vld [vmem:[%s5807 + $0x40] sm:$0xf]
        %v6435 = vld [vmem:[%s5807 + $0x44] sm:$0x1]
        %v6436 = vld [vmem:[%s5807 + $0x48] sm:$0xf]
        %v6437 = vld [vmem:[%s5807 + $0x4c] sm:$0xf]
        %v6438 = vld [vmem:[%s5807 + $0x50] sm:$0x1]
        %v6439 = vld [vmem:[%s5807 + $0x54] sm:$0xf]
        %v6440 = vld [vmem:[%s5807 + $0x58] sm:$0xf]
        %v6441 = vld [vmem:[%s5807 + $0x5c] sm:$0x1]
        %v6442 = vld [vmem:[%s5807 + $0x60] sm:$0xf]
        %v6443 = vld [vmem:[%s5807 + $0x64] sm:$0xf]
        %v6444 = vld [vmem:[%s5807 + $0x68] sm:$0x1]
        %v6445 = vld [vmem:[%s5807 + $0x6c] sm:$0xf]
        %v6446 = vld [vmem:[%s5807 + $0x70] sm:$0xf]
        %v6447 = vld [vmem:[%s5807 + $0x74] sm:$0x1]
        %v6448 = vld [vmem:[%s5807 + $0x78] sm:$0xf]
        %v6449 = vld [vmem:[%s5807 + $0x7c] sm:$0xf]
        %v6450 = vld [vmem:[%s5807 + $0x80] sm:$0x1]
        %v6451 = vld [vmem:[%s5807 + $0x84] sm:$0xf]
        %v6452 = vld [vmem:[%s5807 + $0x88] sm:$0xf]
        %v6453 = vld [vmem:[%s5807 + $0x8c] sm:$0x1]
        %v6454 = vld [vmem:[%s5807 + $0x90] sm:$0xf]
        %v6455 = vld [vmem:[%s5807 + $0x94] sm:$0xf]
        %v6456 = vld [vmem:[%s5807 + $0x98] sm:$0x1]
        %v6457 = vld [vmem:[%s5807 + $0x9c] sm:$0xf]
        %v6458 = vld [vmem:[%s5807 + $0xa0] sm:$0xf]
        %v6459 = vld [vmem:[%s5807 + $0xa4] sm:$0x1]
        %v6460 = vld [vmem:[%s5807 + $0xa8] sm:$0xf]
        %v6461 = vld [vmem:[%s5807 + $0xac] sm:$0xf]
        %v6462 = vld [vmem:[%s5807 + $0xb0] sm:$0x1]
        %v6463 = vld [vmem:[%s5807 + $0xb4] sm:$0xf]
        %v6464 = vld [vmem:[%s5807 + $0xb8] sm:$0xf]
        %v6465 = vld [vmem:[%s5807 + $0xbc] sm:$0x1]
        %v6467 = vshrl.u32 %v6418, 16
        %v6469 = vrot.slane %v6467, 4
        %v6470 = vshll.u32 %v6418, 16
        %v6472 = vrot.slane %v6470, 5
        %v6473 = vor.u32 %v6469, %v6472
        %v6474 = vrot.slane %v6473, 4
        %v6476 = vshll.u32 %v6419, 16
        %v6478 = vrot.slane %v6476, 5
        %v6479 = vsel %vm1777, %v6474, %v6478
        %v6480 = vshrl.u32 %v6419, 16
        %v6482 = vrot.slane %v6480, 4
        %v6483 = vor.u32 %v6482, %v6478
        %v6484 = vrot.slane %v6483, 4
        %v6486 = vshll.u32 %v6420, 16
        %v6488 = vrot.slane %v6486, 5
        %v6489 = vsel %vm1777, %v6484, %v6488
        %v6491 = vshrl.u32 %v6421, 16
        %v6493 = vrot.slane %v6491, 4
        %v6494 = vshll.u32 %v6421, 16
        %v6496 = vrot.slane %v6494, 5
        %v6497 = vor.u32 %v6493, %v6496
        %v6498 = vrot.slane %v6497, 4
        %v6500 = vshll.u32 %v6422, 16
        %v6502 = vrot.slane %v6500, 5
        %v6503 = vsel %vm1777, %v6498, %v6502
        %v6504 = vshrl.u32 %v6422, 16
        %v6506 = vrot.slane %v6504, 4
        %v6507 = vor.u32 %v6506, %v6502
        %v6508 = vrot.slane %v6507, 4
        %v6510 = vshll.u32 %v6423, 16
        %v6512 = vrot.slane %v6510, 5
        %v6513 = vsel %vm1777, %v6508, %v6512
        %v6515 = vshrl.u32 %v6424, 16
        %v6517 = vrot.slane %v6515, 4
        %v6518 = vshll.u32 %v6424, 16
        %v6520 = vrot.slane %v6518, 5
        %v6521 = vor.u32 %v6517, %v6520
        %v6522 = vrot.slane %v6521, 4
        %v6524 = vshll.u32 %v6425, 16
        %v6526 = vrot.slane %v6524, 5
        %v6527 = vsel %vm1777, %v6522, %v6526
        %v6528 = vshrl.u32 %v6425, 16
        %v6530 = vrot.slane %v6528, 4
        %v6531 = vor.u32 %v6530, %v6526
        %v6532 = vrot.slane %v6531, 4
        %v6534 = vshll.u32 %v6426, 16
        %v6536 = vrot.slane %v6534, 5
        %v6537 = vsel %vm1777, %v6532, %v6536
        %v6539 = vshrl.u32 %v6427, 16
        %v6541 = vrot.slane %v6539, 4
        %v6542 = vshll.u32 %v6427, 16
        %v6544 = vrot.slane %v6542, 5
        %v6545 = vor.u32 %v6541, %v6544
        %v6546 = vrot.slane %v6545, 4
        %v6548 = vshll.u32 %v6428, 16
        %v6550 = vrot.slane %v6548, 5
        %v6551 = vsel %vm1777, %v6546, %v6550
        %v6552 = vshrl.u32 %v6428, 16
        %v6554 = vrot.slane %v6552, 4
        %v6555 = vor.u32 %v6554, %v6550
        %v6556 = vrot.slane %v6555, 4
        %v6558 = vshll.u32 %v6429, 16
        %v6560 = vrot.slane %v6558, 5
        %v6561 = vsel %vm1777, %v6556, %v6560
        %v6563 = vshrl.u32 %v6430, 16
        %v6565 = vrot.slane %v6563, 4
        %v6566 = vshll.u32 %v6430, 16
        %v6568 = vrot.slane %v6566, 5
        %v6569 = vor.u32 %v6565, %v6568
        %v6570 = vrot.slane %v6569, 4
        %v6572 = vshll.u32 %v6431, 16
        %v6574 = vrot.slane %v6572, 5
        %v6575 = vsel %vm1777, %v6570, %v6574
        %v6576 = vshrl.u32 %v6431, 16
        %v6578 = vrot.slane %v6576, 4
        %v6579 = vor.u32 %v6578, %v6574
        %v6580 = vrot.slane %v6579, 4
        %v6582 = vshll.u32 %v6432, 16
        %v6584 = vrot.slane %v6582, 5
        %v6585 = vsel %vm1777, %v6580, %v6584
        %v6587 = vshrl.u32 %v6433, 16
        %v6589 = vrot.slane %v6587, 4
        %v6590 = vshll.u32 %v6433, 16
        %v6592 = vrot.slane %v6590, 5
        %v6593 = vor.u32 %v6589, %v6592
        %v6594 = vrot.slane %v6593, 4
        %v6596 = vshll.u32 %v6434, 16
        %v6598 = vrot.slane %v6596, 5
        %v6599 = vsel %vm1777, %v6594, %v6598
        %v6600 = vshrl.u32 %v6434, 16
        %v6602 = vrot.slane %v6600, 4
        %v6603 = vor.u32 %v6602, %v6598
        %v6604 = vrot.slane %v6603, 4
        %v6606 = vshll.u32 %v6435, 16
        %v6608 = vrot.slane %v6606, 5
        %v6609 = vsel %vm1777, %v6604, %v6608
        %v6611 = vshrl.u32 %v6436, 16
        %v6613 = vrot.slane %v6611, 4
        %v6614 = vshll.u32 %v6436, 16
        %v6616 = vrot.slane %v6614, 5
        %v6617 = vor.u32 %v6613, %v6616
        %v6618 = vrot.slane %v6617, 4
        %v6620 = vshll.u32 %v6437, 16
        %v6622 = vrot.slane %v6620, 5
        %v6623 = vsel %vm1777, %v6618, %v6622
        %v6624 = vshrl.u32 %v6437, 16
        %v6626 = vrot.slane %v6624, 4
        %v6627 = vor.u32 %v6626, %v6622
        %v6628 = vrot.slane %v6627, 4
        %v6630 = vshll.u32 %v6438, 16
        %v6632 = vrot.slane %v6630, 5
        %v6633 = vsel %vm1777, %v6628, %v6632
        %v6635 = vshrl.u32 %v6439, 16
        %v6637 = vrot.slane %v6635, 4
        %v6638 = vshll.u32 %v6439, 16
        %v6640 = vrot.slane %v6638, 5
        %v6641 = vor.u32 %v6637, %v6640
        %v6642 = vrot.slane %v6641, 4
        %v6644 = vshll.u32 %v6440, 16
        %v6646 = vrot.slane %v6644, 5
        %v6647 = vsel %vm1777, %v6642, %v6646
        %v6648 = vshrl.u32 %v6440, 16
        %v6650 = vrot.slane %v6648, 4
        %v6651 = vor.u32 %v6650, %v6646
        %v6652 = vrot.slane %v6651, 4
        %v6654 = vshll.u32 %v6441, 16
        %v6656 = vrot.slane %v6654, 5
        %v6657 = vsel %vm1777, %v6652, %v6656
        %v6659 = vshrl.u32 %v6442, 16
        %v6661 = vrot.slane %v6659, 4
        %v6662 = vshll.u32 %v6442, 16
        %v6664 = vrot.slane %v6662, 5
        %v6665 = vor.u32 %v6661, %v6664
        %v6666 = vrot.slane %v6665, 4
        %v6668 = vshll.u32 %v6443, 16
        %v6670 = vrot.slane %v6668, 5
        %v6671 = vsel %vm1777, %v6666, %v6670
        %v6672 = vshrl.u32 %v6443, 16
        %v6674 = vrot.slane %v6672, 4
        %v6675 = vor.u32 %v6674, %v6670
        %v6676 = vrot.slane %v6675, 4
        %v6678 = vshll.u32 %v6444, 16
        %v6680 = vrot.slane %v6678, 5
        %v6681 = vsel %vm1777, %v6676, %v6680
        %v6683 = vshrl.u32 %v6445, 16
        %v6685 = vrot.slane %v6683, 4
        %v6686 = vshll.u32 %v6445, 16
        %v6688 = vrot.slane %v6686, 5
        %v6689 = vor.u32 %v6685, %v6688
        %v6690 = vrot.slane %v6689, 4
        %v6692 = vshll.u32 %v6446, 16
        %v6694 = vrot.slane %v6692, 5
        %v6695 = vsel %vm1777, %v6690, %v6694
        %v6696 = vshrl.u32 %v6446, 16
        %v6698 = vrot.slane %v6696, 4
        %v6699 = vor.u32 %v6698, %v6694
        %v6700 = vrot.slane %v6699, 4
        %v6702 = vshll.u32 %v6447, 16
        %v6704 = vrot.slane %v6702, 5
        %v6705 = vsel %vm1777, %v6700, %v6704
        %v6707 = vshrl.u32 %v6448, 16
        %v6709 = vrot.slane %v6707, 4
        %v6710 = vshll.u32 %v6448, 16
        %v6712 = vrot.slane %v6710, 5
        %v6713 = vor.u32 %v6709, %v6712
        %v6714 = vrot.slane %v6713, 4
        %v6716 = vshll.u32 %v6449, 16
        %v6718 = vrot.slane %v6716, 5
        %v6719 = vsel %vm1777, %v6714, %v6718
        %v6720 = vshrl.u32 %v6449, 16
        %v6722 = vrot.slane %v6720, 4
        %v6723 = vor.u32 %v6722, %v6718
        %v6724 = vrot.slane %v6723, 4
        %v6726 = vshll.u32 %v6450, 16
        %v6728 = vrot.slane %v6726, 5
        %v6729 = vsel %vm1777, %v6724, %v6728
        %v6731 = vshrl.u32 %v6451, 16
        %v6733 = vrot.slane %v6731, 4
        %v6734 = vshll.u32 %v6451, 16
        %v6736 = vrot.slane %v6734, 5
        %v6737 = vor.u32 %v6733, %v6736
        %v6738 = vrot.slane %v6737, 4
        %v6740 = vshll.u32 %v6452, 16
        %v6742 = vrot.slane %v6740, 5
        %v6743 = vsel %vm1777, %v6738, %v6742
        %v6744 = vshrl.u32 %v6452, 16
        %v6746 = vrot.slane %v6744, 4
        %v6747 = vor.u32 %v6746, %v6742
        %v6748 = vrot.slane %v6747, 4
        %v6750 = vshll.u32 %v6453, 16
        %v6752 = vrot.slane %v6750, 5
        %v6753 = vsel %vm1777, %v6748, %v6752
        %v6755 = vshrl.u32 %v6454, 16
        %v6757 = vrot.slane %v6755, 4
        %v6758 = vshll.u32 %v6454, 16
        %v6760 = vrot.slane %v6758, 5
        %v6761 = vor.u32 %v6757, %v6760
        %v6762 = vrot.slane %v6761, 4
        %v6764 = vshll.u32 %v6455, 16
        %v6766 = vrot.slane %v6764, 5
        %v6767 = vsel %vm1777, %v6762, %v6766
        %v6768 = vshrl.u32 %v6455, 16
        %v6770 = vrot.slane %v6768, 4
        %v6771 = vor.u32 %v6770, %v6766
        %v6772 = vrot.slane %v6771, 4
        %v6774 = vshll.u32 %v6456, 16
        %v6776 = vrot.slane %v6774, 5
        %v6777 = vsel %vm1777, %v6772, %v6776
        %v6779 = vshrl.u32 %v6457, 16
        %v6781 = vrot.slane %v6779, 4
        %v6782 = vshll.u32 %v6457, 16
        %v6784 = vrot.slane %v6782, 5
        %v6785 = vor.u32 %v6781, %v6784
        %v6786 = vrot.slane %v6785, 4
        %v6788 = vshll.u32 %v6458, 16
        %v6790 = vrot.slane %v6788, 5
        %v6791 = vsel %vm1777, %v6786, %v6790
        %v6792 = vshrl.u32 %v6458, 16
        %v6794 = vrot.slane %v6792, 4
        %v6795 = vor.u32 %v6794, %v6790
        %v6796 = vrot.slane %v6795, 4
        %v6798 = vshll.u32 %v6459, 16
        %v6800 = vrot.slane %v6798, 5
        %v6801 = vsel %vm1777, %v6796, %v6800
        %v6803 = vshrl.u32 %v6460, 16
        %v6805 = vrot.slane %v6803, 4
        %v6806 = vshll.u32 %v6460, 16
        %v6808 = vrot.slane %v6806, 5
        %v6809 = vor.u32 %v6805, %v6808
        %v6810 = vrot.slane %v6809, 4
        %v6812 = vshll.u32 %v6461, 16
        %v6814 = vrot.slane %v6812, 5
        %v6815 = vsel %vm1777, %v6810, %v6814
        %v6816 = vshrl.u32 %v6461, 16
        %v6818 = vrot.slane %v6816, 4
        %v6819 = vor.u32 %v6818, %v6814
        %v6820 = vrot.slane %v6819, 4
        %v6822 = vshll.u32 %v6462, 16
        %v6824 = vrot.slane %v6822, 5
        %v6825 = vsel %vm1777, %v6820, %v6824
        %v6827 = vshrl.u32 %v6463, 16
        %v6829 = vrot.slane %v6827, 4
        %v6830 = vshll.u32 %v6463, 16
        %v6832 = vrot.slane %v6830, 5
        %v6833 = vor.u32 %v6829, %v6832
        %v6834 = vrot.slane %v6833, 4
        %v6836 = vshll.u32 %v6464, 16
        %v6838 = vrot.slane %v6836, 5
        %v6839 = vsel %vm1777, %v6834, %v6838
        %v6840 = vshrl.u32 %v6464, 16
        %v6842 = vrot.slane %v6840, 4
        %v6843 = vor.u32 %v6842, %v6838
        %v6844 = vrot.slane %v6843, 4
        %v6846 = vshll.u32 %v6465, 16
        %v6848 = vrot.slane %v6846, 5
        %v6849 = vsel %vm1777, %v6844, %v6848
        %s6850 = scalar_lea.vmem [#allocation4], 896
        %v6851 = vld [vmem:[%s6850] sm:$0xff]
        %v6852 = vld [vmem:[%s6850 + $0x8] sm:$0xff]
        %v6853 = vld [vmem:[%s6850 + $0x10] sm:$0xff]
        %v6854 = vld [vmem:[%s6850 + $0x18] sm:$0xff]
        %v6855 = vld [vmem:[%s6850 + $0x20] sm:$0xff]
        %v6856 = vld [vmem:[%s6850 + $0x28] sm:$0xff]
        %v6857 = vld [vmem:[%s6850 + $0x30] sm:$0xff]
        %v6858 = vld [vmem:[%s6850 + $0x38] sm:$0xff]
        %v6859 = vld [vmem:[%s6850 + $0x40] sm:$0xff]
        %v6860 = vld [vmem:[%s6850 + $0x48] sm:$0xff]
        %v6861 = vld [vmem:[%s6850 + $0x50] sm:$0xff]
        %v6862 = vld [vmem:[%s6850 + $0x58] sm:$0xff]
        %v6863 = vld [vmem:[%s6850 + $0x60] sm:$0xff]
        %v6864 = vld [vmem:[%s6850 + $0x68] sm:$0xff]
        %v6865 = vld [vmem:[%s6850 + $0x70] sm:$0xff]
        %v6866 = vld [vmem:[%s6850 + $0x78] sm:$0xff]
        %v6867 = vunpack.c.l.b16 %v6479
        %v6868 = vunpack.c.l.b16 %v6489
        %v6869 = vunpack.c.l.b16 %v6503
        %v6870 = vunpack.c.l.b16 %v6513
        %v6871 = vunpack.c.l.b16 %v6527
        %v6872 = vunpack.c.l.b16 %v6537
        %v6873 = vunpack.c.l.b16 %v6551
        %v6874 = vunpack.c.l.b16 %v6561
        %v6875 = vunpack.c.l.b16 %v6575
        %v6876 = vunpack.c.l.b16 %v6585
        %v6877 = vunpack.c.l.b16 %v6599
        %v6878 = vunpack.c.l.b16 %v6609
        %v6879 = vunpack.c.l.b16 %v6623
        %v6880 = vunpack.c.l.b16 %v6633
        %v6881 = vunpack.c.l.b16 %v6647
        %v6882 = vunpack.c.l.b16 %v6657
        %v6883 = vunpack.c.l.b16 %v6671
        %v6884 = vunpack.c.l.b16 %v6681
        %v6885 = vunpack.c.l.b16 %v6695
        %v6886 = vunpack.c.l.b16 %v6705
        %v6887 = vunpack.c.l.b16 %v6719
        %v6888 = vunpack.c.l.b16 %v6729
        %v6889 = vunpack.c.l.b16 %v6743
        %v6890 = vunpack.c.l.b16 %v6753
        %v6891 = vunpack.c.l.b16 %v6767
        %v6892 = vunpack.c.l.b16 %v6777
        %v6893 = vunpack.c.l.b16 %v6791
        %v6894 = vunpack.c.l.b16 %v6801
        %v6895 = vunpack.c.l.b16 %v6815
        %v6896 = vunpack.c.l.b16 %v6825
        %v6897 = vunpack.c.l.b16 %v6839
        %v6898 = vunpack.c.l.b16 %v6849
        %v6899 = vpack.c.b16 %v6868, %v6867
        %v6900 = vpack.c.b16 %v6870, %v6869
        %v6901 = vpack.c.b16 %v6872, %v6871
        %v6902 = vpack.c.b16 %v6874, %v6873
        %v6903 = vpack.c.b16 %v6876, %v6875
        %v6904 = vpack.c.b16 %v6878, %v6877
        %v6905 = vpack.c.b16 %v6880, %v6879
        %v6906 = vpack.c.b16 %v6882, %v6881
        %v6907 = vpack.c.b16 %v6884, %v6883
        %v6908 = vpack.c.b16 %v6886, %v6885
        %v6909 = vpack.c.b16 %v6888, %v6887
        %v6910 = vpack.c.b16 %v6890, %v6889
        %v6911 = vpack.c.b16 %v6892, %v6891
        %v6912 = vpack.c.b16 %v6894, %v6893
        %v6913 = vpack.c.b16 %v6896, %v6895
        %v6914 = vpack.c.b16 %v6898, %v6897
        %v6947 = vunpack.c.l.b16 %v6851
        %v6948 = vunpack.c.h.b16 %v6851
        %v6949 = vunpack.c.l.b16 %v6852
        %v6950 = vunpack.c.h.b16 %v6852
        %v6951 = vunpack.c.l.b16 %v6853
        %v6952 = vunpack.c.h.b16 %v6853
        %v6953 = vunpack.c.l.b16 %v6854
        %v6954 = vunpack.c.h.b16 %v6854
        %v6955 = vunpack.c.l.b16 %v6855
        %v6956 = vunpack.c.h.b16 %v6855
        %v6957 = vunpack.c.l.b16 %v6856
        %v6958 = vunpack.c.h.b16 %v6856
        %v6959 = vunpack.c.l.b16 %v6857
        %v6960 = vunpack.c.h.b16 %v6857
        %v6961 = vunpack.c.l.b16 %v6858
        %v6962 = vunpack.c.h.b16 %v6858
        %v6963 = vunpack.c.l.b16 %v6859
        %v6964 = vunpack.c.h.b16 %v6859
        %v6965 = vunpack.c.l.b16 %v6860
        %v6966 = vunpack.c.h.b16 %v6860
        %v6967 = vunpack.c.l.b16 %v6861
        %v6968 = vunpack.c.h.b16 %v6861
        %v6969 = vunpack.c.l.b16 %v6862
        %v6970 = vunpack.c.h.b16 %v6862
        %v6971 = vunpack.c.l.b16 %v6863
        %v6972 = vunpack.c.h.b16 %v6863
        %v6973 = vunpack.c.l.b16 %v6864
        %v6974 = vunpack.c.h.b16 %v6864
        %v6975 = vunpack.c.l.b16 %v6865
        %v6976 = vunpack.c.h.b16 %v6865
        %v6977 = vunpack.c.l.b16 %v6866
        %v6978 = vunpack.c.h.b16 %v6866
        %v6979 = vpack.c.b16 %v6949, %v6947
        %v6980 = vpack.c.b16 %v6950, %v6948
        %v6981 = vpack.c.b16 %v6953, %v6951
        %v6982 = vpack.c.b16 %v6954, %v6952
        %v6983 = vpack.c.b16 %v6957, %v6955
        %v6984 = vpack.c.b16 %v6958, %v6956
        %v6985 = vpack.c.b16 %v6961, %v6959
        %v6986 = vpack.c.b16 %v6962, %v6960
        %v6987 = vpack.c.b16 %v6965, %v6963
        %v6988 = vpack.c.b16 %v6966, %v6964
        %v6989 = vpack.c.b16 %v6969, %v6967
        %v6990 = vpack.c.b16 %v6970, %v6968
        %v6991 = vpack.c.b16 %v6973, %v6971
        %v6992 = vpack.c.b16 %v6974, %v6972
        %v6993 = vpack.c.b16 %v6977, %v6975
        %v6994 = vpack.c.b16 %v6978, %v6976
        %7011 = vmatprep.subr.bf16.mxu0 %v6980
        %7012 = vmatpush1.bf16.msra.mxu0 %v6979
        %7013 = vmatprep.subr.bf16.mxu0 %v6982
        %7014 = vmatpush1.bf16.msra.mxu0 %v6981
        %7015 = vmatprep.subr.bf16.mxu0 %v6984
        %7016 = vmatpush1.bf16.msra.mxu0 %v6983
        %7017 = vmatprep.subr.bf16.mxu0 %v6986
        %7018 = vmatpush1.bf16.msra.mxu0 %v6985
        %7019 = vmatprep.subr.bf16.mxu0 %v6988
        %7020 = vmatpush1.bf16.msra.mxu0 %v6987
        %7021 = vmatprep.subr.bf16.mxu0 %v6990
        %7022 = vmatpush1.bf16.msra.mxu0 %v6989
        %7023 = vmatprep.subr.bf16.mxu0 %v6992
        %7024 = vmatpush1.bf16.msra.mxu0 %v6991
        %7025 = vmatprep.subr.bf16.mxu0 %v6994
        %7026 = vmatpush1.bf16.msra.mxu0 %v6993
        %7027 = vmatprep.subr.bf16.mxu0 0
        %7028 = vmatpush1.bf16.msra.mxu0 0
        %7029 = vmatprep.subr.bf16.mxu0 0
        %7030 = vmatpush1.bf16.msra.mxu0 0
        %7031 = vmatprep.subr.bf16.mxu0 0
        %7032 = vmatpush1.bf16.msra.mxu0 0
        %7033 = vmatprep.subr.bf16.mxu0 0
        %7034 = vmatpush1.bf16.msra.mxu0 0
        %7035 = vmatprep.subr.bf16.mxu0 0
        %7036 = vmatpush1.bf16.msra.mxu0 0
        %7037 = vmatprep.subr.bf16.mxu0 0
        %7038 = vmatpush1.bf16.msra.mxu0 0
        %7039 = vmatprep.subr.bf16.mxu0 0
        %7040 = vmatpush1.bf16.msra.mxu0 0
        %7041 = vmatprep.subr.bf16.mxu0 0
        %7042 = vmatpush1.bf16.msra.mxu0 0
        %7043 = vmatprep.mubr.bf16.mxu0 0
        %7044 = vmatmul.mubr.bf16.gmra.mrb[0].mxu0 %v6899
        %v7045 = vpop.f32.mrb[0].mxu0
        %v7046 = vadd.f32 0.0, %v7045
        %v7047 = vpop.f32.mrb[0].mxu0
        %v7048 = vadd.f32 0.0, %v7047
        %v7049 = vpop.f32.mrb[0].mxu0
        %v7050 = vadd.f32 0.0, %v7049
        %v7051 = vpop.f32.mrb[0].mxu0
        %v7052 = vadd.f32 0.0, %v7051
        %7053 = vmatprep.mubr.bf16.mxu0 0
        %7054 = vmatmul.mubr.bf16.gmra.mrb[0].mxu0 %v6900
        %v7055 = vpop.f32.mrb[0].mxu0
        %v7056 = vadd.f32 0.0, %v7055
        %v7057 = vpop.f32.mrb[0].mxu0
        %v7058 = vadd.f32 0.0, %v7057
        %v7059 = vpop.f32.mrb[0].mxu0
        %v7060 = vadd.f32 0.0, %v7059
        %v7061 = vpop.f32.mrb[0].mxu0
        %v7062 = vadd.f32 0.0, %v7061
        %7063 = vmatprep.mubr.bf16.mxu0 0
        %7064 = vmatmul.mubr.bf16.gmra.mrb[0].mxu0 %v6901
        %v7065 = vpop.f32.mrb[0].mxu0
        %v7066 = vadd.f32 0.0, %v7065
        %v7067 = vpop.f32.mrb[0].mxu0
        %v7068 = vadd.f32 0.0, %v7067
        %v7069 = vpop.f32.mrb[0].mxu0
        %v7070 = vadd.f32 0.0, %v7069
        %v7071 = vpop.f32.mrb[0].mxu0
        %v7072 = vadd.f32 0.0, %v7071
        %7073 = vmatprep.mubr.bf16.mxu0 0
        %7074 = vmatmul.mubr.bf16.gmra.mrb[0].mxu0 %v6902
        %v7075 = vpop.f32.mrb[0].mxu0
        %v7076 = vadd.f32 0.0, %v7075
        %v7077 = vpop.f32.mrb[0].mxu0
        %v7078 = vadd.f32 0.0, %v7077
        %v7079 = vpop.f32.mrb[0].mxu0
        %v7080 = vadd.f32 0.0, %v7079
        %v7081 = vpop.f32.mrb[0].mxu0
        %v7082 = vadd.f32 0.0, %v7081
        %7083 = vmatprep.mubr.bf16.mxu0 0
        %7084 = vmatmul.mubr.bf16.gmra.mrb[0].mxu0 %v6903
        %v7085 = vpop.f32.mrb[0].mxu0
        %v7086 = vadd.f32 0.0, %v7085
        %v7087 = vpop.f32.mrb[0].mxu0
        %v7088 = vadd.f32 0.0, %v7087
        %v7089 = vpop.f32.mrb[0].mxu0
        %v7090 = vadd.f32 0.0, %v7089
        %v7091 = vpop.f32.mrb[0].mxu0
        %v7092 = vadd.f32 0.0, %v7091
        %7093 = vmatprep.mubr.bf16.mxu0 0
        %7094 = vmatmul.mubr.bf16.gmra.mrb[0].mxu0 %v6904
        %v7095 = vpop.f32.mrb[0].mxu0
        %v7096 = vadd.f32 0.0, %v7095
        %v7097 = vpop.f32.mrb[0].mxu0
        %v7098 = vadd.f32 0.0, %v7097
        %v7099 = vpop.f32.mrb[0].mxu0
        %v7100 = vadd.f32 0.0, %v7099
        %v7101 = vpop.f32.mrb[0].mxu0
        %v7102 = vadd.f32 0.0, %v7101
        %7103 = vmatprep.mubr.bf16.mxu0 0
        %7104 = vmatmul.mubr.bf16.gmra.mrb[0].mxu0 %v6905
        %v7105 = vpop.f32.mrb[0].mxu0
        %v7106 = vadd.f32 0.0, %v7105
        %v7107 = vpop.f32.mrb[0].mxu0
        %v7108 = vadd.f32 0.0, %v7107
        %v7109 = vpop.f32.mrb[0].mxu0
        %v7110 = vadd.f32 0.0, %v7109
        %v7111 = vpop.f32.mrb[0].mxu0
        %v7112 = vadd.f32 0.0, %v7111
        %7113 = vmatprep.mubr.bf16.mxu0 0
        %7114 = vmatmul.mubr.bf16.gmra.mrb[0].mxu0 %v6906
        %v7115 = vpop.f32.mrb[0].mxu0
        %v7116 = vadd.f32 0.0, %v7115
        %v7117 = vpop.f32.mrb[0].mxu0
        %v7118 = vadd.f32 0.0, %v7117
        %v7119 = vpop.f32.mrb[0].mxu0
        %v7120 = vadd.f32 0.0, %v7119
        %v7121 = vpop.f32.mrb[0].mxu0
        %v7122 = vadd.f32 0.0, %v7121
        %7123 = vmatprep.mubr.bf16.mxu0 0
        %7124 = vmatmul.mubr.bf16.gmra.mrb[0].mxu0 %v6907
        %v7125 = vpop.f32.mrb[0].mxu0
        %v7126 = vadd.f32 0.0, %v7125
        %v7127 = vpop.f32.mrb[0].mxu0
        %v7128 = vadd.f32 0.0, %v7127
        %v7129 = vpop.f32.mrb[0].mxu0
        %v7130 = vadd.f32 0.0, %v7129
        %v7131 = vpop.f32.mrb[0].mxu0
        %v7132 = vadd.f32 0.0, %v7131
        %7133 = vmatprep.mubr.bf16.mxu0 0
        %7134 = vmatmul.mubr.bf16.gmra.mrb[0].mxu0 %v6908
        %v7135 = vpop.f32.mrb[0].mxu0
        %v7136 = vadd.f32 0.0, %v7135
        %v7137 = vpop.f32.mrb[0].mxu0
        %v7138 = vadd.f32 0.0, %v7137
        %v7139 = vpop.f32.mrb[0].mxu0
        %v7140 = vadd.f32 0.0, %v7139
        %v7141 = vpop.f32.mrb[0].mxu0
        %v7142 = vadd.f32 0.0, %v7141
        %7143 = vmatprep.mubr.bf16.mxu0 0
        %7144 = vmatmul.mubr.bf16.gmra.mrb[0].mxu0 %v6909
        %v7145 = vpop.f32.mrb[0].mxu0
        %v7146 = vadd.f32 0.0, %v7145
        %v7147 = vpop.f32.mrb[0].mxu0
        %v7148 = vadd.f32 0.0, %v7147
        %v7149 = vpop.f32.mrb[0].mxu0
        %v7150 = vadd.f32 0.0, %v7149
        %v7151 = vpop.f32.mrb[0].mxu0
        %v7152 = vadd.f32 0.0, %v7151
        %7153 = vmatprep.mubr.bf16.mxu0 0
        %7154 = vmatmul.mubr.bf16.gmra.mrb[0].mxu0 %v6910
        %v7155 = vpop.f32.mrb[0].mxu0
        %v7156 = vadd.f32 0.0, %v7155
        %v7157 = vpop.f32.mrb[0].mxu0
        %v7158 = vadd.f32 0.0, %v7157
        %v7159 = vpop.f32.mrb[0].mxu0
        %v7160 = vadd.f32 0.0, %v7159
        %v7161 = vpop.f32.mrb[0].mxu0
        %v7162 = vadd.f32 0.0, %v7161
        %7163 = vmatprep.mubr.bf16.mxu0 0
        %7164 = vmatmul.mubr.bf16.gmra.mrb[0].mxu0 %v6911
        %v7165 = vpop.f32.mrb[0].mxu0
        %v7166 = vadd.f32 0.0, %v7165
        %v7167 = vpop.f32.mrb[0].mxu0
        %v7168 = vadd.f32 0.0, %v7167
        %v7169 = vpop.f32.mrb[0].mxu0
        %v7170 = vadd.f32 0.0, %v7169
        %v7171 = vpop.f32.mrb[0].mxu0
        %v7172 = vadd.f32 0.0, %v7171
        %7173 = vmatprep.mubr.bf16.mxu0 0
        %7174 = vmatmul.mubr.bf16.gmra.mrb[0].mxu0 %v6912
        %v7175 = vpop.f32.mrb[0].mxu0
        %v7176 = vadd.f32 0.0, %v7175
        %v7177 = vpop.f32.mrb[0].mxu0
        %v7178 = vadd.f32 0.0, %v7177
        %v7179 = vpop.f32.mrb[0].mxu0
        %v7180 = vadd.f32 0.0, %v7179
        %v7181 = vpop.f32.mrb[0].mxu0
        %v7182 = vadd.f32 0.0, %v7181
        %7183 = vmatprep.mubr.bf16.mxu0 0
        %7184 = vmatmul.mubr.bf16.gmra.mrb[0].mxu0 %v6913
        %v7185 = vpop.f32.mrb[0].mxu0
        %v7186 = vadd.f32 0.0, %v7185
        %v7187 = vpop.f32.mrb[0].mxu0
        %v7188 = vadd.f32 0.0, %v7187
        %v7189 = vpop.f32.mrb[0].mxu0
        %v7190 = vadd.f32 0.0, %v7189
        %v7191 = vpop.f32.mrb[0].mxu0
        %v7192 = vadd.f32 0.0, %v7191
        %7193 = vmatprep.mubr.bf16.mxu0 0
        %7194 = vmatmul.mubr.bf16.gmra.mrb[0].mxu0 %v6914
        %v7195 = vpop.f32.mrb[0].mxu0
        %v7196 = vadd.f32 0.0, %v7195
        %v7197 = vpop.f32.mrb[0].mxu0
        %v7198 = vadd.f32 0.0, %v7197
        %v7199 = vpop.f32.mrb[0].mxu0
        %v7200 = vadd.f32 0.0, %v7199
        %v7201 = vpop.f32.mrb[0].mxu0
        %v7202 = vadd.f32 0.0, %v7201
        %7203 = vdwg.mxu0
        %v7204 = vld [vmem:[#allocation3] sm:$0xff]
        %v7205 = vld [vmem:[#allocation3 + $0x8] sm:$0xff]
        %v7206 = vld [vmem:[#allocation3 + $0x10] sm:$0xff]
        %v7207 = vld [vmem:[#allocation3 + $0x18] sm:$0xff]
        %v7208 = vld [vmem:[#allocation3 + $0x20] sm:$0xff]
        %v7209 = vld [vmem:[#allocation3 + $0x28] sm:$0xff]
        %v7210 = vld [vmem:[#allocation3 + $0x30] sm:$0xff]
        %v7211 = vld [vmem:[#allocation3 + $0x38] sm:$0xff]
        %v7212 = vld [vmem:[#allocation3 + $0x40] sm:$0xff]
        %v7213 = vld [vmem:[#allocation3 + $0x48] sm:$0xff]
        %v7214 = vld [vmem:[#allocation3 + $0x50] sm:$0xff]
        %v7215 = vld [vmem:[#allocation3 + $0x58] sm:$0xff]
        %v7216 = vld [vmem:[#allocation3 + $0x60] sm:$0xff]
        %v7217 = vld [vmem:[#allocation3 + $0x68] sm:$0xff]
        %v7218 = vld [vmem:[#allocation3 + $0x70] sm:$0xff]
        %v7219 = vld [vmem:[#allocation3 + $0x78] sm:$0xff]
        %v7220 = vld [vmem:[#allocation3 + $0x80] sm:$0xff]
        %v7221 = vld [vmem:[#allocation3 + $0x88] sm:$0xff]
        %v7222 = vld [vmem:[#allocation3 + $0x90] sm:$0xff]
        %v7223 = vld [vmem:[#allocation3 + $0x98] sm:$0xff]
        %v7224 = vld [vmem:[#allocation3 + $0xa0] sm:$0xff]
        %v7225 = vld [vmem:[#allocation3 + $0xa8] sm:$0xff]
        %v7226 = vld [vmem:[#allocation3 + $0xb0] sm:$0xff]
        %v7227 = vld [vmem:[#allocation3 + $0xb8] sm:$0xff]
        %v7228 = vld [vmem:[#allocation3 + $0xc0] sm:$0xff]
        %v7229 = vld [vmem:[#allocation3 + $0xc8] sm:$0xff]
        %v7230 = vld [vmem:[#allocation3 + $0xd0] sm:$0xff]
        %v7231 = vld [vmem:[#allocation3 + $0xd8] sm:$0xff]
        %v7232 = vld [vmem:[#allocation3 + $0xe0] sm:$0xff]
        %v7233 = vld [vmem:[#allocation3 + $0xe8] sm:$0xff]
        %v7234 = vld [vmem:[#allocation3 + $0xf0] sm:$0xff]
        %v7235 = vld [vmem:[#allocation3 + $0xf8] sm:$0xff]
        %v7236 = vld [vmem:[#allocation3 + $0x100] sm:$0xff]
        %v7237 = vld [vmem:[#allocation3 + $0x108] sm:$0xff]
        %v7238 = vld [vmem:[#allocation3 + $0x110] sm:$0xff]
        %v7239 = vld [vmem:[#allocation3 + $0x118] sm:$0xff]
        %v7240 = vld [vmem:[#allocation3 + $0x120] sm:$0xff]
        %v7241 = vld [vmem:[#allocation3 + $0x128] sm:$0xff]
        %v7242 = vld [vmem:[#allocation3 + $0x130] sm:$0xff]
        %v7243 = vld [vmem:[#allocation3 + $0x138] sm:$0xff]
        %v7244 = vld [vmem:[#allocation3 + $0x140] sm:$0xff]
        %v7245 = vld [vmem:[#allocation3 + $0x148] sm:$0xff]
        %v7246 = vld [vmem:[#allocation3 + $0x150] sm:$0xff]
        %v7247 = vld [vmem:[#allocation3 + $0x158] sm:$0xff]
        %v7248 = vld [vmem:[#allocation3 + $0x160] sm:$0xff]
        %v7249 = vld [vmem:[#allocation3 + $0x168] sm:$0xff]
        %v7250 = vld [vmem:[#allocation3 + $0x170] sm:$0xff]
        %v7251 = vld [vmem:[#allocation3 + $0x178] sm:$0xff]
        %v7252 = vld [vmem:[#allocation3 + $0x180] sm:$0xff]
        %v7253 = vld [vmem:[#allocation3 + $0x188] sm:$0xff]
        %v7254 = vld [vmem:[#allocation3 + $0x190] sm:$0xff]
        %v7255 = vld [vmem:[#allocation3 + $0x198] sm:$0xff]
        %v7256 = vld [vmem:[#allocation3 + $0x1a0] sm:$0xff]
        %v7257 = vld [vmem:[#allocation3 + $0x1a8] sm:$0xff]
        %v7258 = vld [vmem:[#allocation3 + $0x1b0] sm:$0xff]
        %v7259 = vld [vmem:[#allocation3 + $0x1b8] sm:$0xff]
        %v7260 = vld [vmem:[#allocation3 + $0x1c0] sm:$0xff]
        %v7261 = vld [vmem:[#allocation3 + $0x1c8] sm:$0xff]
        %v7262 = vld [vmem:[#allocation3 + $0x1d0] sm:$0xff]
        %v7263 = vld [vmem:[#allocation3 + $0x1d8] sm:$0xff]
        %v7264 = vld [vmem:[#allocation3 + $0x1e0] sm:$0xff]
        %v7265 = vld [vmem:[#allocation3 + $0x1e8] sm:$0xff]
        %v7266 = vld [vmem:[#allocation3 + $0x1f0] sm:$0xff]
        %v7267 = vld [vmem:[#allocation3 + $0x1f8] sm:$0xff]
        %v7268 = vadd.f32 %v7204, %v7046
        %v7269 = vadd.f32 %v7205, %v7048
        %v7270 = vadd.f32 %v7206, %v7050
        %v7271 = vadd.f32 %v7207, %v7052
        %v7272 = vadd.f32 %v7208, %v7056
        %v7273 = vadd.f32 %v7209, %v7058
        %v7274 = vadd.f32 %v7210, %v7060
        %v7275 = vadd.f32 %v7211, %v7062
        %v7276 = vadd.f32 %v7212, %v7066
        %v7277 = vadd.f32 %v7213, %v7068
        %v7278 = vadd.f32 %v7214, %v7070
        %v7279 = vadd.f32 %v7215, %v7072
        %v7280 = vadd.f32 %v7216, %v7076
        %v7281 = vadd.f32 %v7217, %v7078
        %v7282 = vadd.f32 %v7218, %v7080
        %v7283 = vadd.f32 %v7219, %v7082
        %v7284 = vadd.f32 %v7220, %v7086
        %v7285 = vadd.f32 %v7221, %v7088
        %v7286 = vadd.f32 %v7222, %v7090
        %v7287 = vadd.f32 %v7223, %v7092
        %v7288 = vadd.f32 %v7224, %v7096
        %v7289 = vadd.f32 %v7225, %v7098
        %v7290 = vadd.f32 %v7226, %v7100
        %v7291 = vadd.f32 %v7227, %v7102
        %v7292 = vadd.f32 %v7228, %v7106
        %v7293 = vadd.f32 %v7229, %v7108
        %v7294 = vadd.f32 %v7230, %v7110
        %v7295 = vadd.f32 %v7231, %v7112
        %v7296 = vadd.f32 %v7232, %v7116
        %v7297 = vadd.f32 %v7233, %v7118
        %v7298 = vadd.f32 %v7234, %v7120
        %v7299 = vadd.f32 %v7235, %v7122
        %v7300 = vadd.f32 %v7236, %v7126
        %v7301 = vadd.f32 %v7237, %v7128
        %v7302 = vadd.f32 %v7238, %v7130
        %v7303 = vadd.f32 %v7239, %v7132
        %v7304 = vadd.f32 %v7240, %v7136
        %v7305 = vadd.f32 %v7241, %v7138
        %v7306 = vadd.f32 %v7242, %v7140
        %v7307 = vadd.f32 %v7243, %v7142
        %v7308 = vadd.f32 %v7244, %v7146
        %v7309 = vadd.f32 %v7245, %v7148
        %v7310 = vadd.f32 %v7246, %v7150
        %v7311 = vadd.f32 %v7247, %v7152
        %v7312 = vadd.f32 %v7248, %v7156
        %v7313 = vadd.f32 %v7249, %v7158
        %v7314 = vadd.f32 %v7250, %v7160
        %v7315 = vadd.f32 %v7251, %v7162
        %v7316 = vadd.f32 %v7252, %v7166
        %v7317 = vadd.f32 %v7253, %v7168
        %v7318 = vadd.f32 %v7254, %v7170
        %v7319 = vadd.f32 %v7255, %v7172
        %v7320 = vadd.f32 %v7256, %v7176
        %v7321 = vadd.f32 %v7257, %v7178
        %v7322 = vadd.f32 %v7258, %v7180
        %v7323 = vadd.f32 %v7259, %v7182
        %v7324 = vadd.f32 %v7260, %v7186
        %v7325 = vadd.f32 %v7261, %v7188
        %v7326 = vadd.f32 %v7262, %v7190
        %v7327 = vadd.f32 %v7263, %v7192
        %v7328 = vadd.f32 %v7264, %v7196
        %v7329 = vadd.f32 %v7265, %v7198
        %v7330 = vadd.f32 %v7266, %v7200
        %v7331 = vadd.f32 %v7267, %v7202
        %7332 = vst [vmem:[#allocation3] sm:$0xff] %v7268
        %7333 = vst [vmem:[#allocation3 + $0x8] sm:$0xff] %v7269
        %7334 = vst [vmem:[#allocation3 + $0x10] sm:$0xff] %v7270
        %7335 = vst [vmem:[#allocation3 + $0x18] sm:$0xff] %v7271
        %7336 = vst [vmem:[#allocation3 + $0x20] sm:$0xff] %v7272
        %7337 = vst [vmem:[#allocation3 + $0x28] sm:$0xff] %v7273
        %7338 = vst [vmem:[#allocation3 + $0x30] sm:$0xff] %v7274
        %7339 = vst [vmem:[#allocation3 + $0x38] sm:$0xff] %v7275
        %7340 = vst [vmem:[#allocation3 + $0x40] sm:$0xff] %v7276
        %7341 = vst [vmem:[#allocation3 + $0x48] sm:$0xff] %v7277
        %7342 = vst [vmem:[#allocation3 + $0x50] sm:$0xff] %v7278
        %7343 = vst [vmem:[#allocation3 + $0x58] sm:$0xff] %v7279
        %7344 = vst [vmem:[#allocation3 + $0x60] sm:$0xff] %v7280
        %7345 = vst [vmem:[#allocation3 + $0x68] sm:$0xff] %v7281
        %7346 = vst [vmem:[#allocation3 + $0x70] sm:$0xff] %v7282
        %7347 = vst [vmem:[#allocation3 + $0x78] sm:$0xff] %v7283
        %7348 = vst [vmem:[#allocation3 + $0x80] sm:$0xff] %v7284
        %7349 = vst [vmem:[#allocation3 + $0x88] sm:$0xff] %v7285
        %7350 = vst [vmem:[#allocation3 + $0x90] sm:$0xff] %v7286
        %7351 = vst [vmem:[#allocation3 + $0x98] sm:$0xff] %v7287
        %7352 = vst [vmem:[#allocation3 + $0xa0] sm:$0xff] %v7288
        %7353 = vst [vmem:[#allocation3 + $0xa8] sm:$0xff] %v7289
        %7354 = vst [vmem:[#allocation3 + $0xb0] sm:$0xff] %v7290
        %7355 = vst [vmem:[#allocation3 + $0xb8] sm:$0xff] %v7291
        %7356 = vst [vmem:[#allocation3 + $0xc0] sm:$0xff] %v7292
        %7357 = vst [vmem:[#allocation3 + $0xc8] sm:$0xff] %v7293
        %7358 = vst [vmem:[#allocation3 + $0xd0] sm:$0xff] %v7294
        %7359 = vst [vmem:[#allocation3 + $0xd8] sm:$0xff] %v7295
        %7360 = vst [vmem:[#allocation3 + $0xe0] sm:$0xff] %v7296
        %7361 = vst [vmem:[#allocation3 + $0xe8] sm:$0xff] %v7297
        %7362 = vst [vmem:[#allocation3 + $0xf0] sm:$0xff] %v7298
        %7363 = vst [vmem:[#allocation3 + $0xf8] sm:$0xff] %v7299
        %7364 = vst [vmem:[#allocation3 + $0x100] sm:$0xff] %v7300
        %7365 = vst [vmem:[#allocation3 + $0x108] sm:$0xff] %v7301
        %7366 = vst [vmem:[#allocation3 + $0x110] sm:$0xff] %v7302
        %7367 = vst [vmem:[#allocation3 + $0x118] sm:$0xff] %v7303
        %7368 = vst [vmem:[#allocation3 + $0x120] sm:$0xff] %v7304
        %7369 = vst [vmem:[#allocation3 + $0x128] sm:$0xff] %v7305
        %7370 = vst [vmem:[#allocation3 + $0x130] sm:$0xff] %v7306
        %7371 = vst [vmem:[#allocation3 + $0x138] sm:$0xff] %v7307
        %7372 = vst [vmem:[#allocation3 + $0x140] sm:$0xff] %v7308
        %7373 = vst [vmem:[#allocation3 + $0x148] sm:$0xff] %v7309
        %7374 = vst [vmem:[#allocation3 + $0x150] sm:$0xff] %v7310
        %7375 = vst [vmem:[#allocation3 + $0x158] sm:$0xff] %v7311
        %7376 = vst [vmem:[#allocation3 + $0x160] sm:$0xff] %v7312
        %7377 = vst [vmem:[#allocation3 + $0x168] sm:$0xff] %v7313
        %7378 = vst [vmem:[#allocation3 + $0x170] sm:$0xff] %v7314
        %7379 = vst [vmem:[#allocation3 + $0x178] sm:$0xff] %v7315
        %7380 = vst [vmem:[#allocation3 + $0x180] sm:$0xff] %v7316
        %7381 = vst [vmem:[#allocation3 + $0x188] sm:$0xff] %v7317
        %7382 = vst [vmem:[#allocation3 + $0x190] sm:$0xff] %v7318
        %7383 = vst [vmem:[#allocation3 + $0x198] sm:$0xff] %v7319
        %7384 = vst [vmem:[#allocation3 + $0x1a0] sm:$0xff] %v7320
        %7385 = vst [vmem:[#allocation3 + $0x1a8] sm:$0xff] %v7321
        %7386 = vst [vmem:[#allocation3 + $0x1b0] sm:$0xff] %v7322
        %7387 = vst [vmem:[#allocation3 + $0x1b8] sm:$0xff] %v7323
        %7388 = vst [vmem:[#allocation3 + $0x1c0] sm:$0xff] %v7324
        %7389 = vst [vmem:[#allocation3 + $0x1c8] sm:$0xff] %v7325
        %7390 = vst [vmem:[#allocation3 + $0x1d0] sm:$0xff] %v7326
        %7391 = vst [vmem:[#allocation3 + $0x1d8] sm:$0xff] %v7327
        %7392 = vst [vmem:[#allocation3 + $0x1e0] sm:$0xff] %v7328
        %7393 = vst [vmem:[#allocation3 + $0x1e8] sm:$0xff] %v7329
        %7394 = vst [vmem:[#allocation3 + $0x1f0] sm:$0xff] %v7330
        %7395 = vst [vmem:[#allocation3 + $0x1f8] sm:$0xff] %v7331
        %v7396 = vld [vmem:[%s5807] sm:$0xe]
        %v7397 = vld [vmem:[%s5807 + $0x4] sm:$0xf]
        %v7398 = vld [vmem:[%s5807 + $0x8] sm:$0x1]
        %v7399 = vld [vmem:[%s5807 + $0xc] sm:$0xe]
        %v7400 = vld [vmem:[%s5807 + $0x10] sm:$0xf]
        %v7401 = vld [vmem:[%s5807 + $0x14] sm:$0x1]
        %v7402 = vld [vmem:[%s5807 + $0x18] sm:$0xe]
        %v7403 = vld [vmem:[%s5807 + $0x1c] sm:$0xf]
        %v7404 = vld [vmem:[%s5807 + $0x20] sm:$0x1]
        %v7405 = vld [vmem:[%s5807 + $0x24] sm:$0xe]
        %v7406 = vld [vmem:[%s5807 + $0x28] sm:$0xf]
        %v7407 = vld [vmem:[%s5807 + $0x2c] sm:$0x1]
        %v7408 = vld [vmem:[%s5807 + $0x30] sm:$0xe]
        %v7409 = vld [vmem:[%s5807 + $0x34] sm:$0xf]
        %v7410 = vld [vmem:[%s5807 + $0x38] sm:$0x1]
        %v7411 = vld [vmem:[%s5807 + $0x3c] sm:$0xe]
        %v7412 = vld [vmem:[%s5807 + $0x40] sm:$0xf]
        %v7413 = vld [vmem:[%s5807 + $0x44] sm:$0x1]
        %v7414 = vld [vmem:[%s5807 + $0x48] sm:$0xe]
        %v7415 = vld [vmem:[%s5807 + $0x4c] sm:$0xf]
        %v7416 = vld [vmem:[%s5807 + $0x50] sm:$0x1]
        %v7417 = vld [vmem:[%s5807 + $0x54] sm:$0xe]
        %v7418 = vld [vmem:[%s5807 + $0x58] sm:$0xf]
        %v7419 = vld [vmem:[%s5807 + $0x5c] sm:$0x1]
        %v7420 = vld [vmem:[%s5807 + $0x60] sm:$0xe]
        %v7421 = vld [vmem:[%s5807 + $0x64] sm:$0xf]
        %v7422 = vld [vmem:[%s5807 + $0x68] sm:$0x1]
        %v7423 = vld [vmem:[%s5807 + $0x6c] sm:$0xe]
        %v7424 = vld [vmem:[%s5807 + $0x70] sm:$0xf]
        %v7425 = vld [vmem:[%s5807 + $0x74] sm:$0x1]
        %v7426 = vld [vmem:[%s5807 + $0x78] sm:$0xe]
        %v7427 = vld [vmem:[%s5807 + $0x7c] sm:$0xf]
        %v7428 = vld [vmem:[%s5807 + $0x80] sm:$0x1]
        %v7429 = vld [vmem:[%s5807 + $0x84] sm:$0xe]
        %v7430 = vld [vmem:[%s5807 + $0x88] sm:$0xf]
        %v7431 = vld [vmem:[%s5807 + $0x8c] sm:$0x1]
        %v7432 = vld [vmem:[%s5807 + $0x90] sm:$0xe]
        %v7433 = vld [vmem:[%s5807 + $0x94] sm:$0xf]
        %v7434 = vld [vmem:[%s5807 + $0x98] sm:$0x1]
        %v7435 = vld [vmem:[%s5807 + $0x9c] sm:$0xe]
        %v7436 = vld [vmem:[%s5807 + $0xa0] sm:$0xf]
        %v7437 = vld [vmem:[%s5807 + $0xa4] sm:$0x1]
        %v7438 = vld [vmem:[%s5807 + $0xa8] sm:$0xe]
        %v7439 = vld [vmem:[%s5807 + $0xac] sm:$0xf]
        %v7440 = vld [vmem:[%s5807 + $0xb0] sm:$0x1]
        %v7441 = vld [vmem:[%s5807 + $0xb4] sm:$0xe]
        %v7442 = vld [vmem:[%s5807 + $0xb8] sm:$0xf]
        %v7443 = vld [vmem:[%s5807 + $0xbc] sm:$0x1]
        %v7492 = vrot.slane %v7396, 5
        %v7493 = vrot.slane %v7492, 4
        %v7494 = vrot.slane %v7397, 5
        %v7495 = vsel %vm2806, %v7493, %v7494
        %v7496 = vrot.slane %v7494, 4
        %v7497 = vrot.slane %v7398, 5
        %v7498 = vsel %vm2806, %v7496, %v7497
        %v7499 = vrot.slane %v7399, 5
        %v7500 = vrot.slane %v7499, 4
        %v7501 = vrot.slane %v7400, 5
        %v7502 = vsel %vm2806, %v7500, %v7501
        %v7503 = vrot.slane %v7501, 4
        %v7504 = vrot.slane %v7401, 5
        %v7505 = vsel %vm2806, %v7503, %v7504
        %v7506 = vrot.slane %v7402, 5
        %v7507 = vrot.slane %v7506, 4
        %v7508 = vrot.slane %v7403, 5
        %v7509 = vsel %vm2806, %v7507, %v7508
        %v7510 = vrot.slane %v7508, 4
        %v7511 = vrot.slane %v7404, 5
        %v7512 = vsel %vm2806, %v7510, %v7511
        %v7513 = vrot.slane %v7405, 5
        %v7514 = vrot.slane %v7513, 4
        %v7515 = vrot.slane %v7406, 5
        %v7516 = vsel %vm2806, %v7514, %v7515
        %v7517 = vrot.slane %v7515, 4
        %v7518 = vrot.slane %v7407, 5
        %v7519 = vsel %vm2806, %v7517, %v7518
        %v7520 = vrot.slane %v7408, 5
        %v7521 = vrot.slane %v7520, 4
        %v7522 = vrot.slane %v7409, 5
        %v7523 = vsel %vm2806, %v7521, %v7522
        %v7524 = vrot.slane %v7522, 4
        %v7525 = vrot.slane %v7410, 5
        %v7526 = vsel %vm2806, %v7524, %v7525
        %v7527 = vrot.slane %v7411, 5
        %v7528 = vrot.slane %v7527, 4
        %v7529 = vrot.slane %v7412, 5
        %v7530 = vsel %vm2806, %v7528, %v7529
        %v7531 = vrot.slane %v7529, 4
        %v7532 = vrot.slane %v7413, 5
        %v7533 = vsel %vm2806, %v7531, %v7532
        %v7534 = vrot.slane %v7414, 5
        %v7535 = vrot.slane %v7534, 4
        %v7536 = vrot.slane %v7415, 5
        %v7537 = vsel %vm2806, %v7535, %v7536
        %v7538 = vrot.slane %v7536, 4
        %v7539 = vrot.slane %v7416, 5
        %v7540 = vsel %vm2806, %v7538, %v7539
        %v7541 = vrot.slane %v7417, 5
        %v7542 = vrot.slane %v7541, 4
        %v7543 = vrot.slane %v7418, 5
        %v7544 = vsel %vm2806, %v7542, %v7543
        %v7545 = vrot.slane %v7543, 4
        %v7546 = vrot.slane %v7419, 5
        %v7547 = vsel %vm2806, %v7545, %v7546
        %v7548 = vrot.slane %v7420, 5
        %v7549 = vrot.slane %v7548, 4
        %v7550 = vrot.slane %v7421, 5
        %v7551 = vsel %vm2806, %v7549, %v7550
        %v7552 = vrot.slane %v7550, 4
        %v7553 = vrot.slane %v7422, 5
        %v7554 = vsel %vm2806, %v7552, %v7553
        %v7555 = vrot.slane %v7423, 5
        %v7556 = vrot.slane %v7555, 4
        %v7557 = vrot.slane %v7424, 5
        %v7558 = vsel %vm2806, %v7556, %v7557
        %v7559 = vrot.slane %v7557, 4
        %v7560 = vrot.slane %v7425, 5
        %v7561 = vsel %vm2806, %v7559, %v7560
        %v7562 = vrot.slane %v7426, 5
        %v7563 = vrot.slane %v7562, 4
        %v7564 = vrot.slane %v7427, 5
        %v7565 = vsel %vm2806, %v7563, %v7564
        %v7566 = vrot.slane %v7564, 4
        %v7567 = vrot.slane %v7428, 5
        %v7568 = vsel %vm2806, %v7566, %v7567
        %v7569 = vrot.slane %v7429, 5
        %v7570 = vrot.slane %v7569, 4
        %v7571 = vrot.slane %v7430, 5
        %v7572 = vsel %vm2806, %v7570, %v7571
        %v7573 = vrot.slane %v7571, 4
        %v7574 = vrot.slane %v7431, 5
        %v7575 = vsel %vm2806, %v7573, %v7574
        %v7576 = vrot.slane %v7432, 5
        %v7577 = vrot.slane %v7576, 4
        %v7578 = vrot.slane %v7433, 5
        %v7579 = vsel %vm2806, %v7577, %v7578
        %v7580 = vrot.slane %v7578, 4
        %v7581 = vrot.slane %v7434, 5
        %v7582 = vsel %vm2806, %v7580, %v7581
        %v7583 = vrot.slane %v7435, 5
        %v7584 = vrot.slane %v7583, 4
        %v7585 = vrot.slane %v7436, 5
        %v7586 = vsel %vm2806, %v7584, %v7585
        %v7587 = vrot.slane %v7585, 4
        %v7588 = vrot.slane %v7437, 5
        %v7589 = vsel %vm2806, %v7587, %v7588
        %v7590 = vrot.slane %v7438, 5
        %v7591 = vrot.slane %v7590, 4
        %v7592 = vrot.slane %v7439, 5
        %v7593 = vsel %vm2806, %v7591, %v7592
        %v7594 = vrot.slane %v7592, 4
        %v7595 = vrot.slane %v7440, 5
        %v7596 = vsel %vm2806, %v7594, %v7595
        %v7597 = vrot.slane %v7441, 5
        %v7598 = vrot.slane %v7597, 4
        %v7599 = vrot.slane %v7442, 5
        %v7600 = vsel %vm2806, %v7598, %v7599
        %v7601 = vrot.slane %v7599, 4
        %v7602 = vrot.slane %v7443, 5
        %v7603 = vsel %vm2806, %v7601, %v7602
        %s7604 = scalar_lea.vmem [#allocation4], 1024
        %v7605 = vld [vmem:[%s7604] sm:$0xff]
        %v7606 = vld [vmem:[%s7604 + $0x8] sm:$0xff]
        %v7607 = vld [vmem:[%s7604 + $0x10] sm:$0xff]
        %v7608 = vld [vmem:[%s7604 + $0x18] sm:$0xff]
        %v7609 = vld [vmem:[%s7604 + $0x20] sm:$0xff]
        %v7610 = vld [vmem:[%s7604 + $0x28] sm:$0xff]
        %v7611 = vld [vmem:[%s7604 + $0x30] sm:$0xff]
        %v7612 = vld [vmem:[%s7604 + $0x38] sm:$0xff]
        %v7613 = vld [vmem:[%s7604 + $0x40] sm:$0xff]
        %v7614 = vld [vmem:[%s7604 + $0x48] sm:$0xff]
        %v7615 = vld [vmem:[%s7604 + $0x50] sm:$0xff]
        %v7616 = vld [vmem:[%s7604 + $0x58] sm:$0xff]
        %v7617 = vld [vmem:[%s7604 + $0x60] sm:$0xff]
        %v7618 = vld [vmem:[%s7604 + $0x68] sm:$0xff]
        %v7619 = vld [vmem:[%s7604 + $0x70] sm:$0xff]
        %v7620 = vld [vmem:[%s7604 + $0x78] sm:$0xff]
        %v7621 = vunpack.c.l.b16 %v7495
        %v7622 = vunpack.c.l.b16 %v7498
        %v7623 = vunpack.c.l.b16 %v7502
        %v7624 = vunpack.c.l.b16 %v7505
        %v7625 = vunpack.c.l.b16 %v7509
        %v7626 = vunpack.c.l.b16 %v7512
        %v7627 = vunpack.c.l.b16 %v7516
        %v7628 = vunpack.c.l.b16 %v7519
        %v7629 = vunpack.c.l.b16 %v7523
        %v7630 = vunpack.c.l.b16 %v7526
        %v7631 = vunpack.c.l.b16 %v7530
        %v7632 = vunpack.c.l.b16 %v7533
        %v7633 = vunpack.c.l.b16 %v7537
        %v7634 = vunpack.c.l.b16 %v7540
        %v7635 = vunpack.c.l.b16 %v7544
        %v7636 = vunpack.c.l.b16 %v7547
        %v7637 = vunpack.c.l.b16 %v7551
        %v7638 = vunpack.c.l.b16 %v7554
        %v7639 = vunpack.c.l.b16 %v7558
        %v7640 = vunpack.c.l.b16 %v7561
        %v7641 = vunpack.c.l.b16 %v7565
        %v7642 = vunpack.c.l.b16 %v7568
        %v7643 = vunpack.c.l.b16 %v7572
        %v7644 = vunpack.c.l.b16 %v7575
        %v7645 = vunpack.c.l.b16 %v7579
        %v7646 = vunpack.c.l.b16 %v7582
        %v7647 = vunpack.c.l.b16 %v7586
        %v7648 = vunpack.c.l.b16 %v7589
        %v7649 = vunpack.c.l.b16 %v7593
        %v7650 = vunpack.c.l.b16 %v7596
        %v7651 = vunpack.c.l.b16 %v7600
        %v7652 = vunpack.c.l.b16 %v7603
        %v7653 = vpack.c.b16 %v7622, %v7621
        %v7654 = vpack.c.b16 %v7624, %v7623
        %v7655 = vpack.c.b16 %v7626, %v7625
        %v7656 = vpack.c.b16 %v7628, %v7627
        %v7657 = vpack.c.b16 %v7630, %v7629
        %v7658 = vpack.c.b16 %v7632, %v7631
        %v7659 = vpack.c.b16 %v7634, %v7633
        %v7660 = vpack.c.b16 %v7636, %v7635
        %v7661 = vpack.c.b16 %v7638, %v7637
        %v7662 = vpack.c.b16 %v7640, %v7639
        %v7663 = vpack.c.b16 %v7642, %v7641
        %v7664 = vpack.c.b16 %v7644, %v7643
        %v7665 = vpack.c.b16 %v7646, %v7645
        %v7666 = vpack.c.b16 %v7648, %v7647
        %v7667 = vpack.c.b16 %v7650, %v7649
        %v7668 = vpack.c.b16 %v7652, %v7651
        %v7701 = vunpack.c.l.b16 %v7605
        %v7702 = vunpack.c.h.b16 %v7605
        %v7703 = vunpack.c.l.b16 %v7606
        %v7704 = vunpack.c.h.b16 %v7606
        %v7705 = vunpack.c.l.b16 %v7607
        %v7706 = vunpack.c.h.b16 %v7607
        %v7707 = vunpack.c.l.b16 %v7608
        %v7708 = vunpack.c.h.b16 %v7608
        %v7709 = vunpack.c.l.b16 %v7609
        %v7710 = vunpack.c.h.b16 %v7609
        %v7711 = vunpack.c.l.b16 %v7610
        %v7712 = vunpack.c.h.b16 %v7610
        %v7713 = vunpack.c.l.b16 %v7611
        %v7714 = vunpack.c.h.b16 %v7611
        %v7715 = vunpack.c.l.b16 %v7612
        %v7716 = vunpack.c.h.b16 %v7612
        %v7717 = vunpack.c.l.b16 %v7613
        %v7718 = vunpack.c.h.b16 %v7613
        %v7719 = vunpack.c.l.b16 %v7614
        %v7720 = vunpack.c.h.b16 %v7614
        %v7721 = vunpack.c.l.b16 %v7615
        %v7722 = vunpack.c.h.b16 %v7615
        %v7723 = vunpack.c.l.b16 %v7616
        %v7724 = vunpack.c.h.b16 %v7616
        %v7725 = vunpack.c.l.b16 %v7617
        %v7726 = vunpack.c.h.b16 %v7617
        %v7727 = vunpack.c.l.b16 %v7618
        %v7728 = vunpack.c.h.b16 %v7618
        %v7729 = vunpack.c.l.b16 %v7619
        %v7730 = vunpack.c.h.b16 %v7619
        %v7731 = vunpack.c.l.b16 %v7620
        %v7732 = vunpack.c.h.b16 %v7620
        %v7733 = vpack.c.b16 %v7703, %v7701
        %v7734 = vpack.c.b16 %v7704, %v7702
        %v7735 = vpack.c.b16 %v7707, %v7705
        %v7736 = vpack.c.b16 %v7708, %v7706
        %v7737 = vpack.c.b16 %v7711, %v7709
        %v7738 = vpack.c.b16 %v7712, %v7710
        %v7739 = vpack.c.b16 %v7715, %v7713
        %v7740 = vpack.c.b16 %v7716, %v7714
        %v7741 = vpack.c.b16 %v7719, %v7717
        %v7742 = vpack.c.b16 %v7720, %v7718
        %v7743 = vpack.c.b16 %v7723, %v7721
        %v7744 = vpack.c.b16 %v7724, %v7722
        %v7745 = vpack.c.b16 %v7727, %v7725
        %v7746 = vpack.c.b16 %v7728, %v7726
        %v7747 = vpack.c.b16 %v7731, %v7729
        %v7748 = vpack.c.b16 %v7732, %v7730
        %7765 = vmatprep.subr.bf16.mxu0 %v7734
        %7766 = vmatpush1.bf16.msra.mxu0 %v7733
        %7767 = vmatprep.subr.bf16.mxu0 %v7736
        %7768 = vmatpush1.bf16.msra.mxu0 %v7735
        %7769 = vmatprep.subr.bf16.mxu0 %v7738
        %7770 = vmatpush1.bf16.msra.mxu0 %v7737
        %7771 = vmatprep.subr.bf16.mxu0 %v7740
        %7772 = vmatpush1.bf16.msra.mxu0 %v7739
        %7773 = vmatprep.subr.bf16.mxu0 %v7742
        %7774 = vmatpush1.bf16.msra.mxu0 %v7741
        %7775 = vmatprep.subr.bf16.mxu0 %v7744
        %7776 = vmatpush1.bf16.msra.mxu0 %v7743
        %7777 = vmatprep.subr.bf16.mxu0 %v7746
        %7778 = vmatpush1.bf16.msra.mxu0 %v7745
        %7779 = vmatprep.subr.bf16.mxu0 %v7748
        %7780 = vmatpush1.bf16.msra.mxu0 %v7747
        %7781 = vmatprep.subr.bf16.mxu0 0
        %7782 = vmatpush1.bf16.msra.mxu0 0
        %7783 = vmatprep.subr.bf16.mxu0 0
        %7784 = vmatpush1.bf16.msra.mxu0 0
        %7785 = vmatprep.subr.bf16.mxu0 0
        %7786 = vmatpush1.bf16.msra.mxu0 0
        %7787 = vmatprep.subr.bf16.mxu0 0
        %7788 = vmatpush1.bf16.msra.mxu0 0
        %7789 = vmatprep.subr.bf16.mxu0 0
        %7790 = vmatpush1.bf16.msra.mxu0 0
        %7791 = vmatprep.subr.bf16.mxu0 0
        %7792 = vmatpush1.bf16.msra.mxu0 0
        %7793 = vmatprep.subr.bf16.mxu0 0
        %7794 = vmatpush1.bf16.msra.mxu0 0
        %7795 = vmatprep.subr.bf16.mxu0 0
        %7796 = vmatpush1.bf16.msra.mxu0 0
        %7797 = vmatprep.mubr.bf16.mxu0 0
        %7798 = vmatmul.mubr.bf16.gmra.mrb[0].mxu0 %v7653
        %v7799 = vpop.f32.mrb[0].mxu0
        %v7800 = vadd.f32 0.0, %v7799
        %v7801 = vpop.f32.mrb[0].mxu0
        %v7802 = vadd.f32 0.0, %v7801
        %v7803 = vpop.f32.mrb[0].mxu0
        %v7804 = vadd.f32 0.0, %v7803
        %v7805 = vpop.f32.mrb[0].mxu0
        %v7806 = vadd.f32 0.0, %v7805
        %7807 = vmatprep.mubr.bf16.mxu0 0
        %7808 = vmatmul.mubr.bf16.gmra.mrb[0].mxu0 %v7654
        %v7809 = vpop.f32.mrb[0].mxu0
        %v7810 = vadd.f32 0.0, %v7809
        %v7811 = vpop.f32.mrb[0].mxu0
        %v7812 = vadd.f32 0.0, %v7811
        %v7813 = vpop.f32.mrb[0].mxu0
        %v7814 = vadd.f32 0.0, %v7813
        %v7815 = vpop.f32.mrb[0].mxu0
        %v7816 = vadd.f32 0.0, %v7815
        %7817 = vmatprep.mubr.bf16.mxu0 0
        %7818 = vmatmul.mubr.bf16.gmra.mrb[0].mxu0 %v7655
        %v7819 = vpop.f32.mrb[0].mxu0
        %v7820 = vadd.f32 0.0, %v7819
        %v7821 = vpop.f32.mrb[0].mxu0
        %v7822 = vadd.f32 0.0, %v7821
        %v7823 = vpop.f32.mrb[0].mxu0
        %v7824 = vadd.f32 0.0, %v7823
        %v7825 = vpop.f32.mrb[0].mxu0
        %v7826 = vadd.f32 0.0, %v7825
        %7827 = vmatprep.mubr.bf16.mxu0 0
        %7828 = vmatmul.mubr.bf16.gmra.mrb[0].mxu0 %v7656
        %v7829 = vpop.f32.mrb[0].mxu0
        %v7830 = vadd.f32 0.0, %v7829
        %v7831 = vpop.f32.mrb[0].mxu0
        %v7832 = vadd.f32 0.0, %v7831
        %v7833 = vpop.f32.mrb[0].mxu0
        %v7834 = vadd.f32 0.0, %v7833
        %v7835 = vpop.f32.mrb[0].mxu0
        %v7836 = vadd.f32 0.0, %v7835
        %7837 = vmatprep.mubr.bf16.mxu0 0
        %7838 = vmatmul.mubr.bf16.gmra.mrb[0].mxu0 %v7657
        %v7839 = vpop.f32.mrb[0].mxu0
        %v7840 = vadd.f32 0.0, %v7839
        %v7841 = vpop.f32.mrb[0].mxu0
        %v7842 = vadd.f32 0.0, %v7841
        %v7843 = vpop.f32.mrb[0].mxu0
        %v7844 = vadd.f32 0.0, %v7843
        %v7845 = vpop.f32.mrb[0].mxu0
        %v7846 = vadd.f32 0.0, %v7845
        %7847 = vmatprep.mubr.bf16.mxu0 0
        %7848 = vmatmul.mubr.bf16.gmra.mrb[0].mxu0 %v7658
        %v7849 = vpop.f32.mrb[0].mxu0
        %v7850 = vadd.f32 0.0, %v7849
        %v7851 = vpop.f32.mrb[0].mxu0
        %v7852 = vadd.f32 0.0, %v7851
        %v7853 = vpop.f32.mrb[0].mxu0
        %v7854 = vadd.f32 0.0, %v7853
        %v7855 = vpop.f32.mrb[0].mxu0
        %v7856 = vadd.f32 0.0, %v7855
        %7857 = vmatprep.mubr.bf16.mxu0 0
        %7858 = vmatmul.mubr.bf16.gmra.mrb[0].mxu0 %v7659
        %v7859 = vpop.f32.mrb[0].mxu0
        %v7860 = vadd.f32 0.0, %v7859
        %v7861 = vpop.f32.mrb[0].mxu0
        %v7862 = vadd.f32 0.0, %v7861
        %v7863 = vpop.f32.mrb[0].mxu0
        %v7864 = vadd.f32 0.0, %v7863
        %v7865 = vpop.f32.mrb[0].mxu0
        %v7866 = vadd.f32 0.0, %v7865
        %7867 = vmatprep.mubr.bf16.mxu0 0
        %7868 = vmatmul.mubr.bf16.gmra.mrb[0].mxu0 %v7660
        %v7869 = vpop.f32.mrb[0].mxu0
        %v7870 = vadd.f32 0.0, %v7869
        %v7871 = vpop.f32.mrb[0].mxu0
        %v7872 = vadd.f32 0.0, %v7871
        %v7873 = vpop.f32.mrb[0].mxu0
        %v7874 = vadd.f32 0.0, %v7873
        %v7875 = vpop.f32.mrb[0].mxu0
        %v7876 = vadd.f32 0.0, %v7875
        %7877 = vmatprep.mubr.bf16.mxu0 0
        %7878 = vmatmul.mubr.bf16.gmra.mrb[0].mxu0 %v7661
        %v7879 = vpop.f32.mrb[0].mxu0
        %v7880 = vadd.f32 0.0, %v7879
        %v7881 = vpop.f32.mrb[0].mxu0
        %v7882 = vadd.f32 0.0, %v7881
        %v7883 = vpop.f32.mrb[0].mxu0
        %v7884 = vadd.f32 0.0, %v7883
        %v7885 = vpop.f32.mrb[0].mxu0
        %v7886 = vadd.f32 0.0, %v7885
        %7887 = vmatprep.mubr.bf16.mxu0 0
        %7888 = vmatmul.mubr.bf16.gmra.mrb[0].mxu0 %v7662
        %v7889 = vpop.f32.mrb[0].mxu0
        %v7890 = vadd.f32 0.0, %v7889
        %v7891 = vpop.f32.mrb[0].mxu0
        %v7892 = vadd.f32 0.0, %v7891
        %v7893 = vpop.f32.mrb[0].mxu0
        %v7894 = vadd.f32 0.0, %v7893
        %v7895 = vpop.f32.mrb[0].mxu0
        %v7896 = vadd.f32 0.0, %v7895
        %7897 = vmatprep.mubr.bf16.mxu0 0
        %7898 = vmatmul.mubr.bf16.gmra.mrb[0].mxu0 %v7663
        %v7899 = vpop.f32.mrb[0].mxu0
        %v7900 = vadd.f32 0.0, %v7899
        %v7901 = vpop.f32.mrb[0].mxu0
        %v7902 = vadd.f32 0.0, %v7901
        %v7903 = vpop.f32.mrb[0].mxu0
        %v7904 = vadd.f32 0.0, %v7903
        %v7905 = vpop.f32.mrb[0].mxu0
        %v7906 = vadd.f32 0.0, %v7905
        %7907 = vmatprep.mubr.bf16.mxu0 0
        %7908 = vmatmul.mubr.bf16.gmra.mrb[0].mxu0 %v7664
        %v7909 = vpop.f32.mrb[0].mxu0
        %v7910 = vadd.f32 0.0, %v7909
        %v7911 = vpop.f32.mrb[0].mxu0
        %v7912 = vadd.f32 0.0, %v7911
        %v7913 = vpop.f32.mrb[0].mxu0
        %v7914 = vadd.f32 0.0, %v7913
        %v7915 = vpop.f32.mrb[0].mxu0
        %v7916 = vadd.f32 0.0, %v7915
        %7917 = vmatprep.mubr.bf16.mxu0 0
        %7918 = vmatmul.mubr.bf16.gmra.mrb[0].mxu0 %v7665
        %v7919 = vpop.f32.mrb[0].mxu0
        %v7920 = vadd.f32 0.0, %v7919
        %v7921 = vpop.f32.mrb[0].mxu0
        %v7922 = vadd.f32 0.0, %v7921
        %v7923 = vpop.f32.mrb[0].mxu0
        %v7924 = vadd.f32 0.0, %v7923
        %v7925 = vpop.f32.mrb[0].mxu0
        %v7926 = vadd.f32 0.0, %v7925
        %7927 = vmatprep.mubr.bf16.mxu0 0
        %7928 = vmatmul.mubr.bf16.gmra.mrb[0].mxu0 %v7666
        %v7929 = vpop.f32.mrb[0].mxu0
        %v7930 = vadd.f32 0.0, %v7929
        %v7931 = vpop.f32.mrb[0].mxu0
        %v7932 = vadd.f32 0.0, %v7931
        %v7933 = vpop.f32.mrb[0].mxu0
        %v7934 = vadd.f32 0.0, %v7933
        %v7935 = vpop.f32.mrb[0].mxu0
        %v7936 = vadd.f32 0.0, %v7935
        %7937 = vmatprep.mubr.bf16.mxu0 0
        %7938 = vmatmul.mubr.bf16.gmra.mrb[0].mxu0 %v7667
        %v7939 = vpop.f32.mrb[0].mxu0
        %v7940 = vadd.f32 0.0, %v7939
        %v7941 = vpop.f32.mrb[0].mxu0
        %v7942 = vadd.f32 0.0, %v7941
        %v7943 = vpop.f32.mrb[0].mxu0
        %v7944 = vadd.f32 0.0, %v7943
        %v7945 = vpop.f32.mrb[0].mxu0
        %v7946 = vadd.f32 0.0, %v7945
        %7947 = vmatprep.mubr.bf16.mxu0 0
        %7948 = vmatmul.mubr.bf16.gmra.mrb[0].mxu0 %v7668
        %v7949 = vpop.f32.mrb[0].mxu0
        %v7950 = vadd.f32 0.0, %v7949
        %v7951 = vpop.f32.mrb[0].mxu0
        %v7952 = vadd.f32 0.0, %v7951
        %v7953 = vpop.f32.mrb[0].mxu0
        %v7954 = vadd.f32 0.0, %v7953
        %v7955 = vpop.f32.mrb[0].mxu0
        %v7956 = vadd.f32 0.0, %v7955
        %7957 = vdwg.mxu0
        %v7958 = vld [vmem:[#allocation3] sm:$0xff]
        %v7959 = vld [vmem:[#allocation3 + $0x8] sm:$0xff]
        %v7960 = vld [vmem:[#allocation3 + $0x10] sm:$0xff]
        %v7961 = vld [vmem:[#allocation3 + $0x18] sm:$0xff]
        %v7962 = vld [vmem:[#allocation3 + $0x20] sm:$0xff]
        %v7963 = vld [vmem:[#allocation3 + $0x28] sm:$0xff]
        %v7964 = vld [vmem:[#allocation3 + $0x30] sm:$0xff]
        %v7965 = vld [vmem:[#allocation3 + $0x38] sm:$0xff]
        %v7966 = vld [vmem:[#allocation3 + $0x40] sm:$0xff]
        %v7967 = vld [vmem:[#allocation3 + $0x48] sm:$0xff]
        %v7968 = vld [vmem:[#allocation3 + $0x50] sm:$0xff]
        %v7969 = vld [vmem:[#allocation3 + $0x58] sm:$0xff]
        %v7970 = vld [vmem:[#allocation3 + $0x60] sm:$0xff]
        %v7971 = vld [vmem:[#allocation3 + $0x68] sm:$0xff]
        %v7972 = vld [vmem:[#allocation3 + $0x70] sm:$0xff]
        %v7973 = vld [vmem:[#allocation3 + $0x78] sm:$0xff]
        %v7974 = vld [vmem:[#allocation3 + $0x80] sm:$0xff]
        %v7975 = vld [vmem:[#allocation3 + $0x88] sm:$0xff]
        %v7976 = vld [vmem:[#allocation3 + $0x90] sm:$0xff]
        %v7977 = vld [vmem:[#allocation3 + $0x98] sm:$0xff]
        %v7978 = vld [vmem:[#allocation3 + $0xa0] sm:$0xff]
        %v7979 = vld [vmem:[#allocation3 + $0xa8] sm:$0xff]
        %v7980 = vld [vmem:[#allocation3 + $0xb0] sm:$0xff]
        %v7981 = vld [vmem:[#allocation3 + $0xb8] sm:$0xff]
        %v7982 = vld [vmem:[#allocation3 + $0xc0] sm:$0xff]
        %v7983 = vld [vmem:[#allocation3 + $0xc8] sm:$0xff]
        %v7984 = vld [vmem:[#allocation3 + $0xd0] sm:$0xff]
        %v7985 = vld [vmem:[#allocation3 + $0xd8] sm:$0xff]
        %v7986 = vld [vmem:[#allocation3 + $0xe0] sm:$0xff]
        %v7987 = vld [vmem:[#allocation3 + $0xe8] sm:$0xff]
        %v7988 = vld [vmem:[#allocation3 + $0xf0] sm:$0xff]
        %v7989 = vld [vmem:[#allocation3 + $0xf8] sm:$0xff]
        %v7990 = vld [vmem:[#allocation3 + $0x100] sm:$0xff]
        %v7991 = vld [vmem:[#allocation3 + $0x108] sm:$0xff]
        %v7992 = vld [vmem:[#allocation3 + $0x110] sm:$0xff]
        %v7993 = vld [vmem:[#allocation3 + $0x118] sm:$0xff]
        %v7994 = vld [vmem:[#allocation3 + $0x120] sm:$0xff]
        %v7995 = vld [vmem:[#allocation3 + $0x128] sm:$0xff]
        %v7996 = vld [vmem:[#allocation3 + $0x130] sm:$0xff]
        %v7997 = vld [vmem:[#allocation3 + $0x138] sm:$0xff]
        %v7998 = vld [vmem:[#allocation3 + $0x140] sm:$0xff]
        %v7999 = vld [vmem:[#allocation3 + $0x148] sm:$0xff]
        %v8000 = vld [vmem:[#allocation3 + $0x150] sm:$0xff]
        %v8001 = vld [vmem:[#allocation3 + $0x158] sm:$0xff]
        %v8002 = vld [vmem:[#allocation3 + $0x160] sm:$0xff]
        %v8003 = vld [vmem:[#allocation3 + $0x168] sm:$0xff]
        %v8004 = vld [vmem:[#allocation3 + $0x170] sm:$0xff]
        %v8005 = vld [vmem:[#allocation3 + $0x178] sm:$0xff]
        %v8006 = vld [vmem:[#allocation3 + $0x180] sm:$0xff]
        %v8007 = vld [vmem:[#allocation3 + $0x188] sm:$0xff]
        %v8008 = vld [vmem:[#allocation3 + $0x190] sm:$0xff]
        %v8009 = vld [vmem:[#allocation3 + $0x198] sm:$0xff]
        %v8010 = vld [vmem:[#allocation3 + $0x1a0] sm:$0xff]
        %v8011 = vld [vmem:[#allocation3 + $0x1a8] sm:$0xff]
        %v8012 = vld [vmem:[#allocation3 + $0x1b0] sm:$0xff]
        %v8013 = vld [vmem:[#allocation3 + $0x1b8] sm:$0xff]
        %v8014 = vld [vmem:[#allocation3 + $0x1c0] sm:$0xff]
        %v8015 = vld [vmem:[#allocation3 + $0x1c8] sm:$0xff]
        %v8016 = vld [vmem:[#allocation3 + $0x1d0] sm:$0xff]
        %v8017 = vld [vmem:[#allocation3 + $0x1d8] sm:$0xff]
        %v8018 = vld [vmem:[#allocation3 + $0x1e0] sm:$0xff]
        %v8019 = vld [vmem:[#allocation3 + $0x1e8] sm:$0xff]
        %v8020 = vld [vmem:[#allocation3 + $0x1f0] sm:$0xff]
        %v8021 = vld [vmem:[#allocation3 + $0x1f8] sm:$0xff]
        %v8022 = vadd.f32 %v7958, %v7800
        %v8023 = vadd.f32 %v7959, %v7802
        %v8024 = vadd.f32 %v7960, %v7804
        %v8025 = vadd.f32 %v7961, %v7806
        %v8026 = vadd.f32 %v7962, %v7810
        %v8027 = vadd.f32 %v7963, %v7812
        %v8028 = vadd.f32 %v7964, %v7814
        %v8029 = vadd.f32 %v7965, %v7816
        %v8030 = vadd.f32 %v7966, %v7820
        %v8031 = vadd.f32 %v7967, %v7822
        %v8032 = vadd.f32 %v7968, %v7824
        %v8033 = vadd.f32 %v7969, %v7826
        %v8034 = vadd.f32 %v7970, %v7830
        %v8035 = vadd.f32 %v7971, %v7832
        %v8036 = vadd.f32 %v7972, %v7834
        %v8037 = vadd.f32 %v7973, %v7836
        %v8038 = vadd.f32 %v7974, %v7840
        %v8039 = vadd.f32 %v7975, %v7842
        %v8040 = vadd.f32 %v7976, %v7844
        %v8041 = vadd.f32 %v7977, %v7846
        %v8042 = vadd.f32 %v7978, %v7850
        %v8043 = vadd.f32 %v7979, %v7852
        %v8044 = vadd.f32 %v7980, %v7854
        %v8045 = vadd.f32 %v7981, %v7856
        %v8046 = vadd.f32 %v7982, %v7860
        %v8047 = vadd.f32 %v7983, %v7862
        %v8048 = vadd.f32 %v7984, %v7864
        %v8049 = vadd.f32 %v7985, %v7866
        %v8050 = vadd.f32 %v7986, %v7870
        %v8051 = vadd.f32 %v7987, %v7872
        %v8052 = vadd.f32 %v7988, %v7874
        %v8053 = vadd.f32 %v7989, %v7876
        %v8054 = vadd.f32 %v7990, %v7880
        %v8055 = vadd.f32 %v7991, %v7882
        %v8056 = vadd.f32 %v7992, %v7884
        %v8057 = vadd.f32 %v7993, %v7886
        %v8058 = vadd.f32 %v7994, %v7890
        %v8059 = vadd.f32 %v7995, %v7892
        %v8060 = vadd.f32 %v7996, %v7894
        %v8061 = vadd.f32 %v7997, %v7896
        %v8062 = vadd.f32 %v7998, %v7900
        %v8063 = vadd.f32 %v7999, %v7902
        %v8064 = vadd.f32 %v8000, %v7904
        %v8065 = vadd.f32 %v8001, %v7906
        %v8066 = vadd.f32 %v8002, %v7910
        %v8067 = vadd.f32 %v8003, %v7912
        %v8068 = vadd.f32 %v8004, %v7914
        %v8069 = vadd.f32 %v8005, %v7916
        %v8070 = vadd.f32 %v8006, %v7920
        %v8071 = vadd.f32 %v8007, %v7922
        %v8072 = vadd.f32 %v8008, %v7924
        %v8073 = vadd.f32 %v8009, %v7926
        %v8074 = vadd.f32 %v8010, %v7930
        %v8075 = vadd.f32 %v8011, %v7932
        %v8076 = vadd.f32 %v8012, %v7934
        %v8077 = vadd.f32 %v8013, %v7936
        %v8078 = vadd.f32 %v8014, %v7940
        %v8079 = vadd.f32 %v8015, %v7942
        %v8080 = vadd.f32 %v8016, %v7944
        %v8081 = vadd.f32 %v8017, %v7946
        %v8082 = vadd.f32 %v8018, %v7950
        %v8083 = vadd.f32 %v8019, %v7952
        %v8084 = vadd.f32 %v8020, %v7954
        %v8085 = vadd.f32 %v8021, %v7956
        %8086 = vst [vmem:[#allocation3] sm:$0xff] %v8022
        %8087 = vst [vmem:[#allocation3 + $0x8] sm:$0xff] %v8023
        %8088 = vst [vmem:[#allocation3 + $0x10] sm:$0xff] %v8024
        %8089 = vst [vmem:[#allocation3 + $0x18] sm:$0xff] %v8025
        %8090 = vst [vmem:[#allocation3 + $0x20] sm:$0xff] %v8026
        %8091 = vst [vmem:[#allocation3 + $0x28] sm:$0xff] %v8027
        %8092 = vst [vmem:[#allocation3 + $0x30] sm:$0xff] %v8028
        %8093 = vst [vmem:[#allocation3 + $0x38] sm:$0xff] %v8029
        %8094 = vst [vmem:[#allocation3 + $0x40] sm:$0xff] %v8030
        %8095 = vst [vmem:[#allocation3 + $0x48] sm:$0xff] %v8031
        %8096 = vst [vmem:[#allocation3 + $0x50] sm:$0xff] %v8032
        %8097 = vst [vmem:[#allocation3 + $0x58] sm:$0xff] %v8033
        %8098 = vst [vmem:[#allocation3 + $0x60] sm:$0xff] %v8034
        %8099 = vst [vmem:[#allocation3 + $0x68] sm:$0xff] %v8035
        %8100 = vst [vmem:[#allocation3 + $0x70] sm:$0xff] %v8036
        %8101 = vst [vmem:[#allocation3 + $0x78] sm:$0xff] %v8037
        %8102 = vst [vmem:[#allocation3 + $0x80] sm:$0xff] %v8038
        %8103 = vst [vmem:[#allocation3 + $0x88] sm:$0xff] %v8039
        %8104 = vst [vmem:[#allocation3 + $0x90] sm:$0xff] %v8040
        %8105 = vst [vmem:[#allocation3 + $0x98] sm:$0xff] %v8041
        %8106 = vst [vmem:[#allocation3 + $0xa0] sm:$0xff] %v8042
        %8107 = vst [vmem:[#allocation3 + $0xa8] sm:$0xff] %v8043
        %8108 = vst [vmem:[#allocation3 + $0xb0] sm:$0xff] %v8044
        %8109 = vst [vmem:[#allocation3 + $0xb8] sm:$0xff] %v8045
        %8110 = vst [vmem:[#allocation3 + $0xc0] sm:$0xff] %v8046
        %8111 = vst [vmem:[#allocation3 + $0xc8] sm:$0xff] %v8047
        %8112 = vst [vmem:[#allocation3 + $0xd0] sm:$0xff] %v8048
        %8113 = vst [vmem:[#allocation3 + $0xd8] sm:$0xff] %v8049
        %8114 = vst [vmem:[#allocation3 + $0xe0] sm:$0xff] %v8050
        %8115 = vst [vmem:[#allocation3 + $0xe8] sm:$0xff] %v8051
        %8116 = vst [vmem:[#allocation3 + $0xf0] sm:$0xff] %v8052
        %8117 = vst [vmem:[#allocation3 + $0xf8] sm:$0xff] %v8053
        %8118 = vst [vmem:[#allocation3 + $0x100] sm:$0xff] %v8054
        %8119 = vst [vmem:[#allocation3 + $0x108] sm:$0xff] %v8055
        %8120 = vst [vmem:[#allocation3 + $0x110] sm:$0xff] %v8056
        %8121 = vst [vmem:[#allocation3 + $0x118] sm:$0xff] %v8057
        %8122 = vst [vmem:[#allocation3 + $0x120] sm:$0xff] %v8058
        %8123 = vst [vmem:[#allocation3 + $0x128] sm:$0xff] %v8059
        %8124 = vst [vmem:[#allocation3 + $0x130] sm:$0xff] %v8060
        %8125 = vst [vmem:[#allocation3 + $0x138] sm:$0xff] %v8061
        %8126 = vst [vmem:[#allocation3 + $0x140] sm:$0xff] %v8062
        %8127 = vst [vmem:[#allocation3 + $0x148] sm:$0xff] %v8063
        %8128 = vst [vmem:[#allocation3 + $0x150] sm:$0xff] %v8064
        %8129 = vst [vmem:[#allocation3 + $0x158] sm:$0xff] %v8065
        %8130 = vst [vmem:[#allocation3 + $0x160] sm:$0xff] %v8066
        %8131 = vst [vmem:[#allocation3 + $0x168] sm:$0xff] %v8067
        %8132 = vst [vmem:[#allocation3 + $0x170] sm:$0xff] %v8068
        %8133 = vst [vmem:[#allocation3 + $0x178] sm:$0xff] %v8069
        %8134 = vst [vmem:[#allocation3 + $0x180] sm:$0xff] %v8070
        %8135 = vst [vmem:[#allocation3 + $0x188] sm:$0xff] %v8071
        %8136 = vst [vmem:[#allocation3 + $0x190] sm:$0xff] %v8072
        %8137 = vst [vmem:[#allocation3 + $0x198] sm:$0xff] %v8073
        %8138 = vst [vmem:[#allocation3 + $0x1a0] sm:$0xff] %v8074
        %8139 = vst [vmem:[#allocation3 + $0x1a8] sm:$0xff] %v8075
        %8140 = vst [vmem:[#allocation3 + $0x1b0] sm:$0xff] %v8076
        %8141 = vst [vmem:[#allocation3 + $0x1b8] sm:$0xff] %v8077
        %8142 = vst [vmem:[#allocation3 + $0x1c0] sm:$0xff] %v8078
        %8143 = vst [vmem:[#allocation3 + $0x1c8] sm:$0xff] %v8079
        %8144 = vst [vmem:[#allocation3 + $0x1d0] sm:$0xff] %v8080
        %8145 = vst [vmem:[#allocation3 + $0x1d8] sm:$0xff] %v8081
        %8146 = vst [vmem:[#allocation3 + $0x1e0] sm:$0xff] %v8082
        %8147 = vst [vmem:[#allocation3 + $0x1e8] sm:$0xff] %v8083
        %8148 = vst [vmem:[#allocation3 + $0x1f0] sm:$0xff] %v8084
        %8149 = vst [vmem:[#allocation3 + $0x1f8] sm:$0xff] %v8085
        %v8150 = vld [vmem:[#allocation3] sm:$0xff]
        %v8151 = vld [vmem:[#allocation3 + $0x8] sm:$0xff]
        %v8152 = vld [vmem:[#allocation3 + $0x10] sm:$0xff]
        %v8153 = vld [vmem:[#allocation3 + $0x18] sm:$0xff]
        %v8154 = vld [vmem:[#allocation3 + $0x20] sm:$0xff]
        %v8155 = vld [vmem:[#allocation3 + $0x28] sm:$0xff]
        %v8156 = vld [vmem:[#allocation3 + $0x30] sm:$0xff]
        %v8157 = vld [vmem:[#allocation3 + $0x38] sm:$0xff]
        %v8158 = vld [vmem:[#allocation3 + $0x40] sm:$0xff]
        %v8159 = vld [vmem:[#allocation3 + $0x48] sm:$0xff]
        %v8160 = vld [vmem:[#allocation3 + $0x50] sm:$0xff]
        %v8161 = vld [vmem:[#allocation3 + $0x58] sm:$0xff]
        %v8162 = vld [vmem:[#allocation3 + $0x60] sm:$0xff]
        %v8163 = vld [vmem:[#allocation3 + $0x68] sm:$0xff]
        %v8164 = vld [vmem:[#allocation3 + $0x70] sm:$0xff]
        %v8165 = vld [vmem:[#allocation3 + $0x78] sm:$0xff]
        %v8166 = vld [vmem:[#allocation3 + $0x80] sm:$0xff]
        %v8167 = vld [vmem:[#allocation3 + $0x88] sm:$0xff]
        %v8168 = vld [vmem:[#allocation3 + $0x90] sm:$0xff]
        %v8169 = vld [vmem:[#allocation3 + $0x98] sm:$0xff]
        %v8170 = vld [vmem:[#allocation3 + $0xa0] sm:$0xff]
        %v8171 = vld [vmem:[#allocation3 + $0xa8] sm:$0xff]
        %v8172 = vld [vmem:[#allocation3 + $0xb0] sm:$0xff]
        %v8173 = vld [vmem:[#allocation3 + $0xb8] sm:$0xff]
        %v8174 = vld [vmem:[#allocation3 + $0xc0] sm:$0xff]
        %v8175 = vld [vmem:[#allocation3 + $0xc8] sm:$0xff]
        %v8176 = vld [vmem:[#allocation3 + $0xd0] sm:$0xff]
        %v8177 = vld [vmem:[#allocation3 + $0xd8] sm:$0xff]
        %v8178 = vld [vmem:[#allocation3 + $0xe0] sm:$0xff]
        %v8179 = vld [vmem:[#allocation3 + $0xe8] sm:$0xff]
        %v8180 = vld [vmem:[#allocation3 + $0xf0] sm:$0xff]
        %v8181 = vld [vmem:[#allocation3 + $0xf8] sm:$0xff]
        %v8182 = vld [vmem:[#allocation3 + $0x100] sm:$0xff]
        %v8183 = vld [vmem:[#allocation3 + $0x108] sm:$0xff]
        %v8184 = vld [vmem:[#allocation3 + $0x110] sm:$0xff]
        %v8185 = vld [vmem:[#allocation3 + $0x118] sm:$0xff]
        %v8186 = vld [vmem:[#allocation3 + $0x120] sm:$0xff]
        %v8187 = vld [vmem:[#allocation3 + $0x128] sm:$0xff]
        %v8188 = vld [vmem:[#allocation3 + $0x130] sm:$0xff]
        %v8189 = vld [vmem:[#allocation3 + $0x138] sm:$0xff]
        %v8190 = vld [vmem:[#allocation3 + $0x140] sm:$0xff]
        %v8191 = vld [vmem:[#allocation3 + $0x148] sm:$0xff]
        %v8192 = vld [vmem:[#allocation3 + $0x150] sm:$0xff]
        %v8193 = vld [vmem:[#allocation3 + $0x158] sm:$0xff]
        %v8194 = vld [vmem:[#allocation3 + $0x160] sm:$0xff]
        %v8195 = vld [vmem:[#allocation3 + $0x168] sm:$0xff]
        %v8196 = vld [vmem:[#allocation3 + $0x170] sm:$0xff]
        %v8197 = vld [vmem:[#allocation3 + $0x178] sm:$0xff]
        %v8198 = vld [vmem:[#allocation3 + $0x180] sm:$0xff]
        %v8199 = vld [vmem:[#allocation3 + $0x188] sm:$0xff]
        %v8200 = vld [vmem:[#allocation3 + $0x190] sm:$0xff]
        %v8201 = vld [vmem:[#allocation3 + $0x198] sm:$0xff]
        %v8202 = vld [vmem:[#allocation3 + $0x1a0] sm:$0xff]
        %v8203 = vld [vmem:[#allocation3 + $0x1a8] sm:$0xff]
        %v8204 = vld [vmem:[#allocation3 + $0x1b0] sm:$0xff]
        %v8205 = vld [vmem:[#allocation3 + $0x1b8] sm:$0xff]
        %v8206 = vld [vmem:[#allocation3 + $0x1c0] sm:$0xff]
        %v8207 = vld [vmem:[#allocation3 + $0x1c8] sm:$0xff]
        %v8208 = vld [vmem:[#allocation3 + $0x1d0] sm:$0xff]
        %v8209 = vld [vmem:[#allocation3 + $0x1d8] sm:$0xff]
        %v8210 = vld [vmem:[#allocation3 + $0x1e0] sm:$0xff]
        %v8211 = vld [vmem:[#allocation3 + $0x1e8] sm:$0xff]
        %v8212 = vld [vmem:[#allocation3 + $0x1f0] sm:$0xff]
        %v8213 = vld [vmem:[#allocation3 + $0x1f8] sm:$0xff]
        %v8214 = vld [vmem:[%s4] sm:$0x3]
        %v8216 = vlaneseq
        %v8217 = vshrl.u32 %v8216, 7
        %v8218 = vsub.s32 0, %v8217
        %v8219 = vrot.slane %v8214, %v8218
        %v8220 = vlaneseq
        %v8221 = vshrl.u32 %v8220, 7
        %v8222 = vsub.s32 1, %v8221
        %v8223 = vrot.slane %v8214, %v8222
        %v8226 = vadd.f32 %v8150, %v8219
        %v8227 = vadd.f32 %v8151, %v8223
        %v8228 = vadd.f32 %v8152, %v8219
        %v8229 = vadd.f32 %v8153, %v8223
        %v8230 = vadd.f32 %v8154, %v8219
        %v8231 = vadd.f32 %v8155, %v8223
        %v8232 = vadd.f32 %v8156, %v8219
        %v8233 = vadd.f32 %v8157, %v8223
        %v8234 = vadd.f32 %v8158, %v8219
        %v8235 = vadd.f32 %v8159, %v8223
        %v8236 = vadd.f32 %v8160, %v8219
        %v8237 = vadd.f32 %v8161, %v8223
        %v8238 = vadd.f32 %v8162, %v8219
        %v8239 = vadd.f32 %v8163, %v8223
        %v8240 = vadd.f32 %v8164, %v8219
        %v8241 = vadd.f32 %v8165, %v8223
        %v8242 = vadd.f32 %v8166, %v8219
        %v8243 = vadd.f32 %v8167, %v8223
        %v8244 = vadd.f32 %v8168, %v8219
        %v8245 = vadd.f32 %v8169, %v8223
        %v8246 = vadd.f32 %v8170, %v8219
        %v8247 = vadd.f32 %v8171, %v8223
        %v8248 = vadd.f32 %v8172, %v8219
        %v8249 = vadd.f32 %v8173, %v8223
        %v8250 = vadd.f32 %v8174, %v8219
        %v8251 = vadd.f32 %v8175, %v8223
        %v8252 = vadd.f32 %v8176, %v8219
        %v8253 = vadd.f32 %v8177, %v8223
        %v8254 = vadd.f32 %v8178, %v8219
        %v8255 = vadd.f32 %v8179, %v8223
        %v8256 = vadd.f32 %v8180, %v8219
        %v8257 = vadd.f32 %v8181, %v8223
        %v8258 = vadd.f32 %v8182, %v8219
        %v8259 = vadd.f32 %v8183, %v8223
        %v8260 = vadd.f32 %v8184, %v8219
        %v8261 = vadd.f32 %v8185, %v8223
        %v8262 = vadd.f32 %v8186, %v8219
        %v8263 = vadd.f32 %v8187, %v8223
        %v8264 = vadd.f32 %v8188, %v8219
        %v8265 = vadd.f32 %v8189, %v8223
        %v8266 = vadd.f32 %v8190, %v8219
        %v8267 = vadd.f32 %v8191, %v8223
        %v8268 = vadd.f32 %v8192, %v8219
        %v8269 = vadd.f32 %v8193, %v8223
        %v8270 = vadd.f32 %v8194, %v8219
        %v8271 = vadd.f32 %v8195, %v8223
        %v8272 = vadd.f32 %v8196, %v8219
        %v8273 = vadd.f32 %v8197, %v8223
        %v8274 = vadd.f32 %v8198, %v8219
        %v8275 = vadd.f32 %v8199, %v8223
        %v8276 = vadd.f32 %v8200, %v8219
        %v8277 = vadd.f32 %v8201, %v8223
        %v8278 = vadd.f32 %v8202, %v8219
        %v8279 = vadd.f32 %v8203, %v8223
        %v8280 = vadd.f32 %v8204, %v8219
        %v8281 = vadd.f32 %v8205, %v8223
        %v8282 = vadd.f32 %v8206, %v8219
        %v8283 = vadd.f32 %v8207, %v8223
        %v8284 = vadd.f32 %v8208, %v8219
        %v8285 = vadd.f32 %v8209, %v8223
        %v8286 = vadd.f32 %v8210, %v8219
        %v8287 = vadd.f32 %v8211, %v8223
        %v8288 = vadd.f32 %v8212, %v8219
        %v8289 = vadd.f32 %v8213, %v8223
        %v8290 = vmax.f32 %v8226, 0.0
        %v8291 = vmax.f32 %v8227, 0.0
        %v8292 = vmax.f32 %v8228, 0.0
        %v8293 = vmax.f32 %v8229, 0.0
        %v8294 = vmax.f32 %v8230, 0.0
        %v8295 = vmax.f32 %v8231, 0.0
        %v8296 = vmax.f32 %v8232, 0.0
        %v8297 = vmax.f32 %v8233, 0.0
        %v8298 = vmax.f32 %v8234, 0.0
        %v8299 = vmax.f32 %v8235, 0.0
        %v8300 = vmax.f32 %v8236, 0.0
        %v8301 = vmax.f32 %v8237, 0.0
        %v8302 = vmax.f32 %v8238, 0.0
        %v8303 = vmax.f32 %v8239, 0.0
        %v8304 = vmax.f32 %v8240, 0.0
        %v8305 = vmax.f32 %v8241, 0.0
        %v8306 = vmax.f32 %v8242, 0.0
        %v8307 = vmax.f32 %v8243, 0.0
        %v8308 = vmax.f32 %v8244, 0.0
        %v8309 = vmax.f32 %v8245, 0.0
        %v8310 = vmax.f32 %v8246, 0.0
        %v8311 = vmax.f32 %v8247, 0.0
        %v8312 = vmax.f32 %v8248, 0.0
        %v8313 = vmax.f32 %v8249, 0.0
        %v8314 = vmax.f32 %v8250, 0.0
        %v8315 = vmax.f32 %v8251, 0.0
        %v8316 = vmax.f32 %v8252, 0.0
        %v8317 = vmax.f32 %v8253, 0.0
        %v8318 = vmax.f32 %v8254, 0.0
        %v8319 = vmax.f32 %v8255, 0.0
        %v8320 = vmax.f32 %v8256, 0.0
        %v8321 = vmax.f32 %v8257, 0.0
        %v8322 = vmax.f32 %v8258, 0.0
        %v8323 = vmax.f32 %v8259, 0.0
        %v8324 = vmax.f32 %v8260, 0.0
        %v8325 = vmax.f32 %v8261, 0.0
        %v8326 = vmax.f32 %v8262, 0.0
        %v8327 = vmax.f32 %v8263, 0.0
        %v8328 = vmax.f32 %v8264, 0.0
        %v8329 = vmax.f32 %v8265, 0.0
        %v8330 = vmax.f32 %v8266, 0.0
        %v8331 = vmax.f32 %v8267, 0.0
        %v8332 = vmax.f32 %v8268, 0.0
        %v8333 = vmax.f32 %v8269, 0.0
        %v8334 = vmax.f32 %v8270, 0.0
        %v8335 = vmax.f32 %v8271, 0.0
        %v8336 = vmax.f32 %v8272, 0.0
        %v8337 = vmax.f32 %v8273, 0.0
        %v8338 = vmax.f32 %v8274, 0.0
        %v8339 = vmax.f32 %v8275, 0.0
        %v8340 = vmax.f32 %v8276, 0.0
        %v8341 = vmax.f32 %v8277, 0.0
        %v8342 = vmax.f32 %v8278, 0.0
        %v8343 = vmax.f32 %v8279, 0.0
        %v8344 = vmax.f32 %v8280, 0.0
        %v8345 = vmax.f32 %v8281, 0.0
        %v8346 = vmax.f32 %v8282, 0.0
        %v8347 = vmax.f32 %v8283, 0.0
        %v8348 = vmax.f32 %v8284, 0.0
        %v8349 = vmax.f32 %v8285, 0.0
        %v8350 = vmax.f32 %v8286, 0.0
        %v8351 = vmax.f32 %v8287, 0.0
        %v8352 = vmax.f32 %v8288, 0.0
        %v8353 = vmax.f32 %v8289, 0.0
        %v8354 = vpack.c.bf16 %v8292, %v8290
        %v8355 = vpack.c.bf16 %v8293, %v8291
        %v8356 = vpack.c.bf16 %v8296, %v8294
        %v8357 = vpack.c.bf16 %v8297, %v8295
        %v8358 = vpack.c.bf16 %v8300, %v8298
        %v8359 = vpack.c.bf16 %v8301, %v8299
        %v8360 = vpack.c.bf16 %v8304, %v8302
        %v8361 = vpack.c.bf16 %v8305, %v8303
        %v8362 = vpack.c.bf16 %v8308, %v8306
        %v8363 = vpack.c.bf16 %v8309, %v8307
        %v8364 = vpack.c.bf16 %v8312, %v8310
        %v8365 = vpack.c.bf16 %v8313, %v8311
        %v8366 = vpack.c.bf16 %v8316, %v8314
        %v8367 = vpack.c.bf16 %v8317, %v8315
        %v8368 = vpack.c.bf16 %v8320, %v8318
        %v8369 = vpack.c.bf16 %v8321, %v8319
        %v8370 = vpack.c.bf16 %v8324, %v8322
        %v8371 = vpack.c.bf16 %v8325, %v8323
        %v8372 = vpack.c.bf16 %v8328, %v8326
        %v8373 = vpack.c.bf16 %v8329, %v8327
        %v8374 = vpack.c.bf16 %v8332, %v8330
        %v8375 = vpack.c.bf16 %v8333, %v8331
        %v8376 = vpack.c.bf16 %v8336, %v8334
        %v8377 = vpack.c.bf16 %v8337, %v8335
        %v8378 = vpack.c.bf16 %v8340, %v8338
        %v8379 = vpack.c.bf16 %v8341, %v8339
        %v8380 = vpack.c.bf16 %v8344, %v8342
        %v8381 = vpack.c.bf16 %v8345, %v8343
        %v8382 = vpack.c.bf16 %v8348, %v8346
        %v8383 = vpack.c.bf16 %v8349, %v8347
        %v8384 = vpack.c.bf16 %v8352, %v8350
        %v8385 = vpack.c.bf16 %v8353, %v8351
        %v8418 = vunpack.c.l.b16 %v8354
        %v8419 = vunpack.c.l.b16 %v8355
        %v8420 = vunpack.c.h.b16 %v8354
        %v8421 = vunpack.c.h.b16 %v8355
        %v8422 = vunpack.c.l.b16 %v8356
        %v8423 = vunpack.c.l.b16 %v8357
        %v8424 = vunpack.c.h.b16 %v8356
        %v8425 = vunpack.c.h.b16 %v8357
        %v8426 = vunpack.c.l.b16 %v8358
        %v8427 = vunpack.c.l.b16 %v8359
        %v8428 = vunpack.c.h.b16 %v8358
        %v8429 = vunpack.c.h.b16 %v8359
        %v8430 = vunpack.c.l.b16 %v8360
        %v8431 = vunpack.c.l.b16 %v8361
        %v8432 = vunpack.c.h.b16 %v8360
        %v8433 = vunpack.c.h.b16 %v8361
        %v8434 = vunpack.c.l.b16 %v8362
        %v8435 = vunpack.c.l.b16 %v8363
        %v8436 = vunpack.c.h.b16 %v8362
        %v8437 = vunpack.c.h.b16 %v8363
        %v8438 = vunpack.c.l.b16 %v8364
        %v8439 = vunpack.c.l.b16 %v8365
        %v8440 = vunpack.c.h.b16 %v8364
        %v8441 = vunpack.c.h.b16 %v8365
        %v8442 = vunpack.c.l.b16 %v8366
        %v8443 = vunpack.c.l.b16 %v8367
        %v8444 = vunpack.c.h.b16 %v8366
        %v8445 = vunpack.c.h.b16 %v8367
        %v8446 = vunpack.c.l.b16 %v8368
        %v8447 = vunpack.c.l.b16 %v8369
        %v8448 = vunpack.c.h.b16 %v8368
        %v8449 = vunpack.c.h.b16 %v8369
        %v8450 = vunpack.c.l.b16 %v8370
        %v8451 = vunpack.c.l.b16 %v8371
        %v8452 = vunpack.c.h.b16 %v8370
        %v8453 = vunpack.c.h.b16 %v8371
        %v8454 = vunpack.c.l.b16 %v8372
        %v8455 = vunpack.c.l.b16 %v8373
        %v8456 = vunpack.c.h.b16 %v8372
        %v8457 = vunpack.c.h.b16 %v8373
        %v8458 = vunpack.c.l.b16 %v8374
        %v8459 = vunpack.c.l.b16 %v8375
        %v8460 = vunpack.c.h.b16 %v8374
        %v8461 = vunpack.c.h.b16 %v8375
        %v8462 = vunpack.c.l.b16 %v8376
        %v8463 = vunpack.c.l.b16 %v8377
        %v8464 = vunpack.c.h.b16 %v8376
        %v8465 = vunpack.c.h.b16 %v8377
        %v8466 = vunpack.c.l.b16 %v8378
        %v8467 = vunpack.c.l.b16 %v8379
        %v8468 = vunpack.c.h.b16 %v8378
        %v8469 = vunpack.c.h.b16 %v8379
        %v8470 = vunpack.c.l.b16 %v8380
        %v8471 = vunpack.c.l.b16 %v8381
        %v8472 = vunpack.c.h.b16 %v8380
        %v8473 = vunpack.c.h.b16 %v8381
        %v8474 = vunpack.c.l.b16 %v8382
        %v8475 = vunpack.c.l.b16 %v8383
        %v8476 = vunpack.c.h.b16 %v8382
        %v8477 = vunpack.c.h.b16 %v8383
        %v8478 = vunpack.c.l.b16 %v8384
        %v8479 = vunpack.c.l.b16 %v8385
        %v8480 = vunpack.c.h.b16 %v8384
        %v8481 = vunpack.c.h.b16 %v8385
        %v8482 = vpack.c.b16 %v8419, %v8418
        %v8483 = vpack.c.b16 %v8421, %v8420
        %v8484 = vpack.c.b16 %v8423, %v8422
        %v8485 = vpack.c.b16 %v8425, %v8424
        %v8486 = vpack.c.b16 %v8427, %v8426
        %v8487 = vpack.c.b16 %v8429, %v8428
        %v8488 = vpack.c.b16 %v8431, %v8430
        %v8489 = vpack.c.b16 %v8433, %v8432
        %v8490 = vpack.c.b16 %v8435, %v8434
        %v8491 = vpack.c.b16 %v8437, %v8436
        %v8492 = vpack.c.b16 %v8439, %v8438
        %v8493 = vpack.c.b16 %v8441, %v8440
        %v8494 = vpack.c.b16 %v8443, %v8442
        %v8495 = vpack.c.b16 %v8445, %v8444
        %v8496 = vpack.c.b16 %v8447, %v8446
        %v8497 = vpack.c.b16 %v8449, %v8448
        %v8498 = vpack.c.b16 %v8451, %v8450
        %v8499 = vpack.c.b16 %v8453, %v8452
        %v8500 = vpack.c.b16 %v8455, %v8454
        %v8501 = vpack.c.b16 %v8457, %v8456
        %v8502 = vpack.c.b16 %v8459, %v8458
        %v8503 = vpack.c.b16 %v8461, %v8460
        %v8504 = vpack.c.b16 %v8463, %v8462
        %v8505 = vpack.c.b16 %v8465, %v8464
        %v8506 = vpack.c.b16 %v8467, %v8466
        %v8507 = vpack.c.b16 %v8469, %v8468
        %v8508 = vpack.c.b16 %v8471, %v8470
        %v8509 = vpack.c.b16 %v8473, %v8472
        %v8510 = vpack.c.b16 %v8475, %v8474
        %v8511 = vpack.c.b16 %v8477, %v8476
        %v8512 = vpack.c.b16 %v8479, %v8478
        %v8513 = vpack.c.b16 %v8481, %v8480
        %8546 = vst [vmem:[%s232] sm:$0xff] %v8482
        %8547 = vst [vmem:[%s232 + $0x8] sm:$0xff] %v8483
        %8548 = vst [vmem:[%s232 + $0x10] sm:$0xff] %v8484
        %8549 = vst [vmem:[%s232 + $0x18] sm:$0xff] %v8485
        %8550 = vst [vmem:[%s232 + $0x20] sm:$0xff] %v8486
        %8551 = vst [vmem:[%s232 + $0x28] sm:$0xff] %v8487
        %8552 = vst [vmem:[%s232 + $0x30] sm:$0xff] %v8488
        %8553 = vst [vmem:[%s232 + $0x38] sm:$0xff] %v8489
        %8554 = vst [vmem:[%s232 + $0x40] sm:$0xff] %v8490
        %8555 = vst [vmem:[%s232 + $0x48] sm:$0xff] %v8491
        %8556 = vst [vmem:[%s232 + $0x50] sm:$0xff] %v8492
        %8557 = vst [vmem:[%s232 + $0x58] sm:$0xff] %v8493
        %8558 = vst [vmem:[%s232 + $0x60] sm:$0xff] %v8494
        %8559 = vst [vmem:[%s232 + $0x68] sm:$0xff] %v8495
        %8560 = vst [vmem:[%s232 + $0x70] sm:$0xff] %v8496
        %8561 = vst [vmem:[%s232 + $0x78] sm:$0xff] %v8497
        %8562 = vst [vmem:[%s232 + $0x80] sm:$0xff] %v8498
        %8563 = vst [vmem:[%s232 + $0x88] sm:$0xff] %v8499
        %8564 = vst [vmem:[%s232 + $0x90] sm:$0xff] %v8500
        %8565 = vst [vmem:[%s232 + $0x98] sm:$0xff] %v8501
        %8566 = vst [vmem:[%s232 + $0xa0] sm:$0xff] %v8502
        %8567 = vst [vmem:[%s232 + $0xa8] sm:$0xff] %v8503
        %8568 = vst [vmem:[%s232 + $0xb0] sm:$0xff] %v8504
        %8569 = vst [vmem:[%s232 + $0xb8] sm:$0xff] %v8505
        %8570 = vst [vmem:[%s232 + $0xc0] sm:$0xff] %v8506
        %8571 = vst [vmem:[%s232 + $0xc8] sm:$0xff] %v8507
        %8572 = vst [vmem:[%s232 + $0xd0] sm:$0xff] %v8508
        %8573 = vst [vmem:[%s232 + $0xd8] sm:$0xff] %v8509
        %8574 = vst [vmem:[%s232 + $0xe0] sm:$0xff] %v8510
        %8575 = vst [vmem:[%s232 + $0xe8] sm:$0xff] %v8511
        %8576 = vst [vmem:[%s232 + $0xf0] sm:$0xff] %v8512
        %8577 = vst [vmem:[%s232 + $0xf8] sm:$0xff] %v8513
        %s8578 = sand.u32 %s138, 1
        %s8579 = scalar_lea.sflag [#allocation6], %s8578
        %s8580 = sand.u32 %s138, 1
        %s8581 = smul.addr %s8580, 256
        %s8582 = scalar_lea.vmem [#allocation7], %s8581
        // Predicated region
        $region45: #{tpu_custom_call.1} parent=39 // pred_check
          %p8583 = pneg %p148
        $region46: #{tpu_custom_call.1} parent=39 // pred_check_branch
          %8585 = sbr.rel (%p8583) target = $region48
        $region47: #{tpu_custom_call.1} parent=39 // pred_region
          %s8587 = ssub.s32 4096, 4096
          %8588 = vsyncadd %s8579, %s8587
          %s8589 = smul.addr %s20, 64
          %s8590 = smul.addr %s8589, 64
          %s8591 = scalar_lea.hbm %s5, %s8590
          %s8592 = sshll.u32 %s8582, 4
          %s8593 = int_to_ptr.vmem [resolvable:$true] %s8592
          %8598 = dma.vmem_to_hbm [thread:$0]  %s8593, 4096, %s8591, %s8579, 128, 128, 8
        $region48: #{tpu_custom_call.1} parent=39 // pred_fallthru
          _
      $region40: #{tpu_custom_call.1} parent=5 // pred_fallthru
        _
      %p8599 = scmp.le.s32.totalorder 2, %s15
      // Predicated region
      $region49: #{tpu_custom_call.1} parent=5 // pred_check
        %p8600 = pneg %p8599
      $region50: #{tpu_custom_call.1} parent=5 // pred_check_branch
        %8602 = sbr.rel (%p8600) target = $region52
      $region51: #{tpu_custom_call.1} parent=5 // pred_region
        %s8603 = ssub.s32 %s15, 2
        // Predicated region
        $region53: #{tpu_custom_call.1} parent=51 // pred_check
          %p8604 = pneg %p154
        $region54: #{tpu_custom_call.1} parent=51 // pred_check_branch
          %8606 = sbr.rel (%p8604) target = $region56
        $region55: #{tpu_custom_call.1} parent=51 // pred_region
          %s8607 = sand.u32 %s139, 1
          %s8608 = scalar_lea.sflag [#allocation6], %s8607
          %s8609 = sand.u32 %s139, 1
          %s8610 = smul.addr %s8609, 256
          %s8611 = scalar_lea.vmem [#allocation7], %s8610
          %8612 = dma.done %s8608, 4096
        $region56: #{tpu_custom_call.1} parent=51 // pred_fallthru
          _
      $region52: #{tpu_custom_call.1} parent=5 // pred_fallthru
        _
    $region6: #{tpu_custom_call.1} parent=1 // loop_footer
      %s19 = sadd.s32 1, %s15
    $region7: #{tpu_custom_call.1} parent=1 // loop_footer_branch
      %14 = sbr.rel target = $region3
    $region8: #{tpu_custom_call.1} parent=1 // loop_exit
      _
    %8613 = vsyncpa [#allocation5], 1
    %s8614 = scalar_lea.sflag [#allocation5], 1
    %8615 = vsyncpa %s8614, 1
    %8616 = vsyncpa [#allocation6], 1
    %s8617 = scalar_lea.sflag [#allocation6], 1
    %8618 = vsyncpa %s8617, 1

</llo_original>
